<compile_context>
chip_gen: v5e
topology: v5e:2x2
jax: 0.10.0
libtpu: 0.0.40
codegen_flags: <defaults>
</compile_context>

<pallas_src>
import math

import jax
import jax.numpy as jnp
from jax.experimental import pallas as pl
from jax.experimental.pallas import tpu as pltpu


# ----------------------------------------------------------------------------
# Kernel: one stacked x-dot, one dot per produced hidden state, fused heads
# ----------------------------------------------------------------------------
def _make_fused_kernel(n_layers, widths):
    """Kernel ref order: xt, wx_all, b_all, whcons_0..whcons_{L-2}, out.

    xt        : (d, tile_n)            x^T, points on lanes
    wx_all    : (R, d)                 all layers' x-facing weights, stacked
    b_all     : (R, 1)                 all layers' folded biases
    whcons_j  : (sum widths[j+1:], widths[j])   consumers of hidden j, stacked
    out       : (widths[-1], tile_n)   last layer rows (padded to 8)

    widths[l] is the fused output width of layer l (last one sublane-padded);
    R = sum(widths). All row offsets are multiples of 8 -> aligned slices.
    """
    offs = [0]
    for w in widths:
        offs.append(offs[-1] + w)

    def kernel(*refs):
        xt = refs[0][...]                        # (d, T)
        wx_all = refs[1][...]                    # (R, d)
        b_all = refs[2][...]                     # (R, 1)
        wh_refs = refs[3:-1]
        out_ref = refs[-1]

        # single stacked matmul against the streamed input tile + bias add
        z_all = jnp.dot(wx_all, xt, preferred_element_type=jnp.float32) + b_all
        acc = [z_all[offs[l]:offs[l + 1], :] for l in range(n_layers)]

        # one matmul per produced hidden state (stream h_j exactly once)
        for j in range(n_layers - 1):
            hj = jnp.sin(acc[j])                 # SIREN activation
            zz = jnp.dot(wh_refs[j][...], hj,
                         preferred_element_type=jnp.float32)
            off = 0
            for l in range(j + 1, n_layers):     # scatter into consumers
                acc[l] = acc[l] + zz[off:off + widths[l], :]
                off += widths[l]

        out_ref[...] = acc[n_layers - 1]         # scale/loc already folded in

    return kernel


# ----------------------------------------------------------------------------
# Parameter packing: split dense weights, fold affines, fuse heads, stack
# ----------------------------------------------------------------------------
def pack_mrepinn_params(params, n_out_pad):
    """Returns (wx_all (R,d), b_all (R,1), [whcons_j], widths)."""
    s = params["in_scale"].reshape(-1).astype(jnp.float32)   # (d,)
    t = params["in_shift"].reshape(-1).astype(jnp.float32)   # (d,)
    d = s.shape[0]
    n_layers = len(params["u_wb"])
    # head fusion requires identical layer structure in both PINNs
    assert len(params["m_wb"]) == n_layers, "u/mu PINNs must share n_layers"
    for (wu, _), (wm, _) in zip(params["u_wb"], params["m_wb"]):
        assert wu.shape[0] == wm.shape[0] or True  # widths may differ; chunks align per-PINN

    def split_fold(wb, out_scale, out_loc):
        layers = []
        prev_widths = []
        for l, (w, b) in enumerate(wb):
            wt = w.T.astype(jnp.float32)        # (out, in_total)
            bt = b.reshape(-1).astype(jnp.float32)
            out_dim = wt.shape[0]
            wx = wt[:, :d]                      # x-facing chunk
            whs = []
            off = d
            for hw in prev_widths:              # dense skip chunks
                whs.append(wt[:, off:off + hw])
                off += hw
            # fold input affine: W @ (s*x + t) = (W*s) @ x + W @ t
            wx_f = wx * s[None, :]
            b_f = bt + wx @ t
            if l == n_layers - 1:               # fold output scale / loc
                sc = out_scale.reshape(-1).astype(jnp.float32)
                lc = out_loc.reshape(-1).astype(jnp.float32)
                wx_f = wx_f * sc[:, None]
                whs = [wh * sc[:, None] for wh in whs]
                b_f = b_f * sc + lc
            layers.append((wx_f, b_f, whs))
            if l < n_layers - 1:
                prev_widths.append(out_dim)
        return layers

    u_layers = split_fold(params["u_wb"], params["u_scale"], params["u_loc"])
    m_layers = split_fold(params["m_wb"], params["m_scale"], params["m_loc"])

    # fuse heads layer-by-layer (block-diagonal hidden chunks)
    fused = []
    widths = []
    for (wxu, bu, whsu), (wxm, bm, whsm) in zip(u_layers, m_layers):
        wx = jnp.concatenate([wxu, wxm], axis=0)
        b = jnp.concatenate([bu, bm], axis=0)
        whs = []
        for whu, whm in zip(whsu, whsm):
            ru, cu = whu.shape
            rm, cm = whm.shape
            wh = jnp.zeros((ru + rm, cu + cm), jnp.float32)
            wh = wh.at[:ru, :cu].set(whu)
            wh = wh.at[ru:, cu:].set(whm)
            whs.append(wh)
        fused.append((wx, b, whs))
        widths.append(wx.shape[0])

    # pad fused output-layer rows so the output store is fully sublane-dense
    pad_rows = n_out_pad - widths[-1]
    if pad_rows:
        wx, b, whs = fused[-1]
        fused[-1] = (jnp.pad(wx, ((0, pad_rows), (0, 0))),
                     jnp.pad(b, ((0, pad_rows),)),
                     [jnp.pad(wh, ((0, pad_rows), (0, 0))) for wh in whs])
        widths[-1] = n_out_pad

    # stack all x-facing weights / biases -> one matmul per tile
    wx_all = jnp.concatenate([f[0] for f in fused], axis=0)           # (R, d)
    b_all = jnp.concatenate([f[1] for f in fused], axis=0)[:, None]   # (R, 1)

    # for each produced hidden j, stack all consuming layers' chunks
    whcons = []
    for j in range(n_layers - 1):
        chunks = [fused[l][2][j] for l in range(j + 1, n_layers)]
        whcons.append(jnp.concatenate(chunks, axis=0))

    return wx_all, b_all, whcons, widths


# ----------------------------------------------------------------------------
# Wrapper
# ----------------------------------------------------------------------------
def mrepinn_forward(x, params, *, tile_n=None):
    """Full MREPINN forward. Returns (u_pred, mu_pred, a_pred)."""
    n_pts, d = x.shape
    n_layers = len(params["u_wb"])
    n_u = params["u_scale"].shape[-1]
    n_mu = params["n_mu"]
    n_mu_a = params["m_scale"].shape[-1]
    n_out = n_u + n_mu_a
    n_out_pad = -(-n_out // 8) * 8              # sublane-dense output rows

    if tile_n is None:
        # Largest multiple-of-128 tile (<= 4096) keeping >= 8 grid steps so the
        # BlockSpec pipeline overlaps DMA with compute on both v7x TCs; on
        # single-TC v5e/v6e this still leaves plenty of steps for pipelining.
        tile_n = 4096
        while tile_n > 128 and pl.cdiv(n_pts, tile_n) < 8:
            tile_n //= 2
    assert tile_n % 128 == 0

    wx_all, b_all, whcons, widths = pack_mrepinn_params(params, n_out_pad)

    # transposed, padded input: points on lanes (no ones row; bias added in-kernel)
    n_pad = pl.cdiv(n_pts, tile_n) * tile_n
    xt = x.T.astype(jnp.float32)
    if n_pad != n_pts:
        xt = jnp.pad(xt, ((0, 0), (0, n_pad - n_pts)))

    const_params = [wx_all, b_all] + whcons

    def const_spec(arr):
        # full small-parameter block, same block every step (DMA'd once)
        return pl.BlockSpec(arr.shape, lambda i: (0, 0))

    in_specs = [pl.BlockSpec((d, tile_n), lambda i: (0, i))]
    in_specs += [const_spec(a) for a in const_params]
    out_spec = pl.BlockSpec((n_out_pad, tile_n), lambda i: (0, i))

    out_t = pl.pallas_call(
        _make_fused_kernel(n_layers, widths),
        out_shape=jax.ShapeDtypeStruct((n_out_pad, n_pad), jnp.float32),
        grid=(n_pad // tile_n,),
        in_specs=in_specs,
        out_specs=out_spec,
        compiler_params=pltpu.CompilerParams(
            dimension_semantics=("parallel",)),
    )(xt, *const_params)

    out = out_t[:n_out, :n_pts].T                # (N, n_u + n_mu + n_a)
    u_pred = out[:, :n_u]
    mu_pred = out[:, n_u:n_u + n_mu]
    a_pred = out[:, n_u + n_mu:]
    return u_pred, mu_pred, a_pred


# ----------------------------------------------------------------------------
# Parameter construction (deterministic, SIREN init as in PINN.init_weights)
# ----------------------------------------------------------------------------
def init_pinn_params(key, n_input, n_output, n_layers, n_hidden,
                     dense=True, c=6.0):
    wb = []
    n_in = n_input
    for i in range(n_layers - 1):
        key, kw, kb = jax.random.split(key, 3)
        w_std = (1.0 / n_in) if i == 0 else math.sqrt(c / n_in)
        w = jax.random.uniform(kw, (n_in, n_hidden), jnp.float32, -w_std, w_std)
        b_std = 1.0 / math.sqrt(n_in)            # PyTorch default bias range
        b = jax.random.uniform(kb, (1, n_hidden), jnp.float32, -b_std, b_std)
        wb.append((w, b))
        n_in = n_in + n_hidden if dense else n_hidden
    key, kw, kb = jax.random.split(key, 3)
    w_std = math.sqrt(c / n_in) if n_layers > 1 else 1.0 / n_in
    w = jax.random.uniform(kw, (n_in, n_output), jnp.float32, -w_std, w_std)
    b_std = 1.0 / math.sqrt(n_in)
    b = jax.random.uniform(kb, (1, n_output), jnp.float32, -b_std, b_std)
    wb.append((w, b))
    return wb


def build_mrepinn_params(key, *, d=3, n_u=3, n_mu=1, n_a=2,
                         n_layers=3, n_hidden=32, omega=3.0):
    keys = jax.random.split(key, 10)

    x_center = jax.random.normal(keys[0], (d,), jnp.float32) * 0.1
    x_extent = jnp.abs(jax.random.normal(keys[1], (d,), jnp.float32)) + 1.0
    u_loc = jax.random.normal(keys[2], (n_u,), jnp.float32)
    u_scale = jnp.abs(jax.random.normal(keys[3], (n_u,), jnp.float32)) + 0.5
    mu_loc = jax.random.normal(keys[4], (n_mu,), jnp.float32)
    mu_scale = jnp.abs(jax.random.normal(keys[5], (n_mu,), jnp.float32)) + 0.5
    a_loc = jax.random.normal(keys[6], (n_a,), jnp.float32)
    a_scale = jnp.abs(jax.random.normal(keys[7], (n_a,), jnp.float32)) + 0.5

    # x = (x - center) / extent * omega  -> affine scale / shift
    in_scale = (omega / x_extent).reshape(1, d)
    in_shift = (-x_center * omega / x_extent).reshape(1, d)

    u_wb = init_pinn_params(keys[8], d, n_u, n_layers, n_hidden)
    m_wb = init_pinn_params(keys[9], d, n_mu + n_a, n_layers, n_hidden)

    return dict(
        in_scale=in_scale,
        in_shift=in_shift,
        u_wb=u_wb,
        u_scale=u_scale.reshape(1, n_u),
        u_loc=u_loc.reshape(1, n_u),
        m_wb=m_wb,
        m_scale=jnp.concatenate([mu_scale, a_scale]).reshape(1, n_mu + n_a),
        m_loc=jnp.concatenate([mu_loc, a_loc]).reshape(1, n_mu + n_a),
        n_mu=n_mu,
    )


# ----------------------------------------------------------------------------
# Pure-JAX reference (mirrors the PyTorch forward exactly, no folding/fusion)
# ----------------------------------------------------------------------------
def mrepinn_reference(x, p):
    xn = x * p["in_scale"] + p["in_shift"]

    def pinn(x, wb):
        for w, b in wb[:-1]:
            y = jnp.sin(x @ w + b)           # all activations are sin ('ss')
            x = jnp.concatenate([x, y], axis=-1)
        w, b = wb[-1]
        return x @ w + b

    u = pinn(xn, p["u_wb"]) * p["u_scale"] + p["u_loc"]
    mu_a = pinn(xn, p["m_wb"]) * p["m_scale"] + p["m_loc"]
    n_mu = p["n_mu"]
    return u, mu_a[:, :n_mu], mu_a[:, n_mu:]


# ----------------------------------------------------------------------------
if __name__ == "__main__":
    key = jax.random.PRNGKey(0)
    k_param, k_x1, k_x2 = jax.random.split(key, 3)

    D = 3
    params = build_mrepinn_params(k_param, d=D, n_u=3, n_mu=1, n_a=2,
                                  n_layers=3, n_hidden=32, omega=3.0)

    # main run: tile_n auto-picked (512 here -> grid of 8, both v7x TCs pipelined)
    N = 4096
    x = jax.random.normal(k_x1, (N, D), jnp.float32)
    u_pred, mu_pred, a_pred = mrepinn_forward(x, params)
    jax.block_until_ready((u_pred, mu_pred, a_pred))

    u_ref, mu_ref, a_ref = mrepinn_reference(x, params)
    assert u_pred.shape == (N, 3) and mu_pred.shape == (N, 1) and a_pred.shape == (N, 2)
    assert jnp.allclose(u_pred, u_ref, atol=2e-4, rtol=2e-4)
    assert jnp.allclose(mu_pred, mu_ref, atol=2e-4, rtol=2e-4)
    assert jnp.allclose(a_pred, a_ref, atol=2e-4, rtol=2e-4)

    # ragged N exercises the padding path (300 -> padded to 512, grid of 2)
    N2 = 300
    x2 = jax.random.normal(k_x2, (N2, D), jnp.float32)
    outs2 = mrepinn_forward(x2, params, tile_n=256)
    jax.block_until_ready(outs2)
    refs2 = mrepinn_reference(x2, params)
    for o, r in zip(outs2, refs2):
        assert o.shape == r.shape
        assert jnp.allclose(o, r, atol=2e-4, rtol=2e-4)

    print("KERNEL_OK")
</pallas_src>

<mosaic_0001>
module attributes {stable_mosaic.version = 11 : i64} {
  func.func @kernel(%arg0: i32, %arg1: memref<3x512xf32, #tpu.memory_space<vmem>>, %arg2: memref<136x3xf32, #tpu.memory_space<vmem>>, %arg3: memref<136x1xf32, #tpu.memory_space<vmem>>, %arg4: memref<72x64xf32, #tpu.memory_space<vmem>>, %arg5: memref<8x64xf32, #tpu.memory_space<vmem>>, %arg6: memref<8x512xf32, #tpu.memory_space<vmem>>) attributes {dimension_semantics = [#tpu.dimension_semantics<parallel>], iteration_bounds = array<i64: 8>, scalar_prefetch = 0 : i64, scratch_operands = 0 : i64, tpu.core_type = #tpu.core_type<tc>, window_params = [{transform_indices = @transform_0, window_bounds = array<i64: 3, 512>}, {pipeline_mode = #tpu.pipeline_mode<synchronous>, transform_indices = @transform_1, window_bounds = array<i64: 136, 3>}, {pipeline_mode = #tpu.pipeline_mode<synchronous>, transform_indices = @transform_2, window_bounds = array<i64: 136, 1>}, {pipeline_mode = #tpu.pipeline_mode<synchronous>, transform_indices = @transform_3, window_bounds = array<i64: 72, 64>}, {pipeline_mode = #tpu.pipeline_mode<synchronous>, transform_indices = @transform_4, window_bounds = array<i64: 8, 64>}, {transform_indices = @transform_5, window_bounds = array<i64: 8, 512>}]} {
    %c0 = arith.constant 0 : index
    %c0_0 = arith.constant 0 : index
    %0 = vector.load %arg1[%c0, %c0_0] : memref<3x512xf32, #tpu.memory_space<vmem>>, vector<3x512xf32>
    %c0_1 = arith.constant 0 : index
    %c0_2 = arith.constant 0 : index
    %1 = vector.load %arg2[%c0_1, %c0_2] : memref<136x3xf32, #tpu.memory_space<vmem>>, vector<136x3xf32>
    %c0_3 = arith.constant 0 : index
    %c0_4 = arith.constant 0 : index
    %2 = vector.load %arg3[%c0_3, %c0_4] : memref<136x1xf32, #tpu.memory_space<vmem>>, vector<136x1xf32>
    %cst = arith.constant dense<0.000000e+00> : vector<136x512xf32>
    %3 = tpu.matmul %1, %0, %cst {dimension_numbers = #tpu.dot_dimension_numbers<[1], [0], [0], [1], [0, 0, 1, 1], [], []>} : vector<136x3xf32>, vector<3x512xf32>, vector<136x512xf32> -> vector<136x512xf32>
    %4 = vector.broadcast %2 : vector<136x1xf32> to vector<136x512xf32>
    %5 = arith.addf %3, %4 : vector<136x512xf32>
    %6 = vector.extract_strided_slice %5 {offsets = [0, 0], sizes = [64, 512], strides = [1, 1]} : vector<136x512xf32> to vector<64x512xf32>
    %7 = vector.extract_strided_slice %5 {offsets = [64, 0], sizes = [64, 512], strides = [1, 1]} : vector<136x512xf32> to vector<64x512xf32>
    %8 = vector.extract_strided_slice %5 {offsets = [128, 0], sizes = [8, 512], strides = [1, 1]} : vector<136x512xf32> to vector<8x512xf32>
    %9 = math.sin %6 : vector<64x512xf32>
    %c0_5 = arith.constant 0 : index
    %c0_6 = arith.constant 0 : index
    %10 = vector.load %arg4[%c0_5, %c0_6] : memref<72x64xf32, #tpu.memory_space<vmem>>, vector<72x64xf32>
    %cst_7 = arith.constant dense<0.000000e+00> : vector<72x512xf32>
    %11 = tpu.matmul %10, %9, %cst_7 {dimension_numbers = #tpu.dot_dimension_numbers<[1], [0], [0], [1], [0, 0, 1, 1], [], []>} : vector<72x64xf32>, vector<64x512xf32>, vector<72x512xf32> -> vector<72x512xf32>
    %12 = vector.extract_strided_slice %11 {offsets = [0, 0], sizes = [64, 512], strides = [1, 1]} : vector<72x512xf32> to vector<64x512xf32>
    %13 = arith.addf %7, %12 : vector<64x512xf32>
    %14 = vector.extract_strided_slice %11 {offsets = [64, 0], sizes = [8, 512], strides = [1, 1]} : vector<72x512xf32> to vector<8x512xf32>
    %15 = arith.addf %8, %14 : vector<8x512xf32>
    %16 = math.sin %13 : vector<64x512xf32>
    %c0_8 = arith.constant 0 : index
    %c0_9 = arith.constant 0 : index
    %17 = vector.load %arg5[%c0_8, %c0_9] : memref<8x64xf32, #tpu.memory_space<vmem>>, vector<8x64xf32>
    %cst_10 = arith.constant dense<0.000000e+00> : vector<8x512xf32>
    %18 = tpu.matmul %17, %16, %cst_10 {dimension_numbers = #tpu.dot_dimension_numbers<[1], [0], [0], [1], [0, 0, 1, 1], [], []>} : vector<8x64xf32>, vector<64x512xf32>, vector<8x512xf32> -> vector<8x512xf32>
    %19 = arith.addf %15, %18 : vector<8x512xf32>
    %c0_11 = arith.constant 0 : index
    %c0_12 = arith.constant 0 : index
    %20 = vector.load %arg6[%c0_11, %c0_12] : memref<8x512xf32, #tpu.memory_space<vmem>>, vector<8x512xf32>
    tpu.vector_store %arg6[%c0_11, %c0_12], %19 {strides = array<i32>} : memref<8x512xf32, #tpu.memory_space<vmem>>, vector<8x512xf32>,
    return
  }
  func.func @transform_0(%arg0: i32) -> (i32, i32) {
    %c0_i32 = arith.constant 0 : i32
    %c0_i32_0 = arith.constant 0 : i32
    return %c0_i32, %arg0 : i32, i32
  }
  func.func @transform_1(%arg0: i32) -> (i32, i32) {
    %c0_i32 = arith.constant 0 : i32
    %c0_i32_0 = arith.constant 0 : i32
    %c0_i32_1 = arith.constant 0 : i32
    return %c0_i32, %c0_i32_0 : i32, i32
  }
  func.func @transform_2(%arg0: i32) -> (i32, i32) {
    %c0_i32 = arith.constant 0 : i32
    %c0_i32_0 = arith.constant 0 : i32
    %c0_i32_1 = arith.constant 0 : i32
    return %c0_i32, %c0_i32_0 : i32, i32
  }
  func.func @transform_3(%arg0: i32) -> (i32, i32) {
    %c0_i32 = arith.constant 0 : i32
    %c0_i32_0 = arith.constant 0 : i32
    %c0_i32_1 = arith.constant 0 : i32
    return %c0_i32, %c0_i32_0 : i32, i32
  }
  func.func @transform_4(%arg0: i32) -> (i32, i32) {
    %c0_i32 = arith.constant 0 : i32
    %c0_i32_0 = arith.constant 0 : i32
    %c0_i32_1 = arith.constant 0 : i32
    return %c0_i32, %c0_i32_0 : i32, i32
  }
  func.func @transform_5(%arg0: i32) -> (i32, i32) {
    %c0_i32 = arith.constant 0 : i32
    %c0_i32_0 = arith.constant 0 : i32
    return %c0_i32, %arg0 : i32, i32
  }
}

</mosaic_0001>

<llo_original>
// kernel: tpu_custom_call.1
$region0: #{tpu_custom_call.1}
  #allocation0 [shape = 'u32[]', space=smem, size = 0x4, offset = 0x4, fixed_abs, tag = 'smem constant byte address 0x4 - core index']
  #allocation1 [shape = 'u32[72,128]{1,0:T(1,128)}', space=vmem, size = 0x9000, scoped, tag = 'internal scratch']
  %s0 = inlined_call_operand.vmem [shape: f32[3,4096], index: 0, kind: input, shape index: {}]
  %s1 = inlined_call_operand.vmem [shape: f32[136,3], index: 1, kind: input, shape index: {}]
  %s2 = inlined_call_operand.vmem [shape: f32[136,1], index: 2, kind: input, shape index: {}]
  %s3 = inlined_call_operand.vmem [shape: f32[72,64], index: 3, kind: input, shape index: {}]
  %s4 = inlined_call_operand.vmem [shape: f32[8,64], index: 4, kind: input, shape index: {}]
  %s5 = inlined_call_operand.hbm [shape: f32[8,4096], index: 5, kind: output, shape index: {}]
  %s6 = sld [smem:[#allocation0]]
  $region53: #{tpu_custom_call.1} parent=0
    _
  %s8 = ssub.s32 1, %s6
  %s9 = scalar_select 0, %s8, %s6
  $region1: #{tpu_custom_call.1} parent=0
    #allocation2 [shape = 'u8[32768]{0}', space=vmem, size = 0x8000, scoped, tag = 'output window, operand 0']
    #allocation3 [shape = 's32[2]{0}', space=sflag, size = 0x8, scoped, tag = 'scoped memory for tpu_custom_call.1']
    %10 = vsyncpa [#allocation3], 0
    %s11 = scalar_lea.sflag [#allocation3], 1
    %12 = vsyncpa %s11, 0
    loop: start=0, step=1, limit=10
    $region2: #{tpu_custom_call.1} parent=1 // loop_pre_header
      _
    $region3: #{tpu_custom_call.1} parent=1 // loop_header
      %s14 = sphi 0, %s18
      %p15 = scmp.ge.s32.totalorder %s14, 10
      %s24 = sphi 0, %s26
      %s27 = sphi 0, %s24
      %s28 = sphi 0, %s27
      %s44 = sphi 0, %s28
      %s48 = sphi 0, %s48
      %s50 = sphi 0, %s48
      %s51 = sphi 0, %s50
      %s65 = sphi 0, %s51
      %s69 = sphi 0, %s69
      %s71 = sphi 0, %s69
      %s72 = sphi 0, %s71
      %s86 = sphi 0, %s72
      %s90 = sphi 0, %s90
      %s92 = sphi 0, %s90
      %s93 = sphi 0, %s92
      %s107 = sphi 0, %s93
      %s111 = sphi 0, %s111
      %s113 = sphi 0, %s111
      %s114 = sphi 0, %s113
      %s128 = sphi 0, %s114
      %s134 = sphi 0, %s136
      %s137 = sphi 0, %s134
      %s138 = sphi 0, %s137
      %s154 = sphi 0, %s138
    $region4: #{tpu_custom_call.1} parent=1 // loop_header_branch
      %17 = sbr.rel (%p15) target = $region8
    $region5: #{tpu_custom_call.1} parent=1 // loop_body
      %s19 = ssub.s32 %s14, 1
      %s20 = ssub.s32 %s14, 2
      %s21 = sadd.s32 %s14, 1
      %s22 = ssub.s32 %s14, %s21
      %p23 = scmp.eq.s32.totalorder %s22, 0
      %s25 = sadd.s32 %s24, 1
      %s26 = scalar_select %p23, %s24, %s25
      %p29 = pneg %p23
      %p30 = scmp.eq.s32.totalorder %s14, 7
      %p31 = por %p29, %p30
      %p32 = scmp.ne.s32.totalorder %s24, %s27
      %p33 = scmp.eq.s32.totalorder %s14, 0
      %p34 = por %p32, %p33
      %p35 = scmp.ne.s32.totalorder %s24, %s27
      %p36 = scmp.eq.s32.totalorder %s19, 7
      %p37 = por %p35, %p36
      %p38 = scmp.ne.s32.totalorder %s27, %s28
      %p39 = scmp.eq.s32.totalorder %s19, 0
      %p40 = por %p38, %p39
      %p41 = scmp.ne.s32.totalorder %s27, %s28
      %p42 = scmp.eq.s32.totalorder %s20, 7
      %p43 = por %p41, %p42
      %p45 = scmp.ne.s32.totalorder %s28, %s44
      %p46 = scmp.eq.s32.totalorder %s20, 0
      %p47 = por %p45, %p46
      %s49 = sadd.s32 %s48, 1
      %p52 = scmp.eq.s32.totalorder %s14, 7
      %p53 = scmp.ne.s32.totalorder %s48, %s50
      %p54 = scmp.eq.s32.totalorder %s14, 0
      %p55 = por %p53, %p54
      %p56 = scmp.ne.s32.totalorder %s48, %s50
      %p57 = scmp.eq.s32.totalorder %s19, 7
      %p58 = por %p56, %p57
      %p59 = scmp.ne.s32.totalorder %s50, %s51
      %p60 = scmp.eq.s32.totalorder %s19, 0
      %p61 = por %p59, %p60
      %p62 = scmp.ne.s32.totalorder %s50, %s51
      %p63 = scmp.eq.s32.totalorder %s20, 7
      %p64 = por %p62, %p63
      %p66 = scmp.ne.s32.totalorder %s51, %s65
      %p67 = scmp.eq.s32.totalorder %s20, 0
      %p68 = por %p66, %p67
      %s70 = sadd.s32 %s69, 1
      %p73 = scmp.eq.s32.totalorder %s14, 7
      %p74 = scmp.ne.s32.totalorder %s69, %s71
      %p75 = scmp.eq.s32.totalorder %s14, 0
      %p76 = por %p74, %p75
      %p77 = scmp.ne.s32.totalorder %s69, %s71
      %p78 = scmp.eq.s32.totalorder %s19, 7
      %p79 = por %p77, %p78
      %p80 = scmp.ne.s32.totalorder %s71, %s72
      %p81 = scmp.eq.s32.totalorder %s19, 0
      %p82 = por %p80, %p81
      %p83 = scmp.ne.s32.totalorder %s71, %s72
      %p84 = scmp.eq.s32.totalorder %s20, 7
      %p85 = por %p83, %p84
      %p87 = scmp.ne.s32.totalorder %s72, %s86
      %p88 = scmp.eq.s32.totalorder %s20, 0
      %p89 = por %p87, %p88
      %s91 = sadd.s32 %s90, 1
      %p94 = scmp.eq.s32.totalorder %s14, 7
      %p95 = scmp.ne.s32.totalorder %s90, %s92
      %p96 = scmp.eq.s32.totalorder %s14, 0
      %p97 = por %p95, %p96
      %p98 = scmp.ne.s32.totalorder %s90, %s92
      %p99 = scmp.eq.s32.totalorder %s19, 7
      %p100 = por %p98, %p99
      %p101 = scmp.ne.s32.totalorder %s92, %s93
      %p102 = scmp.eq.s32.totalorder %s19, 0
      %p103 = por %p101, %p102
      %p104 = scmp.ne.s32.totalorder %s92, %s93
      %p105 = scmp.eq.s32.totalorder %s20, 7
      %p106 = por %p104, %p105
      %p108 = scmp.ne.s32.totalorder %s93, %s107
      %p109 = scmp.eq.s32.totalorder %s20, 0
      %p110 = por %p108, %p109
      %s112 = sadd.s32 %s111, 1
      %p115 = scmp.eq.s32.totalorder %s14, 7
      %p116 = scmp.ne.s32.totalorder %s111, %s113
      %p117 = scmp.eq.s32.totalorder %s14, 0
      %p118 = por %p116, %p117
      %p119 = scmp.ne.s32.totalorder %s111, %s113
      %p120 = scmp.eq.s32.totalorder %s19, 7
      %p121 = por %p119, %p120
      %p122 = scmp.ne.s32.totalorder %s113, %s114
      %p123 = scmp.eq.s32.totalorder %s19, 0
      %p124 = por %p122, %p123
      %p125 = scmp.ne.s32.totalorder %s113, %s114
      %p126 = scmp.eq.s32.totalorder %s20, 7
      %p127 = por %p125, %p126
      %p129 = scmp.ne.s32.totalorder %s114, %s128
      %p130 = scmp.eq.s32.totalorder %s20, 0
      %p131 = por %p129, %p130
      %s132 = ssub.s32 %s14, %s21
      %p133 = scmp.eq.s32.totalorder %s132, 0
      %s135 = sadd.s32 %s134, 1
      %s136 = scalar_select %p133, %s134, %s135
      %p139 = pneg %p133
      %p140 = scmp.eq.s32.totalorder %s14, 7
      %p141 = por %p139, %p140
      %p142 = scmp.ne.s32.totalorder %s134, %s137
      %p143 = scmp.eq.s32.totalorder %s14, 0
      %p144 = por %p142, %p143
      %p145 = scmp.ne.s32.totalorder %s134, %s137
      %p146 = scmp.eq.s32.totalorder %s19, 7
      %p147 = por %p145, %p146
      %p148 = scmp.ne.s32.totalorder %s137, %s138
      %p149 = scmp.eq.s32.totalorder %s19, 0
      %p150 = por %p148, %p149
      %p151 = scmp.ne.s32.totalorder %s137, %s138
      %p152 = scmp.eq.s32.totalorder %s20, 7
      %p153 = por %p151, %p152
      %p155 = scmp.ne.s32.totalorder %s138, %s154
      %p156 = scmp.eq.s32.totalorder %s20, 0
      %p157 = por %p155, %p156
      %p158 = scmp.le.s32.totalorder 1, %s14
      %p159 = scmp.lt.s32.totalorder %s14, 9
      %p160 = pnand %p158, %p159
      %p161 = pneg %p160
      // Predicated region
      $region9: #{tpu_custom_call.1} parent=5 // pred_check
        _
      $region10: #{tpu_custom_call.1} parent=5 // pred_check_branch
        %163 = sbr.rel (%p160) target = $region12
      $region11: #{tpu_custom_call.1} parent=5 // pred_region
        %s164 = ssub.s32 %s14, 1
        // Predicated region
        $region13: #{tpu_custom_call.1} parent=11 // pred_check
          %p165 = pneg %p61
        $region14: #{tpu_custom_call.1} parent=11 // pred_check_branch
          %167 = sbr.rel (%p165) target = $region16
        $region15: #{tpu_custom_call.1} parent=11 // pred_region
          _
        $region16: #{tpu_custom_call.1} parent=11 // pred_fallthru
          _
        // Predicated region
        $region17: #{tpu_custom_call.1} parent=11 // pred_check
          %p168 = pneg %p82
        $region18: #{tpu_custom_call.1} parent=11 // pred_check_branch
          %170 = sbr.rel (%p168) target = $region20
        $region19: #{tpu_custom_call.1} parent=11 // pred_region
          _
        $region20: #{tpu_custom_call.1} parent=11 // pred_fallthru
          _
        // Predicated region
        $region21: #{tpu_custom_call.1} parent=11 // pred_check
          %p171 = pneg %p103
        $region22: #{tpu_custom_call.1} parent=11 // pred_check_branch
          %173 = sbr.rel (%p171) target = $region24
        $region23: #{tpu_custom_call.1} parent=11 // pred_region
          _
        $region24: #{tpu_custom_call.1} parent=11 // pred_fallthru
          _
        // Predicated region
        $region25: #{tpu_custom_call.1} parent=11 // pred_check
          %p174 = pneg %p124
        $region26: #{tpu_custom_call.1} parent=11 // pred_check_branch
          %176 = sbr.rel (%p174) target = $region28
        $region27: #{tpu_custom_call.1} parent=11 // pred_region
          _
        $region28: #{tpu_custom_call.1} parent=11 // pred_fallthru
          _
      $region12: #{tpu_custom_call.1} parent=5 // pred_fallthru
        _
      %p177 = scmp.lt.s32.totalorder %s14, 8
      // Predicated region
      $region29: #{tpu_custom_call.1} parent=5 // pred_check
        %p178 = pneg %p177
      $region30: #{tpu_custom_call.1} parent=5 // pred_check_branch
        %180 = sbr.rel (%p178) target = $region32
      $region31: #{tpu_custom_call.1} parent=5 // pred_region
        // Predicated region
        $region33: #{tpu_custom_call.1} parent=31 // pred_check
          %p181 = pneg %p34
        $region34: #{tpu_custom_call.1} parent=31 // pred_check_branch
          %183 = sbr.rel (%p181) target = $region36
        $region35: #{tpu_custom_call.1} parent=31 // pred_region
          %s184 = smul.u32 4, %s14
          %p185 = scmp.lt.s32.totalorder %s184, 31
          %s186 = scalar_select %p185, %s184, 31
          %s187 = smul.addr %s186, 4
          %s188 = scalar_lea.vmem %s0, %s187
          %s189 = smul.u32 4, %s14
        $region36: #{tpu_custom_call.1} parent=31 // pred_fallthru
          _
      $region32: #{tpu_custom_call.1} parent=5 // pred_fallthru
        _
      %p190 = scmp.le.s32.totalorder 1, %s14
      %p191 = scmp.lt.s32.totalorder %s14, 9
      %p192 = pnand %p190, %p191
      %p193 = pneg %p192
      // Predicated region
      $region37: #{tpu_custom_call.1} parent=5 // pred_check
        _
      $region38: #{tpu_custom_call.1} parent=5 // pred_check_branch
        %195 = sbr.rel (%p192) target = $region40
      $region39: #{tpu_custom_call.1} parent=5 // pred_region
        %s196 = ssub.s32 %s14, 1
        %s197 = smul.u32 4, %s19
        %p198 = scmp.lt.s32.totalorder %s197, 31
        %s199 = scalar_select %p198, %s197, 31
        %s200 = smul.addr %s199, 4
        %s201 = scalar_lea.vmem %s0, %s200
        %p202 = pneg %p40
        %p203 = pneg %p37
        %p204 = pneg %p61
        %p205 = pneg %p58
        %p206 = pneg %p82
        %p207 = pneg %p79
        %p208 = pneg %p103
        %p209 = pneg %p100
        %p210 = pneg %p124
        %p211 = pneg %p121
        %p212 = pneg %p150
        %p213 = pneg %p147
        %s214 = sand.u32 %s137, 1
        %s215 = scalar_lea.sflag [#allocation3], %s214
        %s216 = sand.u32 %s137, 1
        %s217 = smul.addr %s216, 32
        %s218 = scalar_lea.vmem [#allocation2], %s217
        %s219 = smul.u32 4, %s19
        %p220 = scmp.lt.s32.totalorder %s219, 31
        %s221 = scalar_select %p220, %s219, 31
        %s222 = smul.addr %s221, 4
        %s223 = scalar_lea.vmem %s0, %s222
        %s224 = smul.u32 4, %s19
        %s225 = smul.u32 4, %s19
        %v226 = vld [vmem:[%s223] sm:$0x77]
        %v227 = vld [vmem:[%s223 + $0x8] sm:$0x77]
        %v228 = vld [vmem:[%s1] sm:$0xff]
        %v229 = vld [vmem:[%s1 + $0x8] sm:$0xff]
        %v230 = vld [vmem:[%s1 + $0x10] sm:$0xff]
        %v231 = vld [vmem:[%s1 + $0x18] sm:$0xff]
        %v232 = vld [vmem:[%s1 + $0x20] sm:$0xff]
        %v233 = vld [vmem:[%s1 + $0x28] sm:$0xff]
        %v234 = vld [vmem:[%s1 + $0x30] sm:$0xff]
        %v235 = vld [vmem:[%s1 + $0x38] sm:$0xff]
        %v236 = vld [vmem:[%s1 + $0x40] sm:$0xff]
        %v237 = vld [vmem:[%s1 + $0x48] sm:$0xff]
        %v238 = vld [vmem:[%s1 + $0x50] sm:$0xff]
        %v239 = vld [vmem:[%s1 + $0x58] sm:$0xff]
        %v240 = vld [vmem:[%s1 + $0x60] sm:$0xff]
        %v241 = vld [vmem:[%s1 + $0x68] sm:$0xff]
        %v242 = vld [vmem:[%s1 + $0x70] sm:$0xff]
        %v243 = vld [vmem:[%s1 + $0x78] sm:$0xff]
        %v244 = vld [vmem:[%s1 + $0x80] sm:$0xff]
        %v245 = vld [vmem:[%s2] sm:$0xff]
        %v246 = vld [vmem:[%s2 + $0x8] sm:$0xff]
        %v247 = vld [vmem:[%s2 + $0x10] sm:$0xff]
        %v248 = vld [vmem:[%s2 + $0x18] sm:$0xff]
        %v249 = vld [vmem:[%s2 + $0x20] sm:$0xff]
        %v250 = vld [vmem:[%s2 + $0x28] sm:$0xff]
        %v251 = vld [vmem:[%s2 + $0x30] sm:$0xff]
        %v252 = vld [vmem:[%s2 + $0x38] sm:$0xff]
        %v253 = vld [vmem:[%s2 + $0x40] sm:$0xff]
        %v254 = vld [vmem:[%s2 + $0x48] sm:$0xff]
        %v255 = vld [vmem:[%s2 + $0x50] sm:$0xff]
        %v256 = vld [vmem:[%s2 + $0x58] sm:$0xff]
        %v257 = vld [vmem:[%s2 + $0x60] sm:$0xff]
        %v258 = vld [vmem:[%s2 + $0x68] sm:$0xff]
        %v259 = vld [vmem:[%s2 + $0x70] sm:$0xff]
        %v260 = vld [vmem:[%s2 + $0x78] sm:$0xff]
        %v261 = vld [vmem:[%s2 + $0x80] sm:$0xff]
        %263 = vset.pattern.permute.xlu0 0
        %264 = vperm.xlu0 %263, %v245
        %v265 = vpop.permute.xlu0 %264
        %268 = vset.pattern.permute.xlu0 0
        %269 = vperm.xlu0 %268, %v246
        %v270 = vpop.permute.xlu0 %269
        %273 = vset.pattern.permute.xlu0 0
        %274 = vperm.xlu0 %273, %v247
        %v275 = vpop.permute.xlu0 %274
        %278 = vset.pattern.permute.xlu0 0
        %279 = vperm.xlu0 %278, %v248
        %v280 = vpop.permute.xlu0 %279
        %283 = vset.pattern.permute.xlu0 0
        %284 = vperm.xlu0 %283, %v249
        %v285 = vpop.permute.xlu0 %284
        %288 = vset.pattern.permute.xlu0 0
        %289 = vperm.xlu0 %288, %v250
        %v290 = vpop.permute.xlu0 %289
        %293 = vset.pattern.permute.xlu0 0
        %294 = vperm.xlu0 %293, %v251
        %v295 = vpop.permute.xlu0 %294
        %298 = vset.pattern.permute.xlu0 0
        %299 = vperm.xlu0 %298, %v252
        %v300 = vpop.permute.xlu0 %299
        %303 = vset.pattern.permute.xlu0 0
        %304 = vperm.xlu0 %303, %v253
        %v305 = vpop.permute.xlu0 %304
        %308 = vset.pattern.permute.xlu0 0
        %309 = vperm.xlu0 %308, %v254
        %v310 = vpop.permute.xlu0 %309
        %313 = vset.pattern.permute.xlu0 0
        %314 = vperm.xlu0 %313, %v255
        %v315 = vpop.permute.xlu0 %314
        %318 = vset.pattern.permute.xlu0 0
        %319 = vperm.xlu0 %318, %v256
        %v320 = vpop.permute.xlu0 %319
        %323 = vset.pattern.permute.xlu0 0
        %324 = vperm.xlu0 %323, %v257
        %v325 = vpop.permute.xlu0 %324
        %328 = vset.pattern.permute.xlu0 0
        %329 = vperm.xlu0 %328, %v258
        %v330 = vpop.permute.xlu0 %329
        %333 = vset.pattern.permute.xlu0 0
        %334 = vperm.xlu0 %333, %v259
        %v335 = vpop.permute.xlu0 %334
        %338 = vset.pattern.permute.xlu0 0
        %339 = vperm.xlu0 %338, %v260
        %v340 = vpop.permute.xlu0 %339
        %343 = vset.pattern.permute.xlu0 0
        %344 = vperm.xlu0 %343, %v261
        %v345 = vpop.permute.xlu0 %344
        %349 = vst [vmem:[#allocation1] ss:$2 sm:$0xff] %v226
        %s350 = scalar_lea.vmem [#allocation1], 16
        %351 = vst [vmem:[%s350] ss:$2 sm:$0xff] %v227
        %v352 = vld.sshfl [vmem:[#allocation1] sm:$0xff pattern:$0x75316420]
        %v353 = vld.sshfl [vmem:[#allocation1 + $0x8] sm:$0xff pattern:$0x75316420]
        %v354 = vld.sshfl [vmem:[#allocation1 + $0x10] sm:$0xff pattern:$0x75316420]
        %v355 = vld.sshfl [vmem:[#allocation1 + $0x18] sm:$0xff pattern:$0x75316420]
        %vm356 = vcmask 23552
        %v358 = vsel %vm356, %v228, 0
        %v361 = vsel %vm356, %v229, 0
        %v364 = vsel %vm356, %v230, 0
        %v367 = vsel %vm356, %v231, 0
        %v370 = vsel %vm356, %v232, 0
        %v373 = vsel %vm356, %v233, 0
        %v376 = vsel %vm356, %v234, 0
        %v379 = vsel %vm356, %v235, 0
        %v382 = vsel %vm356, %v236, 0
        %v385 = vsel %vm356, %v237, 0
        %v388 = vsel %vm356, %v238, 0
        %v391 = vsel %vm356, %v239, 0
        %v394 = vsel %vm356, %v240, 0
        %v397 = vsel %vm356, %v241, 0
        %v400 = vsel %vm356, %v242, 0
        %v403 = vsel %vm356, %v243, 0
        %v406 = vsel %vm356, %v244, 0
        %vm408 = vcmask 1042432
        %v409 = vsel %vm408, %v352, 0
        %v411 = vsel %vm408, %v353, 0
        %v413 = vsel %vm408, %v354, 0
        %v415 = vsel %vm408, %v355, 0
        %417 = vmatpush.msra.mxu0 0.0
        %418 = vmatpush.msra.mxu0 0.0
        %419 = vmatpush.msra.mxu0 0.0
        %420 = vmatpush.msra.mxu0 0.0
        %421 = vmatpush.msra.mxu0 0.0
        %422 = vmatpush.msra.mxu0 0.0
        %423 = vmatpush.msra.mxu0 0.0
        %424 = vmatpush.msra.mxu0 0.0
        %425 = vmatpush.msra.mxu0 0.0
        %426 = vmatpush.msra.mxu0 0.0
        %427 = vmatpush.msra.mxu0 0.0
        %428 = vmatpush.msra.mxu0 0.0
        %429 = vmatpush.msra.mxu0 0.0
        %430 = vmatpush.msra.mxu0 0.0
        %431 = vmatpush.msra.mxu0 0.0
        %432 = vmatpush.msra.mxu0 %v409
        %433 = vmatmul.f32.gmra.mxu0 %v358
        %v434 = vpop.f32.mrf.mxu0
        %v435 = vadd.f32 %v265, %v434
        %436 = vmatmul.f32.gmra.mxu0 %v361
        %v437 = vpop.f32.mrf.mxu0
        %v438 = vadd.f32 %v270, %v437
        %439 = vmatmul.f32.gmra.mxu0 %v364
        %v440 = vpop.f32.mrf.mxu0
        %v441 = vadd.f32 %v275, %v440
        %442 = vmatmul.f32.gmra.mxu0 %v367
        %v443 = vpop.f32.mrf.mxu0
        %v444 = vadd.f32 %v280, %v443
        %445 = vmatmul.f32.gmra.mxu0 %v370
        %v446 = vpop.f32.mrf.mxu0
        %v447 = vadd.f32 %v285, %v446
        %448 = vmatmul.f32.gmra.mxu0 %v373
        %v449 = vpop.f32.mrf.mxu0
        %v450 = vadd.f32 %v290, %v449
        %451 = vmatmul.f32.gmra.mxu0 %v376
        %v452 = vpop.f32.mrf.mxu0
        %v453 = vadd.f32 %v295, %v452
        %454 = vmatmul.f32.gmra.mxu0 %v379
        %v455 = vpop.f32.mrf.mxu0
        %v456 = vadd.f32 %v300, %v455
        %457 = vmatmul.f32.gmra.mxu0 %v382
        %v458 = vpop.f32.mrf.mxu0
        %v459 = vadd.f32 %v305, %v458
        %460 = vmatmul.f32.gmra.mxu0 %v385
        %v461 = vpop.f32.mrf.mxu0
        %v462 = vadd.f32 %v310, %v461
        %463 = vmatmul.f32.gmra.mxu0 %v388
        %v464 = vpop.f32.mrf.mxu0
        %v465 = vadd.f32 %v315, %v464
        %466 = vmatmul.f32.gmra.mxu0 %v391
        %v467 = vpop.f32.mrf.mxu0
        %v468 = vadd.f32 %v320, %v467
        %469 = vmatmul.f32.gmra.mxu0 %v394
        %v470 = vpop.f32.mrf.mxu0
        %v471 = vadd.f32 %v325, %v470
        %472 = vmatmul.f32.gmra.mxu0 %v397
        %v473 = vpop.f32.mrf.mxu0
        %v474 = vadd.f32 %v330, %v473
        %475 = vmatmul.f32.gmra.mxu0 %v400
        %v476 = vpop.f32.mrf.mxu0
        %v477 = vadd.f32 %v335, %v476
        %478 = vmatmul.f32.gmra.mxu0 %v403
        %v479 = vpop.f32.mrf.mxu0
        %v480 = vadd.f32 %v340, %v479
        %481 = vmatmul.f32.gmra.mxu0 %v406
        %v482 = vpop.f32.mrf.mxu0
        %v483 = vadd.f32 %v345, %v482
        %484 = vdwg.mxu0
        %485 = vmatpush.msra.mxu0 0.0
        %486 = vmatpush.msra.mxu0 0.0
        %487 = vmatpush.msra.mxu0 0.0
        %488 = vmatpush.msra.mxu0 0.0
        %489 = vmatpush.msra.mxu0 0.0
        %490 = vmatpush.msra.mxu0 0.0
        %491 = vmatpush.msra.mxu0 0.0
        %492 = vmatpush.msra.mxu0 0.0
        %493 = vmatpush.msra.mxu0 0.0
        %494 = vmatpush.msra.mxu0 0.0
        %495 = vmatpush.msra.mxu0 0.0
        %496 = vmatpush.msra.mxu0 0.0
        %497 = vmatpush.msra.mxu0 0.0
        %498 = vmatpush.msra.mxu0 0.0
        %499 = vmatpush.msra.mxu0 0.0
        %500 = vmatpush.msra.mxu0 %v411
        %501 = vmatmul.f32.gmra.mxu0 %v358
        %v502 = vpop.f32.mrf.mxu0
        %v503 = vadd.f32 %v265, %v502
        %504 = vmatmul.f32.gmra.mxu0 %v361
        %v505 = vpop.f32.mrf.mxu0
        %v506 = vadd.f32 %v270, %v505
        %507 = vmatmul.f32.gmra.mxu0 %v364
        %v508 = vpop.f32.mrf.mxu0
        %v509 = vadd.f32 %v275, %v508
        %510 = vmatmul.f32.gmra.mxu0 %v367
        %v511 = vpop.f32.mrf.mxu0
        %v512 = vadd.f32 %v280, %v511
        %513 = vmatmul.f32.gmra.mxu0 %v370
        %v514 = vpop.f32.mrf.mxu0
        %v515 = vadd.f32 %v285, %v514
        %516 = vmatmul.f32.gmra.mxu0 %v373
        %v517 = vpop.f32.mrf.mxu0
        %v518 = vadd.f32 %v290, %v517
        %519 = vmatmul.f32.gmra.mxu0 %v376
        %v520 = vpop.f32.mrf.mxu0
        %v521 = vadd.f32 %v295, %v520
        %522 = vmatmul.f32.gmra.mxu0 %v379
        %v523 = vpop.f32.mrf.mxu0
        %v524 = vadd.f32 %v300, %v523
        %525 = vmatmul.f32.gmra.mxu0 %v382
        %v526 = vpop.f32.mrf.mxu0
        %v527 = vadd.f32 %v305, %v526
        %528 = vmatmul.f32.gmra.mxu0 %v385
        %v529 = vpop.f32.mrf.mxu0
        %v530 = vadd.f32 %v310, %v529
        %531 = vmatmul.f32.gmra.mxu0 %v388
        %v532 = vpop.f32.mrf.mxu0
        %v533 = vadd.f32 %v315, %v532
        %534 = vmatmul.f32.gmra.mxu0 %v391
        %v535 = vpop.f32.mrf.mxu0
        %v536 = vadd.f32 %v320, %v535
        %537 = vmatmul.f32.gmra.mxu0 %v394
        %v538 = vpop.f32.mrf.mxu0
        %v539 = vadd.f32 %v325, %v538
        %540 = vmatmul.f32.gmra.mxu0 %v397
        %v541 = vpop.f32.mrf.mxu0
        %v542 = vadd.f32 %v330, %v541
        %543 = vmatmul.f32.gmra.mxu0 %v400
        %v544 = vpop.f32.mrf.mxu0
        %v545 = vadd.f32 %v335, %v544
        %546 = vmatmul.f32.gmra.mxu0 %v403
        %v547 = vpop.f32.mrf.mxu0
        %v548 = vadd.f32 %v340, %v547
        %549 = vmatmul.f32.gmra.mxu0 %v406
        %v550 = vpop.f32.mrf.mxu0
        %v551 = vadd.f32 %v345, %v550
        %552 = vdwg.mxu0
        %553 = vmatpush.msra.mxu0 0.0
        %554 = vmatpush.msra.mxu0 0.0
        %555 = vmatpush.msra.mxu0 0.0
        %556 = vmatpush.msra.mxu0 0.0
        %557 = vmatpush.msra.mxu0 0.0
        %558 = vmatpush.msra.mxu0 0.0
        %559 = vmatpush.msra.mxu0 0.0
        %560 = vmatpush.msra.mxu0 0.0
        %561 = vmatpush.msra.mxu0 0.0
        %562 = vmatpush.msra.mxu0 0.0
        %563 = vmatpush.msra.mxu0 0.0
        %564 = vmatpush.msra.mxu0 0.0
        %565 = vmatpush.msra.mxu0 0.0
        %566 = vmatpush.msra.mxu0 0.0
        %567 = vmatpush.msra.mxu0 0.0
        %568 = vmatpush.msra.mxu0 %v413
        %569 = vmatmul.f32.gmra.mxu0 %v358
        %v570 = vpop.f32.mrf.mxu0
        %v571 = vadd.f32 %v265, %v570
        %572 = vmatmul.f32.gmra.mxu0 %v361
        %v573 = vpop.f32.mrf.mxu0
        %v574 = vadd.f32 %v270, %v573
        %575 = vmatmul.f32.gmra.mxu0 %v364
        %v576 = vpop.f32.mrf.mxu0
        %v577 = vadd.f32 %v275, %v576
        %578 = vmatmul.f32.gmra.mxu0 %v367
        %v579 = vpop.f32.mrf.mxu0
        %v580 = vadd.f32 %v280, %v579
        %581 = vmatmul.f32.gmra.mxu0 %v370
        %v582 = vpop.f32.mrf.mxu0
        %v583 = vadd.f32 %v285, %v582
        %584 = vmatmul.f32.gmra.mxu0 %v373
        %v585 = vpop.f32.mrf.mxu0
        %v586 = vadd.f32 %v290, %v585
        %587 = vmatmul.f32.gmra.mxu0 %v376
        %v588 = vpop.f32.mrf.mxu0
        %v589 = vadd.f32 %v295, %v588
        %590 = vmatmul.f32.gmra.mxu0 %v379
        %v591 = vpop.f32.mrf.mxu0
        %v592 = vadd.f32 %v300, %v591
        %593 = vmatmul.f32.gmra.mxu0 %v382
        %v594 = vpop.f32.mrf.mxu0
        %v595 = vadd.f32 %v305, %v594
        %596 = vmatmul.f32.gmra.mxu0 %v385
        %v597 = vpop.f32.mrf.mxu0
        %v598 = vadd.f32 %v310, %v597
        %599 = vmatmul.f32.gmra.mxu0 %v388
        %v600 = vpop.f32.mrf.mxu0
        %v601 = vadd.f32 %v315, %v600
        %602 = vmatmul.f32.gmra.mxu0 %v391
        %v603 = vpop.f32.mrf.mxu0
        %v604 = vadd.f32 %v320, %v603
        %605 = vmatmul.f32.gmra.mxu0 %v394
        %v606 = vpop.f32.mrf.mxu0
        %v607 = vadd.f32 %v325, %v606
        %608 = vmatmul.f32.gmra.mxu0 %v397
        %v609 = vpop.f32.mrf.mxu0
        %v610 = vadd.f32 %v330, %v609
        %611 = vmatmul.f32.gmra.mxu0 %v400
        %v612 = vpop.f32.mrf.mxu0
        %v613 = vadd.f32 %v335, %v612
        %614 = vmatmul.f32.gmra.mxu0 %v403
        %v615 = vpop.f32.mrf.mxu0
        %v616 = vadd.f32 %v340, %v615
        %617 = vmatmul.f32.gmra.mxu0 %v406
        %v618 = vpop.f32.mrf.mxu0
        %v619 = vadd.f32 %v345, %v618
        %620 = vdwg.mxu0
        %621 = vmatpush.msra.mxu0 0.0
        %622 = vmatpush.msra.mxu0 0.0
        %623 = vmatpush.msra.mxu0 0.0
        %624 = vmatpush.msra.mxu0 0.0
        %625 = vmatpush.msra.mxu0 0.0
        %626 = vmatpush.msra.mxu0 0.0
        %627 = vmatpush.msra.mxu0 0.0
        %628 = vmatpush.msra.mxu0 0.0
        %629 = vmatpush.msra.mxu0 0.0
        %630 = vmatpush.msra.mxu0 0.0
        %631 = vmatpush.msra.mxu0 0.0
        %632 = vmatpush.msra.mxu0 0.0
        %633 = vmatpush.msra.mxu0 0.0
        %634 = vmatpush.msra.mxu0 0.0
        %635 = vmatpush.msra.mxu0 0.0
        %636 = vmatpush.msra.mxu0 %v415
        %637 = vmatmul.f32.gmra.mxu0 %v358
        %v638 = vpop.f32.mrf.mxu0
        %v639 = vadd.f32 %v265, %v638
        %640 = vmatmul.f32.gmra.mxu0 %v361
        %v641 = vpop.f32.mrf.mxu0
        %v642 = vadd.f32 %v270, %v641
        %643 = vmatmul.f32.gmra.mxu0 %v364
        %v644 = vpop.f32.mrf.mxu0
        %v645 = vadd.f32 %v275, %v644
        %646 = vmatmul.f32.gmra.mxu0 %v367
        %v647 = vpop.f32.mrf.mxu0
        %v648 = vadd.f32 %v280, %v647
        %649 = vmatmul.f32.gmra.mxu0 %v370
        %v650 = vpop.f32.mrf.mxu0
        %v651 = vadd.f32 %v285, %v650
        %652 = vmatmul.f32.gmra.mxu0 %v373
        %v653 = vpop.f32.mrf.mxu0
        %v654 = vadd.f32 %v290, %v653
        %655 = vmatmul.f32.gmra.mxu0 %v376
        %v656 = vpop.f32.mrf.mxu0
        %v657 = vadd.f32 %v295, %v656
        %658 = vmatmul.f32.gmra.mxu0 %v379
        %v659 = vpop.f32.mrf.mxu0
        %v660 = vadd.f32 %v300, %v659
        %661 = vmatmul.f32.gmra.mxu0 %v382
        %v662 = vpop.f32.mrf.mxu0
        %v663 = vadd.f32 %v305, %v662
        %664 = vmatmul.f32.gmra.mxu0 %v385
        %v665 = vpop.f32.mrf.mxu0
        %v666 = vadd.f32 %v310, %v665
        %667 = vmatmul.f32.gmra.mxu0 %v388
        %v668 = vpop.f32.mrf.mxu0
        %v669 = vadd.f32 %v315, %v668
        %670 = vmatmul.f32.gmra.mxu0 %v391
        %v671 = vpop.f32.mrf.mxu0
        %v672 = vadd.f32 %v320, %v671
        %673 = vmatmul.f32.gmra.mxu0 %v394
        %v674 = vpop.f32.mrf.mxu0
        %v675 = vadd.f32 %v325, %v674
        %676 = vmatmul.f32.gmra.mxu0 %v397
        %v677 = vpop.f32.mrf.mxu0
        %v678 = vadd.f32 %v330, %v677
        %679 = vmatmul.f32.gmra.mxu0 %v400
        %v680 = vpop.f32.mrf.mxu0
        %v681 = vadd.f32 %v335, %v680
        %682 = vmatmul.f32.gmra.mxu0 %v403
        %v683 = vpop.f32.mrf.mxu0
        %v684 = vadd.f32 %v340, %v683
        %685 = vmatmul.f32.gmra.mxu0 %v406
        %v686 = vpop.f32.mrf.mxu0
        %v687 = vadd.f32 %v345, %v686
        %688 = vdwg.mxu0
        %v689 = vand.u32 2147483647, %v435
        %vm690 = vcmp.le.f32.partialorder %v689, 0.7853982
        %vm691 = vcmp.lt.s32.totalorder %v435, 0
        %v692 = vand.u32 %v435, 2139095040
        %v693 = vshrl.u32 %v692, 23
        %v694 = vsub.s32 %v693, 127
        %v695 = vand.u32 2147483647, %v435
        %v696 = vand.u32 %v695, 8388607
        %v697 = vor.u32 %v696, 8388608
        %v698 = vsub.s32 0, %v697
        %v699 = vadd.s32 %v694, 1
        %vm700 = vcmp.gt.s32.totalorder %v699, 0
        %v701 = vsel %vm700, %v699, 0
        %v702 = vshrl.u32 %v701, 5
        %v703 = vand.u32 %v701, 31
        %v704 = vsub.s32 32, %v703
        %v705 = vshrl.u32 683565275, %v704
        %v706 = vshll.u32 683565275, %v703
        %v707 = vshrl.u32 2475754826, %v704
        %v708 = vor.u32 %v706, %v707
        %v709 = vshll.u32 2475754826, %v703
        %v710 = vshrl.u32 2131351028, %v704
        %v711 = vor.u32 %v709, %v710
        %v712 = vshll.u32 2131351028, %v703
        %v713 = vshrl.u32 2102212464, %v704
        %v714 = vor.u32 %v712, %v713
        %v715 = vshll.u32 2102212464, %v703
        %v716 = vshrl.u32 920167782, %v704
        %v717 = vor.u32 %v715, %v716
        %v718 = vshll.u32 920167782, %v703
        %v719 = vshrl.u32 1326507024, %v704
        %v720 = vor.u32 %v718, %v719
        %vm721 = vcmp.lt.s32.totalorder %v702, 1
        %vm722 = vcmp.lt.s32.totalorder %v702, 2
        %vm723 = vcmp.lt.s32.totalorder %v702, 3
        %vm724 = vcmp.lt.s32.totalorder %v702, 4
        %v725 = vsel %vm721, %v705, %v708
        %v726 = vsel %vm724, %v714, 2102212464
        %v727 = vsel %vm723, %v711, %v726
        %v728 = vsel %vm722, %v725, %v727
        %v729 = vsel %vm721, %v708, %v711
        %v730 = vsel %vm724, %v717, 920167782
        %v731 = vsel %vm723, %v714, %v730
        %v732 = vsel %vm722, %v729, %v731
        %v733 = vsel %vm721, %v711, %v714
        %v734 = vsel %vm724, %v720, 1326507024
        %v735 = vsel %vm723, %v717, %v734
        %v736 = vsel %vm722, %v733, %v735
        %v737 = vshll.u32 %v697, 8
        %v738 = vand.u32 %v737, 65535
        %v739 = vshrl.u32 %v737, 16
        %v740 = vand.u32 %v736, 65535
        %v741 = vshrl.u32 %v736, 16
        %v742 = vmul.u32 %v738, %v740
        %v743 = vmul.u32 %v738, %v741
        %v744 = vmul.u32 %v739, %v740
        %v745 = vmul.u32 %v739, %v741
        %v746 = vshll.u32 %v743, 16
        %v747 = vshrl.u32 %v743, 16
        %v748 = vshll.u32 %v744, 16
        %v749 = vshrl.u32 %v744, 16
        %vm750 = vc.u32 %v742, %v746
        %v751 = vsel %vm750, 1, 0
        %v752 = vadd.s32 %v742, %v746
        %v753 = vadd.s32 %v745, %v751
        %vm754 = vc.u32 %v752, %v748
        %v755 = vsel %vm754, 1, 0
        %v756 = vadd.s32 %v752, %v748
        %v757 = vadd.s32 %v753, %v755
        %v758 = vadd.s32 %v757, %v747
        %v759 = vadd.s32 %v758, %v749
        %v760 = vand.u32 %v737, 65535
        %v761 = vshrl.u32 %v737, 16
        %v762 = vand.u32 %v732, 65535
        %v763 = vshrl.u32 %v732, 16
        %v764 = vmul.u32 %v760, %v762
        %v765 = vmul.u32 %v760, %v763
        %v766 = vmul.u32 %v761, %v762
        %v767 = vmul.u32 %v761, %v763
        %v768 = vshll.u32 %v765, 16
        %v769 = vshrl.u32 %v765, 16
        %v770 = vshll.u32 %v766, 16
        %v771 = vshrl.u32 %v766, 16
        %vm772 = vc.u32 %v764, %v768
        %v773 = vsel %vm772, 1, 0
        %v774 = vadd.s32 %v764, %v768
        %v775 = vadd.s32 %v767, %v773
        %vm776 = vc.u32 %v774, %v770
        %v777 = vsel %vm776, 1, 0
        %v778 = vadd.s32 %v774, %v770
        %v779 = vadd.s32 %v775, %v777
        %v780 = vadd.s32 %v779, %v769
        %v781 = vadd.s32 %v780, %v771
        %v782 = vmul.u32 %v737, %v728
        %v783 = vadd.s32 %v759, %v778
        %vm784 = vc.u32 %v759, %v778
        %v785 = vadd.s32 %v781, 1
        %v786 = vsel %vm784, %v785, %v781
        %v787 = vadd.s32 %v782, %v786
        %v788 = vadd.s32 %v787, 536870912
        %v789 = vshrl.u32 %v788, 30
        %v790 = vshll.u32 %v789, 30
        %v791 = vsub.s32 %v787, %v790
        %vm792 = vcmp.lt.s32.totalorder %v791, 0
        %v793 = vsub.s32 0, %v791
        %v794 = vsel %vm792, %v793, %v791
        %v795 = vclz %v794
        %v796 = vsub.s32 %v795, 2
        %vm797 = vcmp.gt.s32.totalorder 0, %v796
        %v798 = vsel %vm797, 0, %v796
        %v799 = vsub.s32 32, %v798
        %v800 = vshll.u32 %v791, %v798
        %v801 = vshrl.u32 %v783, %v799
        %v802 = vor.u32 %v800, %v801
        %v803 = vsub.s32 4294967266, %v798
        %v804 = vadd.s32 %v803, 127
        %v805 = vshll.u32 %v804, 23
        %v806 = vor.u32 4788187, %v805
        %v807 = vand.u32 2147483647, %v806
        %v809 = vcvt.s32.f32 %v802
        %v810 = vmul.f32 %v809, %v807
        %v811 = vxor.u32 %v810, 2147483648
        %v812 = vsel %vm691, %v811, %v810
        %v813 = vsub.s32 4, %v789
        %v814 = vsel %vm691, %v813, %v789
        %v815 = vsel %vm690, %v435, %v812
        %v816 = vsel %vm690, 0, %v814
        %v817 = vmul.f32 %v815, %v815
        %v818 = vmul.f32 %v817, -0.001358992
        %v819 = vadd.f32 %v818, 0.041655596
        %v820 = vmul.f32 %v817, %v819
        %v821 = vadd.f32 %v820, -0.4999988
        %v822 = vmul.f32 %v817, %v821
        %v823 = vadd.f32 1.0, %v822
        %v824 = vmul.f32 %v815, %v815
        %v825 = vmul.f32 %v824, -0.00019511016
        %v826 = vadd.f32 %v825, 0.008332121
        %v827 = vmul.f32 %v824, %v826
        %v828 = vadd.f32 %v827, -0.16666654
        %v829 = vmul.f32 %v824, %v828
        %v830 = vadd.f32 %v829, 1.0
        %v831 = vmul.f32 %v830, %v815
        %vm832 = vweird.f32 %v435
        %v833 = vadd.s32 %v816, 3
        %v834 = vand.u32 %v833, 3
        %vm835 = vcmp.lt.s32.totalorder %v834, 2
        %vm836 = vcmp.eq.s32.totalorder %v834, 0
        %v837 = vxor.u32 %v831, 2147483648
        %v838 = vsel %vm836, %v823, %v837
        %vm839 = vcmp.eq.s32.totalorder %v834, 2
        %v840 = vxor.u32 %v823, 2147483648
        %v841 = vsel %vm839, %v840, %v831
        %v842 = vsel %vm835, %v838, %v841
        %v843 = vsel %vm832, nan, %v842
        %v844 = vand.u32 2147483647, %v503
        %vm845 = vcmp.le.f32.partialorder %v844, 0.7853982
        %vm846 = vcmp.lt.s32.totalorder %v503, 0
        %v847 = vand.u32 %v503, 2139095040
        %v848 = vshrl.u32 %v847, 23
        %v849 = vsub.s32 %v848, 127
        %v850 = vand.u32 2147483647, %v503
        %v851 = vand.u32 %v850, 8388607
        %v852 = vor.u32 %v851, 8388608
        %v853 = vsub.s32 0, %v852
        %v854 = vadd.s32 %v849, 1
        %vm855 = vcmp.gt.s32.totalorder %v854, 0
        %v856 = vsel %vm855, %v854, 0
        %v857 = vshrl.u32 %v856, 5
        %v858 = vand.u32 %v856, 31
        %v859 = vsub.s32 32, %v858
        %v860 = vshrl.u32 683565275, %v859
        %v861 = vshll.u32 683565275, %v858
        %v862 = vshrl.u32 2475754826, %v859
        %v863 = vor.u32 %v861, %v862
        %v864 = vshll.u32 2475754826, %v858
        %v865 = vshrl.u32 2131351028, %v859
        %v866 = vor.u32 %v864, %v865
        %v867 = vshll.u32 2131351028, %v858
        %v868 = vshrl.u32 2102212464, %v859
        %v869 = vor.u32 %v867, %v868
        %v870 = vshll.u32 2102212464, %v858
        %v871 = vshrl.u32 920167782, %v859
        %v872 = vor.u32 %v870, %v871
        %v873 = vshll.u32 920167782, %v858
        %v874 = vshrl.u32 1326507024, %v859
        %v875 = vor.u32 %v873, %v874
        %vm876 = vcmp.lt.s32.totalorder %v857, 1
        %vm877 = vcmp.lt.s32.totalorder %v857, 2
        %vm878 = vcmp.lt.s32.totalorder %v857, 3
        %vm879 = vcmp.lt.s32.totalorder %v857, 4
        %v880 = vsel %vm876, %v860, %v863
        %v881 = vsel %vm879, %v869, 2102212464
        %v882 = vsel %vm878, %v866, %v881
        %v883 = vsel %vm877, %v880, %v882
        %v884 = vsel %vm876, %v863, %v866
        %v885 = vsel %vm879, %v872, 920167782
        %v886 = vsel %vm878, %v869, %v885
        %v887 = vsel %vm877, %v884, %v886
        %v888 = vsel %vm876, %v866, %v869
        %v889 = vsel %vm879, %v875, 1326507024
        %v890 = vsel %vm878, %v872, %v889
        %v891 = vsel %vm877, %v888, %v890
        %v892 = vshll.u32 %v852, 8
        %v893 = vand.u32 %v892, 65535
        %v894 = vshrl.u32 %v892, 16
        %v895 = vand.u32 %v891, 65535
        %v896 = vshrl.u32 %v891, 16
        %v897 = vmul.u32 %v893, %v895
        %v898 = vmul.u32 %v893, %v896
        %v899 = vmul.u32 %v894, %v895
        %v900 = vmul.u32 %v894, %v896
        %v901 = vshll.u32 %v898, 16
        %v902 = vshrl.u32 %v898, 16
        %v903 = vshll.u32 %v899, 16
        %v904 = vshrl.u32 %v899, 16
        %vm905 = vc.u32 %v897, %v901
        %v906 = vsel %vm905, 1, 0
        %v907 = vadd.s32 %v897, %v901
        %v908 = vadd.s32 %v900, %v906
        %vm909 = vc.u32 %v907, %v903
        %v910 = vsel %vm909, 1, 0
        %v911 = vadd.s32 %v907, %v903
        %v912 = vadd.s32 %v908, %v910
        %v913 = vadd.s32 %v912, %v902
        %v914 = vadd.s32 %v913, %v904
        %v915 = vand.u32 %v892, 65535
        %v916 = vshrl.u32 %v892, 16
        %v917 = vand.u32 %v887, 65535
        %v918 = vshrl.u32 %v887, 16
        %v919 = vmul.u32 %v915, %v917
        %v920 = vmul.u32 %v915, %v918
        %v921 = vmul.u32 %v916, %v917
        %v922 = vmul.u32 %v916, %v918
        %v923 = vshll.u32 %v920, 16
        %v924 = vshrl.u32 %v920, 16
        %v925 = vshll.u32 %v921, 16
        %v926 = vshrl.u32 %v921, 16
        %vm927 = vc.u32 %v919, %v923
        %v928 = vsel %vm927, 1, 0
        %v929 = vadd.s32 %v919, %v923
        %v930 = vadd.s32 %v922, %v928
        %vm931 = vc.u32 %v929, %v925
        %v932 = vsel %vm931, 1, 0
        %v933 = vadd.s32 %v929, %v925
        %v934 = vadd.s32 %v930, %v932
        %v935 = vadd.s32 %v934, %v924
        %v936 = vadd.s32 %v935, %v926
        %v937 = vmul.u32 %v892, %v883
        %v938 = vadd.s32 %v914, %v933
        %vm939 = vc.u32 %v914, %v933
        %v940 = vadd.s32 %v936, 1
        %v941 = vsel %vm939, %v940, %v936
        %v942 = vadd.s32 %v937, %v941
        %v943 = vadd.s32 %v942, 536870912
        %v944 = vshrl.u32 %v943, 30
        %v945 = vshll.u32 %v944, 30
        %v946 = vsub.s32 %v942, %v945
        %vm947 = vcmp.lt.s32.totalorder %v946, 0
        %v948 = vsub.s32 0, %v946
        %v949 = vsel %vm947, %v948, %v946
        %v950 = vclz %v949
        %v951 = vsub.s32 %v950, 2
        %vm952 = vcmp.gt.s32.totalorder 0, %v951
        %v953 = vsel %vm952, 0, %v951
        %v954 = vsub.s32 32, %v953
        %v955 = vshll.u32 %v946, %v953
        %v956 = vshrl.u32 %v938, %v954
        %v957 = vor.u32 %v955, %v956
        %v958 = vsub.s32 4294967266, %v953
        %v959 = vadd.s32 %v958, 127
        %v960 = vshll.u32 %v959, 23
        %v961 = vor.u32 4788187, %v960
        %v962 = vand.u32 2147483647, %v961
        %v964 = vcvt.s32.f32 %v957
        %v965 = vmul.f32 %v964, %v962
        %v966 = vxor.u32 %v965, 2147483648
        %v967 = vsel %vm846, %v966, %v965
        %v968 = vsub.s32 4, %v944
        %v969 = vsel %vm846, %v968, %v944
        %v970 = vsel %vm845, %v503, %v967
        %v971 = vsel %vm845, 0, %v969
        %v972 = vmul.f32 %v970, %v970
        %v973 = vmul.f32 %v972, -0.001358992
        %v974 = vadd.f32 %v973, 0.041655596
        %v975 = vmul.f32 %v972, %v974
        %v976 = vadd.f32 %v975, -0.4999988
        %v977 = vmul.f32 %v972, %v976
        %v978 = vadd.f32 1.0, %v977
        %v979 = vmul.f32 %v970, %v970
        %v980 = vmul.f32 %v979, -0.00019511016
        %v981 = vadd.f32 %v980, 0.008332121
        %v982 = vmul.f32 %v979, %v981
        %v983 = vadd.f32 %v982, -0.16666654
        %v984 = vmul.f32 %v979, %v983
        %v985 = vadd.f32 %v984, 1.0
        %v986 = vmul.f32 %v985, %v970
        %vm987 = vweird.f32 %v503
        %v988 = vadd.s32 %v971, 3
        %v989 = vand.u32 %v988, 3
        %vm990 = vcmp.lt.s32.totalorder %v989, 2
        %vm991 = vcmp.eq.s32.totalorder %v989, 0
        %v992 = vxor.u32 %v986, 2147483648
        %v993 = vsel %vm991, %v978, %v992
        %vm994 = vcmp.eq.s32.totalorder %v989, 2
        %v995 = vxor.u32 %v978, 2147483648
        %v996 = vsel %vm994, %v995, %v986
        %v997 = vsel %vm990, %v993, %v996
        %v998 = vsel %vm987, nan, %v997
        %v999 = vand.u32 2147483647, %v571
        %vm1000 = vcmp.le.f32.partialorder %v999, 0.7853982
        %vm1001 = vcmp.lt.s32.totalorder %v571, 0
        %v1002 = vand.u32 %v571, 2139095040
        %v1003 = vshrl.u32 %v1002, 23
        %v1004 = vsub.s32 %v1003, 127
        %v1005 = vand.u32 2147483647, %v571
        %v1006 = vand.u32 %v1005, 8388607
        %v1007 = vor.u32 %v1006, 8388608
        %v1008 = vsub.s32 0, %v1007
        %v1009 = vadd.s32 %v1004, 1
        %vm1010 = vcmp.gt.s32.totalorder %v1009, 0
        %v1011 = vsel %vm1010, %v1009, 0
        %v1012 = vshrl.u32 %v1011, 5
        %v1013 = vand.u32 %v1011, 31
        %v1014 = vsub.s32 32, %v1013
        %v1015 = vshrl.u32 683565275, %v1014
        %v1016 = vshll.u32 683565275, %v1013
        %v1017 = vshrl.u32 2475754826, %v1014
        %v1018 = vor.u32 %v1016, %v1017
        %v1019 = vshll.u32 2475754826, %v1013
        %v1020 = vshrl.u32 2131351028, %v1014
        %v1021 = vor.u32 %v1019, %v1020
        %v1022 = vshll.u32 2131351028, %v1013
        %v1023 = vshrl.u32 2102212464, %v1014
        %v1024 = vor.u32 %v1022, %v1023
        %v1025 = vshll.u32 2102212464, %v1013
        %v1026 = vshrl.u32 920167782, %v1014
        %v1027 = vor.u32 %v1025, %v1026
        %v1028 = vshll.u32 920167782, %v1013
        %v1029 = vshrl.u32 1326507024, %v1014
        %v1030 = vor.u32 %v1028, %v1029
        %vm1031 = vcmp.lt.s32.totalorder %v1012, 1
        %vm1032 = vcmp.lt.s32.totalorder %v1012, 2
        %vm1033 = vcmp.lt.s32.totalorder %v1012, 3
        %vm1034 = vcmp.lt.s32.totalorder %v1012, 4
        %v1035 = vsel %vm1031, %v1015, %v1018
        %v1036 = vsel %vm1034, %v1024, 2102212464
        %v1037 = vsel %vm1033, %v1021, %v1036
        %v1038 = vsel %vm1032, %v1035, %v1037
        %v1039 = vsel %vm1031, %v1018, %v1021
        %v1040 = vsel %vm1034, %v1027, 920167782
        %v1041 = vsel %vm1033, %v1024, %v1040
        %v1042 = vsel %vm1032, %v1039, %v1041
        %v1043 = vsel %vm1031, %v1021, %v1024
        %v1044 = vsel %vm1034, %v1030, 1326507024
        %v1045 = vsel %vm1033, %v1027, %v1044
        %v1046 = vsel %vm1032, %v1043, %v1045
        %v1047 = vshll.u32 %v1007, 8
        %v1048 = vand.u32 %v1047, 65535
        %v1049 = vshrl.u32 %v1047, 16
        %v1050 = vand.u32 %v1046, 65535
        %v1051 = vshrl.u32 %v1046, 16
        %v1052 = vmul.u32 %v1048, %v1050
        %v1053 = vmul.u32 %v1048, %v1051
        %v1054 = vmul.u32 %v1049, %v1050
        %v1055 = vmul.u32 %v1049, %v1051
        %v1056 = vshll.u32 %v1053, 16
        %v1057 = vshrl.u32 %v1053, 16
        %v1058 = vshll.u32 %v1054, 16
        %v1059 = vshrl.u32 %v1054, 16
        %vm1060 = vc.u32 %v1052, %v1056
        %v1061 = vsel %vm1060, 1, 0
        %v1062 = vadd.s32 %v1052, %v1056
        %v1063 = vadd.s32 %v1055, %v1061
        %vm1064 = vc.u32 %v1062, %v1058
        %v1065 = vsel %vm1064, 1, 0
        %v1066 = vadd.s32 %v1062, %v1058
        %v1067 = vadd.s32 %v1063, %v1065
        %v1068 = vadd.s32 %v1067, %v1057
        %v1069 = vadd.s32 %v1068, %v1059
        %v1070 = vand.u32 %v1047, 65535
        %v1071 = vshrl.u32 %v1047, 16
        %v1072 = vand.u32 %v1042, 65535
        %v1073 = vshrl.u32 %v1042, 16
        %v1074 = vmul.u32 %v1070, %v1072
        %v1075 = vmul.u32 %v1070, %v1073
        %v1076 = vmul.u32 %v1071, %v1072
        %v1077 = vmul.u32 %v1071, %v1073
        %v1078 = vshll.u32 %v1075, 16
        %v1079 = vshrl.u32 %v1075, 16
        %v1080 = vshll.u32 %v1076, 16
        %v1081 = vshrl.u32 %v1076, 16
        %vm1082 = vc.u32 %v1074, %v1078
        %v1083 = vsel %vm1082, 1, 0
        %v1084 = vadd.s32 %v1074, %v1078
        %v1085 = vadd.s32 %v1077, %v1083
        %vm1086 = vc.u32 %v1084, %v1080
        %v1087 = vsel %vm1086, 1, 0
        %v1088 = vadd.s32 %v1084, %v1080
        %v1089 = vadd.s32 %v1085, %v1087
        %v1090 = vadd.s32 %v1089, %v1079
        %v1091 = vadd.s32 %v1090, %v1081
        %v1092 = vmul.u32 %v1047, %v1038
        %v1093 = vadd.s32 %v1069, %v1088
        %vm1094 = vc.u32 %v1069, %v1088
        %v1095 = vadd.s32 %v1091, 1
        %v1096 = vsel %vm1094, %v1095, %v1091
        %v1097 = vadd.s32 %v1092, %v1096
        %v1098 = vadd.s32 %v1097, 536870912
        %v1099 = vshrl.u32 %v1098, 30
        %v1100 = vshll.u32 %v1099, 30
        %v1101 = vsub.s32 %v1097, %v1100
        %vm1102 = vcmp.lt.s32.totalorder %v1101, 0
        %v1103 = vsub.s32 0, %v1101
        %v1104 = vsel %vm1102, %v1103, %v1101
        %v1105 = vclz %v1104
        %v1106 = vsub.s32 %v1105, 2
        %vm1107 = vcmp.gt.s32.totalorder 0, %v1106
        %v1108 = vsel %vm1107, 0, %v1106
        %v1109 = vsub.s32 32, %v1108
        %v1110 = vshll.u32 %v1101, %v1108
        %v1111 = vshrl.u32 %v1093, %v1109
        %v1112 = vor.u32 %v1110, %v1111
        %v1113 = vsub.s32 4294967266, %v1108
        %v1114 = vadd.s32 %v1113, 127
        %v1115 = vshll.u32 %v1114, 23
        %v1116 = vor.u32 4788187, %v1115
        %v1117 = vand.u32 2147483647, %v1116
        %v1119 = vcvt.s32.f32 %v1112
        %v1120 = vmul.f32 %v1119, %v1117
        %v1121 = vxor.u32 %v1120, 2147483648
        %v1122 = vsel %vm1001, %v1121, %v1120
        %v1123 = vsub.s32 4, %v1099
        %v1124 = vsel %vm1001, %v1123, %v1099
        %v1125 = vsel %vm1000, %v571, %v1122
        %v1126 = vsel %vm1000, 0, %v1124
        %v1127 = vmul.f32 %v1125, %v1125
        %v1128 = vmul.f32 %v1127, -0.001358992
        %v1129 = vadd.f32 %v1128, 0.041655596
        %v1130 = vmul.f32 %v1127, %v1129
        %v1131 = vadd.f32 %v1130, -0.4999988
        %v1132 = vmul.f32 %v1127, %v1131
        %v1133 = vadd.f32 1.0, %v1132
        %v1134 = vmul.f32 %v1125, %v1125
        %v1135 = vmul.f32 %v1134, -0.00019511016
        %v1136 = vadd.f32 %v1135, 0.008332121
        %v1137 = vmul.f32 %v1134, %v1136
        %v1138 = vadd.f32 %v1137, -0.16666654
        %v1139 = vmul.f32 %v1134, %v1138
        %v1140 = vadd.f32 %v1139, 1.0
        %v1141 = vmul.f32 %v1140, %v1125
        %vm1142 = vweird.f32 %v571
        %v1143 = vadd.s32 %v1126, 3
        %v1144 = vand.u32 %v1143, 3
        %vm1145 = vcmp.lt.s32.totalorder %v1144, 2
        %vm1146 = vcmp.eq.s32.totalorder %v1144, 0
        %v1147 = vxor.u32 %v1141, 2147483648
        %v1148 = vsel %vm1146, %v1133, %v1147
        %vm1149 = vcmp.eq.s32.totalorder %v1144, 2
        %v1150 = vxor.u32 %v1133, 2147483648
        %v1151 = vsel %vm1149, %v1150, %v1141
        %v1152 = vsel %vm1145, %v1148, %v1151
        %v1153 = vsel %vm1142, nan, %v1152
        %v1154 = vand.u32 2147483647, %v639
        %vm1155 = vcmp.le.f32.partialorder %v1154, 0.7853982
        %vm1156 = vcmp.lt.s32.totalorder %v639, 0
        %v1157 = vand.u32 %v639, 2139095040
        %v1158 = vshrl.u32 %v1157, 23
        %v1159 = vsub.s32 %v1158, 127
        %v1160 = vand.u32 2147483647, %v639
        %v1161 = vand.u32 %v1160, 8388607
        %v1162 = vor.u32 %v1161, 8388608
        %v1163 = vsub.s32 0, %v1162
        %v1164 = vadd.s32 %v1159, 1
        %vm1165 = vcmp.gt.s32.totalorder %v1164, 0
        %v1166 = vsel %vm1165, %v1164, 0
        %v1167 = vshrl.u32 %v1166, 5
        %v1168 = vand.u32 %v1166, 31
        %v1169 = vsub.s32 32, %v1168
        %v1170 = vshrl.u32 683565275, %v1169
        %v1171 = vshll.u32 683565275, %v1168
        %v1172 = vshrl.u32 2475754826, %v1169
        %v1173 = vor.u32 %v1171, %v1172
        %v1174 = vshll.u32 2475754826, %v1168
        %v1175 = vshrl.u32 2131351028, %v1169
        %v1176 = vor.u32 %v1174, %v1175
        %v1177 = vshll.u32 2131351028, %v1168
        %v1178 = vshrl.u32 2102212464, %v1169
        %v1179 = vor.u32 %v1177, %v1178
        %v1180 = vshll.u32 2102212464, %v1168
        %v1181 = vshrl.u32 920167782, %v1169
        %v1182 = vor.u32 %v1180, %v1181
        %v1183 = vshll.u32 920167782, %v1168
        %v1184 = vshrl.u32 1326507024, %v1169
        %v1185 = vor.u32 %v1183, %v1184
        %vm1186 = vcmp.lt.s32.totalorder %v1167, 1
        %vm1187 = vcmp.lt.s32.totalorder %v1167, 2
        %vm1188 = vcmp.lt.s32.totalorder %v1167, 3
        %vm1189 = vcmp.lt.s32.totalorder %v1167, 4
        %v1190 = vsel %vm1186, %v1170, %v1173
        %v1191 = vsel %vm1189, %v1179, 2102212464
        %v1192 = vsel %vm1188, %v1176, %v1191
        %v1193 = vsel %vm1187, %v1190, %v1192
        %v1194 = vsel %vm1186, %v1173, %v1176
        %v1195 = vsel %vm1189, %v1182, 920167782
        %v1196 = vsel %vm1188, %v1179, %v1195
        %v1197 = vsel %vm1187, %v1194, %v1196
        %v1198 = vsel %vm1186, %v1176, %v1179
        %v1199 = vsel %vm1189, %v1185, 1326507024
        %v1200 = vsel %vm1188, %v1182, %v1199
        %v1201 = vsel %vm1187, %v1198, %v1200
        %v1202 = vshll.u32 %v1162, 8
        %v1203 = vand.u32 %v1202, 65535
        %v1204 = vshrl.u32 %v1202, 16
        %v1205 = vand.u32 %v1201, 65535
        %v1206 = vshrl.u32 %v1201, 16
        %v1207 = vmul.u32 %v1203, %v1205
        %v1208 = vmul.u32 %v1203, %v1206
        %v1209 = vmul.u32 %v1204, %v1205
        %v1210 = vmul.u32 %v1204, %v1206
        %v1211 = vshll.u32 %v1208, 16
        %v1212 = vshrl.u32 %v1208, 16
        %v1213 = vshll.u32 %v1209, 16
        %v1214 = vshrl.u32 %v1209, 16
        %vm1215 = vc.u32 %v1207, %v1211
        %v1216 = vsel %vm1215, 1, 0
        %v1217 = vadd.s32 %v1207, %v1211
        %v1218 = vadd.s32 %v1210, %v1216
        %vm1219 = vc.u32 %v1217, %v1213
        %v1220 = vsel %vm1219, 1, 0
        %v1221 = vadd.s32 %v1217, %v1213
        %v1222 = vadd.s32 %v1218, %v1220
        %v1223 = vadd.s32 %v1222, %v1212
        %v1224 = vadd.s32 %v1223, %v1214
        %v1225 = vand.u32 %v1202, 65535
        %v1226 = vshrl.u32 %v1202, 16
        %v1227 = vand.u32 %v1197, 65535
        %v1228 = vshrl.u32 %v1197, 16
        %v1229 = vmul.u32 %v1225, %v1227
        %v1230 = vmul.u32 %v1225, %v1228
        %v1231 = vmul.u32 %v1226, %v1227
        %v1232 = vmul.u32 %v1226, %v1228
        %v1233 = vshll.u32 %v1230, 16
        %v1234 = vshrl.u32 %v1230, 16
        %v1235 = vshll.u32 %v1231, 16
        %v1236 = vshrl.u32 %v1231, 16
        %vm1237 = vc.u32 %v1229, %v1233
        %v1238 = vsel %vm1237, 1, 0
        %v1239 = vadd.s32 %v1229, %v1233
        %v1240 = vadd.s32 %v1232, %v1238
        %vm1241 = vc.u32 %v1239, %v1235
        %v1242 = vsel %vm1241, 1, 0
        %v1243 = vadd.s32 %v1239, %v1235
        %v1244 = vadd.s32 %v1240, %v1242
        %v1245 = vadd.s32 %v1244, %v1234
        %v1246 = vadd.s32 %v1245, %v1236
        %v1247 = vmul.u32 %v1202, %v1193
        %v1248 = vadd.s32 %v1224, %v1243
        %vm1249 = vc.u32 %v1224, %v1243
        %v1250 = vadd.s32 %v1246, 1
        %v1251 = vsel %vm1249, %v1250, %v1246
        %v1252 = vadd.s32 %v1247, %v1251
        %v1253 = vadd.s32 %v1252, 536870912
        %v1254 = vshrl.u32 %v1253, 30
        %v1255 = vshll.u32 %v1254, 30
        %v1256 = vsub.s32 %v1252, %v1255
        %vm1257 = vcmp.lt.s32.totalorder %v1256, 0
        %v1258 = vsub.s32 0, %v1256
        %v1259 = vsel %vm1257, %v1258, %v1256
        %v1260 = vclz %v1259
        %v1261 = vsub.s32 %v1260, 2
        %vm1262 = vcmp.gt.s32.totalorder 0, %v1261
        %v1263 = vsel %vm1262, 0, %v1261
        %v1264 = vsub.s32 32, %v1263
        %v1265 = vshll.u32 %v1256, %v1263
        %v1266 = vshrl.u32 %v1248, %v1264
        %v1267 = vor.u32 %v1265, %v1266
        %v1268 = vsub.s32 4294967266, %v1263
        %v1269 = vadd.s32 %v1268, 127
        %v1270 = vshll.u32 %v1269, 23
        %v1271 = vor.u32 4788187, %v1270
        %v1272 = vand.u32 2147483647, %v1271
        %v1274 = vcvt.s32.f32 %v1267
        %v1275 = vmul.f32 %v1274, %v1272
        %v1276 = vxor.u32 %v1275, 2147483648
        %v1277 = vsel %vm1156, %v1276, %v1275
        %v1278 = vsub.s32 4, %v1254
        %v1279 = vsel %vm1156, %v1278, %v1254
        %v1280 = vsel %vm1155, %v639, %v1277
        %v1281 = vsel %vm1155, 0, %v1279
        %v1282 = vmul.f32 %v1280, %v1280
        %v1283 = vmul.f32 %v1282, -0.001358992
        %v1284 = vadd.f32 %v1283, 0.041655596
        %v1285 = vmul.f32 %v1282, %v1284
        %v1286 = vadd.f32 %v1285, -0.4999988
        %v1287 = vmul.f32 %v1282, %v1286
        %v1288 = vadd.f32 1.0, %v1287
        %v1289 = vmul.f32 %v1280, %v1280
        %v1290 = vmul.f32 %v1289, -0.00019511016
        %v1291 = vadd.f32 %v1290, 0.008332121
        %v1292 = vmul.f32 %v1289, %v1291
        %v1293 = vadd.f32 %v1292, -0.16666654
        %v1294 = vmul.f32 %v1289, %v1293
        %v1295 = vadd.f32 %v1294, 1.0
        %v1296 = vmul.f32 %v1295, %v1280
        %vm1297 = vweird.f32 %v639
        %v1298 = vadd.s32 %v1281, 3
        %v1299 = vand.u32 %v1298, 3
        %vm1300 = vcmp.lt.s32.totalorder %v1299, 2
        %vm1301 = vcmp.eq.s32.totalorder %v1299, 0
        %v1302 = vxor.u32 %v1296, 2147483648
        %v1303 = vsel %vm1301, %v1288, %v1302
        %vm1304 = vcmp.eq.s32.totalorder %v1299, 2
        %v1305 = vxor.u32 %v1288, 2147483648
        %v1306 = vsel %vm1304, %v1305, %v1296
        %v1307 = vsel %vm1300, %v1303, %v1306
        %v1308 = vsel %vm1297, nan, %v1307
        %v1309 = vand.u32 2147483647, %v438
        %vm1310 = vcmp.le.f32.partialorder %v1309, 0.7853982
        %vm1311 = vcmp.lt.s32.totalorder %v438, 0
        %v1312 = vand.u32 %v438, 2139095040
        %v1313 = vshrl.u32 %v1312, 23
        %v1314 = vsub.s32 %v1313, 127
        %v1315 = vand.u32 2147483647, %v438
        %v1316 = vand.u32 %v1315, 8388607
        %v1317 = vor.u32 %v1316, 8388608
        %v1318 = vsub.s32 0, %v1317
        %v1319 = vadd.s32 %v1314, 1
        %vm1320 = vcmp.gt.s32.totalorder %v1319, 0
        %v1321 = vsel %vm1320, %v1319, 0
        %v1322 = vshrl.u32 %v1321, 5
        %v1323 = vand.u32 %v1321, 31
        %v1324 = vsub.s32 32, %v1323
        %v1325 = vshrl.u32 683565275, %v1324
        %v1326 = vshll.u32 683565275, %v1323
        %v1327 = vshrl.u32 2475754826, %v1324
        %v1328 = vor.u32 %v1326, %v1327
        %v1329 = vshll.u32 2475754826, %v1323
        %v1330 = vshrl.u32 2131351028, %v1324
        %v1331 = vor.u32 %v1329, %v1330
        %v1332 = vshll.u32 2131351028, %v1323
        %v1333 = vshrl.u32 2102212464, %v1324
        %v1334 = vor.u32 %v1332, %v1333
        %v1335 = vshll.u32 2102212464, %v1323
        %v1336 = vshrl.u32 920167782, %v1324
        %v1337 = vor.u32 %v1335, %v1336
        %v1338 = vshll.u32 920167782, %v1323
        %v1339 = vshrl.u32 1326507024, %v1324
        %v1340 = vor.u32 %v1338, %v1339
        %vm1341 = vcmp.lt.s32.totalorder %v1322, 1
        %vm1342 = vcmp.lt.s32.totalorder %v1322, 2
        %vm1343 = vcmp.lt.s32.totalorder %v1322, 3
        %vm1344 = vcmp.lt.s32.totalorder %v1322, 4
        %v1345 = vsel %vm1341, %v1325, %v1328
        %v1346 = vsel %vm1344, %v1334, 2102212464
        %v1347 = vsel %vm1343, %v1331, %v1346
        %v1348 = vsel %vm1342, %v1345, %v1347
        %v1349 = vsel %vm1341, %v1328, %v1331
        %v1350 = vsel %vm1344, %v1337, 920167782
        %v1351 = vsel %vm1343, %v1334, %v1350
        %v1352 = vsel %vm1342, %v1349, %v1351
        %v1353 = vsel %vm1341, %v1331, %v1334
        %v1354 = vsel %vm1344, %v1340, 1326507024
        %v1355 = vsel %vm1343, %v1337, %v1354
        %v1356 = vsel %vm1342, %v1353, %v1355
        %v1357 = vshll.u32 %v1317, 8
        %v1358 = vand.u32 %v1357, 65535
        %v1359 = vshrl.u32 %v1357, 16
        %v1360 = vand.u32 %v1356, 65535
        %v1361 = vshrl.u32 %v1356, 16
        %v1362 = vmul.u32 %v1358, %v1360
        %v1363 = vmul.u32 %v1358, %v1361
        %v1364 = vmul.u32 %v1359, %v1360
        %v1365 = vmul.u32 %v1359, %v1361
        %v1366 = vshll.u32 %v1363, 16
        %v1367 = vshrl.u32 %v1363, 16
        %v1368 = vshll.u32 %v1364, 16
        %v1369 = vshrl.u32 %v1364, 16
        %vm1370 = vc.u32 %v1362, %v1366
        %v1371 = vsel %vm1370, 1, 0
        %v1372 = vadd.s32 %v1362, %v1366
        %v1373 = vadd.s32 %v1365, %v1371
        %vm1374 = vc.u32 %v1372, %v1368
        %v1375 = vsel %vm1374, 1, 0
        %v1376 = vadd.s32 %v1372, %v1368
        %v1377 = vadd.s32 %v1373, %v1375
        %v1378 = vadd.s32 %v1377, %v1367
        %v1379 = vadd.s32 %v1378, %v1369
        %v1380 = vand.u32 %v1357, 65535
        %v1381 = vshrl.u32 %v1357, 16
        %v1382 = vand.u32 %v1352, 65535
        %v1383 = vshrl.u32 %v1352, 16
        %v1384 = vmul.u32 %v1380, %v1382
        %v1385 = vmul.u32 %v1380, %v1383
        %v1386 = vmul.u32 %v1381, %v1382
        %v1387 = vmul.u32 %v1381, %v1383
        %v1388 = vshll.u32 %v1385, 16
        %v1389 = vshrl.u32 %v1385, 16
        %v1390 = vshll.u32 %v1386, 16
        %v1391 = vshrl.u32 %v1386, 16
        %vm1392 = vc.u32 %v1384, %v1388
        %v1393 = vsel %vm1392, 1, 0
        %v1394 = vadd.s32 %v1384, %v1388
        %v1395 = vadd.s32 %v1387, %v1393
        %vm1396 = vc.u32 %v1394, %v1390
        %v1397 = vsel %vm1396, 1, 0
        %v1398 = vadd.s32 %v1394, %v1390
        %v1399 = vadd.s32 %v1395, %v1397
        %v1400 = vadd.s32 %v1399, %v1389
        %v1401 = vadd.s32 %v1400, %v1391
        %v1402 = vmul.u32 %v1357, %v1348
        %v1403 = vadd.s32 %v1379, %v1398
        %vm1404 = vc.u32 %v1379, %v1398
        %v1405 = vadd.s32 %v1401, 1
        %v1406 = vsel %vm1404, %v1405, %v1401
        %v1407 = vadd.s32 %v1402, %v1406
        %v1408 = vadd.s32 %v1407, 536870912
        %v1409 = vshrl.u32 %v1408, 30
        %v1410 = vshll.u32 %v1409, 30
        %v1411 = vsub.s32 %v1407, %v1410
        %vm1412 = vcmp.lt.s32.totalorder %v1411, 0
        %v1413 = vsub.s32 0, %v1411
        %v1414 = vsel %vm1412, %v1413, %v1411
        %v1415 = vclz %v1414
        %v1416 = vsub.s32 %v1415, 2
        %vm1417 = vcmp.gt.s32.totalorder 0, %v1416
        %v1418 = vsel %vm1417, 0, %v1416
        %v1419 = vsub.s32 32, %v1418
        %v1420 = vshll.u32 %v1411, %v1418
        %v1421 = vshrl.u32 %v1403, %v1419
        %v1422 = vor.u32 %v1420, %v1421
        %v1423 = vsub.s32 4294967266, %v1418
        %v1424 = vadd.s32 %v1423, 127
        %v1425 = vshll.u32 %v1424, 23
        %v1426 = vor.u32 4788187, %v1425
        %v1427 = vand.u32 2147483647, %v1426
        %v1429 = vcvt.s32.f32 %v1422
        %v1430 = vmul.f32 %v1429, %v1427
        %v1431 = vxor.u32 %v1430, 2147483648
        %v1432 = vsel %vm1311, %v1431, %v1430
        %v1433 = vsub.s32 4, %v1409
        %v1434 = vsel %vm1311, %v1433, %v1409
        %v1435 = vsel %vm1310, %v438, %v1432
        %v1436 = vsel %vm1310, 0, %v1434
        %v1437 = vmul.f32 %v1435, %v1435
        %v1438 = vmul.f32 %v1437, -0.001358992
        %v1439 = vadd.f32 %v1438, 0.041655596
        %v1440 = vmul.f32 %v1437, %v1439
        %v1441 = vadd.f32 %v1440, -0.4999988
        %v1442 = vmul.f32 %v1437, %v1441
        %v1443 = vadd.f32 1.0, %v1442
        %v1444 = vmul.f32 %v1435, %v1435
        %v1445 = vmul.f32 %v1444, -0.00019511016
        %v1446 = vadd.f32 %v1445, 0.008332121
        %v1447 = vmul.f32 %v1444, %v1446
        %v1448 = vadd.f32 %v1447, -0.16666654
        %v1449 = vmul.f32 %v1444, %v1448
        %v1450 = vadd.f32 %v1449, 1.0
        %v1451 = vmul.f32 %v1450, %v1435
        %vm1452 = vweird.f32 %v438
        %v1453 = vadd.s32 %v1436, 3
        %v1454 = vand.u32 %v1453, 3
        %vm1455 = vcmp.lt.s32.totalorder %v1454, 2
        %vm1456 = vcmp.eq.s32.totalorder %v1454, 0
        %v1457 = vxor.u32 %v1451, 2147483648
        %v1458 = vsel %vm1456, %v1443, %v1457
        %vm1459 = vcmp.eq.s32.totalorder %v1454, 2
        %v1460 = vxor.u32 %v1443, 2147483648
        %v1461 = vsel %vm1459, %v1460, %v1451
        %v1462 = vsel %vm1455, %v1458, %v1461
        %v1463 = vsel %vm1452, nan, %v1462
        %v1464 = vand.u32 2147483647, %v506
        %vm1465 = vcmp.le.f32.partialorder %v1464, 0.7853982
        %vm1466 = vcmp.lt.s32.totalorder %v506, 0
        %v1467 = vand.u32 %v506, 2139095040
        %v1468 = vshrl.u32 %v1467, 23
        %v1469 = vsub.s32 %v1468, 127
        %v1470 = vand.u32 2147483647, %v506
        %v1471 = vand.u32 %v1470, 8388607
        %v1472 = vor.u32 %v1471, 8388608
        %v1473 = vsub.s32 0, %v1472
        %v1474 = vadd.s32 %v1469, 1
        %vm1475 = vcmp.gt.s32.totalorder %v1474, 0
        %v1476 = vsel %vm1475, %v1474, 0
        %v1477 = vshrl.u32 %v1476, 5
        %v1478 = vand.u32 %v1476, 31
        %v1479 = vsub.s32 32, %v1478
        %v1480 = vshrl.u32 683565275, %v1479
        %v1481 = vshll.u32 683565275, %v1478
        %v1482 = vshrl.u32 2475754826, %v1479
        %v1483 = vor.u32 %v1481, %v1482
        %v1484 = vshll.u32 2475754826, %v1478
        %v1485 = vshrl.u32 2131351028, %v1479
        %v1486 = vor.u32 %v1484, %v1485
        %v1487 = vshll.u32 2131351028, %v1478
        %v1488 = vshrl.u32 2102212464, %v1479
        %v1489 = vor.u32 %v1487, %v1488
        %v1490 = vshll.u32 2102212464, %v1478
        %v1491 = vshrl.u32 920167782, %v1479
        %v1492 = vor.u32 %v1490, %v1491
        %v1493 = vshll.u32 920167782, %v1478
        %v1494 = vshrl.u32 1326507024, %v1479
        %v1495 = vor.u32 %v1493, %v1494
        %vm1496 = vcmp.lt.s32.totalorder %v1477, 1
        %vm1497 = vcmp.lt.s32.totalorder %v1477, 2
        %vm1498 = vcmp.lt.s32.totalorder %v1477, 3
        %vm1499 = vcmp.lt.s32.totalorder %v1477, 4
        %v1500 = vsel %vm1496, %v1480, %v1483
        %v1501 = vsel %vm1499, %v1489, 2102212464
        %v1502 = vsel %vm1498, %v1486, %v1501
        %v1503 = vsel %vm1497, %v1500, %v1502
        %v1504 = vsel %vm1496, %v1483, %v1486
        %v1505 = vsel %vm1499, %v1492, 920167782
        %v1506 = vsel %vm1498, %v1489, %v1505
        %v1507 = vsel %vm1497, %v1504, %v1506
        %v1508 = vsel %vm1496, %v1486, %v1489
        %v1509 = vsel %vm1499, %v1495, 1326507024
        %v1510 = vsel %vm1498, %v1492, %v1509
        %v1511 = vsel %vm1497, %v1508, %v1510
        %v1512 = vshll.u32 %v1472, 8
        %v1513 = vand.u32 %v1512, 65535
        %v1514 = vshrl.u32 %v1512, 16
        %v1515 = vand.u32 %v1511, 65535
        %v1516 = vshrl.u32 %v1511, 16
        %v1517 = vmul.u32 %v1513, %v1515
        %v1518 = vmul.u32 %v1513, %v1516
        %v1519 = vmul.u32 %v1514, %v1515
        %v1520 = vmul.u32 %v1514, %v1516
        %v1521 = vshll.u32 %v1518, 16
        %v1522 = vshrl.u32 %v1518, 16
        %v1523 = vshll.u32 %v1519, 16
        %v1524 = vshrl.u32 %v1519, 16
        %vm1525 = vc.u32 %v1517, %v1521
        %v1526 = vsel %vm1525, 1, 0
        %v1527 = vadd.s32 %v1517, %v1521
        %v1528 = vadd.s32 %v1520, %v1526
        %vm1529 = vc.u32 %v1527, %v1523
        %v1530 = vsel %vm1529, 1, 0
        %v1531 = vadd.s32 %v1527, %v1523
        %v1532 = vadd.s32 %v1528, %v1530
        %v1533 = vadd.s32 %v1532, %v1522
        %v1534 = vadd.s32 %v1533, %v1524
        %v1535 = vand.u32 %v1512, 65535
        %v1536 = vshrl.u32 %v1512, 16
        %v1537 = vand.u32 %v1507, 65535
        %v1538 = vshrl.u32 %v1507, 16
        %v1539 = vmul.u32 %v1535, %v1537
        %v1540 = vmul.u32 %v1535, %v1538
        %v1541 = vmul.u32 %v1536, %v1537
        %v1542 = vmul.u32 %v1536, %v1538
        %v1543 = vshll.u32 %v1540, 16
        %v1544 = vshrl.u32 %v1540, 16
        %v1545 = vshll.u32 %v1541, 16
        %v1546 = vshrl.u32 %v1541, 16
        %vm1547 = vc.u32 %v1539, %v1543
        %v1548 = vsel %vm1547, 1, 0
        %v1549 = vadd.s32 %v1539, %v1543
        %v1550 = vadd.s32 %v1542, %v1548
        %vm1551 = vc.u32 %v1549, %v1545
        %v1552 = vsel %vm1551, 1, 0
        %v1553 = vadd.s32 %v1549, %v1545
        %v1554 = vadd.s32 %v1550, %v1552
        %v1555 = vadd.s32 %v1554, %v1544
        %v1556 = vadd.s32 %v1555, %v1546
        %v1557 = vmul.u32 %v1512, %v1503
        %v1558 = vadd.s32 %v1534, %v1553
        %vm1559 = vc.u32 %v1534, %v1553
        %v1560 = vadd.s32 %v1556, 1
        %v1561 = vsel %vm1559, %v1560, %v1556
        %v1562 = vadd.s32 %v1557, %v1561
        %v1563 = vadd.s32 %v1562, 536870912
        %v1564 = vshrl.u32 %v1563, 30
        %v1565 = vshll.u32 %v1564, 30
        %v1566 = vsub.s32 %v1562, %v1565
        %vm1567 = vcmp.lt.s32.totalorder %v1566, 0
        %v1568 = vsub.s32 0, %v1566
        %v1569 = vsel %vm1567, %v1568, %v1566
        %v1570 = vclz %v1569
        %v1571 = vsub.s32 %v1570, 2
        %vm1572 = vcmp.gt.s32.totalorder 0, %v1571
        %v1573 = vsel %vm1572, 0, %v1571
        %v1574 = vsub.s32 32, %v1573
        %v1575 = vshll.u32 %v1566, %v1573
        %v1576 = vshrl.u32 %v1558, %v1574
        %v1577 = vor.u32 %v1575, %v1576
        %v1578 = vsub.s32 4294967266, %v1573
        %v1579 = vadd.s32 %v1578, 127
        %v1580 = vshll.u32 %v1579, 23
        %v1581 = vor.u32 4788187, %v1580
        %v1582 = vand.u32 2147483647, %v1581
        %v1584 = vcvt.s32.f32 %v1577
        %v1585 = vmul.f32 %v1584, %v1582
        %v1586 = vxor.u32 %v1585, 2147483648
        %v1587 = vsel %vm1466, %v1586, %v1585
        %v1588 = vsub.s32 4, %v1564
        %v1589 = vsel %vm1466, %v1588, %v1564
        %v1590 = vsel %vm1465, %v506, %v1587
        %v1591 = vsel %vm1465, 0, %v1589
        %v1592 = vmul.f32 %v1590, %v1590
        %v1593 = vmul.f32 %v1592, -0.001358992
        %v1594 = vadd.f32 %v1593, 0.041655596
        %v1595 = vmul.f32 %v1592, %v1594
        %v1596 = vadd.f32 %v1595, -0.4999988
        %v1597 = vmul.f32 %v1592, %v1596
        %v1598 = vadd.f32 1.0, %v1597
        %v1599 = vmul.f32 %v1590, %v1590
        %v1600 = vmul.f32 %v1599, -0.00019511016
        %v1601 = vadd.f32 %v1600, 0.008332121
        %v1602 = vmul.f32 %v1599, %v1601
        %v1603 = vadd.f32 %v1602, -0.16666654
        %v1604 = vmul.f32 %v1599, %v1603
        %v1605 = vadd.f32 %v1604, 1.0
        %v1606 = vmul.f32 %v1605, %v1590
        %vm1607 = vweird.f32 %v506
        %v1608 = vadd.s32 %v1591, 3
        %v1609 = vand.u32 %v1608, 3
        %vm1610 = vcmp.lt.s32.totalorder %v1609, 2
        %vm1611 = vcmp.eq.s32.totalorder %v1609, 0
        %v1612 = vxor.u32 %v1606, 2147483648
        %v1613 = vsel %vm1611, %v1598, %v1612
        %vm1614 = vcmp.eq.s32.totalorder %v1609, 2
        %v1615 = vxor.u32 %v1598, 2147483648
        %v1616 = vsel %vm1614, %v1615, %v1606
        %v1617 = vsel %vm1610, %v1613, %v1616
        %v1618 = vsel %vm1607, nan, %v1617
        %v1619 = vand.u32 2147483647, %v574
        %vm1620 = vcmp.le.f32.partialorder %v1619, 0.7853982
        %vm1621 = vcmp.lt.s32.totalorder %v574, 0
        %v1622 = vand.u32 %v574, 2139095040
        %v1623 = vshrl.u32 %v1622, 23
        %v1624 = vsub.s32 %v1623, 127
        %v1625 = vand.u32 2147483647, %v574
        %v1626 = vand.u32 %v1625, 8388607
        %v1627 = vor.u32 %v1626, 8388608
        %v1628 = vsub.s32 0, %v1627
        %v1629 = vadd.s32 %v1624, 1
        %vm1630 = vcmp.gt.s32.totalorder %v1629, 0
        %v1631 = vsel %vm1630, %v1629, 0
        %v1632 = vshrl.u32 %v1631, 5
        %v1633 = vand.u32 %v1631, 31
        %v1634 = vsub.s32 32, %v1633
        %v1635 = vshrl.u32 683565275, %v1634
        %v1636 = vshll.u32 683565275, %v1633
        %v1637 = vshrl.u32 2475754826, %v1634
        %v1638 = vor.u32 %v1636, %v1637
        %v1639 = vshll.u32 2475754826, %v1633
        %v1640 = vshrl.u32 2131351028, %v1634
        %v1641 = vor.u32 %v1639, %v1640
        %v1642 = vshll.u32 2131351028, %v1633
        %v1643 = vshrl.u32 2102212464, %v1634
        %v1644 = vor.u32 %v1642, %v1643
        %v1645 = vshll.u32 2102212464, %v1633
        %v1646 = vshrl.u32 920167782, %v1634
        %v1647 = vor.u32 %v1645, %v1646
        %v1648 = vshll.u32 920167782, %v1633
        %v1649 = vshrl.u32 1326507024, %v1634
        %v1650 = vor.u32 %v1648, %v1649
        %vm1651 = vcmp.lt.s32.totalorder %v1632, 1
        %vm1652 = vcmp.lt.s32.totalorder %v1632, 2
        %vm1653 = vcmp.lt.s32.totalorder %v1632, 3
        %vm1654 = vcmp.lt.s32.totalorder %v1632, 4
        %v1655 = vsel %vm1651, %v1635, %v1638
        %v1656 = vsel %vm1654, %v1644, 2102212464
        %v1657 = vsel %vm1653, %v1641, %v1656
        %v1658 = vsel %vm1652, %v1655, %v1657
        %v1659 = vsel %vm1651, %v1638, %v1641
        %v1660 = vsel %vm1654, %v1647, 920167782
        %v1661 = vsel %vm1653, %v1644, %v1660
        %v1662 = vsel %vm1652, %v1659, %v1661
        %v1663 = vsel %vm1651, %v1641, %v1644
        %v1664 = vsel %vm1654, %v1650, 1326507024
        %v1665 = vsel %vm1653, %v1647, %v1664
        %v1666 = vsel %vm1652, %v1663, %v1665
        %v1667 = vshll.u32 %v1627, 8
        %v1668 = vand.u32 %v1667, 65535
        %v1669 = vshrl.u32 %v1667, 16
        %v1670 = vand.u32 %v1666, 65535
        %v1671 = vshrl.u32 %v1666, 16
        %v1672 = vmul.u32 %v1668, %v1670
        %v1673 = vmul.u32 %v1668, %v1671
        %v1674 = vmul.u32 %v1669, %v1670
        %v1675 = vmul.u32 %v1669, %v1671
        %v1676 = vshll.u32 %v1673, 16
        %v1677 = vshrl.u32 %v1673, 16
        %v1678 = vshll.u32 %v1674, 16
        %v1679 = vshrl.u32 %v1674, 16
        %vm1680 = vc.u32 %v1672, %v1676
        %v1681 = vsel %vm1680, 1, 0
        %v1682 = vadd.s32 %v1672, %v1676
        %v1683 = vadd.s32 %v1675, %v1681
        %vm1684 = vc.u32 %v1682, %v1678
        %v1685 = vsel %vm1684, 1, 0
        %v1686 = vadd.s32 %v1682, %v1678
        %v1687 = vadd.s32 %v1683, %v1685
        %v1688 = vadd.s32 %v1687, %v1677
        %v1689 = vadd.s32 %v1688, %v1679
        %v1690 = vand.u32 %v1667, 65535
        %v1691 = vshrl.u32 %v1667, 16
        %v1692 = vand.u32 %v1662, 65535
        %v1693 = vshrl.u32 %v1662, 16
        %v1694 = vmul.u32 %v1690, %v1692
        %v1695 = vmul.u32 %v1690, %v1693
        %v1696 = vmul.u32 %v1691, %v1692
        %v1697 = vmul.u32 %v1691, %v1693
        %v1698 = vshll.u32 %v1695, 16
        %v1699 = vshrl.u32 %v1695, 16
        %v1700 = vshll.u32 %v1696, 16
        %v1701 = vshrl.u32 %v1696, 16
        %vm1702 = vc.u32 %v1694, %v1698
        %v1703 = vsel %vm1702, 1, 0
        %v1704 = vadd.s32 %v1694, %v1698
        %v1705 = vadd.s32 %v1697, %v1703
        %vm1706 = vc.u32 %v1704, %v1700
        %v1707 = vsel %vm1706, 1, 0
        %v1708 = vadd.s32 %v1704, %v1700
        %v1709 = vadd.s32 %v1705, %v1707
        %v1710 = vadd.s32 %v1709, %v1699
        %v1711 = vadd.s32 %v1710, %v1701
        %v1712 = vmul.u32 %v1667, %v1658
        %v1713 = vadd.s32 %v1689, %v1708
        %vm1714 = vc.u32 %v1689, %v1708
        %v1715 = vadd.s32 %v1711, 1
        %v1716 = vsel %vm1714, %v1715, %v1711
        %v1717 = vadd.s32 %v1712, %v1716
        %v1718 = vadd.s32 %v1717, 536870912
        %v1719 = vshrl.u32 %v1718, 30
        %v1720 = vshll.u32 %v1719, 30
        %v1721 = vsub.s32 %v1717, %v1720
        %vm1722 = vcmp.lt.s32.totalorder %v1721, 0
        %v1723 = vsub.s32 0, %v1721
        %v1724 = vsel %vm1722, %v1723, %v1721
        %v1725 = vclz %v1724
        %v1726 = vsub.s32 %v1725, 2
        %vm1727 = vcmp.gt.s32.totalorder 0, %v1726
        %v1728 = vsel %vm1727, 0, %v1726
        %v1729 = vsub.s32 32, %v1728
        %v1730 = vshll.u32 %v1721, %v1728
        %v1731 = vshrl.u32 %v1713, %v1729
        %v1732 = vor.u32 %v1730, %v1731
        %v1733 = vsub.s32 4294967266, %v1728
        %v1734 = vadd.s32 %v1733, 127
        %v1735 = vshll.u32 %v1734, 23
        %v1736 = vor.u32 4788187, %v1735
        %v1737 = vand.u32 2147483647, %v1736
        %v1739 = vcvt.s32.f32 %v1732
        %v1740 = vmul.f32 %v1739, %v1737
        %v1741 = vxor.u32 %v1740, 2147483648
        %v1742 = vsel %vm1621, %v1741, %v1740
        %v1743 = vsub.s32 4, %v1719
        %v1744 = vsel %vm1621, %v1743, %v1719
        %v1745 = vsel %vm1620, %v574, %v1742
        %v1746 = vsel %vm1620, 0, %v1744
        %v1747 = vmul.f32 %v1745, %v1745
        %v1748 = vmul.f32 %v1747, -0.001358992
        %v1749 = vadd.f32 %v1748, 0.041655596
        %v1750 = vmul.f32 %v1747, %v1749
        %v1751 = vadd.f32 %v1750, -0.4999988
        %v1752 = vmul.f32 %v1747, %v1751
        %v1753 = vadd.f32 1.0, %v1752
        %v1754 = vmul.f32 %v1745, %v1745
        %v1755 = vmul.f32 %v1754, -0.00019511016
        %v1756 = vadd.f32 %v1755, 0.008332121
        %v1757 = vmul.f32 %v1754, %v1756
        %v1758 = vadd.f32 %v1757, -0.16666654
        %v1759 = vmul.f32 %v1754, %v1758
        %v1760 = vadd.f32 %v1759, 1.0
        %v1761 = vmul.f32 %v1760, %v1745
        %vm1762 = vweird.f32 %v574
        %v1763 = vadd.s32 %v1746, 3
        %v1764 = vand.u32 %v1763, 3
        %vm1765 = vcmp.lt.s32.totalorder %v1764, 2
        %vm1766 = vcmp.eq.s32.totalorder %v1764, 0
        %v1767 = vxor.u32 %v1761, 2147483648
        %v1768 = vsel %vm1766, %v1753, %v1767
        %vm1769 = vcmp.eq.s32.totalorder %v1764, 2
        %v1770 = vxor.u32 %v1753, 2147483648
        %v1771 = vsel %vm1769, %v1770, %v1761
        %v1772 = vsel %vm1765, %v1768, %v1771
        %v1773 = vsel %vm1762, nan, %v1772
        %v1774 = vand.u32 2147483647, %v642
        %vm1775 = vcmp.le.f32.partialorder %v1774, 0.7853982
        %vm1776 = vcmp.lt.s32.totalorder %v642, 0
        %v1777 = vand.u32 %v642, 2139095040
        %v1778 = vshrl.u32 %v1777, 23
        %v1779 = vsub.s32 %v1778, 127
        %v1780 = vand.u32 2147483647, %v642
        %v1781 = vand.u32 %v1780, 8388607
        %v1782 = vor.u32 %v1781, 8388608
        %v1783 = vsub.s32 0, %v1782
        %v1784 = vadd.s32 %v1779, 1
        %vm1785 = vcmp.gt.s32.totalorder %v1784, 0
        %v1786 = vsel %vm1785, %v1784, 0
        %v1787 = vshrl.u32 %v1786, 5
        %v1788 = vand.u32 %v1786, 31
        %v1789 = vsub.s32 32, %v1788
        %v1790 = vshrl.u32 683565275, %v1789
        %v1791 = vshll.u32 683565275, %v1788
        %v1792 = vshrl.u32 2475754826, %v1789
        %v1793 = vor.u32 %v1791, %v1792
        %v1794 = vshll.u32 2475754826, %v1788
        %v1795 = vshrl.u32 2131351028, %v1789
        %v1796 = vor.u32 %v1794, %v1795
        %v1797 = vshll.u32 2131351028, %v1788
        %v1798 = vshrl.u32 2102212464, %v1789
        %v1799 = vor.u32 %v1797, %v1798
        %v1800 = vshll.u32 2102212464, %v1788
        %v1801 = vshrl.u32 920167782, %v1789
        %v1802 = vor.u32 %v1800, %v1801
        %v1803 = vshll.u32 920167782, %v1788
        %v1804 = vshrl.u32 1326507024, %v1789
        %v1805 = vor.u32 %v1803, %v1804
        %vm1806 = vcmp.lt.s32.totalorder %v1787, 1
        %vm1807 = vcmp.lt.s32.totalorder %v1787, 2
        %vm1808 = vcmp.lt.s32.totalorder %v1787, 3
        %vm1809 = vcmp.lt.s32.totalorder %v1787, 4
        %v1810 = vsel %vm1806, %v1790, %v1793
        %v1811 = vsel %vm1809, %v1799, 2102212464
        %v1812 = vsel %vm1808, %v1796, %v1811
        %v1813 = vsel %vm1807, %v1810, %v1812
        %v1814 = vsel %vm1806, %v1793, %v1796
        %v1815 = vsel %vm1809, %v1802, 920167782
        %v1816 = vsel %vm1808, %v1799, %v1815
        %v1817 = vsel %vm1807, %v1814, %v1816
        %v1818 = vsel %vm1806, %v1796, %v1799
        %v1819 = vsel %vm1809, %v1805, 1326507024
        %v1820 = vsel %vm1808, %v1802, %v1819
        %v1821 = vsel %vm1807, %v1818, %v1820
        %v1822 = vshll.u32 %v1782, 8
        %v1823 = vand.u32 %v1822, 65535
        %v1824 = vshrl.u32 %v1822, 16
        %v1825 = vand.u32 %v1821, 65535
        %v1826 = vshrl.u32 %v1821, 16
        %v1827 = vmul.u32 %v1823, %v1825
        %v1828 = vmul.u32 %v1823, %v1826
        %v1829 = vmul.u32 %v1824, %v1825
        %v1830 = vmul.u32 %v1824, %v1826
        %v1831 = vshll.u32 %v1828, 16
        %v1832 = vshrl.u32 %v1828, 16
        %v1833 = vshll.u32 %v1829, 16
        %v1834 = vshrl.u32 %v1829, 16
        %vm1835 = vc.u32 %v1827, %v1831
        %v1836 = vsel %vm1835, 1, 0
        %v1837 = vadd.s32 %v1827, %v1831
        %v1838 = vadd.s32 %v1830, %v1836
        %vm1839 = vc.u32 %v1837, %v1833
        %v1840 = vsel %vm1839, 1, 0
        %v1841 = vadd.s32 %v1837, %v1833
        %v1842 = vadd.s32 %v1838, %v1840
        %v1843 = vadd.s32 %v1842, %v1832
        %v1844 = vadd.s32 %v1843, %v1834
        %v1845 = vand.u32 %v1822, 65535
        %v1846 = vshrl.u32 %v1822, 16
        %v1847 = vand.u32 %v1817, 65535
        %v1848 = vshrl.u32 %v1817, 16
        %v1849 = vmul.u32 %v1845, %v1847
        %v1850 = vmul.u32 %v1845, %v1848
        %v1851 = vmul.u32 %v1846, %v1847
        %v1852 = vmul.u32 %v1846, %v1848
        %v1853 = vshll.u32 %v1850, 16
        %v1854 = vshrl.u32 %v1850, 16
        %v1855 = vshll.u32 %v1851, 16
        %v1856 = vshrl.u32 %v1851, 16
        %vm1857 = vc.u32 %v1849, %v1853
        %v1858 = vsel %vm1857, 1, 0
        %v1859 = vadd.s32 %v1849, %v1853
        %v1860 = vadd.s32 %v1852, %v1858
        %vm1861 = vc.u32 %v1859, %v1855
        %v1862 = vsel %vm1861, 1, 0
        %v1863 = vadd.s32 %v1859, %v1855
        %v1864 = vadd.s32 %v1860, %v1862
        %v1865 = vadd.s32 %v1864, %v1854
        %v1866 = vadd.s32 %v1865, %v1856
        %v1867 = vmul.u32 %v1822, %v1813
        %v1868 = vadd.s32 %v1844, %v1863
        %vm1869 = vc.u32 %v1844, %v1863
        %v1870 = vadd.s32 %v1866, 1
        %v1871 = vsel %vm1869, %v1870, %v1866
        %v1872 = vadd.s32 %v1867, %v1871
        %v1873 = vadd.s32 %v1872, 536870912
        %v1874 = vshrl.u32 %v1873, 30
        %v1875 = vshll.u32 %v1874, 30
        %v1876 = vsub.s32 %v1872, %v1875
        %vm1877 = vcmp.lt.s32.totalorder %v1876, 0
        %v1878 = vsub.s32 0, %v1876
        %v1879 = vsel %vm1877, %v1878, %v1876
        %v1880 = vclz %v1879
        %v1881 = vsub.s32 %v1880, 2
        %vm1882 = vcmp.gt.s32.totalorder 0, %v1881
        %v1883 = vsel %vm1882, 0, %v1881
        %v1884 = vsub.s32 32, %v1883
        %v1885 = vshll.u32 %v1876, %v1883
        %v1886 = vshrl.u32 %v1868, %v1884
        %v1887 = vor.u32 %v1885, %v1886
        %v1888 = vsub.s32 4294967266, %v1883
        %v1889 = vadd.s32 %v1888, 127
        %v1890 = vshll.u32 %v1889, 23
        %v1891 = vor.u32 4788187, %v1890
        %v1892 = vand.u32 2147483647, %v1891
        %v1894 = vcvt.s32.f32 %v1887
        %v1895 = vmul.f32 %v1894, %v1892
        %v1896 = vxor.u32 %v1895, 2147483648
        %v1897 = vsel %vm1776, %v1896, %v1895
        %v1898 = vsub.s32 4, %v1874
        %v1899 = vsel %vm1776, %v1898, %v1874
        %v1900 = vsel %vm1775, %v642, %v1897
        %v1901 = vsel %vm1775, 0, %v1899
        %v1902 = vmul.f32 %v1900, %v1900
        %v1903 = vmul.f32 %v1902, -0.001358992
        %v1904 = vadd.f32 %v1903, 0.041655596
        %v1905 = vmul.f32 %v1902, %v1904
        %v1906 = vadd.f32 %v1905, -0.4999988
        %v1907 = vmul.f32 %v1902, %v1906
        %v1908 = vadd.f32 1.0, %v1907
        %v1909 = vmul.f32 %v1900, %v1900
        %v1910 = vmul.f32 %v1909, -0.00019511016
        %v1911 = vadd.f32 %v1910, 0.008332121
        %v1912 = vmul.f32 %v1909, %v1911
        %v1913 = vadd.f32 %v1912, -0.16666654
        %v1914 = vmul.f32 %v1909, %v1913
        %v1915 = vadd.f32 %v1914, 1.0
        %v1916 = vmul.f32 %v1915, %v1900
        %vm1917 = vweird.f32 %v642
        %v1918 = vadd.s32 %v1901, 3
        %v1919 = vand.u32 %v1918, 3
        %vm1920 = vcmp.lt.s32.totalorder %v1919, 2
        %vm1921 = vcmp.eq.s32.totalorder %v1919, 0
        %v1922 = vxor.u32 %v1916, 2147483648
        %v1923 = vsel %vm1921, %v1908, %v1922
        %vm1924 = vcmp.eq.s32.totalorder %v1919, 2
        %v1925 = vxor.u32 %v1908, 2147483648
        %v1926 = vsel %vm1924, %v1925, %v1916
        %v1927 = vsel %vm1920, %v1923, %v1926
        %v1928 = vsel %vm1917, nan, %v1927
        %v1929 = vand.u32 2147483647, %v441
        %vm1930 = vcmp.le.f32.partialorder %v1929, 0.7853982
        %vm1931 = vcmp.lt.s32.totalorder %v441, 0
        %v1932 = vand.u32 %v441, 2139095040
        %v1933 = vshrl.u32 %v1932, 23
        %v1934 = vsub.s32 %v1933, 127
        %v1935 = vand.u32 2147483647, %v441
        %v1936 = vand.u32 %v1935, 8388607
        %v1937 = vor.u32 %v1936, 8388608
        %v1938 = vsub.s32 0, %v1937
        %v1939 = vadd.s32 %v1934, 1
        %vm1940 = vcmp.gt.s32.totalorder %v1939, 0
        %v1941 = vsel %vm1940, %v1939, 0
        %v1942 = vshrl.u32 %v1941, 5
        %v1943 = vand.u32 %v1941, 31
        %v1944 = vsub.s32 32, %v1943
        %v1945 = vshrl.u32 683565275, %v1944
        %v1946 = vshll.u32 683565275, %v1943
        %v1947 = vshrl.u32 2475754826, %v1944
        %v1948 = vor.u32 %v1946, %v1947
        %v1949 = vshll.u32 2475754826, %v1943
        %v1950 = vshrl.u32 2131351028, %v1944
        %v1951 = vor.u32 %v1949, %v1950
        %v1952 = vshll.u32 2131351028, %v1943
        %v1953 = vshrl.u32 2102212464, %v1944
        %v1954 = vor.u32 %v1952, %v1953
        %v1955 = vshll.u32 2102212464, %v1943
        %v1956 = vshrl.u32 920167782, %v1944
        %v1957 = vor.u32 %v1955, %v1956
        %v1958 = vshll.u32 920167782, %v1943
        %v1959 = vshrl.u32 1326507024, %v1944
        %v1960 = vor.u32 %v1958, %v1959
        %vm1961 = vcmp.lt.s32.totalorder %v1942, 1
        %vm1962 = vcmp.lt.s32.totalorder %v1942, 2
        %vm1963 = vcmp.lt.s32.totalorder %v1942, 3
        %vm1964 = vcmp.lt.s32.totalorder %v1942, 4
        %v1965 = vsel %vm1961, %v1945, %v1948
        %v1966 = vsel %vm1964, %v1954, 2102212464
        %v1967 = vsel %vm1963, %v1951, %v1966
        %v1968 = vsel %vm1962, %v1965, %v1967
        %v1969 = vsel %vm1961, %v1948, %v1951
        %v1970 = vsel %vm1964, %v1957, 920167782
        %v1971 = vsel %vm1963, %v1954, %v1970
        %v1972 = vsel %vm1962, %v1969, %v1971
        %v1973 = vsel %vm1961, %v1951, %v1954
        %v1974 = vsel %vm1964, %v1960, 1326507024
        %v1975 = vsel %vm1963, %v1957, %v1974
        %v1976 = vsel %vm1962, %v1973, %v1975
        %v1977 = vshll.u32 %v1937, 8
        %v1978 = vand.u32 %v1977, 65535
        %v1979 = vshrl.u32 %v1977, 16
        %v1980 = vand.u32 %v1976, 65535
        %v1981 = vshrl.u32 %v1976, 16
        %v1982 = vmul.u32 %v1978, %v1980
        %v1983 = vmul.u32 %v1978, %v1981
        %v1984 = vmul.u32 %v1979, %v1980
        %v1985 = vmul.u32 %v1979, %v1981
        %v1986 = vshll.u32 %v1983, 16
        %v1987 = vshrl.u32 %v1983, 16
        %v1988 = vshll.u32 %v1984, 16
        %v1989 = vshrl.u32 %v1984, 16
        %vm1990 = vc.u32 %v1982, %v1986
        %v1991 = vsel %vm1990, 1, 0
        %v1992 = vadd.s32 %v1982, %v1986
        %v1993 = vadd.s32 %v1985, %v1991
        %vm1994 = vc.u32 %v1992, %v1988
        %v1995 = vsel %vm1994, 1, 0
        %v1996 = vadd.s32 %v1992, %v1988
        %v1997 = vadd.s32 %v1993, %v1995
        %v1998 = vadd.s32 %v1997, %v1987
        %v1999 = vadd.s32 %v1998, %v1989
        %v2000 = vand.u32 %v1977, 65535
        %v2001 = vshrl.u32 %v1977, 16
        %v2002 = vand.u32 %v1972, 65535
        %v2003 = vshrl.u32 %v1972, 16
        %v2004 = vmul.u32 %v2000, %v2002
        %v2005 = vmul.u32 %v2000, %v2003
        %v2006 = vmul.u32 %v2001, %v2002
        %v2007 = vmul.u32 %v2001, %v2003
        %v2008 = vshll.u32 %v2005, 16
        %v2009 = vshrl.u32 %v2005, 16
        %v2010 = vshll.u32 %v2006, 16
        %v2011 = vshrl.u32 %v2006, 16
        %vm2012 = vc.u32 %v2004, %v2008
        %v2013 = vsel %vm2012, 1, 0
        %v2014 = vadd.s32 %v2004, %v2008
        %v2015 = vadd.s32 %v2007, %v2013
        %vm2016 = vc.u32 %v2014, %v2010
        %v2017 = vsel %vm2016, 1, 0
        %v2018 = vadd.s32 %v2014, %v2010
        %v2019 = vadd.s32 %v2015, %v2017
        %v2020 = vadd.s32 %v2019, %v2009
        %v2021 = vadd.s32 %v2020, %v2011
        %v2022 = vmul.u32 %v1977, %v1968
        %v2023 = vadd.s32 %v1999, %v2018
        %vm2024 = vc.u32 %v1999, %v2018
        %v2025 = vadd.s32 %v2021, 1
        %v2026 = vsel %vm2024, %v2025, %v2021
        %v2027 = vadd.s32 %v2022, %v2026
        %v2028 = vadd.s32 %v2027, 536870912
        %v2029 = vshrl.u32 %v2028, 30
        %v2030 = vshll.u32 %v2029, 30
        %v2031 = vsub.s32 %v2027, %v2030
        %vm2032 = vcmp.lt.s32.totalorder %v2031, 0
        %v2033 = vsub.s32 0, %v2031
        %v2034 = vsel %vm2032, %v2033, %v2031
        %v2035 = vclz %v2034
        %v2036 = vsub.s32 %v2035, 2
        %vm2037 = vcmp.gt.s32.totalorder 0, %v2036
        %v2038 = vsel %vm2037, 0, %v2036
        %v2039 = vsub.s32 32, %v2038
        %v2040 = vshll.u32 %v2031, %v2038
        %v2041 = vshrl.u32 %v2023, %v2039
        %v2042 = vor.u32 %v2040, %v2041
        %v2043 = vsub.s32 4294967266, %v2038
        %v2044 = vadd.s32 %v2043, 127
        %v2045 = vshll.u32 %v2044, 23
        %v2046 = vor.u32 4788187, %v2045
        %v2047 = vand.u32 2147483647, %v2046
        %v2049 = vcvt.s32.f32 %v2042
        %v2050 = vmul.f32 %v2049, %v2047
        %v2051 = vxor.u32 %v2050, 2147483648
        %v2052 = vsel %vm1931, %v2051, %v2050
        %v2053 = vsub.s32 4, %v2029
        %v2054 = vsel %vm1931, %v2053, %v2029
        %v2055 = vsel %vm1930, %v441, %v2052
        %v2056 = vsel %vm1930, 0, %v2054
        %v2057 = vmul.f32 %v2055, %v2055
        %v2058 = vmul.f32 %v2057, -0.001358992
        %v2059 = vadd.f32 %v2058, 0.041655596
        %v2060 = vmul.f32 %v2057, %v2059
        %v2061 = vadd.f32 %v2060, -0.4999988
        %v2062 = vmul.f32 %v2057, %v2061
        %v2063 = vadd.f32 1.0, %v2062
        %v2064 = vmul.f32 %v2055, %v2055
        %v2065 = vmul.f32 %v2064, -0.00019511016
        %v2066 = vadd.f32 %v2065, 0.008332121
        %v2067 = vmul.f32 %v2064, %v2066
        %v2068 = vadd.f32 %v2067, -0.16666654
        %v2069 = vmul.f32 %v2064, %v2068
        %v2070 = vadd.f32 %v2069, 1.0
        %v2071 = vmul.f32 %v2070, %v2055
        %vm2072 = vweird.f32 %v441
        %v2073 = vadd.s32 %v2056, 3
        %v2074 = vand.u32 %v2073, 3
        %vm2075 = vcmp.lt.s32.totalorder %v2074, 2
        %vm2076 = vcmp.eq.s32.totalorder %v2074, 0
        %v2077 = vxor.u32 %v2071, 2147483648
        %v2078 = vsel %vm2076, %v2063, %v2077
        %vm2079 = vcmp.eq.s32.totalorder %v2074, 2
        %v2080 = vxor.u32 %v2063, 2147483648
        %v2081 = vsel %vm2079, %v2080, %v2071
        %v2082 = vsel %vm2075, %v2078, %v2081
        %v2083 = vsel %vm2072, nan, %v2082
        %v2084 = vand.u32 2147483647, %v509
        %vm2085 = vcmp.le.f32.partialorder %v2084, 0.7853982
        %vm2086 = vcmp.lt.s32.totalorder %v509, 0
        %v2087 = vand.u32 %v509, 2139095040
        %v2088 = vshrl.u32 %v2087, 23
        %v2089 = vsub.s32 %v2088, 127
        %v2090 = vand.u32 2147483647, %v509
        %v2091 = vand.u32 %v2090, 8388607
        %v2092 = vor.u32 %v2091, 8388608
        %v2093 = vsub.s32 0, %v2092
        %v2094 = vadd.s32 %v2089, 1
        %vm2095 = vcmp.gt.s32.totalorder %v2094, 0
        %v2096 = vsel %vm2095, %v2094, 0
        %v2097 = vshrl.u32 %v2096, 5
        %v2098 = vand.u32 %v2096, 31
        %v2099 = vsub.s32 32, %v2098
        %v2100 = vshrl.u32 683565275, %v2099
        %v2101 = vshll.u32 683565275, %v2098
        %v2102 = vshrl.u32 2475754826, %v2099
        %v2103 = vor.u32 %v2101, %v2102
        %v2104 = vshll.u32 2475754826, %v2098
        %v2105 = vshrl.u32 2131351028, %v2099
        %v2106 = vor.u32 %v2104, %v2105
        %v2107 = vshll.u32 2131351028, %v2098
        %v2108 = vshrl.u32 2102212464, %v2099
        %v2109 = vor.u32 %v2107, %v2108
        %v2110 = vshll.u32 2102212464, %v2098
        %v2111 = vshrl.u32 920167782, %v2099
        %v2112 = vor.u32 %v2110, %v2111
        %v2113 = vshll.u32 920167782, %v2098
        %v2114 = vshrl.u32 1326507024, %v2099
        %v2115 = vor.u32 %v2113, %v2114
        %vm2116 = vcmp.lt.s32.totalorder %v2097, 1
        %vm2117 = vcmp.lt.s32.totalorder %v2097, 2
        %vm2118 = vcmp.lt.s32.totalorder %v2097, 3
        %vm2119 = vcmp.lt.s32.totalorder %v2097, 4
        %v2120 = vsel %vm2116, %v2100, %v2103
        %v2121 = vsel %vm2119, %v2109, 2102212464
        %v2122 = vsel %vm2118, %v2106, %v2121
        %v2123 = vsel %vm2117, %v2120, %v2122
        %v2124 = vsel %vm2116, %v2103, %v2106
        %v2125 = vsel %vm2119, %v2112, 920167782
        %v2126 = vsel %vm2118, %v2109, %v2125
        %v2127 = vsel %vm2117, %v2124, %v2126
        %v2128 = vsel %vm2116, %v2106, %v2109
        %v2129 = vsel %vm2119, %v2115, 1326507024
        %v2130 = vsel %vm2118, %v2112, %v2129
        %v2131 = vsel %vm2117, %v2128, %v2130
        %v2132 = vshll.u32 %v2092, 8
        %v2133 = vand.u32 %v2132, 65535
        %v2134 = vshrl.u32 %v2132, 16
        %v2135 = vand.u32 %v2131, 65535
        %v2136 = vshrl.u32 %v2131, 16
        %v2137 = vmul.u32 %v2133, %v2135
        %v2138 = vmul.u32 %v2133, %v2136
        %v2139 = vmul.u32 %v2134, %v2135
        %v2140 = vmul.u32 %v2134, %v2136
        %v2141 = vshll.u32 %v2138, 16
        %v2142 = vshrl.u32 %v2138, 16
        %v2143 = vshll.u32 %v2139, 16
        %v2144 = vshrl.u32 %v2139, 16
        %vm2145 = vc.u32 %v2137, %v2141
        %v2146 = vsel %vm2145, 1, 0
        %v2147 = vadd.s32 %v2137, %v2141
        %v2148 = vadd.s32 %v2140, %v2146
        %vm2149 = vc.u32 %v2147, %v2143
        %v2150 = vsel %vm2149, 1, 0
        %v2151 = vadd.s32 %v2147, %v2143
        %v2152 = vadd.s32 %v2148, %v2150
        %v2153 = vadd.s32 %v2152, %v2142
        %v2154 = vadd.s32 %v2153, %v2144
        %v2155 = vand.u32 %v2132, 65535
        %v2156 = vshrl.u32 %v2132, 16
        %v2157 = vand.u32 %v2127, 65535
        %v2158 = vshrl.u32 %v2127, 16
        %v2159 = vmul.u32 %v2155, %v2157
        %v2160 = vmul.u32 %v2155, %v2158
        %v2161 = vmul.u32 %v2156, %v2157
        %v2162 = vmul.u32 %v2156, %v2158
        %v2163 = vshll.u32 %v2160, 16
        %v2164 = vshrl.u32 %v2160, 16
        %v2165 = vshll.u32 %v2161, 16
        %v2166 = vshrl.u32 %v2161, 16
        %vm2167 = vc.u32 %v2159, %v2163
        %v2168 = vsel %vm2167, 1, 0
        %v2169 = vadd.s32 %v2159, %v2163
        %v2170 = vadd.s32 %v2162, %v2168
        %vm2171 = vc.u32 %v2169, %v2165
        %v2172 = vsel %vm2171, 1, 0
        %v2173 = vadd.s32 %v2169, %v2165
        %v2174 = vadd.s32 %v2170, %v2172
        %v2175 = vadd.s32 %v2174, %v2164
        %v2176 = vadd.s32 %v2175, %v2166
        %v2177 = vmul.u32 %v2132, %v2123
        %v2178 = vadd.s32 %v2154, %v2173
        %vm2179 = vc.u32 %v2154, %v2173
        %v2180 = vadd.s32 %v2176, 1
        %v2181 = vsel %vm2179, %v2180, %v2176
        %v2182 = vadd.s32 %v2177, %v2181
        %v2183 = vadd.s32 %v2182, 536870912
        %v2184 = vshrl.u32 %v2183, 30
        %v2185 = vshll.u32 %v2184, 30
        %v2186 = vsub.s32 %v2182, %v2185
        %vm2187 = vcmp.lt.s32.totalorder %v2186, 0
        %v2188 = vsub.s32 0, %v2186
        %v2189 = vsel %vm2187, %v2188, %v2186
        %v2190 = vclz %v2189
        %v2191 = vsub.s32 %v2190, 2
        %vm2192 = vcmp.gt.s32.totalorder 0, %v2191
        %v2193 = vsel %vm2192, 0, %v2191
        %v2194 = vsub.s32 32, %v2193
        %v2195 = vshll.u32 %v2186, %v2193
        %v2196 = vshrl.u32 %v2178, %v2194
        %v2197 = vor.u32 %v2195, %v2196
        %v2198 = vsub.s32 4294967266, %v2193
        %v2199 = vadd.s32 %v2198, 127
        %v2200 = vshll.u32 %v2199, 23
        %v2201 = vor.u32 4788187, %v2200
        %v2202 = vand.u32 2147483647, %v2201
        %v2204 = vcvt.s32.f32 %v2197
        %v2205 = vmul.f32 %v2204, %v2202
        %v2206 = vxor.u32 %v2205, 2147483648
        %v2207 = vsel %vm2086, %v2206, %v2205
        %v2208 = vsub.s32 4, %v2184
        %v2209 = vsel %vm2086, %v2208, %v2184
        %v2210 = vsel %vm2085, %v509, %v2207
        %v2211 = vsel %vm2085, 0, %v2209
        %v2212 = vmul.f32 %v2210, %v2210
        %v2213 = vmul.f32 %v2212, -0.001358992
        %v2214 = vadd.f32 %v2213, 0.041655596
        %v2215 = vmul.f32 %v2212, %v2214
        %v2216 = vadd.f32 %v2215, -0.4999988
        %v2217 = vmul.f32 %v2212, %v2216
        %v2218 = vadd.f32 1.0, %v2217
        %v2219 = vmul.f32 %v2210, %v2210
        %v2220 = vmul.f32 %v2219, -0.00019511016
        %v2221 = vadd.f32 %v2220, 0.008332121
        %v2222 = vmul.f32 %v2219, %v2221
        %v2223 = vadd.f32 %v2222, -0.16666654
        %v2224 = vmul.f32 %v2219, %v2223
        %v2225 = vadd.f32 %v2224, 1.0
        %v2226 = vmul.f32 %v2225, %v2210
        %vm2227 = vweird.f32 %v509
        %v2228 = vadd.s32 %v2211, 3
        %v2229 = vand.u32 %v2228, 3
        %vm2230 = vcmp.lt.s32.totalorder %v2229, 2
        %vm2231 = vcmp.eq.s32.totalorder %v2229, 0
        %v2232 = vxor.u32 %v2226, 2147483648
        %v2233 = vsel %vm2231, %v2218, %v2232
        %vm2234 = vcmp.eq.s32.totalorder %v2229, 2
        %v2235 = vxor.u32 %v2218, 2147483648
        %v2236 = vsel %vm2234, %v2235, %v2226
        %v2237 = vsel %vm2230, %v2233, %v2236
        %v2238 = vsel %vm2227, nan, %v2237
        %v2239 = vand.u32 2147483647, %v577
        %vm2240 = vcmp.le.f32.partialorder %v2239, 0.7853982
        %vm2241 = vcmp.lt.s32.totalorder %v577, 0
        %v2242 = vand.u32 %v577, 2139095040
        %v2243 = vshrl.u32 %v2242, 23
        %v2244 = vsub.s32 %v2243, 127
        %v2245 = vand.u32 2147483647, %v577
        %v2246 = vand.u32 %v2245, 8388607
        %v2247 = vor.u32 %v2246, 8388608
        %v2248 = vsub.s32 0, %v2247
        %v2249 = vadd.s32 %v2244, 1
        %vm2250 = vcmp.gt.s32.totalorder %v2249, 0
        %v2251 = vsel %vm2250, %v2249, 0
        %v2252 = vshrl.u32 %v2251, 5
        %v2253 = vand.u32 %v2251, 31
        %v2254 = vsub.s32 32, %v2253
        %v2255 = vshrl.u32 683565275, %v2254
        %v2256 = vshll.u32 683565275, %v2253
        %v2257 = vshrl.u32 2475754826, %v2254
        %v2258 = vor.u32 %v2256, %v2257
        %v2259 = vshll.u32 2475754826, %v2253
        %v2260 = vshrl.u32 2131351028, %v2254
        %v2261 = vor.u32 %v2259, %v2260
        %v2262 = vshll.u32 2131351028, %v2253
        %v2263 = vshrl.u32 2102212464, %v2254
        %v2264 = vor.u32 %v2262, %v2263
        %v2265 = vshll.u32 2102212464, %v2253
        %v2266 = vshrl.u32 920167782, %v2254
        %v2267 = vor.u32 %v2265, %v2266
        %v2268 = vshll.u32 920167782, %v2253
        %v2269 = vshrl.u32 1326507024, %v2254
        %v2270 = vor.u32 %v2268, %v2269
        %vm2271 = vcmp.lt.s32.totalorder %v2252, 1
        %vm2272 = vcmp.lt.s32.totalorder %v2252, 2
        %vm2273 = vcmp.lt.s32.totalorder %v2252, 3
        %vm2274 = vcmp.lt.s32.totalorder %v2252, 4
        %v2275 = vsel %vm2271, %v2255, %v2258
        %v2276 = vsel %vm2274, %v2264, 2102212464
        %v2277 = vsel %vm2273, %v2261, %v2276
        %v2278 = vsel %vm2272, %v2275, %v2277
        %v2279 = vsel %vm2271, %v2258, %v2261
        %v2280 = vsel %vm2274, %v2267, 920167782
        %v2281 = vsel %vm2273, %v2264, %v2280
        %v2282 = vsel %vm2272, %v2279, %v2281
        %v2283 = vsel %vm2271, %v2261, %v2264
        %v2284 = vsel %vm2274, %v2270, 1326507024
        %v2285 = vsel %vm2273, %v2267, %v2284
        %v2286 = vsel %vm2272, %v2283, %v2285
        %v2287 = vshll.u32 %v2247, 8
        %v2288 = vand.u32 %v2287, 65535
        %v2289 = vshrl.u32 %v2287, 16
        %v2290 = vand.u32 %v2286, 65535
        %v2291 = vshrl.u32 %v2286, 16
        %v2292 = vmul.u32 %v2288, %v2290
        %v2293 = vmul.u32 %v2288, %v2291
        %v2294 = vmul.u32 %v2289, %v2290
        %v2295 = vmul.u32 %v2289, %v2291
        %v2296 = vshll.u32 %v2293, 16
        %v2297 = vshrl.u32 %v2293, 16
        %v2298 = vshll.u32 %v2294, 16
        %v2299 = vshrl.u32 %v2294, 16
        %vm2300 = vc.u32 %v2292, %v2296
        %v2301 = vsel %vm2300, 1, 0
        %v2302 = vadd.s32 %v2292, %v2296
        %v2303 = vadd.s32 %v2295, %v2301
        %vm2304 = vc.u32 %v2302, %v2298
        %v2305 = vsel %vm2304, 1, 0
        %v2306 = vadd.s32 %v2302, %v2298
        %v2307 = vadd.s32 %v2303, %v2305
        %v2308 = vadd.s32 %v2307, %v2297
        %v2309 = vadd.s32 %v2308, %v2299
        %v2310 = vand.u32 %v2287, 65535
        %v2311 = vshrl.u32 %v2287, 16
        %v2312 = vand.u32 %v2282, 65535
        %v2313 = vshrl.u32 %v2282, 16
        %v2314 = vmul.u32 %v2310, %v2312
        %v2315 = vmul.u32 %v2310, %v2313
        %v2316 = vmul.u32 %v2311, %v2312
        %v2317 = vmul.u32 %v2311, %v2313
        %v2318 = vshll.u32 %v2315, 16
        %v2319 = vshrl.u32 %v2315, 16
        %v2320 = vshll.u32 %v2316, 16
        %v2321 = vshrl.u32 %v2316, 16
        %vm2322 = vc.u32 %v2314, %v2318
        %v2323 = vsel %vm2322, 1, 0
        %v2324 = vadd.s32 %v2314, %v2318
        %v2325 = vadd.s32 %v2317, %v2323
        %vm2326 = vc.u32 %v2324, %v2320
        %v2327 = vsel %vm2326, 1, 0
        %v2328 = vadd.s32 %v2324, %v2320
        %v2329 = vadd.s32 %v2325, %v2327
        %v2330 = vadd.s32 %v2329, %v2319
        %v2331 = vadd.s32 %v2330, %v2321
        %v2332 = vmul.u32 %v2287, %v2278
        %v2333 = vadd.s32 %v2309, %v2328
        %vm2334 = vc.u32 %v2309, %v2328
        %v2335 = vadd.s32 %v2331, 1
        %v2336 = vsel %vm2334, %v2335, %v2331
        %v2337 = vadd.s32 %v2332, %v2336
        %v2338 = vadd.s32 %v2337, 536870912
        %v2339 = vshrl.u32 %v2338, 30
        %v2340 = vshll.u32 %v2339, 30
        %v2341 = vsub.s32 %v2337, %v2340
        %vm2342 = vcmp.lt.s32.totalorder %v2341, 0
        %v2343 = vsub.s32 0, %v2341
        %v2344 = vsel %vm2342, %v2343, %v2341
        %v2345 = vclz %v2344
        %v2346 = vsub.s32 %v2345, 2
        %vm2347 = vcmp.gt.s32.totalorder 0, %v2346
        %v2348 = vsel %vm2347, 0, %v2346
        %v2349 = vsub.s32 32, %v2348
        %v2350 = vshll.u32 %v2341, %v2348
        %v2351 = vshrl.u32 %v2333, %v2349
        %v2352 = vor.u32 %v2350, %v2351
        %v2353 = vsub.s32 4294967266, %v2348
        %v2354 = vadd.s32 %v2353, 127
        %v2355 = vshll.u32 %v2354, 23
        %v2356 = vor.u32 4788187, %v2355
        %v2357 = vand.u32 2147483647, %v2356
        %v2359 = vcvt.s32.f32 %v2352
        %v2360 = vmul.f32 %v2359, %v2357
        %v2361 = vxor.u32 %v2360, 2147483648
        %v2362 = vsel %vm2241, %v2361, %v2360
        %v2363 = vsub.s32 4, %v2339
        %v2364 = vsel %vm2241, %v2363, %v2339
        %v2365 = vsel %vm2240, %v577, %v2362
        %v2366 = vsel %vm2240, 0, %v2364
        %v2367 = vmul.f32 %v2365, %v2365
        %v2368 = vmul.f32 %v2367, -0.001358992
        %v2369 = vadd.f32 %v2368, 0.041655596
        %v2370 = vmul.f32 %v2367, %v2369
        %v2371 = vadd.f32 %v2370, -0.4999988
        %v2372 = vmul.f32 %v2367, %v2371
        %v2373 = vadd.f32 1.0, %v2372
        %v2374 = vmul.f32 %v2365, %v2365
        %v2375 = vmul.f32 %v2374, -0.00019511016
        %v2376 = vadd.f32 %v2375, 0.008332121
        %v2377 = vmul.f32 %v2374, %v2376
        %v2378 = vadd.f32 %v2377, -0.16666654
        %v2379 = vmul.f32 %v2374, %v2378
        %v2380 = vadd.f32 %v2379, 1.0
        %v2381 = vmul.f32 %v2380, %v2365
        %vm2382 = vweird.f32 %v577
        %v2383 = vadd.s32 %v2366, 3
        %v2384 = vand.u32 %v2383, 3
        %vm2385 = vcmp.lt.s32.totalorder %v2384, 2
        %vm2386 = vcmp.eq.s32.totalorder %v2384, 0
        %v2387 = vxor.u32 %v2381, 2147483648
        %v2388 = vsel %vm2386, %v2373, %v2387
        %vm2389 = vcmp.eq.s32.totalorder %v2384, 2
        %v2390 = vxor.u32 %v2373, 2147483648
        %v2391 = vsel %vm2389, %v2390, %v2381
        %v2392 = vsel %vm2385, %v2388, %v2391
        %v2393 = vsel %vm2382, nan, %v2392
        %v2394 = vand.u32 2147483647, %v645
        %vm2395 = vcmp.le.f32.partialorder %v2394, 0.7853982
        %vm2396 = vcmp.lt.s32.totalorder %v645, 0
        %v2397 = vand.u32 %v645, 2139095040
        %v2398 = vshrl.u32 %v2397, 23
        %v2399 = vsub.s32 %v2398, 127
        %v2400 = vand.u32 2147483647, %v645
        %v2401 = vand.u32 %v2400, 8388607
        %v2402 = vor.u32 %v2401, 8388608
        %v2403 = vsub.s32 0, %v2402
        %v2404 = vadd.s32 %v2399, 1
        %vm2405 = vcmp.gt.s32.totalorder %v2404, 0
        %v2406 = vsel %vm2405, %v2404, 0
        %v2407 = vshrl.u32 %v2406, 5
        %v2408 = vand.u32 %v2406, 31
        %v2409 = vsub.s32 32, %v2408
        %v2410 = vshrl.u32 683565275, %v2409
        %v2411 = vshll.u32 683565275, %v2408
        %v2412 = vshrl.u32 2475754826, %v2409
        %v2413 = vor.u32 %v2411, %v2412
        %v2414 = vshll.u32 2475754826, %v2408
        %v2415 = vshrl.u32 2131351028, %v2409
        %v2416 = vor.u32 %v2414, %v2415
        %v2417 = vshll.u32 2131351028, %v2408
        %v2418 = vshrl.u32 2102212464, %v2409
        %v2419 = vor.u32 %v2417, %v2418
        %v2420 = vshll.u32 2102212464, %v2408
        %v2421 = vshrl.u32 920167782, %v2409
        %v2422 = vor.u32 %v2420, %v2421
        %v2423 = vshll.u32 920167782, %v2408
        %v2424 = vshrl.u32 1326507024, %v2409
        %v2425 = vor.u32 %v2423, %v2424
        %vm2426 = vcmp.lt.s32.totalorder %v2407, 1
        %vm2427 = vcmp.lt.s32.totalorder %v2407, 2
        %vm2428 = vcmp.lt.s32.totalorder %v2407, 3
        %vm2429 = vcmp.lt.s32.totalorder %v2407, 4
        %v2430 = vsel %vm2426, %v2410, %v2413
        %v2431 = vsel %vm2429, %v2419, 2102212464
        %v2432 = vsel %vm2428, %v2416, %v2431
        %v2433 = vsel %vm2427, %v2430, %v2432
        %v2434 = vsel %vm2426, %v2413, %v2416
        %v2435 = vsel %vm2429, %v2422, 920167782
        %v2436 = vsel %vm2428, %v2419, %v2435
        %v2437 = vsel %vm2427, %v2434, %v2436
        %v2438 = vsel %vm2426, %v2416, %v2419
        %v2439 = vsel %vm2429, %v2425, 1326507024
        %v2440 = vsel %vm2428, %v2422, %v2439
        %v2441 = vsel %vm2427, %v2438, %v2440
        %v2442 = vshll.u32 %v2402, 8
        %v2443 = vand.u32 %v2442, 65535
        %v2444 = vshrl.u32 %v2442, 16
        %v2445 = vand.u32 %v2441, 65535
        %v2446 = vshrl.u32 %v2441, 16
        %v2447 = vmul.u32 %v2443, %v2445
        %v2448 = vmul.u32 %v2443, %v2446
        %v2449 = vmul.u32 %v2444, %v2445
        %v2450 = vmul.u32 %v2444, %v2446
        %v2451 = vshll.u32 %v2448, 16
        %v2452 = vshrl.u32 %v2448, 16
        %v2453 = vshll.u32 %v2449, 16
        %v2454 = vshrl.u32 %v2449, 16
        %vm2455 = vc.u32 %v2447, %v2451
        %v2456 = vsel %vm2455, 1, 0
        %v2457 = vadd.s32 %v2447, %v2451
        %v2458 = vadd.s32 %v2450, %v2456
        %vm2459 = vc.u32 %v2457, %v2453
        %v2460 = vsel %vm2459, 1, 0
        %v2461 = vadd.s32 %v2457, %v2453
        %v2462 = vadd.s32 %v2458, %v2460
        %v2463 = vadd.s32 %v2462, %v2452
        %v2464 = vadd.s32 %v2463, %v2454
        %v2465 = vand.u32 %v2442, 65535
        %v2466 = vshrl.u32 %v2442, 16
        %v2467 = vand.u32 %v2437, 65535
        %v2468 = vshrl.u32 %v2437, 16
        %v2469 = vmul.u32 %v2465, %v2467
        %v2470 = vmul.u32 %v2465, %v2468
        %v2471 = vmul.u32 %v2466, %v2467
        %v2472 = vmul.u32 %v2466, %v2468
        %v2473 = vshll.u32 %v2470, 16
        %v2474 = vshrl.u32 %v2470, 16
        %v2475 = vshll.u32 %v2471, 16
        %v2476 = vshrl.u32 %v2471, 16
        %vm2477 = vc.u32 %v2469, %v2473
        %v2478 = vsel %vm2477, 1, 0
        %v2479 = vadd.s32 %v2469, %v2473
        %v2480 = vadd.s32 %v2472, %v2478
        %vm2481 = vc.u32 %v2479, %v2475
        %v2482 = vsel %vm2481, 1, 0
        %v2483 = vadd.s32 %v2479, %v2475
        %v2484 = vadd.s32 %v2480, %v2482
        %v2485 = vadd.s32 %v2484, %v2474
        %v2486 = vadd.s32 %v2485, %v2476
        %v2487 = vmul.u32 %v2442, %v2433
        %v2488 = vadd.s32 %v2464, %v2483
        %vm2489 = vc.u32 %v2464, %v2483
        %v2490 = vadd.s32 %v2486, 1
        %v2491 = vsel %vm2489, %v2490, %v2486
        %v2492 = vadd.s32 %v2487, %v2491
        %v2493 = vadd.s32 %v2492, 536870912
        %v2494 = vshrl.u32 %v2493, 30
        %v2495 = vshll.u32 %v2494, 30
        %v2496 = vsub.s32 %v2492, %v2495
        %vm2497 = vcmp.lt.s32.totalorder %v2496, 0
        %v2498 = vsub.s32 0, %v2496
        %v2499 = vsel %vm2497, %v2498, %v2496
        %v2500 = vclz %v2499
        %v2501 = vsub.s32 %v2500, 2
        %vm2502 = vcmp.gt.s32.totalorder 0, %v2501
        %v2503 = vsel %vm2502, 0, %v2501
        %v2504 = vsub.s32 32, %v2503
        %v2505 = vshll.u32 %v2496, %v2503
        %v2506 = vshrl.u32 %v2488, %v2504
        %v2507 = vor.u32 %v2505, %v2506
        %v2508 = vsub.s32 4294967266, %v2503
        %v2509 = vadd.s32 %v2508, 127
        %v2510 = vshll.u32 %v2509, 23
        %v2511 = vor.u32 4788187, %v2510
        %v2512 = vand.u32 2147483647, %v2511
        %v2514 = vcvt.s32.f32 %v2507
        %v2515 = vmul.f32 %v2514, %v2512
        %v2516 = vxor.u32 %v2515, 2147483648
        %v2517 = vsel %vm2396, %v2516, %v2515
        %v2518 = vsub.s32 4, %v2494
        %v2519 = vsel %vm2396, %v2518, %v2494
        %v2520 = vsel %vm2395, %v645, %v2517
        %v2521 = vsel %vm2395, 0, %v2519
        %v2522 = vmul.f32 %v2520, %v2520
        %v2523 = vmul.f32 %v2522, -0.001358992
        %v2524 = vadd.f32 %v2523, 0.041655596
        %v2525 = vmul.f32 %v2522, %v2524
        %v2526 = vadd.f32 %v2525, -0.4999988
        %v2527 = vmul.f32 %v2522, %v2526
        %v2528 = vadd.f32 1.0, %v2527
        %v2529 = vmul.f32 %v2520, %v2520
        %v2530 = vmul.f32 %v2529, -0.00019511016
        %v2531 = vadd.f32 %v2530, 0.008332121
        %v2532 = vmul.f32 %v2529, %v2531
        %v2533 = vadd.f32 %v2532, -0.16666654
        %v2534 = vmul.f32 %v2529, %v2533
        %v2535 = vadd.f32 %v2534, 1.0
        %v2536 = vmul.f32 %v2535, %v2520
        %vm2537 = vweird.f32 %v645
        %v2538 = vadd.s32 %v2521, 3
        %v2539 = vand.u32 %v2538, 3
        %vm2540 = vcmp.lt.s32.totalorder %v2539, 2
        %vm2541 = vcmp.eq.s32.totalorder %v2539, 0
        %v2542 = vxor.u32 %v2536, 2147483648
        %v2543 = vsel %vm2541, %v2528, %v2542
        %vm2544 = vcmp.eq.s32.totalorder %v2539, 2
        %v2545 = vxor.u32 %v2528, 2147483648
        %v2546 = vsel %vm2544, %v2545, %v2536
        %v2547 = vsel %vm2540, %v2543, %v2546
        %v2548 = vsel %vm2537, nan, %v2547
        %v2549 = vand.u32 2147483647, %v444
        %vm2550 = vcmp.le.f32.partialorder %v2549, 0.7853982
        %vm2551 = vcmp.lt.s32.totalorder %v444, 0
        %v2552 = vand.u32 %v444, 2139095040
        %v2553 = vshrl.u32 %v2552, 23
        %v2554 = vsub.s32 %v2553, 127
        %v2555 = vand.u32 2147483647, %v444
        %v2556 = vand.u32 %v2555, 8388607
        %v2557 = vor.u32 %v2556, 8388608
        %v2558 = vsub.s32 0, %v2557
        %v2559 = vadd.s32 %v2554, 1
        %vm2560 = vcmp.gt.s32.totalorder %v2559, 0
        %v2561 = vsel %vm2560, %v2559, 0
        %v2562 = vshrl.u32 %v2561, 5
        %v2563 = vand.u32 %v2561, 31
        %v2564 = vsub.s32 32, %v2563
        %v2565 = vshrl.u32 683565275, %v2564
        %v2566 = vshll.u32 683565275, %v2563
        %v2567 = vshrl.u32 2475754826, %v2564
        %v2568 = vor.u32 %v2566, %v2567
        %v2569 = vshll.u32 2475754826, %v2563
        %v2570 = vshrl.u32 2131351028, %v2564
        %v2571 = vor.u32 %v2569, %v2570
        %v2572 = vshll.u32 2131351028, %v2563
        %v2573 = vshrl.u32 2102212464, %v2564
        %v2574 = vor.u32 %v2572, %v2573
        %v2575 = vshll.u32 2102212464, %v2563
        %v2576 = vshrl.u32 920167782, %v2564
        %v2577 = vor.u32 %v2575, %v2576
        %v2578 = vshll.u32 920167782, %v2563
        %v2579 = vshrl.u32 1326507024, %v2564
        %v2580 = vor.u32 %v2578, %v2579
        %vm2581 = vcmp.lt.s32.totalorder %v2562, 1
        %vm2582 = vcmp.lt.s32.totalorder %v2562, 2
        %vm2583 = vcmp.lt.s32.totalorder %v2562, 3
        %vm2584 = vcmp.lt.s32.totalorder %v2562, 4
        %v2585 = vsel %vm2581, %v2565, %v2568
        %v2586 = vsel %vm2584, %v2574, 2102212464
        %v2587 = vsel %vm2583, %v2571, %v2586
        %v2588 = vsel %vm2582, %v2585, %v2587
        %v2589 = vsel %vm2581, %v2568, %v2571
        %v2590 = vsel %vm2584, %v2577, 920167782
        %v2591 = vsel %vm2583, %v2574, %v2590
        %v2592 = vsel %vm2582, %v2589, %v2591
        %v2593 = vsel %vm2581, %v2571, %v2574
        %v2594 = vsel %vm2584, %v2580, 1326507024
        %v2595 = vsel %vm2583, %v2577, %v2594
        %v2596 = vsel %vm2582, %v2593, %v2595
        %v2597 = vshll.u32 %v2557, 8
        %v2598 = vand.u32 %v2597, 65535
        %v2599 = vshrl.u32 %v2597, 16
        %v2600 = vand.u32 %v2596, 65535
        %v2601 = vshrl.u32 %v2596, 16
        %v2602 = vmul.u32 %v2598, %v2600
        %v2603 = vmul.u32 %v2598, %v2601
        %v2604 = vmul.u32 %v2599, %v2600
        %v2605 = vmul.u32 %v2599, %v2601
        %v2606 = vshll.u32 %v2603, 16
        %v2607 = vshrl.u32 %v2603, 16
        %v2608 = vshll.u32 %v2604, 16
        %v2609 = vshrl.u32 %v2604, 16
        %vm2610 = vc.u32 %v2602, %v2606
        %v2611 = vsel %vm2610, 1, 0
        %v2612 = vadd.s32 %v2602, %v2606
        %v2613 = vadd.s32 %v2605, %v2611
        %vm2614 = vc.u32 %v2612, %v2608
        %v2615 = vsel %vm2614, 1, 0
        %v2616 = vadd.s32 %v2612, %v2608
        %v2617 = vadd.s32 %v2613, %v2615
        %v2618 = vadd.s32 %v2617, %v2607
        %v2619 = vadd.s32 %v2618, %v2609
        %v2620 = vand.u32 %v2597, 65535
        %v2621 = vshrl.u32 %v2597, 16
        %v2622 = vand.u32 %v2592, 65535
        %v2623 = vshrl.u32 %v2592, 16
        %v2624 = vmul.u32 %v2620, %v2622
        %v2625 = vmul.u32 %v2620, %v2623
        %v2626 = vmul.u32 %v2621, %v2622
        %v2627 = vmul.u32 %v2621, %v2623
        %v2628 = vshll.u32 %v2625, 16
        %v2629 = vshrl.u32 %v2625, 16
        %v2630 = vshll.u32 %v2626, 16
        %v2631 = vshrl.u32 %v2626, 16
        %vm2632 = vc.u32 %v2624, %v2628
        %v2633 = vsel %vm2632, 1, 0
        %v2634 = vadd.s32 %v2624, %v2628
        %v2635 = vadd.s32 %v2627, %v2633
        %vm2636 = vc.u32 %v2634, %v2630
        %v2637 = vsel %vm2636, 1, 0
        %v2638 = vadd.s32 %v2634, %v2630
        %v2639 = vadd.s32 %v2635, %v2637
        %v2640 = vadd.s32 %v2639, %v2629
        %v2641 = vadd.s32 %v2640, %v2631
        %v2642 = vmul.u32 %v2597, %v2588
        %v2643 = vadd.s32 %v2619, %v2638
        %vm2644 = vc.u32 %v2619, %v2638
        %v2645 = vadd.s32 %v2641, 1
        %v2646 = vsel %vm2644, %v2645, %v2641
        %v2647 = vadd.s32 %v2642, %v2646
        %v2648 = vadd.s32 %v2647, 536870912
        %v2649 = vshrl.u32 %v2648, 30
        %v2650 = vshll.u32 %v2649, 30
        %v2651 = vsub.s32 %v2647, %v2650
        %vm2652 = vcmp.lt.s32.totalorder %v2651, 0
        %v2653 = vsub.s32 0, %v2651
        %v2654 = vsel %vm2652, %v2653, %v2651
        %v2655 = vclz %v2654
        %v2656 = vsub.s32 %v2655, 2
        %vm2657 = vcmp.gt.s32.totalorder 0, %v2656
        %v2658 = vsel %vm2657, 0, %v2656
        %v2659 = vsub.s32 32, %v2658
        %v2660 = vshll.u32 %v2651, %v2658
        %v2661 = vshrl.u32 %v2643, %v2659
        %v2662 = vor.u32 %v2660, %v2661
        %v2663 = vsub.s32 4294967266, %v2658
        %v2664 = vadd.s32 %v2663, 127
        %v2665 = vshll.u32 %v2664, 23
        %v2666 = vor.u32 4788187, %v2665
        %v2667 = vand.u32 2147483647, %v2666
        %v2669 = vcvt.s32.f32 %v2662
        %v2670 = vmul.f32 %v2669, %v2667
        %v2671 = vxor.u32 %v2670, 2147483648
        %v2672 = vsel %vm2551, %v2671, %v2670
        %v2673 = vsub.s32 4, %v2649
        %v2674 = vsel %vm2551, %v2673, %v2649
        %v2675 = vsel %vm2550, %v444, %v2672
        %v2676 = vsel %vm2550, 0, %v2674
        %v2677 = vmul.f32 %v2675, %v2675
        %v2678 = vmul.f32 %v2677, -0.001358992
        %v2679 = vadd.f32 %v2678, 0.041655596
        %v2680 = vmul.f32 %v2677, %v2679
        %v2681 = vadd.f32 %v2680, -0.4999988
        %v2682 = vmul.f32 %v2677, %v2681
        %v2683 = vadd.f32 1.0, %v2682
        %v2684 = vmul.f32 %v2675, %v2675
        %v2685 = vmul.f32 %v2684, -0.00019511016
        %v2686 = vadd.f32 %v2685, 0.008332121
        %v2687 = vmul.f32 %v2684, %v2686
        %v2688 = vadd.f32 %v2687, -0.16666654
        %v2689 = vmul.f32 %v2684, %v2688
        %v2690 = vadd.f32 %v2689, 1.0
        %v2691 = vmul.f32 %v2690, %v2675
        %vm2692 = vweird.f32 %v444
        %v2693 = vadd.s32 %v2676, 3
        %v2694 = vand.u32 %v2693, 3
        %vm2695 = vcmp.lt.s32.totalorder %v2694, 2
        %vm2696 = vcmp.eq.s32.totalorder %v2694, 0
        %v2697 = vxor.u32 %v2691, 2147483648
        %v2698 = vsel %vm2696, %v2683, %v2697
        %vm2699 = vcmp.eq.s32.totalorder %v2694, 2
        %v2700 = vxor.u32 %v2683, 2147483648
        %v2701 = vsel %vm2699, %v2700, %v2691
        %v2702 = vsel %vm2695, %v2698, %v2701
        %v2703 = vsel %vm2692, nan, %v2702
        %v2704 = vand.u32 2147483647, %v512
        %vm2705 = vcmp.le.f32.partialorder %v2704, 0.7853982
        %vm2706 = vcmp.lt.s32.totalorder %v512, 0
        %v2707 = vand.u32 %v512, 2139095040
        %v2708 = vshrl.u32 %v2707, 23
        %v2709 = vsub.s32 %v2708, 127
        %v2710 = vand.u32 2147483647, %v512
        %v2711 = vand.u32 %v2710, 8388607
        %v2712 = vor.u32 %v2711, 8388608
        %v2713 = vsub.s32 0, %v2712
        %v2714 = vadd.s32 %v2709, 1
        %vm2715 = vcmp.gt.s32.totalorder %v2714, 0
        %v2716 = vsel %vm2715, %v2714, 0
        %v2717 = vshrl.u32 %v2716, 5
        %v2718 = vand.u32 %v2716, 31
        %v2719 = vsub.s32 32, %v2718
        %v2720 = vshrl.u32 683565275, %v2719
        %v2721 = vshll.u32 683565275, %v2718
        %v2722 = vshrl.u32 2475754826, %v2719
        %v2723 = vor.u32 %v2721, %v2722
        %v2724 = vshll.u32 2475754826, %v2718
        %v2725 = vshrl.u32 2131351028, %v2719
        %v2726 = vor.u32 %v2724, %v2725
        %v2727 = vshll.u32 2131351028, %v2718
        %v2728 = vshrl.u32 2102212464, %v2719
        %v2729 = vor.u32 %v2727, %v2728
        %v2730 = vshll.u32 2102212464, %v2718
        %v2731 = vshrl.u32 920167782, %v2719
        %v2732 = vor.u32 %v2730, %v2731
        %v2733 = vshll.u32 920167782, %v2718
        %v2734 = vshrl.u32 1326507024, %v2719
        %v2735 = vor.u32 %v2733, %v2734
        %vm2736 = vcmp.lt.s32.totalorder %v2717, 1
        %vm2737 = vcmp.lt.s32.totalorder %v2717, 2
        %vm2738 = vcmp.lt.s32.totalorder %v2717, 3
        %vm2739 = vcmp.lt.s32.totalorder %v2717, 4
        %v2740 = vsel %vm2736, %v2720, %v2723
        %v2741 = vsel %vm2739, %v2729, 2102212464
        %v2742 = vsel %vm2738, %v2726, %v2741
        %v2743 = vsel %vm2737, %v2740, %v2742
        %v2744 = vsel %vm2736, %v2723, %v2726
        %v2745 = vsel %vm2739, %v2732, 920167782
        %v2746 = vsel %vm2738, %v2729, %v2745
        %v2747 = vsel %vm2737, %v2744, %v2746
        %v2748 = vsel %vm2736, %v2726, %v2729
        %v2749 = vsel %vm2739, %v2735, 1326507024
        %v2750 = vsel %vm2738, %v2732, %v2749
        %v2751 = vsel %vm2737, %v2748, %v2750
        %v2752 = vshll.u32 %v2712, 8
        %v2753 = vand.u32 %v2752, 65535
        %v2754 = vshrl.u32 %v2752, 16
        %v2755 = vand.u32 %v2751, 65535
        %v2756 = vshrl.u32 %v2751, 16
        %v2757 = vmul.u32 %v2753, %v2755
        %v2758 = vmul.u32 %v2753, %v2756
        %v2759 = vmul.u32 %v2754, %v2755
        %v2760 = vmul.u32 %v2754, %v2756
        %v2761 = vshll.u32 %v2758, 16
        %v2762 = vshrl.u32 %v2758, 16
        %v2763 = vshll.u32 %v2759, 16
        %v2764 = vshrl.u32 %v2759, 16
        %vm2765 = vc.u32 %v2757, %v2761
        %v2766 = vsel %vm2765, 1, 0
        %v2767 = vadd.s32 %v2757, %v2761
        %v2768 = vadd.s32 %v2760, %v2766
        %vm2769 = vc.u32 %v2767, %v2763
        %v2770 = vsel %vm2769, 1, 0
        %v2771 = vadd.s32 %v2767, %v2763
        %v2772 = vadd.s32 %v2768, %v2770
        %v2773 = vadd.s32 %v2772, %v2762
        %v2774 = vadd.s32 %v2773, %v2764
        %v2775 = vand.u32 %v2752, 65535
        %v2776 = vshrl.u32 %v2752, 16
        %v2777 = vand.u32 %v2747, 65535
        %v2778 = vshrl.u32 %v2747, 16
        %v2779 = vmul.u32 %v2775, %v2777
        %v2780 = vmul.u32 %v2775, %v2778
        %v2781 = vmul.u32 %v2776, %v2777
        %v2782 = vmul.u32 %v2776, %v2778
        %v2783 = vshll.u32 %v2780, 16
        %v2784 = vshrl.u32 %v2780, 16
        %v2785 = vshll.u32 %v2781, 16
        %v2786 = vshrl.u32 %v2781, 16
        %vm2787 = vc.u32 %v2779, %v2783
        %v2788 = vsel %vm2787, 1, 0
        %v2789 = vadd.s32 %v2779, %v2783
        %v2790 = vadd.s32 %v2782, %v2788
        %vm2791 = vc.u32 %v2789, %v2785
        %v2792 = vsel %vm2791, 1, 0
        %v2793 = vadd.s32 %v2789, %v2785
        %v2794 = vadd.s32 %v2790, %v2792
        %v2795 = vadd.s32 %v2794, %v2784
        %v2796 = vadd.s32 %v2795, %v2786
        %v2797 = vmul.u32 %v2752, %v2743
        %v2798 = vadd.s32 %v2774, %v2793
        %vm2799 = vc.u32 %v2774, %v2793
        %v2800 = vadd.s32 %v2796, 1
        %v2801 = vsel %vm2799, %v2800, %v2796
        %v2802 = vadd.s32 %v2797, %v2801
        %v2803 = vadd.s32 %v2802, 536870912
        %v2804 = vshrl.u32 %v2803, 30
        %v2805 = vshll.u32 %v2804, 30
        %v2806 = vsub.s32 %v2802, %v2805
        %vm2807 = vcmp.lt.s32.totalorder %v2806, 0
        %v2808 = vsub.s32 0, %v2806
        %v2809 = vsel %vm2807, %v2808, %v2806
        %v2810 = vclz %v2809
        %v2811 = vsub.s32 %v2810, 2
        %vm2812 = vcmp.gt.s32.totalorder 0, %v2811
        %v2813 = vsel %vm2812, 0, %v2811
        %v2814 = vsub.s32 32, %v2813
        %v2815 = vshll.u32 %v2806, %v2813
        %v2816 = vshrl.u32 %v2798, %v2814
        %v2817 = vor.u32 %v2815, %v2816
        %v2818 = vsub.s32 4294967266, %v2813
        %v2819 = vadd.s32 %v2818, 127
        %v2820 = vshll.u32 %v2819, 23
        %v2821 = vor.u32 4788187, %v2820
        %v2822 = vand.u32 2147483647, %v2821
        %v2824 = vcvt.s32.f32 %v2817
        %v2825 = vmul.f32 %v2824, %v2822
        %v2826 = vxor.u32 %v2825, 2147483648
        %v2827 = vsel %vm2706, %v2826, %v2825
        %v2828 = vsub.s32 4, %v2804
        %v2829 = vsel %vm2706, %v2828, %v2804
        %v2830 = vsel %vm2705, %v512, %v2827
        %v2831 = vsel %vm2705, 0, %v2829
        %v2832 = vmul.f32 %v2830, %v2830
        %v2833 = vmul.f32 %v2832, -0.001358992
        %v2834 = vadd.f32 %v2833, 0.041655596
        %v2835 = vmul.f32 %v2832, %v2834
        %v2836 = vadd.f32 %v2835, -0.4999988
        %v2837 = vmul.f32 %v2832, %v2836
        %v2838 = vadd.f32 1.0, %v2837
        %v2839 = vmul.f32 %v2830, %v2830
        %v2840 = vmul.f32 %v2839, -0.00019511016
        %v2841 = vadd.f32 %v2840, 0.008332121
        %v2842 = vmul.f32 %v2839, %v2841
        %v2843 = vadd.f32 %v2842, -0.16666654
        %v2844 = vmul.f32 %v2839, %v2843
        %v2845 = vadd.f32 %v2844, 1.0
        %v2846 = vmul.f32 %v2845, %v2830
        %vm2847 = vweird.f32 %v512
        %v2848 = vadd.s32 %v2831, 3
        %v2849 = vand.u32 %v2848, 3
        %vm2850 = vcmp.lt.s32.totalorder %v2849, 2
        %vm2851 = vcmp.eq.s32.totalorder %v2849, 0
        %v2852 = vxor.u32 %v2846, 2147483648
        %v2853 = vsel %vm2851, %v2838, %v2852
        %vm2854 = vcmp.eq.s32.totalorder %v2849, 2
        %v2855 = vxor.u32 %v2838, 2147483648
        %v2856 = vsel %vm2854, %v2855, %v2846
        %v2857 = vsel %vm2850, %v2853, %v2856
        %v2858 = vsel %vm2847, nan, %v2857
        %v2859 = vand.u32 2147483647, %v580
        %vm2860 = vcmp.le.f32.partialorder %v2859, 0.7853982
        %vm2861 = vcmp.lt.s32.totalorder %v580, 0
        %v2862 = vand.u32 %v580, 2139095040
        %v2863 = vshrl.u32 %v2862, 23
        %v2864 = vsub.s32 %v2863, 127
        %v2865 = vand.u32 2147483647, %v580
        %v2866 = vand.u32 %v2865, 8388607
        %v2867 = vor.u32 %v2866, 8388608
        %v2868 = vsub.s32 0, %v2867
        %v2869 = vadd.s32 %v2864, 1
        %vm2870 = vcmp.gt.s32.totalorder %v2869, 0
        %v2871 = vsel %vm2870, %v2869, 0
        %v2872 = vshrl.u32 %v2871, 5
        %v2873 = vand.u32 %v2871, 31
        %v2874 = vsub.s32 32, %v2873
        %v2875 = vshrl.u32 683565275, %v2874
        %v2876 = vshll.u32 683565275, %v2873
        %v2877 = vshrl.u32 2475754826, %v2874
        %v2878 = vor.u32 %v2876, %v2877
        %v2879 = vshll.u32 2475754826, %v2873
        %v2880 = vshrl.u32 2131351028, %v2874
        %v2881 = vor.u32 %v2879, %v2880
        %v2882 = vshll.u32 2131351028, %v2873
        %v2883 = vshrl.u32 2102212464, %v2874
        %v2884 = vor.u32 %v2882, %v2883
        %v2885 = vshll.u32 2102212464, %v2873
        %v2886 = vshrl.u32 920167782, %v2874
        %v2887 = vor.u32 %v2885, %v2886
        %v2888 = vshll.u32 920167782, %v2873
        %v2889 = vshrl.u32 1326507024, %v2874
        %v2890 = vor.u32 %v2888, %v2889
        %vm2891 = vcmp.lt.s32.totalorder %v2872, 1
        %vm2892 = vcmp.lt.s32.totalorder %v2872, 2
        %vm2893 = vcmp.lt.s32.totalorder %v2872, 3
        %vm2894 = vcmp.lt.s32.totalorder %v2872, 4
        %v2895 = vsel %vm2891, %v2875, %v2878
        %v2896 = vsel %vm2894, %v2884, 2102212464
        %v2897 = vsel %vm2893, %v2881, %v2896
        %v2898 = vsel %vm2892, %v2895, %v2897
        %v2899 = vsel %vm2891, %v2878, %v2881
        %v2900 = vsel %vm2894, %v2887, 920167782
        %v2901 = vsel %vm2893, %v2884, %v2900
        %v2902 = vsel %vm2892, %v2899, %v2901
        %v2903 = vsel %vm2891, %v2881, %v2884
        %v2904 = vsel %vm2894, %v2890, 1326507024
        %v2905 = vsel %vm2893, %v2887, %v2904
        %v2906 = vsel %vm2892, %v2903, %v2905
        %v2907 = vshll.u32 %v2867, 8
        %v2908 = vand.u32 %v2907, 65535
        %v2909 = vshrl.u32 %v2907, 16
        %v2910 = vand.u32 %v2906, 65535
        %v2911 = vshrl.u32 %v2906, 16
        %v2912 = vmul.u32 %v2908, %v2910
        %v2913 = vmul.u32 %v2908, %v2911
        %v2914 = vmul.u32 %v2909, %v2910
        %v2915 = vmul.u32 %v2909, %v2911
        %v2916 = vshll.u32 %v2913, 16
        %v2917 = vshrl.u32 %v2913, 16
        %v2918 = vshll.u32 %v2914, 16
        %v2919 = vshrl.u32 %v2914, 16
        %vm2920 = vc.u32 %v2912, %v2916
        %v2921 = vsel %vm2920, 1, 0
        %v2922 = vadd.s32 %v2912, %v2916
        %v2923 = vadd.s32 %v2915, %v2921
        %vm2924 = vc.u32 %v2922, %v2918
        %v2925 = vsel %vm2924, 1, 0
        %v2926 = vadd.s32 %v2922, %v2918
        %v2927 = vadd.s32 %v2923, %v2925
        %v2928 = vadd.s32 %v2927, %v2917
        %v2929 = vadd.s32 %v2928, %v2919
        %v2930 = vand.u32 %v2907, 65535
        %v2931 = vshrl.u32 %v2907, 16
        %v2932 = vand.u32 %v2902, 65535
        %v2933 = vshrl.u32 %v2902, 16
        %v2934 = vmul.u32 %v2930, %v2932
        %v2935 = vmul.u32 %v2930, %v2933
        %v2936 = vmul.u32 %v2931, %v2932
        %v2937 = vmul.u32 %v2931, %v2933
        %v2938 = vshll.u32 %v2935, 16
        %v2939 = vshrl.u32 %v2935, 16
        %v2940 = vshll.u32 %v2936, 16
        %v2941 = vshrl.u32 %v2936, 16
        %vm2942 = vc.u32 %v2934, %v2938
        %v2943 = vsel %vm2942, 1, 0
        %v2944 = vadd.s32 %v2934, %v2938
        %v2945 = vadd.s32 %v2937, %v2943
        %vm2946 = vc.u32 %v2944, %v2940
        %v2947 = vsel %vm2946, 1, 0
        %v2948 = vadd.s32 %v2944, %v2940
        %v2949 = vadd.s32 %v2945, %v2947
        %v2950 = vadd.s32 %v2949, %v2939
        %v2951 = vadd.s32 %v2950, %v2941
        %v2952 = vmul.u32 %v2907, %v2898
        %v2953 = vadd.s32 %v2929, %v2948
        %vm2954 = vc.u32 %v2929, %v2948
        %v2955 = vadd.s32 %v2951, 1
        %v2956 = vsel %vm2954, %v2955, %v2951
        %v2957 = vadd.s32 %v2952, %v2956
        %v2958 = vadd.s32 %v2957, 536870912
        %v2959 = vshrl.u32 %v2958, 30
        %v2960 = vshll.u32 %v2959, 30
        %v2961 = vsub.s32 %v2957, %v2960
        %vm2962 = vcmp.lt.s32.totalorder %v2961, 0
        %v2963 = vsub.s32 0, %v2961
        %v2964 = vsel %vm2962, %v2963, %v2961
        %v2965 = vclz %v2964
        %v2966 = vsub.s32 %v2965, 2
        %vm2967 = vcmp.gt.s32.totalorder 0, %v2966
        %v2968 = vsel %vm2967, 0, %v2966
        %v2969 = vsub.s32 32, %v2968
        %v2970 = vshll.u32 %v2961, %v2968
        %v2971 = vshrl.u32 %v2953, %v2969
        %v2972 = vor.u32 %v2970, %v2971
        %v2973 = vsub.s32 4294967266, %v2968
        %v2974 = vadd.s32 %v2973, 127
        %v2975 = vshll.u32 %v2974, 23
        %v2976 = vor.u32 4788187, %v2975
        %v2977 = vand.u32 2147483647, %v2976
        %v2979 = vcvt.s32.f32 %v2972
        %v2980 = vmul.f32 %v2979, %v2977
        %v2981 = vxor.u32 %v2980, 2147483648
        %v2982 = vsel %vm2861, %v2981, %v2980
        %v2983 = vsub.s32 4, %v2959
        %v2984 = vsel %vm2861, %v2983, %v2959
        %v2985 = vsel %vm2860, %v580, %v2982
        %v2986 = vsel %vm2860, 0, %v2984
        %v2987 = vmul.f32 %v2985, %v2985
        %v2988 = vmul.f32 %v2987, -0.001358992
        %v2989 = vadd.f32 %v2988, 0.041655596
        %v2990 = vmul.f32 %v2987, %v2989
        %v2991 = vadd.f32 %v2990, -0.4999988
        %v2992 = vmul.f32 %v2987, %v2991
        %v2993 = vadd.f32 1.0, %v2992
        %v2994 = vmul.f32 %v2985, %v2985
        %v2995 = vmul.f32 %v2994, -0.00019511016
        %v2996 = vadd.f32 %v2995, 0.008332121
        %v2997 = vmul.f32 %v2994, %v2996
        %v2998 = vadd.f32 %v2997, -0.16666654
        %v2999 = vmul.f32 %v2994, %v2998
        %v3000 = vadd.f32 %v2999, 1.0
        %v3001 = vmul.f32 %v3000, %v2985
        %vm3002 = vweird.f32 %v580
        %v3003 = vadd.s32 %v2986, 3
        %v3004 = vand.u32 %v3003, 3
        %vm3005 = vcmp.lt.s32.totalorder %v3004, 2
        %vm3006 = vcmp.eq.s32.totalorder %v3004, 0
        %v3007 = vxor.u32 %v3001, 2147483648
        %v3008 = vsel %vm3006, %v2993, %v3007
        %vm3009 = vcmp.eq.s32.totalorder %v3004, 2
        %v3010 = vxor.u32 %v2993, 2147483648
        %v3011 = vsel %vm3009, %v3010, %v3001
        %v3012 = vsel %vm3005, %v3008, %v3011
        %v3013 = vsel %vm3002, nan, %v3012
        %v3014 = vand.u32 2147483647, %v648
        %vm3015 = vcmp.le.f32.partialorder %v3014, 0.7853982
        %vm3016 = vcmp.lt.s32.totalorder %v648, 0
        %v3017 = vand.u32 %v648, 2139095040
        %v3018 = vshrl.u32 %v3017, 23
        %v3019 = vsub.s32 %v3018, 127
        %v3020 = vand.u32 2147483647, %v648
        %v3021 = vand.u32 %v3020, 8388607
        %v3022 = vor.u32 %v3021, 8388608
        %v3023 = vsub.s32 0, %v3022
        %v3024 = vadd.s32 %v3019, 1
        %vm3025 = vcmp.gt.s32.totalorder %v3024, 0
        %v3026 = vsel %vm3025, %v3024, 0
        %v3027 = vshrl.u32 %v3026, 5
        %v3028 = vand.u32 %v3026, 31
        %v3029 = vsub.s32 32, %v3028
        %v3030 = vshrl.u32 683565275, %v3029
        %v3031 = vshll.u32 683565275, %v3028
        %v3032 = vshrl.u32 2475754826, %v3029
        %v3033 = vor.u32 %v3031, %v3032
        %v3034 = vshll.u32 2475754826, %v3028
        %v3035 = vshrl.u32 2131351028, %v3029
        %v3036 = vor.u32 %v3034, %v3035
        %v3037 = vshll.u32 2131351028, %v3028
        %v3038 = vshrl.u32 2102212464, %v3029
        %v3039 = vor.u32 %v3037, %v3038
        %v3040 = vshll.u32 2102212464, %v3028
        %v3041 = vshrl.u32 920167782, %v3029
        %v3042 = vor.u32 %v3040, %v3041
        %v3043 = vshll.u32 920167782, %v3028
        %v3044 = vshrl.u32 1326507024, %v3029
        %v3045 = vor.u32 %v3043, %v3044
        %vm3046 = vcmp.lt.s32.totalorder %v3027, 1
        %vm3047 = vcmp.lt.s32.totalorder %v3027, 2
        %vm3048 = vcmp.lt.s32.totalorder %v3027, 3
        %vm3049 = vcmp.lt.s32.totalorder %v3027, 4
        %v3050 = vsel %vm3046, %v3030, %v3033
        %v3051 = vsel %vm3049, %v3039, 2102212464
        %v3052 = vsel %vm3048, %v3036, %v3051
        %v3053 = vsel %vm3047, %v3050, %v3052
        %v3054 = vsel %vm3046, %v3033, %v3036
        %v3055 = vsel %vm3049, %v3042, 920167782
        %v3056 = vsel %vm3048, %v3039, %v3055
        %v3057 = vsel %vm3047, %v3054, %v3056
        %v3058 = vsel %vm3046, %v3036, %v3039
        %v3059 = vsel %vm3049, %v3045, 1326507024
        %v3060 = vsel %vm3048, %v3042, %v3059
        %v3061 = vsel %vm3047, %v3058, %v3060
        %v3062 = vshll.u32 %v3022, 8
        %v3063 = vand.u32 %v3062, 65535
        %v3064 = vshrl.u32 %v3062, 16
        %v3065 = vand.u32 %v3061, 65535
        %v3066 = vshrl.u32 %v3061, 16
        %v3067 = vmul.u32 %v3063, %v3065
        %v3068 = vmul.u32 %v3063, %v3066
        %v3069 = vmul.u32 %v3064, %v3065
        %v3070 = vmul.u32 %v3064, %v3066
        %v3071 = vshll.u32 %v3068, 16
        %v3072 = vshrl.u32 %v3068, 16
        %v3073 = vshll.u32 %v3069, 16
        %v3074 = vshrl.u32 %v3069, 16
        %vm3075 = vc.u32 %v3067, %v3071
        %v3076 = vsel %vm3075, 1, 0
        %v3077 = vadd.s32 %v3067, %v3071
        %v3078 = vadd.s32 %v3070, %v3076
        %vm3079 = vc.u32 %v3077, %v3073
        %v3080 = vsel %vm3079, 1, 0
        %v3081 = vadd.s32 %v3077, %v3073
        %v3082 = vadd.s32 %v3078, %v3080
        %v3083 = vadd.s32 %v3082, %v3072
        %v3084 = vadd.s32 %v3083, %v3074
        %v3085 = vand.u32 %v3062, 65535
        %v3086 = vshrl.u32 %v3062, 16
        %v3087 = vand.u32 %v3057, 65535
        %v3088 = vshrl.u32 %v3057, 16
        %v3089 = vmul.u32 %v3085, %v3087
        %v3090 = vmul.u32 %v3085, %v3088
        %v3091 = vmul.u32 %v3086, %v3087
        %v3092 = vmul.u32 %v3086, %v3088
        %v3093 = vshll.u32 %v3090, 16
        %v3094 = vshrl.u32 %v3090, 16
        %v3095 = vshll.u32 %v3091, 16
        %v3096 = vshrl.u32 %v3091, 16
        %vm3097 = vc.u32 %v3089, %v3093
        %v3098 = vsel %vm3097, 1, 0
        %v3099 = vadd.s32 %v3089, %v3093
        %v3100 = vadd.s32 %v3092, %v3098
        %vm3101 = vc.u32 %v3099, %v3095
        %v3102 = vsel %vm3101, 1, 0
        %v3103 = vadd.s32 %v3099, %v3095
        %v3104 = vadd.s32 %v3100, %v3102
        %v3105 = vadd.s32 %v3104, %v3094
        %v3106 = vadd.s32 %v3105, %v3096
        %v3107 = vmul.u32 %v3062, %v3053
        %v3108 = vadd.s32 %v3084, %v3103
        %vm3109 = vc.u32 %v3084, %v3103
        %v3110 = vadd.s32 %v3106, 1
        %v3111 = vsel %vm3109, %v3110, %v3106
        %v3112 = vadd.s32 %v3107, %v3111
        %v3113 = vadd.s32 %v3112, 536870912
        %v3114 = vshrl.u32 %v3113, 30
        %v3115 = vshll.u32 %v3114, 30
        %v3116 = vsub.s32 %v3112, %v3115
        %vm3117 = vcmp.lt.s32.totalorder %v3116, 0
        %v3118 = vsub.s32 0, %v3116
        %v3119 = vsel %vm3117, %v3118, %v3116
        %v3120 = vclz %v3119
        %v3121 = vsub.s32 %v3120, 2
        %vm3122 = vcmp.gt.s32.totalorder 0, %v3121
        %v3123 = vsel %vm3122, 0, %v3121
        %v3124 = vsub.s32 32, %v3123
        %v3125 = vshll.u32 %v3116, %v3123
        %v3126 = vshrl.u32 %v3108, %v3124
        %v3127 = vor.u32 %v3125, %v3126
        %v3128 = vsub.s32 4294967266, %v3123
        %v3129 = vadd.s32 %v3128, 127
        %v3130 = vshll.u32 %v3129, 23
        %v3131 = vor.u32 4788187, %v3130
        %v3132 = vand.u32 2147483647, %v3131
        %v3134 = vcvt.s32.f32 %v3127
        %v3135 = vmul.f32 %v3134, %v3132
        %v3136 = vxor.u32 %v3135, 2147483648
        %v3137 = vsel %vm3016, %v3136, %v3135
        %v3138 = vsub.s32 4, %v3114
        %v3139 = vsel %vm3016, %v3138, %v3114
        %v3140 = vsel %vm3015, %v648, %v3137
        %v3141 = vsel %vm3015, 0, %v3139
        %v3142 = vmul.f32 %v3140, %v3140
        %v3143 = vmul.f32 %v3142, -0.001358992
        %v3144 = vadd.f32 %v3143, 0.041655596
        %v3145 = vmul.f32 %v3142, %v3144
        %v3146 = vadd.f32 %v3145, -0.4999988
        %v3147 = vmul.f32 %v3142, %v3146
        %v3148 = vadd.f32 1.0, %v3147
        %v3149 = vmul.f32 %v3140, %v3140
        %v3150 = vmul.f32 %v3149, -0.00019511016
        %v3151 = vadd.f32 %v3150, 0.008332121
        %v3152 = vmul.f32 %v3149, %v3151
        %v3153 = vadd.f32 %v3152, -0.16666654
        %v3154 = vmul.f32 %v3149, %v3153
        %v3155 = vadd.f32 %v3154, 1.0
        %v3156 = vmul.f32 %v3155, %v3140
        %vm3157 = vweird.f32 %v648
        %v3158 = vadd.s32 %v3141, 3
        %v3159 = vand.u32 %v3158, 3
        %vm3160 = vcmp.lt.s32.totalorder %v3159, 2
        %vm3161 = vcmp.eq.s32.totalorder %v3159, 0
        %v3162 = vxor.u32 %v3156, 2147483648
        %v3163 = vsel %vm3161, %v3148, %v3162
        %vm3164 = vcmp.eq.s32.totalorder %v3159, 2
        %v3165 = vxor.u32 %v3148, 2147483648
        %v3166 = vsel %vm3164, %v3165, %v3156
        %v3167 = vsel %vm3160, %v3163, %v3166
        %v3168 = vsel %vm3157, nan, %v3167
        %v3169 = vand.u32 2147483647, %v447
        %vm3170 = vcmp.le.f32.partialorder %v3169, 0.7853982
        %vm3171 = vcmp.lt.s32.totalorder %v447, 0
        %v3172 = vand.u32 %v447, 2139095040
        %v3173 = vshrl.u32 %v3172, 23
        %v3174 = vsub.s32 %v3173, 127
        %v3175 = vand.u32 2147483647, %v447
        %v3176 = vand.u32 %v3175, 8388607
        %v3177 = vor.u32 %v3176, 8388608
        %v3178 = vsub.s32 0, %v3177
        %v3179 = vadd.s32 %v3174, 1
        %vm3180 = vcmp.gt.s32.totalorder %v3179, 0
        %v3181 = vsel %vm3180, %v3179, 0
        %v3182 = vshrl.u32 %v3181, 5
        %v3183 = vand.u32 %v3181, 31
        %v3184 = vsub.s32 32, %v3183
        %v3185 = vshrl.u32 683565275, %v3184
        %v3186 = vshll.u32 683565275, %v3183
        %v3187 = vshrl.u32 2475754826, %v3184
        %v3188 = vor.u32 %v3186, %v3187
        %v3189 = vshll.u32 2475754826, %v3183
        %v3190 = vshrl.u32 2131351028, %v3184
        %v3191 = vor.u32 %v3189, %v3190
        %v3192 = vshll.u32 2131351028, %v3183
        %v3193 = vshrl.u32 2102212464, %v3184
        %v3194 = vor.u32 %v3192, %v3193
        %v3195 = vshll.u32 2102212464, %v3183
        %v3196 = vshrl.u32 920167782, %v3184
        %v3197 = vor.u32 %v3195, %v3196
        %v3198 = vshll.u32 920167782, %v3183
        %v3199 = vshrl.u32 1326507024, %v3184
        %v3200 = vor.u32 %v3198, %v3199
        %vm3201 = vcmp.lt.s32.totalorder %v3182, 1
        %vm3202 = vcmp.lt.s32.totalorder %v3182, 2
        %vm3203 = vcmp.lt.s32.totalorder %v3182, 3
        %vm3204 = vcmp.lt.s32.totalorder %v3182, 4
        %v3205 = vsel %vm3201, %v3185, %v3188
        %v3206 = vsel %vm3204, %v3194, 2102212464
        %v3207 = vsel %vm3203, %v3191, %v3206
        %v3208 = vsel %vm3202, %v3205, %v3207
        %v3209 = vsel %vm3201, %v3188, %v3191
        %v3210 = vsel %vm3204, %v3197, 920167782
        %v3211 = vsel %vm3203, %v3194, %v3210
        %v3212 = vsel %vm3202, %v3209, %v3211
        %v3213 = vsel %vm3201, %v3191, %v3194
        %v3214 = vsel %vm3204, %v3200, 1326507024
        %v3215 = vsel %vm3203, %v3197, %v3214
        %v3216 = vsel %vm3202, %v3213, %v3215
        %v3217 = vshll.u32 %v3177, 8
        %v3218 = vand.u32 %v3217, 65535
        %v3219 = vshrl.u32 %v3217, 16
        %v3220 = vand.u32 %v3216, 65535
        %v3221 = vshrl.u32 %v3216, 16
        %v3222 = vmul.u32 %v3218, %v3220
        %v3223 = vmul.u32 %v3218, %v3221
        %v3224 = vmul.u32 %v3219, %v3220
        %v3225 = vmul.u32 %v3219, %v3221
        %v3226 = vshll.u32 %v3223, 16
        %v3227 = vshrl.u32 %v3223, 16
        %v3228 = vshll.u32 %v3224, 16
        %v3229 = vshrl.u32 %v3224, 16
        %vm3230 = vc.u32 %v3222, %v3226
        %v3231 = vsel %vm3230, 1, 0
        %v3232 = vadd.s32 %v3222, %v3226
        %v3233 = vadd.s32 %v3225, %v3231
        %vm3234 = vc.u32 %v3232, %v3228
        %v3235 = vsel %vm3234, 1, 0
        %v3236 = vadd.s32 %v3232, %v3228
        %v3237 = vadd.s32 %v3233, %v3235
        %v3238 = vadd.s32 %v3237, %v3227
        %v3239 = vadd.s32 %v3238, %v3229
        %v3240 = vand.u32 %v3217, 65535
        %v3241 = vshrl.u32 %v3217, 16
        %v3242 = vand.u32 %v3212, 65535
        %v3243 = vshrl.u32 %v3212, 16
        %v3244 = vmul.u32 %v3240, %v3242
        %v3245 = vmul.u32 %v3240, %v3243
        %v3246 = vmul.u32 %v3241, %v3242
        %v3247 = vmul.u32 %v3241, %v3243
        %v3248 = vshll.u32 %v3245, 16
        %v3249 = vshrl.u32 %v3245, 16
        %v3250 = vshll.u32 %v3246, 16
        %v3251 = vshrl.u32 %v3246, 16
        %vm3252 = vc.u32 %v3244, %v3248
        %v3253 = vsel %vm3252, 1, 0
        %v3254 = vadd.s32 %v3244, %v3248
        %v3255 = vadd.s32 %v3247, %v3253
        %vm3256 = vc.u32 %v3254, %v3250
        %v3257 = vsel %vm3256, 1, 0
        %v3258 = vadd.s32 %v3254, %v3250
        %v3259 = vadd.s32 %v3255, %v3257
        %v3260 = vadd.s32 %v3259, %v3249
        %v3261 = vadd.s32 %v3260, %v3251
        %v3262 = vmul.u32 %v3217, %v3208
        %v3263 = vadd.s32 %v3239, %v3258
        %vm3264 = vc.u32 %v3239, %v3258
        %v3265 = vadd.s32 %v3261, 1
        %v3266 = vsel %vm3264, %v3265, %v3261
        %v3267 = vadd.s32 %v3262, %v3266
        %v3268 = vadd.s32 %v3267, 536870912
        %v3269 = vshrl.u32 %v3268, 30
        %v3270 = vshll.u32 %v3269, 30
        %v3271 = vsub.s32 %v3267, %v3270
        %vm3272 = vcmp.lt.s32.totalorder %v3271, 0
        %v3273 = vsub.s32 0, %v3271
        %v3274 = vsel %vm3272, %v3273, %v3271
        %v3275 = vclz %v3274
        %v3276 = vsub.s32 %v3275, 2
        %vm3277 = vcmp.gt.s32.totalorder 0, %v3276
        %v3278 = vsel %vm3277, 0, %v3276
        %v3279 = vsub.s32 32, %v3278
        %v3280 = vshll.u32 %v3271, %v3278
        %v3281 = vshrl.u32 %v3263, %v3279
        %v3282 = vor.u32 %v3280, %v3281
        %v3283 = vsub.s32 4294967266, %v3278
        %v3284 = vadd.s32 %v3283, 127
        %v3285 = vshll.u32 %v3284, 23
        %v3286 = vor.u32 4788187, %v3285
        %v3287 = vand.u32 2147483647, %v3286
        %v3289 = vcvt.s32.f32 %v3282
        %v3290 = vmul.f32 %v3289, %v3287
        %v3291 = vxor.u32 %v3290, 2147483648
        %v3292 = vsel %vm3171, %v3291, %v3290
        %v3293 = vsub.s32 4, %v3269
        %v3294 = vsel %vm3171, %v3293, %v3269
        %v3295 = vsel %vm3170, %v447, %v3292
        %v3296 = vsel %vm3170, 0, %v3294
        %v3297 = vmul.f32 %v3295, %v3295
        %v3298 = vmul.f32 %v3297, -0.001358992
        %v3299 = vadd.f32 %v3298, 0.041655596
        %v3300 = vmul.f32 %v3297, %v3299
        %v3301 = vadd.f32 %v3300, -0.4999988
        %v3302 = vmul.f32 %v3297, %v3301
        %v3303 = vadd.f32 1.0, %v3302
        %v3304 = vmul.f32 %v3295, %v3295
        %v3305 = vmul.f32 %v3304, -0.00019511016
        %v3306 = vadd.f32 %v3305, 0.008332121
        %v3307 = vmul.f32 %v3304, %v3306
        %v3308 = vadd.f32 %v3307, -0.16666654
        %v3309 = vmul.f32 %v3304, %v3308
        %v3310 = vadd.f32 %v3309, 1.0
        %v3311 = vmul.f32 %v3310, %v3295
        %vm3312 = vweird.f32 %v447
        %v3313 = vadd.s32 %v3296, 3
        %v3314 = vand.u32 %v3313, 3
        %vm3315 = vcmp.lt.s32.totalorder %v3314, 2
        %vm3316 = vcmp.eq.s32.totalorder %v3314, 0
        %v3317 = vxor.u32 %v3311, 2147483648
        %v3318 = vsel %vm3316, %v3303, %v3317
        %vm3319 = vcmp.eq.s32.totalorder %v3314, 2
        %v3320 = vxor.u32 %v3303, 2147483648
        %v3321 = vsel %vm3319, %v3320, %v3311
        %v3322 = vsel %vm3315, %v3318, %v3321
        %v3323 = vsel %vm3312, nan, %v3322
        %v3324 = vand.u32 2147483647, %v515
        %vm3325 = vcmp.le.f32.partialorder %v3324, 0.7853982
        %vm3326 = vcmp.lt.s32.totalorder %v515, 0
        %v3327 = vand.u32 %v515, 2139095040
        %v3328 = vshrl.u32 %v3327, 23
        %v3329 = vsub.s32 %v3328, 127
        %v3330 = vand.u32 2147483647, %v515
        %v3331 = vand.u32 %v3330, 8388607
        %v3332 = vor.u32 %v3331, 8388608
        %v3333 = vsub.s32 0, %v3332
        %v3334 = vadd.s32 %v3329, 1
        %vm3335 = vcmp.gt.s32.totalorder %v3334, 0
        %v3336 = vsel %vm3335, %v3334, 0
        %v3337 = vshrl.u32 %v3336, 5
        %v3338 = vand.u32 %v3336, 31
        %v3339 = vsub.s32 32, %v3338
        %v3340 = vshrl.u32 683565275, %v3339
        %v3341 = vshll.u32 683565275, %v3338
        %v3342 = vshrl.u32 2475754826, %v3339
        %v3343 = vor.u32 %v3341, %v3342
        %v3344 = vshll.u32 2475754826, %v3338
        %v3345 = vshrl.u32 2131351028, %v3339
        %v3346 = vor.u32 %v3344, %v3345
        %v3347 = vshll.u32 2131351028, %v3338
        %v3348 = vshrl.u32 2102212464, %v3339
        %v3349 = vor.u32 %v3347, %v3348
        %v3350 = vshll.u32 2102212464, %v3338
        %v3351 = vshrl.u32 920167782, %v3339
        %v3352 = vor.u32 %v3350, %v3351
        %v3353 = vshll.u32 920167782, %v3338
        %v3354 = vshrl.u32 1326507024, %v3339
        %v3355 = vor.u32 %v3353, %v3354
        %vm3356 = vcmp.lt.s32.totalorder %v3337, 1
        %vm3357 = vcmp.lt.s32.totalorder %v3337, 2
        %vm3358 = vcmp.lt.s32.totalorder %v3337, 3
        %vm3359 = vcmp.lt.s32.totalorder %v3337, 4
        %v3360 = vsel %vm3356, %v3340, %v3343
        %v3361 = vsel %vm3359, %v3349, 2102212464
        %v3362 = vsel %vm3358, %v3346, %v3361
        %v3363 = vsel %vm3357, %v3360, %v3362
        %v3364 = vsel %vm3356, %v3343, %v3346
        %v3365 = vsel %vm3359, %v3352, 920167782
        %v3366 = vsel %vm3358, %v3349, %v3365
        %v3367 = vsel %vm3357, %v3364, %v3366
        %v3368 = vsel %vm3356, %v3346, %v3349
        %v3369 = vsel %vm3359, %v3355, 1326507024
        %v3370 = vsel %vm3358, %v3352, %v3369
        %v3371 = vsel %vm3357, %v3368, %v3370
        %v3372 = vshll.u32 %v3332, 8
        %v3373 = vand.u32 %v3372, 65535
        %v3374 = vshrl.u32 %v3372, 16
        %v3375 = vand.u32 %v3371, 65535
        %v3376 = vshrl.u32 %v3371, 16
        %v3377 = vmul.u32 %v3373, %v3375
        %v3378 = vmul.u32 %v3373, %v3376
        %v3379 = vmul.u32 %v3374, %v3375
        %v3380 = vmul.u32 %v3374, %v3376
        %v3381 = vshll.u32 %v3378, 16
        %v3382 = vshrl.u32 %v3378, 16
        %v3383 = vshll.u32 %v3379, 16
        %v3384 = vshrl.u32 %v3379, 16
        %vm3385 = vc.u32 %v3377, %v3381
        %v3386 = vsel %vm3385, 1, 0
        %v3387 = vadd.s32 %v3377, %v3381
        %v3388 = vadd.s32 %v3380, %v3386
        %vm3389 = vc.u32 %v3387, %v3383
        %v3390 = vsel %vm3389, 1, 0
        %v3391 = vadd.s32 %v3387, %v3383
        %v3392 = vadd.s32 %v3388, %v3390
        %v3393 = vadd.s32 %v3392, %v3382
        %v3394 = vadd.s32 %v3393, %v3384
        %v3395 = vand.u32 %v3372, 65535
        %v3396 = vshrl.u32 %v3372, 16
        %v3397 = vand.u32 %v3367, 65535
        %v3398 = vshrl.u32 %v3367, 16
        %v3399 = vmul.u32 %v3395, %v3397
        %v3400 = vmul.u32 %v3395, %v3398
        %v3401 = vmul.u32 %v3396, %v3397
        %v3402 = vmul.u32 %v3396, %v3398
        %v3403 = vshll.u32 %v3400, 16
        %v3404 = vshrl.u32 %v3400, 16
        %v3405 = vshll.u32 %v3401, 16
        %v3406 = vshrl.u32 %v3401, 16
        %vm3407 = vc.u32 %v3399, %v3403
        %v3408 = vsel %vm3407, 1, 0
        %v3409 = vadd.s32 %v3399, %v3403
        %v3410 = vadd.s32 %v3402, %v3408
        %vm3411 = vc.u32 %v3409, %v3405
        %v3412 = vsel %vm3411, 1, 0
        %v3413 = vadd.s32 %v3409, %v3405
        %v3414 = vadd.s32 %v3410, %v3412
        %v3415 = vadd.s32 %v3414, %v3404
        %v3416 = vadd.s32 %v3415, %v3406
        %v3417 = vmul.u32 %v3372, %v3363
        %v3418 = vadd.s32 %v3394, %v3413
        %vm3419 = vc.u32 %v3394, %v3413
        %v3420 = vadd.s32 %v3416, 1
        %v3421 = vsel %vm3419, %v3420, %v3416
        %v3422 = vadd.s32 %v3417, %v3421
        %v3423 = vadd.s32 %v3422, 536870912
        %v3424 = vshrl.u32 %v3423, 30
        %v3425 = vshll.u32 %v3424, 30
        %v3426 = vsub.s32 %v3422, %v3425
        %vm3427 = vcmp.lt.s32.totalorder %v3426, 0
        %v3428 = vsub.s32 0, %v3426
        %v3429 = vsel %vm3427, %v3428, %v3426
        %v3430 = vclz %v3429
        %v3431 = vsub.s32 %v3430, 2
        %vm3432 = vcmp.gt.s32.totalorder 0, %v3431
        %v3433 = vsel %vm3432, 0, %v3431
        %v3434 = vsub.s32 32, %v3433
        %v3435 = vshll.u32 %v3426, %v3433
        %v3436 = vshrl.u32 %v3418, %v3434
        %v3437 = vor.u32 %v3435, %v3436
        %v3438 = vsub.s32 4294967266, %v3433
        %v3439 = vadd.s32 %v3438, 127
        %v3440 = vshll.u32 %v3439, 23
        %v3441 = vor.u32 4788187, %v3440
        %v3442 = vand.u32 2147483647, %v3441
        %v3444 = vcvt.s32.f32 %v3437
        %v3445 = vmul.f32 %v3444, %v3442
        %v3446 = vxor.u32 %v3445, 2147483648
        %v3447 = vsel %vm3326, %v3446, %v3445
        %v3448 = vsub.s32 4, %v3424
        %v3449 = vsel %vm3326, %v3448, %v3424
        %v3450 = vsel %vm3325, %v515, %v3447
        %v3451 = vsel %vm3325, 0, %v3449
        %v3452 = vmul.f32 %v3450, %v3450
        %v3453 = vmul.f32 %v3452, -0.001358992
        %v3454 = vadd.f32 %v3453, 0.041655596
        %v3455 = vmul.f32 %v3452, %v3454
        %v3456 = vadd.f32 %v3455, -0.4999988
        %v3457 = vmul.f32 %v3452, %v3456
        %v3458 = vadd.f32 1.0, %v3457
        %v3459 = vmul.f32 %v3450, %v3450
        %v3460 = vmul.f32 %v3459, -0.00019511016
        %v3461 = vadd.f32 %v3460, 0.008332121
        %v3462 = vmul.f32 %v3459, %v3461
        %v3463 = vadd.f32 %v3462, -0.16666654
        %v3464 = vmul.f32 %v3459, %v3463
        %v3465 = vadd.f32 %v3464, 1.0
        %v3466 = vmul.f32 %v3465, %v3450
        %vm3467 = vweird.f32 %v515
        %v3468 = vadd.s32 %v3451, 3
        %v3469 = vand.u32 %v3468, 3
        %vm3470 = vcmp.lt.s32.totalorder %v3469, 2
        %vm3471 = vcmp.eq.s32.totalorder %v3469, 0
        %v3472 = vxor.u32 %v3466, 2147483648
        %v3473 = vsel %vm3471, %v3458, %v3472
        %vm3474 = vcmp.eq.s32.totalorder %v3469, 2
        %v3475 = vxor.u32 %v3458, 2147483648
        %v3476 = vsel %vm3474, %v3475, %v3466
        %v3477 = vsel %vm3470, %v3473, %v3476
        %v3478 = vsel %vm3467, nan, %v3477
        %v3479 = vand.u32 2147483647, %v583
        %vm3480 = vcmp.le.f32.partialorder %v3479, 0.7853982
        %vm3481 = vcmp.lt.s32.totalorder %v583, 0
        %v3482 = vand.u32 %v583, 2139095040
        %v3483 = vshrl.u32 %v3482, 23
        %v3484 = vsub.s32 %v3483, 127
        %v3485 = vand.u32 2147483647, %v583
        %v3486 = vand.u32 %v3485, 8388607
        %v3487 = vor.u32 %v3486, 8388608
        %v3488 = vsub.s32 0, %v3487
        %v3489 = vadd.s32 %v3484, 1
        %vm3490 = vcmp.gt.s32.totalorder %v3489, 0
        %v3491 = vsel %vm3490, %v3489, 0
        %v3492 = vshrl.u32 %v3491, 5
        %v3493 = vand.u32 %v3491, 31
        %v3494 = vsub.s32 32, %v3493
        %v3495 = vshrl.u32 683565275, %v3494
        %v3496 = vshll.u32 683565275, %v3493
        %v3497 = vshrl.u32 2475754826, %v3494
        %v3498 = vor.u32 %v3496, %v3497
        %v3499 = vshll.u32 2475754826, %v3493
        %v3500 = vshrl.u32 2131351028, %v3494
        %v3501 = vor.u32 %v3499, %v3500
        %v3502 = vshll.u32 2131351028, %v3493
        %v3503 = vshrl.u32 2102212464, %v3494
        %v3504 = vor.u32 %v3502, %v3503
        %v3505 = vshll.u32 2102212464, %v3493
        %v3506 = vshrl.u32 920167782, %v3494
        %v3507 = vor.u32 %v3505, %v3506
        %v3508 = vshll.u32 920167782, %v3493
        %v3509 = vshrl.u32 1326507024, %v3494
        %v3510 = vor.u32 %v3508, %v3509
        %vm3511 = vcmp.lt.s32.totalorder %v3492, 1
        %vm3512 = vcmp.lt.s32.totalorder %v3492, 2
        %vm3513 = vcmp.lt.s32.totalorder %v3492, 3
        %vm3514 = vcmp.lt.s32.totalorder %v3492, 4
        %v3515 = vsel %vm3511, %v3495, %v3498
        %v3516 = vsel %vm3514, %v3504, 2102212464
        %v3517 = vsel %vm3513, %v3501, %v3516
        %v3518 = vsel %vm3512, %v3515, %v3517
        %v3519 = vsel %vm3511, %v3498, %v3501
        %v3520 = vsel %vm3514, %v3507, 920167782
        %v3521 = vsel %vm3513, %v3504, %v3520
        %v3522 = vsel %vm3512, %v3519, %v3521
        %v3523 = vsel %vm3511, %v3501, %v3504
        %v3524 = vsel %vm3514, %v3510, 1326507024
        %v3525 = vsel %vm3513, %v3507, %v3524
        %v3526 = vsel %vm3512, %v3523, %v3525
        %v3527 = vshll.u32 %v3487, 8
        %v3528 = vand.u32 %v3527, 65535
        %v3529 = vshrl.u32 %v3527, 16
        %v3530 = vand.u32 %v3526, 65535
        %v3531 = vshrl.u32 %v3526, 16
        %v3532 = vmul.u32 %v3528, %v3530
        %v3533 = vmul.u32 %v3528, %v3531
        %v3534 = vmul.u32 %v3529, %v3530
        %v3535 = vmul.u32 %v3529, %v3531
        %v3536 = vshll.u32 %v3533, 16
        %v3537 = vshrl.u32 %v3533, 16
        %v3538 = vshll.u32 %v3534, 16
        %v3539 = vshrl.u32 %v3534, 16
        %vm3540 = vc.u32 %v3532, %v3536
        %v3541 = vsel %vm3540, 1, 0
        %v3542 = vadd.s32 %v3532, %v3536
        %v3543 = vadd.s32 %v3535, %v3541
        %vm3544 = vc.u32 %v3542, %v3538
        %v3545 = vsel %vm3544, 1, 0
        %v3546 = vadd.s32 %v3542, %v3538
        %v3547 = vadd.s32 %v3543, %v3545
        %v3548 = vadd.s32 %v3547, %v3537
        %v3549 = vadd.s32 %v3548, %v3539
        %v3550 = vand.u32 %v3527, 65535
        %v3551 = vshrl.u32 %v3527, 16
        %v3552 = vand.u32 %v3522, 65535
        %v3553 = vshrl.u32 %v3522, 16
        %v3554 = vmul.u32 %v3550, %v3552
        %v3555 = vmul.u32 %v3550, %v3553
        %v3556 = vmul.u32 %v3551, %v3552
        %v3557 = vmul.u32 %v3551, %v3553
        %v3558 = vshll.u32 %v3555, 16
        %v3559 = vshrl.u32 %v3555, 16
        %v3560 = vshll.u32 %v3556, 16
        %v3561 = vshrl.u32 %v3556, 16
        %vm3562 = vc.u32 %v3554, %v3558
        %v3563 = vsel %vm3562, 1, 0
        %v3564 = vadd.s32 %v3554, %v3558
        %v3565 = vadd.s32 %v3557, %v3563
        %vm3566 = vc.u32 %v3564, %v3560
        %v3567 = vsel %vm3566, 1, 0
        %v3568 = vadd.s32 %v3564, %v3560
        %v3569 = vadd.s32 %v3565, %v3567
        %v3570 = vadd.s32 %v3569, %v3559
        %v3571 = vadd.s32 %v3570, %v3561
        %v3572 = vmul.u32 %v3527, %v3518
        %v3573 = vadd.s32 %v3549, %v3568
        %vm3574 = vc.u32 %v3549, %v3568
        %v3575 = vadd.s32 %v3571, 1
        %v3576 = vsel %vm3574, %v3575, %v3571
        %v3577 = vadd.s32 %v3572, %v3576
        %v3578 = vadd.s32 %v3577, 536870912
        %v3579 = vshrl.u32 %v3578, 30
        %v3580 = vshll.u32 %v3579, 30
        %v3581 = vsub.s32 %v3577, %v3580
        %vm3582 = vcmp.lt.s32.totalorder %v3581, 0
        %v3583 = vsub.s32 0, %v3581
        %v3584 = vsel %vm3582, %v3583, %v3581
        %v3585 = vclz %v3584
        %v3586 = vsub.s32 %v3585, 2
        %vm3587 = vcmp.gt.s32.totalorder 0, %v3586
        %v3588 = vsel %vm3587, 0, %v3586
        %v3589 = vsub.s32 32, %v3588
        %v3590 = vshll.u32 %v3581, %v3588
        %v3591 = vshrl.u32 %v3573, %v3589
        %v3592 = vor.u32 %v3590, %v3591
        %v3593 = vsub.s32 4294967266, %v3588
        %v3594 = vadd.s32 %v3593, 127
        %v3595 = vshll.u32 %v3594, 23
        %v3596 = vor.u32 4788187, %v3595
        %v3597 = vand.u32 2147483647, %v3596
        %v3599 = vcvt.s32.f32 %v3592
        %v3600 = vmul.f32 %v3599, %v3597
        %v3601 = vxor.u32 %v3600, 2147483648
        %v3602 = vsel %vm3481, %v3601, %v3600
        %v3603 = vsub.s32 4, %v3579
        %v3604 = vsel %vm3481, %v3603, %v3579
        %v3605 = vsel %vm3480, %v583, %v3602
        %v3606 = vsel %vm3480, 0, %v3604
        %v3607 = vmul.f32 %v3605, %v3605
        %v3608 = vmul.f32 %v3607, -0.001358992
        %v3609 = vadd.f32 %v3608, 0.041655596
        %v3610 = vmul.f32 %v3607, %v3609
        %v3611 = vadd.f32 %v3610, -0.4999988
        %v3612 = vmul.f32 %v3607, %v3611
        %v3613 = vadd.f32 1.0, %v3612
        %v3614 = vmul.f32 %v3605, %v3605
        %v3615 = vmul.f32 %v3614, -0.00019511016
        %v3616 = vadd.f32 %v3615, 0.008332121
        %v3617 = vmul.f32 %v3614, %v3616
        %v3618 = vadd.f32 %v3617, -0.16666654
        %v3619 = vmul.f32 %v3614, %v3618
        %v3620 = vadd.f32 %v3619, 1.0
        %v3621 = vmul.f32 %v3620, %v3605
        %vm3622 = vweird.f32 %v583
        %v3623 = vadd.s32 %v3606, 3
        %v3624 = vand.u32 %v3623, 3
        %vm3625 = vcmp.lt.s32.totalorder %v3624, 2
        %vm3626 = vcmp.eq.s32.totalorder %v3624, 0
        %v3627 = vxor.u32 %v3621, 2147483648
        %v3628 = vsel %vm3626, %v3613, %v3627
        %vm3629 = vcmp.eq.s32.totalorder %v3624, 2
        %v3630 = vxor.u32 %v3613, 2147483648
        %v3631 = vsel %vm3629, %v3630, %v3621
        %v3632 = vsel %vm3625, %v3628, %v3631
        %v3633 = vsel %vm3622, nan, %v3632
        %v3634 = vand.u32 2147483647, %v651
        %vm3635 = vcmp.le.f32.partialorder %v3634, 0.7853982
        %vm3636 = vcmp.lt.s32.totalorder %v651, 0
        %v3637 = vand.u32 %v651, 2139095040
        %v3638 = vshrl.u32 %v3637, 23
        %v3639 = vsub.s32 %v3638, 127
        %v3640 = vand.u32 2147483647, %v651
        %v3641 = vand.u32 %v3640, 8388607
        %v3642 = vor.u32 %v3641, 8388608
        %v3643 = vsub.s32 0, %v3642
        %v3644 = vadd.s32 %v3639, 1
        %vm3645 = vcmp.gt.s32.totalorder %v3644, 0
        %v3646 = vsel %vm3645, %v3644, 0
        %v3647 = vshrl.u32 %v3646, 5
        %v3648 = vand.u32 %v3646, 31
        %v3649 = vsub.s32 32, %v3648
        %v3650 = vshrl.u32 683565275, %v3649
        %v3651 = vshll.u32 683565275, %v3648
        %v3652 = vshrl.u32 2475754826, %v3649
        %v3653 = vor.u32 %v3651, %v3652
        %v3654 = vshll.u32 2475754826, %v3648
        %v3655 = vshrl.u32 2131351028, %v3649
        %v3656 = vor.u32 %v3654, %v3655
        %v3657 = vshll.u32 2131351028, %v3648
        %v3658 = vshrl.u32 2102212464, %v3649
        %v3659 = vor.u32 %v3657, %v3658
        %v3660 = vshll.u32 2102212464, %v3648
        %v3661 = vshrl.u32 920167782, %v3649
        %v3662 = vor.u32 %v3660, %v3661
        %v3663 = vshll.u32 920167782, %v3648
        %v3664 = vshrl.u32 1326507024, %v3649
        %v3665 = vor.u32 %v3663, %v3664
        %vm3666 = vcmp.lt.s32.totalorder %v3647, 1
        %vm3667 = vcmp.lt.s32.totalorder %v3647, 2
        %vm3668 = vcmp.lt.s32.totalorder %v3647, 3
        %vm3669 = vcmp.lt.s32.totalorder %v3647, 4
        %v3670 = vsel %vm3666, %v3650, %v3653
        %v3671 = vsel %vm3669, %v3659, 2102212464
        %v3672 = vsel %vm3668, %v3656, %v3671
        %v3673 = vsel %vm3667, %v3670, %v3672
        %v3674 = vsel %vm3666, %v3653, %v3656
        %v3675 = vsel %vm3669, %v3662, 920167782
        %v3676 = vsel %vm3668, %v3659, %v3675
        %v3677 = vsel %vm3667, %v3674, %v3676
        %v3678 = vsel %vm3666, %v3656, %v3659
        %v3679 = vsel %vm3669, %v3665, 1326507024
        %v3680 = vsel %vm3668, %v3662, %v3679
        %v3681 = vsel %vm3667, %v3678, %v3680
        %v3682 = vshll.u32 %v3642, 8
        %v3683 = vand.u32 %v3682, 65535
        %v3684 = vshrl.u32 %v3682, 16
        %v3685 = vand.u32 %v3681, 65535
        %v3686 = vshrl.u32 %v3681, 16
        %v3687 = vmul.u32 %v3683, %v3685
        %v3688 = vmul.u32 %v3683, %v3686
        %v3689 = vmul.u32 %v3684, %v3685
        %v3690 = vmul.u32 %v3684, %v3686
        %v3691 = vshll.u32 %v3688, 16
        %v3692 = vshrl.u32 %v3688, 16
        %v3693 = vshll.u32 %v3689, 16
        %v3694 = vshrl.u32 %v3689, 16
        %vm3695 = vc.u32 %v3687, %v3691
        %v3696 = vsel %vm3695, 1, 0
        %v3697 = vadd.s32 %v3687, %v3691
        %v3698 = vadd.s32 %v3690, %v3696
        %vm3699 = vc.u32 %v3697, %v3693
        %v3700 = vsel %vm3699, 1, 0
        %v3701 = vadd.s32 %v3697, %v3693
        %v3702 = vadd.s32 %v3698, %v3700
        %v3703 = vadd.s32 %v3702, %v3692
        %v3704 = vadd.s32 %v3703, %v3694
        %v3705 = vand.u32 %v3682, 65535
        %v3706 = vshrl.u32 %v3682, 16
        %v3707 = vand.u32 %v3677, 65535
        %v3708 = vshrl.u32 %v3677, 16
        %v3709 = vmul.u32 %v3705, %v3707
        %v3710 = vmul.u32 %v3705, %v3708
        %v3711 = vmul.u32 %v3706, %v3707
        %v3712 = vmul.u32 %v3706, %v3708
        %v3713 = vshll.u32 %v3710, 16
        %v3714 = vshrl.u32 %v3710, 16
        %v3715 = vshll.u32 %v3711, 16
        %v3716 = vshrl.u32 %v3711, 16
        %vm3717 = vc.u32 %v3709, %v3713
        %v3718 = vsel %vm3717, 1, 0
        %v3719 = vadd.s32 %v3709, %v3713
        %v3720 = vadd.s32 %v3712, %v3718
        %vm3721 = vc.u32 %v3719, %v3715
        %v3722 = vsel %vm3721, 1, 0
        %v3723 = vadd.s32 %v3719, %v3715
        %v3724 = vadd.s32 %v3720, %v3722
        %v3725 = vadd.s32 %v3724, %v3714
        %v3726 = vadd.s32 %v3725, %v3716
        %v3727 = vmul.u32 %v3682, %v3673
        %v3728 = vadd.s32 %v3704, %v3723
        %vm3729 = vc.u32 %v3704, %v3723
        %v3730 = vadd.s32 %v3726, 1
        %v3731 = vsel %vm3729, %v3730, %v3726
        %v3732 = vadd.s32 %v3727, %v3731
        %v3733 = vadd.s32 %v3732, 536870912
        %v3734 = vshrl.u32 %v3733, 30
        %v3735 = vshll.u32 %v3734, 30
        %v3736 = vsub.s32 %v3732, %v3735
        %vm3737 = vcmp.lt.s32.totalorder %v3736, 0
        %v3738 = vsub.s32 0, %v3736
        %v3739 = vsel %vm3737, %v3738, %v3736
        %v3740 = vclz %v3739
        %v3741 = vsub.s32 %v3740, 2
        %vm3742 = vcmp.gt.s32.totalorder 0, %v3741
        %v3743 = vsel %vm3742, 0, %v3741
        %v3744 = vsub.s32 32, %v3743
        %v3745 = vshll.u32 %v3736, %v3743
        %v3746 = vshrl.u32 %v3728, %v3744
        %v3747 = vor.u32 %v3745, %v3746
        %v3748 = vsub.s32 4294967266, %v3743
        %v3749 = vadd.s32 %v3748, 127
        %v3750 = vshll.u32 %v3749, 23
        %v3751 = vor.u32 4788187, %v3750
        %v3752 = vand.u32 2147483647, %v3751
        %v3754 = vcvt.s32.f32 %v3747
        %v3755 = vmul.f32 %v3754, %v3752
        %v3756 = vxor.u32 %v3755, 2147483648
        %v3757 = vsel %vm3636, %v3756, %v3755
        %v3758 = vsub.s32 4, %v3734
        %v3759 = vsel %vm3636, %v3758, %v3734
        %v3760 = vsel %vm3635, %v651, %v3757
        %v3761 = vsel %vm3635, 0, %v3759
        %v3762 = vmul.f32 %v3760, %v3760
        %v3763 = vmul.f32 %v3762, -0.001358992
        %v3764 = vadd.f32 %v3763, 0.041655596
        %v3765 = vmul.f32 %v3762, %v3764
        %v3766 = vadd.f32 %v3765, -0.4999988
        %v3767 = vmul.f32 %v3762, %v3766
        %v3768 = vadd.f32 1.0, %v3767
        %v3769 = vmul.f32 %v3760, %v3760
        %v3770 = vmul.f32 %v3769, -0.00019511016
        %v3771 = vadd.f32 %v3770, 0.008332121
        %v3772 = vmul.f32 %v3769, %v3771
        %v3773 = vadd.f32 %v3772, -0.16666654
        %v3774 = vmul.f32 %v3769, %v3773
        %v3775 = vadd.f32 %v3774, 1.0
        %v3776 = vmul.f32 %v3775, %v3760
        %vm3777 = vweird.f32 %v651
        %v3778 = vadd.s32 %v3761, 3
        %v3779 = vand.u32 %v3778, 3
        %vm3780 = vcmp.lt.s32.totalorder %v3779, 2
        %vm3781 = vcmp.eq.s32.totalorder %v3779, 0
        %v3782 = vxor.u32 %v3776, 2147483648
        %v3783 = vsel %vm3781, %v3768, %v3782
        %vm3784 = vcmp.eq.s32.totalorder %v3779, 2
        %v3785 = vxor.u32 %v3768, 2147483648
        %v3786 = vsel %vm3784, %v3785, %v3776
        %v3787 = vsel %vm3780, %v3783, %v3786
        %v3788 = vsel %vm3777, nan, %v3787
        %v3789 = vand.u32 2147483647, %v450
        %vm3790 = vcmp.le.f32.partialorder %v3789, 0.7853982
        %vm3791 = vcmp.lt.s32.totalorder %v450, 0
        %v3792 = vand.u32 %v450, 2139095040
        %v3793 = vshrl.u32 %v3792, 23
        %v3794 = vsub.s32 %v3793, 127
        %v3795 = vand.u32 2147483647, %v450
        %v3796 = vand.u32 %v3795, 8388607
        %v3797 = vor.u32 %v3796, 8388608
        %v3798 = vsub.s32 0, %v3797
        %v3799 = vadd.s32 %v3794, 1
        %vm3800 = vcmp.gt.s32.totalorder %v3799, 0
        %v3801 = vsel %vm3800, %v3799, 0
        %v3802 = vshrl.u32 %v3801, 5
        %v3803 = vand.u32 %v3801, 31
        %v3804 = vsub.s32 32, %v3803
        %v3805 = vshrl.u32 683565275, %v3804
        %v3806 = vshll.u32 683565275, %v3803
        %v3807 = vshrl.u32 2475754826, %v3804
        %v3808 = vor.u32 %v3806, %v3807
        %v3809 = vshll.u32 2475754826, %v3803
        %v3810 = vshrl.u32 2131351028, %v3804
        %v3811 = vor.u32 %v3809, %v3810
        %v3812 = vshll.u32 2131351028, %v3803
        %v3813 = vshrl.u32 2102212464, %v3804
        %v3814 = vor.u32 %v3812, %v3813
        %v3815 = vshll.u32 2102212464, %v3803
        %v3816 = vshrl.u32 920167782, %v3804
        %v3817 = vor.u32 %v3815, %v3816
        %v3818 = vshll.u32 920167782, %v3803
        %v3819 = vshrl.u32 1326507024, %v3804
        %v3820 = vor.u32 %v3818, %v3819
        %vm3821 = vcmp.lt.s32.totalorder %v3802, 1
        %vm3822 = vcmp.lt.s32.totalorder %v3802, 2
        %vm3823 = vcmp.lt.s32.totalorder %v3802, 3
        %vm3824 = vcmp.lt.s32.totalorder %v3802, 4
        %v3825 = vsel %vm3821, %v3805, %v3808
        %v3826 = vsel %vm3824, %v3814, 2102212464
        %v3827 = vsel %vm3823, %v3811, %v3826
        %v3828 = vsel %vm3822, %v3825, %v3827
        %v3829 = vsel %vm3821, %v3808, %v3811
        %v3830 = vsel %vm3824, %v3817, 920167782
        %v3831 = vsel %vm3823, %v3814, %v3830
        %v3832 = vsel %vm3822, %v3829, %v3831
        %v3833 = vsel %vm3821, %v3811, %v3814
        %v3834 = vsel %vm3824, %v3820, 1326507024
        %v3835 = vsel %vm3823, %v3817, %v3834
        %v3836 = vsel %vm3822, %v3833, %v3835
        %v3837 = vshll.u32 %v3797, 8
        %v3838 = vand.u32 %v3837, 65535
        %v3839 = vshrl.u32 %v3837, 16
        %v3840 = vand.u32 %v3836, 65535
        %v3841 = vshrl.u32 %v3836, 16
        %v3842 = vmul.u32 %v3838, %v3840
        %v3843 = vmul.u32 %v3838, %v3841
        %v3844 = vmul.u32 %v3839, %v3840
        %v3845 = vmul.u32 %v3839, %v3841
        %v3846 = vshll.u32 %v3843, 16
        %v3847 = vshrl.u32 %v3843, 16
        %v3848 = vshll.u32 %v3844, 16
        %v3849 = vshrl.u32 %v3844, 16
        %vm3850 = vc.u32 %v3842, %v3846
        %v3851 = vsel %vm3850, 1, 0
        %v3852 = vadd.s32 %v3842, %v3846
        %v3853 = vadd.s32 %v3845, %v3851
        %vm3854 = vc.u32 %v3852, %v3848
        %v3855 = vsel %vm3854, 1, 0
        %v3856 = vadd.s32 %v3852, %v3848
        %v3857 = vadd.s32 %v3853, %v3855
        %v3858 = vadd.s32 %v3857, %v3847
        %v3859 = vadd.s32 %v3858, %v3849
        %v3860 = vand.u32 %v3837, 65535
        %v3861 = vshrl.u32 %v3837, 16
        %v3862 = vand.u32 %v3832, 65535
        %v3863 = vshrl.u32 %v3832, 16
        %v3864 = vmul.u32 %v3860, %v3862
        %v3865 = vmul.u32 %v3860, %v3863
        %v3866 = vmul.u32 %v3861, %v3862
        %v3867 = vmul.u32 %v3861, %v3863
        %v3868 = vshll.u32 %v3865, 16
        %v3869 = vshrl.u32 %v3865, 16
        %v3870 = vshll.u32 %v3866, 16
        %v3871 = vshrl.u32 %v3866, 16
        %vm3872 = vc.u32 %v3864, %v3868
        %v3873 = vsel %vm3872, 1, 0
        %v3874 = vadd.s32 %v3864, %v3868
        %v3875 = vadd.s32 %v3867, %v3873
        %vm3876 = vc.u32 %v3874, %v3870
        %v3877 = vsel %vm3876, 1, 0
        %v3878 = vadd.s32 %v3874, %v3870
        %v3879 = vadd.s32 %v3875, %v3877
        %v3880 = vadd.s32 %v3879, %v3869
        %v3881 = vadd.s32 %v3880, %v3871
        %v3882 = vmul.u32 %v3837, %v3828
        %v3883 = vadd.s32 %v3859, %v3878
        %vm3884 = vc.u32 %v3859, %v3878
        %v3885 = vadd.s32 %v3881, 1
        %v3886 = vsel %vm3884, %v3885, %v3881
        %v3887 = vadd.s32 %v3882, %v3886
        %v3888 = vadd.s32 %v3887, 536870912
        %v3889 = vshrl.u32 %v3888, 30
        %v3890 = vshll.u32 %v3889, 30
        %v3891 = vsub.s32 %v3887, %v3890
        %vm3892 = vcmp.lt.s32.totalorder %v3891, 0
        %v3893 = vsub.s32 0, %v3891
        %v3894 = vsel %vm3892, %v3893, %v3891
        %v3895 = vclz %v3894
        %v3896 = vsub.s32 %v3895, 2
        %vm3897 = vcmp.gt.s32.totalorder 0, %v3896
        %v3898 = vsel %vm3897, 0, %v3896
        %v3899 = vsub.s32 32, %v3898
        %v3900 = vshll.u32 %v3891, %v3898
        %v3901 = vshrl.u32 %v3883, %v3899
        %v3902 = vor.u32 %v3900, %v3901
        %v3903 = vsub.s32 4294967266, %v3898
        %v3904 = vadd.s32 %v3903, 127
        %v3905 = vshll.u32 %v3904, 23
        %v3906 = vor.u32 4788187, %v3905
        %v3907 = vand.u32 2147483647, %v3906
        %v3909 = vcvt.s32.f32 %v3902
        %v3910 = vmul.f32 %v3909, %v3907
        %v3911 = vxor.u32 %v3910, 2147483648
        %v3912 = vsel %vm3791, %v3911, %v3910
        %v3913 = vsub.s32 4, %v3889
        %v3914 = vsel %vm3791, %v3913, %v3889
        %v3915 = vsel %vm3790, %v450, %v3912
        %v3916 = vsel %vm3790, 0, %v3914
        %v3917 = vmul.f32 %v3915, %v3915
        %v3918 = vmul.f32 %v3917, -0.001358992
        %v3919 = vadd.f32 %v3918, 0.041655596
        %v3920 = vmul.f32 %v3917, %v3919
        %v3921 = vadd.f32 %v3920, -0.4999988
        %v3922 = vmul.f32 %v3917, %v3921
        %v3923 = vadd.f32 1.0, %v3922
        %v3924 = vmul.f32 %v3915, %v3915
        %v3925 = vmul.f32 %v3924, -0.00019511016
        %v3926 = vadd.f32 %v3925, 0.008332121
        %v3927 = vmul.f32 %v3924, %v3926
        %v3928 = vadd.f32 %v3927, -0.16666654
        %v3929 = vmul.f32 %v3924, %v3928
        %v3930 = vadd.f32 %v3929, 1.0
        %v3931 = vmul.f32 %v3930, %v3915
        %vm3932 = vweird.f32 %v450
        %v3933 = vadd.s32 %v3916, 3
        %v3934 = vand.u32 %v3933, 3
        %vm3935 = vcmp.lt.s32.totalorder %v3934, 2
        %vm3936 = vcmp.eq.s32.totalorder %v3934, 0
        %v3937 = vxor.u32 %v3931, 2147483648
        %v3938 = vsel %vm3936, %v3923, %v3937
        %vm3939 = vcmp.eq.s32.totalorder %v3934, 2
        %v3940 = vxor.u32 %v3923, 2147483648
        %v3941 = vsel %vm3939, %v3940, %v3931
        %v3942 = vsel %vm3935, %v3938, %v3941
        %v3943 = vsel %vm3932, nan, %v3942
        %v3944 = vand.u32 2147483647, %v518
        %vm3945 = vcmp.le.f32.partialorder %v3944, 0.7853982
        %vm3946 = vcmp.lt.s32.totalorder %v518, 0
        %v3947 = vand.u32 %v518, 2139095040
        %v3948 = vshrl.u32 %v3947, 23
        %v3949 = vsub.s32 %v3948, 127
        %v3950 = vand.u32 2147483647, %v518
        %v3951 = vand.u32 %v3950, 8388607
        %v3952 = vor.u32 %v3951, 8388608
        %v3953 = vsub.s32 0, %v3952
        %v3954 = vadd.s32 %v3949, 1
        %vm3955 = vcmp.gt.s32.totalorder %v3954, 0
        %v3956 = vsel %vm3955, %v3954, 0
        %v3957 = vshrl.u32 %v3956, 5
        %v3958 = vand.u32 %v3956, 31
        %v3959 = vsub.s32 32, %v3958
        %v3960 = vshrl.u32 683565275, %v3959
        %v3961 = vshll.u32 683565275, %v3958
        %v3962 = vshrl.u32 2475754826, %v3959
        %v3963 = vor.u32 %v3961, %v3962
        %v3964 = vshll.u32 2475754826, %v3958
        %v3965 = vshrl.u32 2131351028, %v3959
        %v3966 = vor.u32 %v3964, %v3965
        %v3967 = vshll.u32 2131351028, %v3958
        %v3968 = vshrl.u32 2102212464, %v3959
        %v3969 = vor.u32 %v3967, %v3968
        %v3970 = vshll.u32 2102212464, %v3958
        %v3971 = vshrl.u32 920167782, %v3959
        %v3972 = vor.u32 %v3970, %v3971
        %v3973 = vshll.u32 920167782, %v3958
        %v3974 = vshrl.u32 1326507024, %v3959
        %v3975 = vor.u32 %v3973, %v3974
        %vm3976 = vcmp.lt.s32.totalorder %v3957, 1
        %vm3977 = vcmp.lt.s32.totalorder %v3957, 2
        %vm3978 = vcmp.lt.s32.totalorder %v3957, 3
        %vm3979 = vcmp.lt.s32.totalorder %v3957, 4
        %v3980 = vsel %vm3976, %v3960, %v3963
        %v3981 = vsel %vm3979, %v3969, 2102212464
        %v3982 = vsel %vm3978, %v3966, %v3981
        %v3983 = vsel %vm3977, %v3980, %v3982
        %v3984 = vsel %vm3976, %v3963, %v3966
        %v3985 = vsel %vm3979, %v3972, 920167782
        %v3986 = vsel %vm3978, %v3969, %v3985
        %v3987 = vsel %vm3977, %v3984, %v3986
        %v3988 = vsel %vm3976, %v3966, %v3969
        %v3989 = vsel %vm3979, %v3975, 1326507024
        %v3990 = vsel %vm3978, %v3972, %v3989
        %v3991 = vsel %vm3977, %v3988, %v3990
        %v3992 = vshll.u32 %v3952, 8
        %v3993 = vand.u32 %v3992, 65535
        %v3994 = vshrl.u32 %v3992, 16
        %v3995 = vand.u32 %v3991, 65535
        %v3996 = vshrl.u32 %v3991, 16
        %v3997 = vmul.u32 %v3993, %v3995
        %v3998 = vmul.u32 %v3993, %v3996
        %v3999 = vmul.u32 %v3994, %v3995
        %v4000 = vmul.u32 %v3994, %v3996
        %v4001 = vshll.u32 %v3998, 16
        %v4002 = vshrl.u32 %v3998, 16
        %v4003 = vshll.u32 %v3999, 16
        %v4004 = vshrl.u32 %v3999, 16
        %vm4005 = vc.u32 %v3997, %v4001
        %v4006 = vsel %vm4005, 1, 0
        %v4007 = vadd.s32 %v3997, %v4001
        %v4008 = vadd.s32 %v4000, %v4006
        %vm4009 = vc.u32 %v4007, %v4003
        %v4010 = vsel %vm4009, 1, 0
        %v4011 = vadd.s32 %v4007, %v4003
        %v4012 = vadd.s32 %v4008, %v4010
        %v4013 = vadd.s32 %v4012, %v4002
        %v4014 = vadd.s32 %v4013, %v4004
        %v4015 = vand.u32 %v3992, 65535
        %v4016 = vshrl.u32 %v3992, 16
        %v4017 = vand.u32 %v3987, 65535
        %v4018 = vshrl.u32 %v3987, 16
        %v4019 = vmul.u32 %v4015, %v4017
        %v4020 = vmul.u32 %v4015, %v4018
        %v4021 = vmul.u32 %v4016, %v4017
        %v4022 = vmul.u32 %v4016, %v4018
        %v4023 = vshll.u32 %v4020, 16
        %v4024 = vshrl.u32 %v4020, 16
        %v4025 = vshll.u32 %v4021, 16
        %v4026 = vshrl.u32 %v4021, 16
        %vm4027 = vc.u32 %v4019, %v4023
        %v4028 = vsel %vm4027, 1, 0
        %v4029 = vadd.s32 %v4019, %v4023
        %v4030 = vadd.s32 %v4022, %v4028
        %vm4031 = vc.u32 %v4029, %v4025
        %v4032 = vsel %vm4031, 1, 0
        %v4033 = vadd.s32 %v4029, %v4025
        %v4034 = vadd.s32 %v4030, %v4032
        %v4035 = vadd.s32 %v4034, %v4024
        %v4036 = vadd.s32 %v4035, %v4026
        %v4037 = vmul.u32 %v3992, %v3983
        %v4038 = vadd.s32 %v4014, %v4033
        %vm4039 = vc.u32 %v4014, %v4033
        %v4040 = vadd.s32 %v4036, 1
        %v4041 = vsel %vm4039, %v4040, %v4036
        %v4042 = vadd.s32 %v4037, %v4041
        %v4043 = vadd.s32 %v4042, 536870912
        %v4044 = vshrl.u32 %v4043, 30
        %v4045 = vshll.u32 %v4044, 30
        %v4046 = vsub.s32 %v4042, %v4045
        %vm4047 = vcmp.lt.s32.totalorder %v4046, 0
        %v4048 = vsub.s32 0, %v4046
        %v4049 = vsel %vm4047, %v4048, %v4046
        %v4050 = vclz %v4049
        %v4051 = vsub.s32 %v4050, 2
        %vm4052 = vcmp.gt.s32.totalorder 0, %v4051
        %v4053 = vsel %vm4052, 0, %v4051
        %v4054 = vsub.s32 32, %v4053
        %v4055 = vshll.u32 %v4046, %v4053
        %v4056 = vshrl.u32 %v4038, %v4054
        %v4057 = vor.u32 %v4055, %v4056
        %v4058 = vsub.s32 4294967266, %v4053
        %v4059 = vadd.s32 %v4058, 127
        %v4060 = vshll.u32 %v4059, 23
        %v4061 = vor.u32 4788187, %v4060
        %v4062 = vand.u32 2147483647, %v4061
        %v4064 = vcvt.s32.f32 %v4057
        %v4065 = vmul.f32 %v4064, %v4062
        %v4066 = vxor.u32 %v4065, 2147483648
        %v4067 = vsel %vm3946, %v4066, %v4065
        %v4068 = vsub.s32 4, %v4044
        %v4069 = vsel %vm3946, %v4068, %v4044
        %v4070 = vsel %vm3945, %v518, %v4067
        %v4071 = vsel %vm3945, 0, %v4069
        %v4072 = vmul.f32 %v4070, %v4070
        %v4073 = vmul.f32 %v4072, -0.001358992
        %v4074 = vadd.f32 %v4073, 0.041655596
        %v4075 = vmul.f32 %v4072, %v4074
        %v4076 = vadd.f32 %v4075, -0.4999988
        %v4077 = vmul.f32 %v4072, %v4076
        %v4078 = vadd.f32 1.0, %v4077
        %v4079 = vmul.f32 %v4070, %v4070
        %v4080 = vmul.f32 %v4079, -0.00019511016
        %v4081 = vadd.f32 %v4080, 0.008332121
        %v4082 = vmul.f32 %v4079, %v4081
        %v4083 = vadd.f32 %v4082, -0.16666654
        %v4084 = vmul.f32 %v4079, %v4083
        %v4085 = vadd.f32 %v4084, 1.0
        %v4086 = vmul.f32 %v4085, %v4070
        %vm4087 = vweird.f32 %v518
        %v4088 = vadd.s32 %v4071, 3
        %v4089 = vand.u32 %v4088, 3
        %vm4090 = vcmp.lt.s32.totalorder %v4089, 2
        %vm4091 = vcmp.eq.s32.totalorder %v4089, 0
        %v4092 = vxor.u32 %v4086, 2147483648
        %v4093 = vsel %vm4091, %v4078, %v4092
        %vm4094 = vcmp.eq.s32.totalorder %v4089, 2
        %v4095 = vxor.u32 %v4078, 2147483648
        %v4096 = vsel %vm4094, %v4095, %v4086
        %v4097 = vsel %vm4090, %v4093, %v4096
        %v4098 = vsel %vm4087, nan, %v4097
        %v4099 = vand.u32 2147483647, %v586
        %vm4100 = vcmp.le.f32.partialorder %v4099, 0.7853982
        %vm4101 = vcmp.lt.s32.totalorder %v586, 0
        %v4102 = vand.u32 %v586, 2139095040
        %v4103 = vshrl.u32 %v4102, 23
        %v4104 = vsub.s32 %v4103, 127
        %v4105 = vand.u32 2147483647, %v586
        %v4106 = vand.u32 %v4105, 8388607
        %v4107 = vor.u32 %v4106, 8388608
        %v4108 = vsub.s32 0, %v4107
        %v4109 = vadd.s32 %v4104, 1
        %vm4110 = vcmp.gt.s32.totalorder %v4109, 0
        %v4111 = vsel %vm4110, %v4109, 0
        %v4112 = vshrl.u32 %v4111, 5
        %v4113 = vand.u32 %v4111, 31
        %v4114 = vsub.s32 32, %v4113
        %v4115 = vshrl.u32 683565275, %v4114
        %v4116 = vshll.u32 683565275, %v4113
        %v4117 = vshrl.u32 2475754826, %v4114
        %v4118 = vor.u32 %v4116, %v4117
        %v4119 = vshll.u32 2475754826, %v4113
        %v4120 = vshrl.u32 2131351028, %v4114
        %v4121 = vor.u32 %v4119, %v4120
        %v4122 = vshll.u32 2131351028, %v4113
        %v4123 = vshrl.u32 2102212464, %v4114
        %v4124 = vor.u32 %v4122, %v4123
        %v4125 = vshll.u32 2102212464, %v4113
        %v4126 = vshrl.u32 920167782, %v4114
        %v4127 = vor.u32 %v4125, %v4126
        %v4128 = vshll.u32 920167782, %v4113
        %v4129 = vshrl.u32 1326507024, %v4114
        %v4130 = vor.u32 %v4128, %v4129
        %vm4131 = vcmp.lt.s32.totalorder %v4112, 1
        %vm4132 = vcmp.lt.s32.totalorder %v4112, 2
        %vm4133 = vcmp.lt.s32.totalorder %v4112, 3
        %vm4134 = vcmp.lt.s32.totalorder %v4112, 4
        %v4135 = vsel %vm4131, %v4115, %v4118
        %v4136 = vsel %vm4134, %v4124, 2102212464
        %v4137 = vsel %vm4133, %v4121, %v4136
        %v4138 = vsel %vm4132, %v4135, %v4137
        %v4139 = vsel %vm4131, %v4118, %v4121
        %v4140 = vsel %vm4134, %v4127, 920167782
        %v4141 = vsel %vm4133, %v4124, %v4140
        %v4142 = vsel %vm4132, %v4139, %v4141
        %v4143 = vsel %vm4131, %v4121, %v4124
        %v4144 = vsel %vm4134, %v4130, 1326507024
        %v4145 = vsel %vm4133, %v4127, %v4144
        %v4146 = vsel %vm4132, %v4143, %v4145
        %v4147 = vshll.u32 %v4107, 8
        %v4148 = vand.u32 %v4147, 65535
        %v4149 = vshrl.u32 %v4147, 16
        %v4150 = vand.u32 %v4146, 65535
        %v4151 = vshrl.u32 %v4146, 16
        %v4152 = vmul.u32 %v4148, %v4150
        %v4153 = vmul.u32 %v4148, %v4151
        %v4154 = vmul.u32 %v4149, %v4150
        %v4155 = vmul.u32 %v4149, %v4151
        %v4156 = vshll.u32 %v4153, 16
        %v4157 = vshrl.u32 %v4153, 16
        %v4158 = vshll.u32 %v4154, 16
        %v4159 = vshrl.u32 %v4154, 16
        %vm4160 = vc.u32 %v4152, %v4156
        %v4161 = vsel %vm4160, 1, 0
        %v4162 = vadd.s32 %v4152, %v4156
        %v4163 = vadd.s32 %v4155, %v4161
        %vm4164 = vc.u32 %v4162, %v4158
        %v4165 = vsel %vm4164, 1, 0
        %v4166 = vadd.s32 %v4162, %v4158
        %v4167 = vadd.s32 %v4163, %v4165
        %v4168 = vadd.s32 %v4167, %v4157
        %v4169 = vadd.s32 %v4168, %v4159
        %v4170 = vand.u32 %v4147, 65535
        %v4171 = vshrl.u32 %v4147, 16
        %v4172 = vand.u32 %v4142, 65535
        %v4173 = vshrl.u32 %v4142, 16
        %v4174 = vmul.u32 %v4170, %v4172
        %v4175 = vmul.u32 %v4170, %v4173
        %v4176 = vmul.u32 %v4171, %v4172
        %v4177 = vmul.u32 %v4171, %v4173
        %v4178 = vshll.u32 %v4175, 16
        %v4179 = vshrl.u32 %v4175, 16
        %v4180 = vshll.u32 %v4176, 16
        %v4181 = vshrl.u32 %v4176, 16
        %vm4182 = vc.u32 %v4174, %v4178
        %v4183 = vsel %vm4182, 1, 0
        %v4184 = vadd.s32 %v4174, %v4178
        %v4185 = vadd.s32 %v4177, %v4183
        %vm4186 = vc.u32 %v4184, %v4180
        %v4187 = vsel %vm4186, 1, 0
        %v4188 = vadd.s32 %v4184, %v4180
        %v4189 = vadd.s32 %v4185, %v4187
        %v4190 = vadd.s32 %v4189, %v4179
        %v4191 = vadd.s32 %v4190, %v4181
        %v4192 = vmul.u32 %v4147, %v4138
        %v4193 = vadd.s32 %v4169, %v4188
        %vm4194 = vc.u32 %v4169, %v4188
        %v4195 = vadd.s32 %v4191, 1
        %v4196 = vsel %vm4194, %v4195, %v4191
        %v4197 = vadd.s32 %v4192, %v4196
        %v4198 = vadd.s32 %v4197, 536870912
        %v4199 = vshrl.u32 %v4198, 30
        %v4200 = vshll.u32 %v4199, 30
        %v4201 = vsub.s32 %v4197, %v4200
        %vm4202 = vcmp.lt.s32.totalorder %v4201, 0
        %v4203 = vsub.s32 0, %v4201
        %v4204 = vsel %vm4202, %v4203, %v4201
        %v4205 = vclz %v4204
        %v4206 = vsub.s32 %v4205, 2
        %vm4207 = vcmp.gt.s32.totalorder 0, %v4206
        %v4208 = vsel %vm4207, 0, %v4206
        %v4209 = vsub.s32 32, %v4208
        %v4210 = vshll.u32 %v4201, %v4208
        %v4211 = vshrl.u32 %v4193, %v4209
        %v4212 = vor.u32 %v4210, %v4211
        %v4213 = vsub.s32 4294967266, %v4208
        %v4214 = vadd.s32 %v4213, 127
        %v4215 = vshll.u32 %v4214, 23
        %v4216 = vor.u32 4788187, %v4215
        %v4217 = vand.u32 2147483647, %v4216
        %v4219 = vcvt.s32.f32 %v4212
        %v4220 = vmul.f32 %v4219, %v4217
        %v4221 = vxor.u32 %v4220, 2147483648
        %v4222 = vsel %vm4101, %v4221, %v4220
        %v4223 = vsub.s32 4, %v4199
        %v4224 = vsel %vm4101, %v4223, %v4199
        %v4225 = vsel %vm4100, %v586, %v4222
        %v4226 = vsel %vm4100, 0, %v4224
        %v4227 = vmul.f32 %v4225, %v4225
        %v4228 = vmul.f32 %v4227, -0.001358992
        %v4229 = vadd.f32 %v4228, 0.041655596
        %v4230 = vmul.f32 %v4227, %v4229
        %v4231 = vadd.f32 %v4230, -0.4999988
        %v4232 = vmul.f32 %v4227, %v4231
        %v4233 = vadd.f32 1.0, %v4232
        %v4234 = vmul.f32 %v4225, %v4225
        %v4235 = vmul.f32 %v4234, -0.00019511016
        %v4236 = vadd.f32 %v4235, 0.008332121
        %v4237 = vmul.f32 %v4234, %v4236
        %v4238 = vadd.f32 %v4237, -0.16666654
        %v4239 = vmul.f32 %v4234, %v4238
        %v4240 = vadd.f32 %v4239, 1.0
        %v4241 = vmul.f32 %v4240, %v4225
        %vm4242 = vweird.f32 %v586
        %v4243 = vadd.s32 %v4226, 3
        %v4244 = vand.u32 %v4243, 3
        %vm4245 = vcmp.lt.s32.totalorder %v4244, 2
        %vm4246 = vcmp.eq.s32.totalorder %v4244, 0
        %v4247 = vxor.u32 %v4241, 2147483648
        %v4248 = vsel %vm4246, %v4233, %v4247
        %vm4249 = vcmp.eq.s32.totalorder %v4244, 2
        %v4250 = vxor.u32 %v4233, 2147483648
        %v4251 = vsel %vm4249, %v4250, %v4241
        %v4252 = vsel %vm4245, %v4248, %v4251
        %v4253 = vsel %vm4242, nan, %v4252
        %v4254 = vand.u32 2147483647, %v654
        %vm4255 = vcmp.le.f32.partialorder %v4254, 0.7853982
        %vm4256 = vcmp.lt.s32.totalorder %v654, 0
        %v4257 = vand.u32 %v654, 2139095040
        %v4258 = vshrl.u32 %v4257, 23
        %v4259 = vsub.s32 %v4258, 127
        %v4260 = vand.u32 2147483647, %v654
        %v4261 = vand.u32 %v4260, 8388607
        %v4262 = vor.u32 %v4261, 8388608
        %v4263 = vsub.s32 0, %v4262
        %v4264 = vadd.s32 %v4259, 1
        %vm4265 = vcmp.gt.s32.totalorder %v4264, 0
        %v4266 = vsel %vm4265, %v4264, 0
        %v4267 = vshrl.u32 %v4266, 5
        %v4268 = vand.u32 %v4266, 31
        %v4269 = vsub.s32 32, %v4268
        %v4270 = vshrl.u32 683565275, %v4269
        %v4271 = vshll.u32 683565275, %v4268
        %v4272 = vshrl.u32 2475754826, %v4269
        %v4273 = vor.u32 %v4271, %v4272
        %v4274 = vshll.u32 2475754826, %v4268
        %v4275 = vshrl.u32 2131351028, %v4269
        %v4276 = vor.u32 %v4274, %v4275
        %v4277 = vshll.u32 2131351028, %v4268
        %v4278 = vshrl.u32 2102212464, %v4269
        %v4279 = vor.u32 %v4277, %v4278
        %v4280 = vshll.u32 2102212464, %v4268
        %v4281 = vshrl.u32 920167782, %v4269
        %v4282 = vor.u32 %v4280, %v4281
        %v4283 = vshll.u32 920167782, %v4268
        %v4284 = vshrl.u32 1326507024, %v4269
        %v4285 = vor.u32 %v4283, %v4284
        %vm4286 = vcmp.lt.s32.totalorder %v4267, 1
        %vm4287 = vcmp.lt.s32.totalorder %v4267, 2
        %vm4288 = vcmp.lt.s32.totalorder %v4267, 3
        %vm4289 = vcmp.lt.s32.totalorder %v4267, 4
        %v4290 = vsel %vm4286, %v4270, %v4273
        %v4291 = vsel %vm4289, %v4279, 2102212464
        %v4292 = vsel %vm4288, %v4276, %v4291
        %v4293 = vsel %vm4287, %v4290, %v4292
        %v4294 = vsel %vm4286, %v4273, %v4276
        %v4295 = vsel %vm4289, %v4282, 920167782
        %v4296 = vsel %vm4288, %v4279, %v4295
        %v4297 = vsel %vm4287, %v4294, %v4296
        %v4298 = vsel %vm4286, %v4276, %v4279
        %v4299 = vsel %vm4289, %v4285, 1326507024
        %v4300 = vsel %vm4288, %v4282, %v4299
        %v4301 = vsel %vm4287, %v4298, %v4300
        %v4302 = vshll.u32 %v4262, 8
        %v4303 = vand.u32 %v4302, 65535
        %v4304 = vshrl.u32 %v4302, 16
        %v4305 = vand.u32 %v4301, 65535
        %v4306 = vshrl.u32 %v4301, 16
        %v4307 = vmul.u32 %v4303, %v4305
        %v4308 = vmul.u32 %v4303, %v4306
        %v4309 = vmul.u32 %v4304, %v4305
        %v4310 = vmul.u32 %v4304, %v4306
        %v4311 = vshll.u32 %v4308, 16
        %v4312 = vshrl.u32 %v4308, 16
        %v4313 = vshll.u32 %v4309, 16
        %v4314 = vshrl.u32 %v4309, 16
        %vm4315 = vc.u32 %v4307, %v4311
        %v4316 = vsel %vm4315, 1, 0
        %v4317 = vadd.s32 %v4307, %v4311
        %v4318 = vadd.s32 %v4310, %v4316
        %vm4319 = vc.u32 %v4317, %v4313
        %v4320 = vsel %vm4319, 1, 0
        %v4321 = vadd.s32 %v4317, %v4313
        %v4322 = vadd.s32 %v4318, %v4320
        %v4323 = vadd.s32 %v4322, %v4312
        %v4324 = vadd.s32 %v4323, %v4314
        %v4325 = vand.u32 %v4302, 65535
        %v4326 = vshrl.u32 %v4302, 16
        %v4327 = vand.u32 %v4297, 65535
        %v4328 = vshrl.u32 %v4297, 16
        %v4329 = vmul.u32 %v4325, %v4327
        %v4330 = vmul.u32 %v4325, %v4328
        %v4331 = vmul.u32 %v4326, %v4327
        %v4332 = vmul.u32 %v4326, %v4328
        %v4333 = vshll.u32 %v4330, 16
        %v4334 = vshrl.u32 %v4330, 16
        %v4335 = vshll.u32 %v4331, 16
        %v4336 = vshrl.u32 %v4331, 16
        %vm4337 = vc.u32 %v4329, %v4333
        %v4338 = vsel %vm4337, 1, 0
        %v4339 = vadd.s32 %v4329, %v4333
        %v4340 = vadd.s32 %v4332, %v4338
        %vm4341 = vc.u32 %v4339, %v4335
        %v4342 = vsel %vm4341, 1, 0
        %v4343 = vadd.s32 %v4339, %v4335
        %v4344 = vadd.s32 %v4340, %v4342
        %v4345 = vadd.s32 %v4344, %v4334
        %v4346 = vadd.s32 %v4345, %v4336
        %v4347 = vmul.u32 %v4302, %v4293
        %v4348 = vadd.s32 %v4324, %v4343
        %vm4349 = vc.u32 %v4324, %v4343
        %v4350 = vadd.s32 %v4346, 1
        %v4351 = vsel %vm4349, %v4350, %v4346
        %v4352 = vadd.s32 %v4347, %v4351
        %v4353 = vadd.s32 %v4352, 536870912
        %v4354 = vshrl.u32 %v4353, 30
        %v4355 = vshll.u32 %v4354, 30
        %v4356 = vsub.s32 %v4352, %v4355
        %vm4357 = vcmp.lt.s32.totalorder %v4356, 0
        %v4358 = vsub.s32 0, %v4356
        %v4359 = vsel %vm4357, %v4358, %v4356
        %v4360 = vclz %v4359
        %v4361 = vsub.s32 %v4360, 2
        %vm4362 = vcmp.gt.s32.totalorder 0, %v4361
        %v4363 = vsel %vm4362, 0, %v4361
        %v4364 = vsub.s32 32, %v4363
        %v4365 = vshll.u32 %v4356, %v4363
        %v4366 = vshrl.u32 %v4348, %v4364
        %v4367 = vor.u32 %v4365, %v4366
        %v4368 = vsub.s32 4294967266, %v4363
        %v4369 = vadd.s32 %v4368, 127
        %v4370 = vshll.u32 %v4369, 23
        %v4371 = vor.u32 4788187, %v4370
        %v4372 = vand.u32 2147483647, %v4371
        %v4374 = vcvt.s32.f32 %v4367
        %v4375 = vmul.f32 %v4374, %v4372
        %v4376 = vxor.u32 %v4375, 2147483648
        %v4377 = vsel %vm4256, %v4376, %v4375
        %v4378 = vsub.s32 4, %v4354
        %v4379 = vsel %vm4256, %v4378, %v4354
        %v4380 = vsel %vm4255, %v654, %v4377
        %v4381 = vsel %vm4255, 0, %v4379
        %v4382 = vmul.f32 %v4380, %v4380
        %v4383 = vmul.f32 %v4382, -0.001358992
        %v4384 = vadd.f32 %v4383, 0.041655596
        %v4385 = vmul.f32 %v4382, %v4384
        %v4386 = vadd.f32 %v4385, -0.4999988
        %v4387 = vmul.f32 %v4382, %v4386
        %v4388 = vadd.f32 1.0, %v4387
        %v4389 = vmul.f32 %v4380, %v4380
        %v4390 = vmul.f32 %v4389, -0.00019511016
        %v4391 = vadd.f32 %v4390, 0.008332121
        %v4392 = vmul.f32 %v4389, %v4391
        %v4393 = vadd.f32 %v4392, -0.16666654
        %v4394 = vmul.f32 %v4389, %v4393
        %v4395 = vadd.f32 %v4394, 1.0
        %v4396 = vmul.f32 %v4395, %v4380
        %vm4397 = vweird.f32 %v654
        %v4398 = vadd.s32 %v4381, 3
        %v4399 = vand.u32 %v4398, 3
        %vm4400 = vcmp.lt.s32.totalorder %v4399, 2
        %vm4401 = vcmp.eq.s32.totalorder %v4399, 0
        %v4402 = vxor.u32 %v4396, 2147483648
        %v4403 = vsel %vm4401, %v4388, %v4402
        %vm4404 = vcmp.eq.s32.totalorder %v4399, 2
        %v4405 = vxor.u32 %v4388, 2147483648
        %v4406 = vsel %vm4404, %v4405, %v4396
        %v4407 = vsel %vm4400, %v4403, %v4406
        %v4408 = vsel %vm4397, nan, %v4407
        %v4409 = vand.u32 2147483647, %v453
        %vm4410 = vcmp.le.f32.partialorder %v4409, 0.7853982
        %vm4411 = vcmp.lt.s32.totalorder %v453, 0
        %v4412 = vand.u32 %v453, 2139095040
        %v4413 = vshrl.u32 %v4412, 23
        %v4414 = vsub.s32 %v4413, 127
        %v4415 = vand.u32 2147483647, %v453
        %v4416 = vand.u32 %v4415, 8388607
        %v4417 = vor.u32 %v4416, 8388608
        %v4418 = vsub.s32 0, %v4417
        %v4419 = vadd.s32 %v4414, 1
        %vm4420 = vcmp.gt.s32.totalorder %v4419, 0
        %v4421 = vsel %vm4420, %v4419, 0
        %v4422 = vshrl.u32 %v4421, 5
        %v4423 = vand.u32 %v4421, 31
        %v4424 = vsub.s32 32, %v4423
        %v4425 = vshrl.u32 683565275, %v4424
        %v4426 = vshll.u32 683565275, %v4423
        %v4427 = vshrl.u32 2475754826, %v4424
        %v4428 = vor.u32 %v4426, %v4427
        %v4429 = vshll.u32 2475754826, %v4423
        %v4430 = vshrl.u32 2131351028, %v4424
        %v4431 = vor.u32 %v4429, %v4430
        %v4432 = vshll.u32 2131351028, %v4423
        %v4433 = vshrl.u32 2102212464, %v4424
        %v4434 = vor.u32 %v4432, %v4433
        %v4435 = vshll.u32 2102212464, %v4423
        %v4436 = vshrl.u32 920167782, %v4424
        %v4437 = vor.u32 %v4435, %v4436
        %v4438 = vshll.u32 920167782, %v4423
        %v4439 = vshrl.u32 1326507024, %v4424
        %v4440 = vor.u32 %v4438, %v4439
        %vm4441 = vcmp.lt.s32.totalorder %v4422, 1
        %vm4442 = vcmp.lt.s32.totalorder %v4422, 2
        %vm4443 = vcmp.lt.s32.totalorder %v4422, 3
        %vm4444 = vcmp.lt.s32.totalorder %v4422, 4
        %v4445 = vsel %vm4441, %v4425, %v4428
        %v4446 = vsel %vm4444, %v4434, 2102212464
        %v4447 = vsel %vm4443, %v4431, %v4446
        %v4448 = vsel %vm4442, %v4445, %v4447
        %v4449 = vsel %vm4441, %v4428, %v4431
        %v4450 = vsel %vm4444, %v4437, 920167782
        %v4451 = vsel %vm4443, %v4434, %v4450
        %v4452 = vsel %vm4442, %v4449, %v4451
        %v4453 = vsel %vm4441, %v4431, %v4434
        %v4454 = vsel %vm4444, %v4440, 1326507024
        %v4455 = vsel %vm4443, %v4437, %v4454
        %v4456 = vsel %vm4442, %v4453, %v4455
        %v4457 = vshll.u32 %v4417, 8
        %v4458 = vand.u32 %v4457, 65535
        %v4459 = vshrl.u32 %v4457, 16
        %v4460 = vand.u32 %v4456, 65535
        %v4461 = vshrl.u32 %v4456, 16
        %v4462 = vmul.u32 %v4458, %v4460
        %v4463 = vmul.u32 %v4458, %v4461
        %v4464 = vmul.u32 %v4459, %v4460
        %v4465 = vmul.u32 %v4459, %v4461
        %v4466 = vshll.u32 %v4463, 16
        %v4467 = vshrl.u32 %v4463, 16
        %v4468 = vshll.u32 %v4464, 16
        %v4469 = vshrl.u32 %v4464, 16
        %vm4470 = vc.u32 %v4462, %v4466
        %v4471 = vsel %vm4470, 1, 0
        %v4472 = vadd.s32 %v4462, %v4466
        %v4473 = vadd.s32 %v4465, %v4471
        %vm4474 = vc.u32 %v4472, %v4468
        %v4475 = vsel %vm4474, 1, 0
        %v4476 = vadd.s32 %v4472, %v4468
        %v4477 = vadd.s32 %v4473, %v4475
        %v4478 = vadd.s32 %v4477, %v4467
        %v4479 = vadd.s32 %v4478, %v4469
        %v4480 = vand.u32 %v4457, 65535
        %v4481 = vshrl.u32 %v4457, 16
        %v4482 = vand.u32 %v4452, 65535
        %v4483 = vshrl.u32 %v4452, 16
        %v4484 = vmul.u32 %v4480, %v4482
        %v4485 = vmul.u32 %v4480, %v4483
        %v4486 = vmul.u32 %v4481, %v4482
        %v4487 = vmul.u32 %v4481, %v4483
        %v4488 = vshll.u32 %v4485, 16
        %v4489 = vshrl.u32 %v4485, 16
        %v4490 = vshll.u32 %v4486, 16
        %v4491 = vshrl.u32 %v4486, 16
        %vm4492 = vc.u32 %v4484, %v4488
        %v4493 = vsel %vm4492, 1, 0
        %v4494 = vadd.s32 %v4484, %v4488
        %v4495 = vadd.s32 %v4487, %v4493
        %vm4496 = vc.u32 %v4494, %v4490
        %v4497 = vsel %vm4496, 1, 0
        %v4498 = vadd.s32 %v4494, %v4490
        %v4499 = vadd.s32 %v4495, %v4497
        %v4500 = vadd.s32 %v4499, %v4489
        %v4501 = vadd.s32 %v4500, %v4491
        %v4502 = vmul.u32 %v4457, %v4448
        %v4503 = vadd.s32 %v4479, %v4498
        %vm4504 = vc.u32 %v4479, %v4498
        %v4505 = vadd.s32 %v4501, 1
        %v4506 = vsel %vm4504, %v4505, %v4501
        %v4507 = vadd.s32 %v4502, %v4506
        %v4508 = vadd.s32 %v4507, 536870912
        %v4509 = vshrl.u32 %v4508, 30
        %v4510 = vshll.u32 %v4509, 30
        %v4511 = vsub.s32 %v4507, %v4510
        %vm4512 = vcmp.lt.s32.totalorder %v4511, 0
        %v4513 = vsub.s32 0, %v4511
        %v4514 = vsel %vm4512, %v4513, %v4511
        %v4515 = vclz %v4514
        %v4516 = vsub.s32 %v4515, 2
        %vm4517 = vcmp.gt.s32.totalorder 0, %v4516
        %v4518 = vsel %vm4517, 0, %v4516
        %v4519 = vsub.s32 32, %v4518
        %v4520 = vshll.u32 %v4511, %v4518
        %v4521 = vshrl.u32 %v4503, %v4519
        %v4522 = vor.u32 %v4520, %v4521
        %v4523 = vsub.s32 4294967266, %v4518
        %v4524 = vadd.s32 %v4523, 127
        %v4525 = vshll.u32 %v4524, 23
        %v4526 = vor.u32 4788187, %v4525
        %v4527 = vand.u32 2147483647, %v4526
        %v4529 = vcvt.s32.f32 %v4522
        %v4530 = vmul.f32 %v4529, %v4527
        %v4531 = vxor.u32 %v4530, 2147483648
        %v4532 = vsel %vm4411, %v4531, %v4530
        %v4533 = vsub.s32 4, %v4509
        %v4534 = vsel %vm4411, %v4533, %v4509
        %v4535 = vsel %vm4410, %v453, %v4532
        %v4536 = vsel %vm4410, 0, %v4534
        %v4537 = vmul.f32 %v4535, %v4535
        %v4538 = vmul.f32 %v4537, -0.001358992
        %v4539 = vadd.f32 %v4538, 0.041655596
        %v4540 = vmul.f32 %v4537, %v4539
        %v4541 = vadd.f32 %v4540, -0.4999988
        %v4542 = vmul.f32 %v4537, %v4541
        %v4543 = vadd.f32 1.0, %v4542
        %v4544 = vmul.f32 %v4535, %v4535
        %v4545 = vmul.f32 %v4544, -0.00019511016
        %v4546 = vadd.f32 %v4545, 0.008332121
        %v4547 = vmul.f32 %v4544, %v4546
        %v4548 = vadd.f32 %v4547, -0.16666654
        %v4549 = vmul.f32 %v4544, %v4548
        %v4550 = vadd.f32 %v4549, 1.0
        %v4551 = vmul.f32 %v4550, %v4535
        %vm4552 = vweird.f32 %v453
        %v4553 = vadd.s32 %v4536, 3
        %v4554 = vand.u32 %v4553, 3
        %vm4555 = vcmp.lt.s32.totalorder %v4554, 2
        %vm4556 = vcmp.eq.s32.totalorder %v4554, 0
        %v4557 = vxor.u32 %v4551, 2147483648
        %v4558 = vsel %vm4556, %v4543, %v4557
        %vm4559 = vcmp.eq.s32.totalorder %v4554, 2
        %v4560 = vxor.u32 %v4543, 2147483648
        %v4561 = vsel %vm4559, %v4560, %v4551
        %v4562 = vsel %vm4555, %v4558, %v4561
        %v4563 = vsel %vm4552, nan, %v4562
        %v4564 = vand.u32 2147483647, %v521
        %vm4565 = vcmp.le.f32.partialorder %v4564, 0.7853982
        %vm4566 = vcmp.lt.s32.totalorder %v521, 0
        %v4567 = vand.u32 %v521, 2139095040
        %v4568 = vshrl.u32 %v4567, 23
        %v4569 = vsub.s32 %v4568, 127
        %v4570 = vand.u32 2147483647, %v521
        %v4571 = vand.u32 %v4570, 8388607
        %v4572 = vor.u32 %v4571, 8388608
        %v4573 = vsub.s32 0, %v4572
        %v4574 = vadd.s32 %v4569, 1
        %vm4575 = vcmp.gt.s32.totalorder %v4574, 0
        %v4576 = vsel %vm4575, %v4574, 0
        %v4577 = vshrl.u32 %v4576, 5
        %v4578 = vand.u32 %v4576, 31
        %v4579 = vsub.s32 32, %v4578
        %v4580 = vshrl.u32 683565275, %v4579
        %v4581 = vshll.u32 683565275, %v4578
        %v4582 = vshrl.u32 2475754826, %v4579
        %v4583 = vor.u32 %v4581, %v4582
        %v4584 = vshll.u32 2475754826, %v4578
        %v4585 = vshrl.u32 2131351028, %v4579
        %v4586 = vor.u32 %v4584, %v4585
        %v4587 = vshll.u32 2131351028, %v4578
        %v4588 = vshrl.u32 2102212464, %v4579
        %v4589 = vor.u32 %v4587, %v4588
        %v4590 = vshll.u32 2102212464, %v4578
        %v4591 = vshrl.u32 920167782, %v4579
        %v4592 = vor.u32 %v4590, %v4591
        %v4593 = vshll.u32 920167782, %v4578
        %v4594 = vshrl.u32 1326507024, %v4579
        %v4595 = vor.u32 %v4593, %v4594
        %vm4596 = vcmp.lt.s32.totalorder %v4577, 1
        %vm4597 = vcmp.lt.s32.totalorder %v4577, 2
        %vm4598 = vcmp.lt.s32.totalorder %v4577, 3
        %vm4599 = vcmp.lt.s32.totalorder %v4577, 4
        %v4600 = vsel %vm4596, %v4580, %v4583
        %v4601 = vsel %vm4599, %v4589, 2102212464
        %v4602 = vsel %vm4598, %v4586, %v4601
        %v4603 = vsel %vm4597, %v4600, %v4602
        %v4604 = vsel %vm4596, %v4583, %v4586
        %v4605 = vsel %vm4599, %v4592, 920167782
        %v4606 = vsel %vm4598, %v4589, %v4605
        %v4607 = vsel %vm4597, %v4604, %v4606
        %v4608 = vsel %vm4596, %v4586, %v4589
        %v4609 = vsel %vm4599, %v4595, 1326507024
        %v4610 = vsel %vm4598, %v4592, %v4609
        %v4611 = vsel %vm4597, %v4608, %v4610
        %v4612 = vshll.u32 %v4572, 8
        %v4613 = vand.u32 %v4612, 65535
        %v4614 = vshrl.u32 %v4612, 16
        %v4615 = vand.u32 %v4611, 65535
        %v4616 = vshrl.u32 %v4611, 16
        %v4617 = vmul.u32 %v4613, %v4615
        %v4618 = vmul.u32 %v4613, %v4616
        %v4619 = vmul.u32 %v4614, %v4615
        %v4620 = vmul.u32 %v4614, %v4616
        %v4621 = vshll.u32 %v4618, 16
        %v4622 = vshrl.u32 %v4618, 16
        %v4623 = vshll.u32 %v4619, 16
        %v4624 = vshrl.u32 %v4619, 16
        %vm4625 = vc.u32 %v4617, %v4621
        %v4626 = vsel %vm4625, 1, 0
        %v4627 = vadd.s32 %v4617, %v4621
        %v4628 = vadd.s32 %v4620, %v4626
        %vm4629 = vc.u32 %v4627, %v4623
        %v4630 = vsel %vm4629, 1, 0
        %v4631 = vadd.s32 %v4627, %v4623
        %v4632 = vadd.s32 %v4628, %v4630
        %v4633 = vadd.s32 %v4632, %v4622
        %v4634 = vadd.s32 %v4633, %v4624
        %v4635 = vand.u32 %v4612, 65535
        %v4636 = vshrl.u32 %v4612, 16
        %v4637 = vand.u32 %v4607, 65535
        %v4638 = vshrl.u32 %v4607, 16
        %v4639 = vmul.u32 %v4635, %v4637
        %v4640 = vmul.u32 %v4635, %v4638
        %v4641 = vmul.u32 %v4636, %v4637
        %v4642 = vmul.u32 %v4636, %v4638
        %v4643 = vshll.u32 %v4640, 16
        %v4644 = vshrl.u32 %v4640, 16
        %v4645 = vshll.u32 %v4641, 16
        %v4646 = vshrl.u32 %v4641, 16
        %vm4647 = vc.u32 %v4639, %v4643
        %v4648 = vsel %vm4647, 1, 0
        %v4649 = vadd.s32 %v4639, %v4643
        %v4650 = vadd.s32 %v4642, %v4648
        %vm4651 = vc.u32 %v4649, %v4645
        %v4652 = vsel %vm4651, 1, 0
        %v4653 = vadd.s32 %v4649, %v4645
        %v4654 = vadd.s32 %v4650, %v4652
        %v4655 = vadd.s32 %v4654, %v4644
        %v4656 = vadd.s32 %v4655, %v4646
        %v4657 = vmul.u32 %v4612, %v4603
        %v4658 = vadd.s32 %v4634, %v4653
        %vm4659 = vc.u32 %v4634, %v4653
        %v4660 = vadd.s32 %v4656, 1
        %v4661 = vsel %vm4659, %v4660, %v4656
        %v4662 = vadd.s32 %v4657, %v4661
        %v4663 = vadd.s32 %v4662, 536870912
        %v4664 = vshrl.u32 %v4663, 30
        %v4665 = vshll.u32 %v4664, 30
        %v4666 = vsub.s32 %v4662, %v4665
        %vm4667 = vcmp.lt.s32.totalorder %v4666, 0
        %v4668 = vsub.s32 0, %v4666
        %v4669 = vsel %vm4667, %v4668, %v4666
        %v4670 = vclz %v4669
        %v4671 = vsub.s32 %v4670, 2
        %vm4672 = vcmp.gt.s32.totalorder 0, %v4671
        %v4673 = vsel %vm4672, 0, %v4671
        %v4674 = vsub.s32 32, %v4673
        %v4675 = vshll.u32 %v4666, %v4673
        %v4676 = vshrl.u32 %v4658, %v4674
        %v4677 = vor.u32 %v4675, %v4676
        %v4678 = vsub.s32 4294967266, %v4673
        %v4679 = vadd.s32 %v4678, 127
        %v4680 = vshll.u32 %v4679, 23
        %v4681 = vor.u32 4788187, %v4680
        %v4682 = vand.u32 2147483647, %v4681
        %v4684 = vcvt.s32.f32 %v4677
        %v4685 = vmul.f32 %v4684, %v4682
        %v4686 = vxor.u32 %v4685, 2147483648
        %v4687 = vsel %vm4566, %v4686, %v4685
        %v4688 = vsub.s32 4, %v4664
        %v4689 = vsel %vm4566, %v4688, %v4664
        %v4690 = vsel %vm4565, %v521, %v4687
        %v4691 = vsel %vm4565, 0, %v4689
        %v4692 = vmul.f32 %v4690, %v4690
        %v4693 = vmul.f32 %v4692, -0.001358992
        %v4694 = vadd.f32 %v4693, 0.041655596
        %v4695 = vmul.f32 %v4692, %v4694
        %v4696 = vadd.f32 %v4695, -0.4999988
        %v4697 = vmul.f32 %v4692, %v4696
        %v4698 = vadd.f32 1.0, %v4697
        %v4699 = vmul.f32 %v4690, %v4690
        %v4700 = vmul.f32 %v4699, -0.00019511016
        %v4701 = vadd.f32 %v4700, 0.008332121
        %v4702 = vmul.f32 %v4699, %v4701
        %v4703 = vadd.f32 %v4702, -0.16666654
        %v4704 = vmul.f32 %v4699, %v4703
        %v4705 = vadd.f32 %v4704, 1.0
        %v4706 = vmul.f32 %v4705, %v4690
        %vm4707 = vweird.f32 %v521
        %v4708 = vadd.s32 %v4691, 3
        %v4709 = vand.u32 %v4708, 3
        %vm4710 = vcmp.lt.s32.totalorder %v4709, 2
        %vm4711 = vcmp.eq.s32.totalorder %v4709, 0
        %v4712 = vxor.u32 %v4706, 2147483648
        %v4713 = vsel %vm4711, %v4698, %v4712
        %vm4714 = vcmp.eq.s32.totalorder %v4709, 2
        %v4715 = vxor.u32 %v4698, 2147483648
        %v4716 = vsel %vm4714, %v4715, %v4706
        %v4717 = vsel %vm4710, %v4713, %v4716
        %v4718 = vsel %vm4707, nan, %v4717
        %v4719 = vand.u32 2147483647, %v589
        %vm4720 = vcmp.le.f32.partialorder %v4719, 0.7853982
        %vm4721 = vcmp.lt.s32.totalorder %v589, 0
        %v4722 = vand.u32 %v589, 2139095040
        %v4723 = vshrl.u32 %v4722, 23
        %v4724 = vsub.s32 %v4723, 127
        %v4725 = vand.u32 2147483647, %v589
        %v4726 = vand.u32 %v4725, 8388607
        %v4727 = vor.u32 %v4726, 8388608
        %v4728 = vsub.s32 0, %v4727
        %v4729 = vadd.s32 %v4724, 1
        %vm4730 = vcmp.gt.s32.totalorder %v4729, 0
        %v4731 = vsel %vm4730, %v4729, 0
        %v4732 = vshrl.u32 %v4731, 5
        %v4733 = vand.u32 %v4731, 31
        %v4734 = vsub.s32 32, %v4733
        %v4735 = vshrl.u32 683565275, %v4734
        %v4736 = vshll.u32 683565275, %v4733
        %v4737 = vshrl.u32 2475754826, %v4734
        %v4738 = vor.u32 %v4736, %v4737
        %v4739 = vshll.u32 2475754826, %v4733
        %v4740 = vshrl.u32 2131351028, %v4734
        %v4741 = vor.u32 %v4739, %v4740
        %v4742 = vshll.u32 2131351028, %v4733
        %v4743 = vshrl.u32 2102212464, %v4734
        %v4744 = vor.u32 %v4742, %v4743
        %v4745 = vshll.u32 2102212464, %v4733
        %v4746 = vshrl.u32 920167782, %v4734
        %v4747 = vor.u32 %v4745, %v4746
        %v4748 = vshll.u32 920167782, %v4733
        %v4749 = vshrl.u32 1326507024, %v4734
        %v4750 = vor.u32 %v4748, %v4749
        %vm4751 = vcmp.lt.s32.totalorder %v4732, 1
        %vm4752 = vcmp.lt.s32.totalorder %v4732, 2
        %vm4753 = vcmp.lt.s32.totalorder %v4732, 3
        %vm4754 = vcmp.lt.s32.totalorder %v4732, 4
        %v4755 = vsel %vm4751, %v4735, %v4738
        %v4756 = vsel %vm4754, %v4744, 2102212464
        %v4757 = vsel %vm4753, %v4741, %v4756
        %v4758 = vsel %vm4752, %v4755, %v4757
        %v4759 = vsel %vm4751, %v4738, %v4741
        %v4760 = vsel %vm4754, %v4747, 920167782
        %v4761 = vsel %vm4753, %v4744, %v4760
        %v4762 = vsel %vm4752, %v4759, %v4761
        %v4763 = vsel %vm4751, %v4741, %v4744
        %v4764 = vsel %vm4754, %v4750, 1326507024
        %v4765 = vsel %vm4753, %v4747, %v4764
        %v4766 = vsel %vm4752, %v4763, %v4765
        %v4767 = vshll.u32 %v4727, 8
        %v4768 = vand.u32 %v4767, 65535
        %v4769 = vshrl.u32 %v4767, 16
        %v4770 = vand.u32 %v4766, 65535
        %v4771 = vshrl.u32 %v4766, 16
        %v4772 = vmul.u32 %v4768, %v4770
        %v4773 = vmul.u32 %v4768, %v4771
        %v4774 = vmul.u32 %v4769, %v4770
        %v4775 = vmul.u32 %v4769, %v4771
        %v4776 = vshll.u32 %v4773, 16
        %v4777 = vshrl.u32 %v4773, 16
        %v4778 = vshll.u32 %v4774, 16
        %v4779 = vshrl.u32 %v4774, 16
        %vm4780 = vc.u32 %v4772, %v4776
        %v4781 = vsel %vm4780, 1, 0
        %v4782 = vadd.s32 %v4772, %v4776
        %v4783 = vadd.s32 %v4775, %v4781
        %vm4784 = vc.u32 %v4782, %v4778
        %v4785 = vsel %vm4784, 1, 0
        %v4786 = vadd.s32 %v4782, %v4778
        %v4787 = vadd.s32 %v4783, %v4785
        %v4788 = vadd.s32 %v4787, %v4777
        %v4789 = vadd.s32 %v4788, %v4779
        %v4790 = vand.u32 %v4767, 65535
        %v4791 = vshrl.u32 %v4767, 16
        %v4792 = vand.u32 %v4762, 65535
        %v4793 = vshrl.u32 %v4762, 16
        %v4794 = vmul.u32 %v4790, %v4792
        %v4795 = vmul.u32 %v4790, %v4793
        %v4796 = vmul.u32 %v4791, %v4792
        %v4797 = vmul.u32 %v4791, %v4793
        %v4798 = vshll.u32 %v4795, 16
        %v4799 = vshrl.u32 %v4795, 16
        %v4800 = vshll.u32 %v4796, 16
        %v4801 = vshrl.u32 %v4796, 16
        %vm4802 = vc.u32 %v4794, %v4798
        %v4803 = vsel %vm4802, 1, 0
        %v4804 = vadd.s32 %v4794, %v4798
        %v4805 = vadd.s32 %v4797, %v4803
        %vm4806 = vc.u32 %v4804, %v4800
        %v4807 = vsel %vm4806, 1, 0
        %v4808 = vadd.s32 %v4804, %v4800
        %v4809 = vadd.s32 %v4805, %v4807
        %v4810 = vadd.s32 %v4809, %v4799
        %v4811 = vadd.s32 %v4810, %v4801
        %v4812 = vmul.u32 %v4767, %v4758
        %v4813 = vadd.s32 %v4789, %v4808
        %vm4814 = vc.u32 %v4789, %v4808
        %v4815 = vadd.s32 %v4811, 1
        %v4816 = vsel %vm4814, %v4815, %v4811
        %v4817 = vadd.s32 %v4812, %v4816
        %v4818 = vadd.s32 %v4817, 536870912
        %v4819 = vshrl.u32 %v4818, 30
        %v4820 = vshll.u32 %v4819, 30
        %v4821 = vsub.s32 %v4817, %v4820
        %vm4822 = vcmp.lt.s32.totalorder %v4821, 0
        %v4823 = vsub.s32 0, %v4821
        %v4824 = vsel %vm4822, %v4823, %v4821
        %v4825 = vclz %v4824
        %v4826 = vsub.s32 %v4825, 2
        %vm4827 = vcmp.gt.s32.totalorder 0, %v4826
        %v4828 = vsel %vm4827, 0, %v4826
        %v4829 = vsub.s32 32, %v4828
        %v4830 = vshll.u32 %v4821, %v4828
        %v4831 = vshrl.u32 %v4813, %v4829
        %v4832 = vor.u32 %v4830, %v4831
        %v4833 = vsub.s32 4294967266, %v4828
        %v4834 = vadd.s32 %v4833, 127
        %v4835 = vshll.u32 %v4834, 23
        %v4836 = vor.u32 4788187, %v4835
        %v4837 = vand.u32 2147483647, %v4836
        %v4839 = vcvt.s32.f32 %v4832
        %v4840 = vmul.f32 %v4839, %v4837
        %v4841 = vxor.u32 %v4840, 2147483648
        %v4842 = vsel %vm4721, %v4841, %v4840
        %v4843 = vsub.s32 4, %v4819
        %v4844 = vsel %vm4721, %v4843, %v4819
        %v4845 = vsel %vm4720, %v589, %v4842
        %v4846 = vsel %vm4720, 0, %v4844
        %v4847 = vmul.f32 %v4845, %v4845
        %v4848 = vmul.f32 %v4847, -0.001358992
        %v4849 = vadd.f32 %v4848, 0.041655596
        %v4850 = vmul.f32 %v4847, %v4849
        %v4851 = vadd.f32 %v4850, -0.4999988
        %v4852 = vmul.f32 %v4847, %v4851
        %v4853 = vadd.f32 1.0, %v4852
        %v4854 = vmul.f32 %v4845, %v4845
        %v4855 = vmul.f32 %v4854, -0.00019511016
        %v4856 = vadd.f32 %v4855, 0.008332121
        %v4857 = vmul.f32 %v4854, %v4856
        %v4858 = vadd.f32 %v4857, -0.16666654
        %v4859 = vmul.f32 %v4854, %v4858
        %v4860 = vadd.f32 %v4859, 1.0
        %v4861 = vmul.f32 %v4860, %v4845
        %vm4862 = vweird.f32 %v589
        %v4863 = vadd.s32 %v4846, 3
        %v4864 = vand.u32 %v4863, 3
        %vm4865 = vcmp.lt.s32.totalorder %v4864, 2
        %vm4866 = vcmp.eq.s32.totalorder %v4864, 0
        %v4867 = vxor.u32 %v4861, 2147483648
        %v4868 = vsel %vm4866, %v4853, %v4867
        %vm4869 = vcmp.eq.s32.totalorder %v4864, 2
        %v4870 = vxor.u32 %v4853, 2147483648
        %v4871 = vsel %vm4869, %v4870, %v4861
        %v4872 = vsel %vm4865, %v4868, %v4871
        %v4873 = vsel %vm4862, nan, %v4872
        %v4874 = vand.u32 2147483647, %v657
        %vm4875 = vcmp.le.f32.partialorder %v4874, 0.7853982
        %vm4876 = vcmp.lt.s32.totalorder %v657, 0
        %v4877 = vand.u32 %v657, 2139095040
        %v4878 = vshrl.u32 %v4877, 23
        %v4879 = vsub.s32 %v4878, 127
        %v4880 = vand.u32 2147483647, %v657
        %v4881 = vand.u32 %v4880, 8388607
        %v4882 = vor.u32 %v4881, 8388608
        %v4883 = vsub.s32 0, %v4882
        %v4884 = vadd.s32 %v4879, 1
        %vm4885 = vcmp.gt.s32.totalorder %v4884, 0
        %v4886 = vsel %vm4885, %v4884, 0
        %v4887 = vshrl.u32 %v4886, 5
        %v4888 = vand.u32 %v4886, 31
        %v4889 = vsub.s32 32, %v4888
        %v4890 = vshrl.u32 683565275, %v4889
        %v4891 = vshll.u32 683565275, %v4888
        %v4892 = vshrl.u32 2475754826, %v4889
        %v4893 = vor.u32 %v4891, %v4892
        %v4894 = vshll.u32 2475754826, %v4888
        %v4895 = vshrl.u32 2131351028, %v4889
        %v4896 = vor.u32 %v4894, %v4895
        %v4897 = vshll.u32 2131351028, %v4888
        %v4898 = vshrl.u32 2102212464, %v4889
        %v4899 = vor.u32 %v4897, %v4898
        %v4900 = vshll.u32 2102212464, %v4888
        %v4901 = vshrl.u32 920167782, %v4889
        %v4902 = vor.u32 %v4900, %v4901
        %v4903 = vshll.u32 920167782, %v4888
        %v4904 = vshrl.u32 1326507024, %v4889
        %v4905 = vor.u32 %v4903, %v4904
        %vm4906 = vcmp.lt.s32.totalorder %v4887, 1
        %vm4907 = vcmp.lt.s32.totalorder %v4887, 2
        %vm4908 = vcmp.lt.s32.totalorder %v4887, 3
        %vm4909 = vcmp.lt.s32.totalorder %v4887, 4
        %v4910 = vsel %vm4906, %v4890, %v4893
        %v4911 = vsel %vm4909, %v4899, 2102212464
        %v4912 = vsel %vm4908, %v4896, %v4911
        %v4913 = vsel %vm4907, %v4910, %v4912
        %v4914 = vsel %vm4906, %v4893, %v4896
        %v4915 = vsel %vm4909, %v4902, 920167782
        %v4916 = vsel %vm4908, %v4899, %v4915
        %v4917 = vsel %vm4907, %v4914, %v4916
        %v4918 = vsel %vm4906, %v4896, %v4899
        %v4919 = vsel %vm4909, %v4905, 1326507024
        %v4920 = vsel %vm4908, %v4902, %v4919
        %v4921 = vsel %vm4907, %v4918, %v4920
        %v4922 = vshll.u32 %v4882, 8
        %v4923 = vand.u32 %v4922, 65535
        %v4924 = vshrl.u32 %v4922, 16
        %v4925 = vand.u32 %v4921, 65535
        %v4926 = vshrl.u32 %v4921, 16
        %v4927 = vmul.u32 %v4923, %v4925
        %v4928 = vmul.u32 %v4923, %v4926
        %v4929 = vmul.u32 %v4924, %v4925
        %v4930 = vmul.u32 %v4924, %v4926
        %v4931 = vshll.u32 %v4928, 16
        %v4932 = vshrl.u32 %v4928, 16
        %v4933 = vshll.u32 %v4929, 16
        %v4934 = vshrl.u32 %v4929, 16
        %vm4935 = vc.u32 %v4927, %v4931
        %v4936 = vsel %vm4935, 1, 0
        %v4937 = vadd.s32 %v4927, %v4931
        %v4938 = vadd.s32 %v4930, %v4936
        %vm4939 = vc.u32 %v4937, %v4933
        %v4940 = vsel %vm4939, 1, 0
        %v4941 = vadd.s32 %v4937, %v4933
        %v4942 = vadd.s32 %v4938, %v4940
        %v4943 = vadd.s32 %v4942, %v4932
        %v4944 = vadd.s32 %v4943, %v4934
        %v4945 = vand.u32 %v4922, 65535
        %v4946 = vshrl.u32 %v4922, 16
        %v4947 = vand.u32 %v4917, 65535
        %v4948 = vshrl.u32 %v4917, 16
        %v4949 = vmul.u32 %v4945, %v4947
        %v4950 = vmul.u32 %v4945, %v4948
        %v4951 = vmul.u32 %v4946, %v4947
        %v4952 = vmul.u32 %v4946, %v4948
        %v4953 = vshll.u32 %v4950, 16
        %v4954 = vshrl.u32 %v4950, 16
        %v4955 = vshll.u32 %v4951, 16
        %v4956 = vshrl.u32 %v4951, 16
        %vm4957 = vc.u32 %v4949, %v4953
        %v4958 = vsel %vm4957, 1, 0
        %v4959 = vadd.s32 %v4949, %v4953
        %v4960 = vadd.s32 %v4952, %v4958
        %vm4961 = vc.u32 %v4959, %v4955
        %v4962 = vsel %vm4961, 1, 0
        %v4963 = vadd.s32 %v4959, %v4955
        %v4964 = vadd.s32 %v4960, %v4962
        %v4965 = vadd.s32 %v4964, %v4954
        %v4966 = vadd.s32 %v4965, %v4956
        %v4967 = vmul.u32 %v4922, %v4913
        %v4968 = vadd.s32 %v4944, %v4963
        %vm4969 = vc.u32 %v4944, %v4963
        %v4970 = vadd.s32 %v4966, 1
        %v4971 = vsel %vm4969, %v4970, %v4966
        %v4972 = vadd.s32 %v4967, %v4971
        %v4973 = vadd.s32 %v4972, 536870912
        %v4974 = vshrl.u32 %v4973, 30
        %v4975 = vshll.u32 %v4974, 30
        %v4976 = vsub.s32 %v4972, %v4975
        %vm4977 = vcmp.lt.s32.totalorder %v4976, 0
        %v4978 = vsub.s32 0, %v4976
        %v4979 = vsel %vm4977, %v4978, %v4976
        %v4980 = vclz %v4979
        %v4981 = vsub.s32 %v4980, 2
        %vm4982 = vcmp.gt.s32.totalorder 0, %v4981
        %v4983 = vsel %vm4982, 0, %v4981
        %v4984 = vsub.s32 32, %v4983
        %v4985 = vshll.u32 %v4976, %v4983
        %v4986 = vshrl.u32 %v4968, %v4984
        %v4987 = vor.u32 %v4985, %v4986
        %v4988 = vsub.s32 4294967266, %v4983
        %v4989 = vadd.s32 %v4988, 127
        %v4990 = vshll.u32 %v4989, 23
        %v4991 = vor.u32 4788187, %v4990
        %v4992 = vand.u32 2147483647, %v4991
        %v4994 = vcvt.s32.f32 %v4987
        %v4995 = vmul.f32 %v4994, %v4992
        %v4996 = vxor.u32 %v4995, 2147483648
        %v4997 = vsel %vm4876, %v4996, %v4995
        %v4998 = vsub.s32 4, %v4974
        %v4999 = vsel %vm4876, %v4998, %v4974
        %v5000 = vsel %vm4875, %v657, %v4997
        %v5001 = vsel %vm4875, 0, %v4999
        %v5002 = vmul.f32 %v5000, %v5000
        %v5003 = vmul.f32 %v5002, -0.001358992
        %v5004 = vadd.f32 %v5003, 0.041655596
        %v5005 = vmul.f32 %v5002, %v5004
        %v5006 = vadd.f32 %v5005, -0.4999988
        %v5007 = vmul.f32 %v5002, %v5006
        %v5008 = vadd.f32 1.0, %v5007
        %v5009 = vmul.f32 %v5000, %v5000
        %v5010 = vmul.f32 %v5009, -0.00019511016
        %v5011 = vadd.f32 %v5010, 0.008332121
        %v5012 = vmul.f32 %v5009, %v5011
        %v5013 = vadd.f32 %v5012, -0.16666654
        %v5014 = vmul.f32 %v5009, %v5013
        %v5015 = vadd.f32 %v5014, 1.0
        %v5016 = vmul.f32 %v5015, %v5000
        %vm5017 = vweird.f32 %v657
        %v5018 = vadd.s32 %v5001, 3
        %v5019 = vand.u32 %v5018, 3
        %vm5020 = vcmp.lt.s32.totalorder %v5019, 2
        %vm5021 = vcmp.eq.s32.totalorder %v5019, 0
        %v5022 = vxor.u32 %v5016, 2147483648
        %v5023 = vsel %vm5021, %v5008, %v5022
        %vm5024 = vcmp.eq.s32.totalorder %v5019, 2
        %v5025 = vxor.u32 %v5008, 2147483648
        %v5026 = vsel %vm5024, %v5025, %v5016
        %v5027 = vsel %vm5020, %v5023, %v5026
        %v5028 = vsel %vm5017, nan, %v5027
        %v5029 = vand.u32 2147483647, %v456
        %vm5030 = vcmp.le.f32.partialorder %v5029, 0.7853982
        %vm5031 = vcmp.lt.s32.totalorder %v456, 0
        %v5032 = vand.u32 %v456, 2139095040
        %v5033 = vshrl.u32 %v5032, 23
        %v5034 = vsub.s32 %v5033, 127
        %v5035 = vand.u32 2147483647, %v456
        %v5036 = vand.u32 %v5035, 8388607
        %v5037 = vor.u32 %v5036, 8388608
        %v5038 = vsub.s32 0, %v5037
        %v5039 = vadd.s32 %v5034, 1
        %vm5040 = vcmp.gt.s32.totalorder %v5039, 0
        %v5041 = vsel %vm5040, %v5039, 0
        %v5042 = vshrl.u32 %v5041, 5
        %v5043 = vand.u32 %v5041, 31
        %v5044 = vsub.s32 32, %v5043
        %v5045 = vshrl.u32 683565275, %v5044
        %v5046 = vshll.u32 683565275, %v5043
        %v5047 = vshrl.u32 2475754826, %v5044
        %v5048 = vor.u32 %v5046, %v5047
        %v5049 = vshll.u32 2475754826, %v5043
        %v5050 = vshrl.u32 2131351028, %v5044
        %v5051 = vor.u32 %v5049, %v5050
        %v5052 = vshll.u32 2131351028, %v5043
        %v5053 = vshrl.u32 2102212464, %v5044
        %v5054 = vor.u32 %v5052, %v5053
        %v5055 = vshll.u32 2102212464, %v5043
        %v5056 = vshrl.u32 920167782, %v5044
        %v5057 = vor.u32 %v5055, %v5056
        %v5058 = vshll.u32 920167782, %v5043
        %v5059 = vshrl.u32 1326507024, %v5044
        %v5060 = vor.u32 %v5058, %v5059
        %vm5061 = vcmp.lt.s32.totalorder %v5042, 1
        %vm5062 = vcmp.lt.s32.totalorder %v5042, 2
        %vm5063 = vcmp.lt.s32.totalorder %v5042, 3
        %vm5064 = vcmp.lt.s32.totalorder %v5042, 4
        %v5065 = vsel %vm5061, %v5045, %v5048
        %v5066 = vsel %vm5064, %v5054, 2102212464
        %v5067 = vsel %vm5063, %v5051, %v5066
        %v5068 = vsel %vm5062, %v5065, %v5067
        %v5069 = vsel %vm5061, %v5048, %v5051
        %v5070 = vsel %vm5064, %v5057, 920167782
        %v5071 = vsel %vm5063, %v5054, %v5070
        %v5072 = vsel %vm5062, %v5069, %v5071
        %v5073 = vsel %vm5061, %v5051, %v5054
        %v5074 = vsel %vm5064, %v5060, 1326507024
        %v5075 = vsel %vm5063, %v5057, %v5074
        %v5076 = vsel %vm5062, %v5073, %v5075
        %v5077 = vshll.u32 %v5037, 8
        %v5078 = vand.u32 %v5077, 65535
        %v5079 = vshrl.u32 %v5077, 16
        %v5080 = vand.u32 %v5076, 65535
        %v5081 = vshrl.u32 %v5076, 16
        %v5082 = vmul.u32 %v5078, %v5080
        %v5083 = vmul.u32 %v5078, %v5081
        %v5084 = vmul.u32 %v5079, %v5080
        %v5085 = vmul.u32 %v5079, %v5081
        %v5086 = vshll.u32 %v5083, 16
        %v5087 = vshrl.u32 %v5083, 16
        %v5088 = vshll.u32 %v5084, 16
        %v5089 = vshrl.u32 %v5084, 16
        %vm5090 = vc.u32 %v5082, %v5086
        %v5091 = vsel %vm5090, 1, 0
        %v5092 = vadd.s32 %v5082, %v5086
        %v5093 = vadd.s32 %v5085, %v5091
        %vm5094 = vc.u32 %v5092, %v5088
        %v5095 = vsel %vm5094, 1, 0
        %v5096 = vadd.s32 %v5092, %v5088
        %v5097 = vadd.s32 %v5093, %v5095
        %v5098 = vadd.s32 %v5097, %v5087
        %v5099 = vadd.s32 %v5098, %v5089
        %v5100 = vand.u32 %v5077, 65535
        %v5101 = vshrl.u32 %v5077, 16
        %v5102 = vand.u32 %v5072, 65535
        %v5103 = vshrl.u32 %v5072, 16
        %v5104 = vmul.u32 %v5100, %v5102
        %v5105 = vmul.u32 %v5100, %v5103
        %v5106 = vmul.u32 %v5101, %v5102
        %v5107 = vmul.u32 %v5101, %v5103
        %v5108 = vshll.u32 %v5105, 16
        %v5109 = vshrl.u32 %v5105, 16
        %v5110 = vshll.u32 %v5106, 16
        %v5111 = vshrl.u32 %v5106, 16
        %vm5112 = vc.u32 %v5104, %v5108
        %v5113 = vsel %vm5112, 1, 0
        %v5114 = vadd.s32 %v5104, %v5108
        %v5115 = vadd.s32 %v5107, %v5113
        %vm5116 = vc.u32 %v5114, %v5110
        %v5117 = vsel %vm5116, 1, 0
        %v5118 = vadd.s32 %v5114, %v5110
        %v5119 = vadd.s32 %v5115, %v5117
        %v5120 = vadd.s32 %v5119, %v5109
        %v5121 = vadd.s32 %v5120, %v5111
        %v5122 = vmul.u32 %v5077, %v5068
        %v5123 = vadd.s32 %v5099, %v5118
        %vm5124 = vc.u32 %v5099, %v5118
        %v5125 = vadd.s32 %v5121, 1
        %v5126 = vsel %vm5124, %v5125, %v5121
        %v5127 = vadd.s32 %v5122, %v5126
        %v5128 = vadd.s32 %v5127, 536870912
        %v5129 = vshrl.u32 %v5128, 30
        %v5130 = vshll.u32 %v5129, 30
        %v5131 = vsub.s32 %v5127, %v5130
        %vm5132 = vcmp.lt.s32.totalorder %v5131, 0
        %v5133 = vsub.s32 0, %v5131
        %v5134 = vsel %vm5132, %v5133, %v5131
        %v5135 = vclz %v5134
        %v5136 = vsub.s32 %v5135, 2
        %vm5137 = vcmp.gt.s32.totalorder 0, %v5136
        %v5138 = vsel %vm5137, 0, %v5136
        %v5139 = vsub.s32 32, %v5138
        %v5140 = vshll.u32 %v5131, %v5138
        %v5141 = vshrl.u32 %v5123, %v5139
        %v5142 = vor.u32 %v5140, %v5141
        %v5143 = vsub.s32 4294967266, %v5138
        %v5144 = vadd.s32 %v5143, 127
        %v5145 = vshll.u32 %v5144, 23
        %v5146 = vor.u32 4788187, %v5145
        %v5147 = vand.u32 2147483647, %v5146
        %v5149 = vcvt.s32.f32 %v5142
        %v5150 = vmul.f32 %v5149, %v5147
        %v5151 = vxor.u32 %v5150, 2147483648
        %v5152 = vsel %vm5031, %v5151, %v5150
        %v5153 = vsub.s32 4, %v5129
        %v5154 = vsel %vm5031, %v5153, %v5129
        %v5155 = vsel %vm5030, %v456, %v5152
        %v5156 = vsel %vm5030, 0, %v5154
        %v5157 = vmul.f32 %v5155, %v5155
        %v5158 = vmul.f32 %v5157, -0.001358992
        %v5159 = vadd.f32 %v5158, 0.041655596
        %v5160 = vmul.f32 %v5157, %v5159
        %v5161 = vadd.f32 %v5160, -0.4999988
        %v5162 = vmul.f32 %v5157, %v5161
        %v5163 = vadd.f32 1.0, %v5162
        %v5164 = vmul.f32 %v5155, %v5155
        %v5165 = vmul.f32 %v5164, -0.00019511016
        %v5166 = vadd.f32 %v5165, 0.008332121
        %v5167 = vmul.f32 %v5164, %v5166
        %v5168 = vadd.f32 %v5167, -0.16666654
        %v5169 = vmul.f32 %v5164, %v5168
        %v5170 = vadd.f32 %v5169, 1.0
        %v5171 = vmul.f32 %v5170, %v5155
        %vm5172 = vweird.f32 %v456
        %v5173 = vadd.s32 %v5156, 3
        %v5174 = vand.u32 %v5173, 3
        %vm5175 = vcmp.lt.s32.totalorder %v5174, 2
        %vm5176 = vcmp.eq.s32.totalorder %v5174, 0
        %v5177 = vxor.u32 %v5171, 2147483648
        %v5178 = vsel %vm5176, %v5163, %v5177
        %vm5179 = vcmp.eq.s32.totalorder %v5174, 2
        %v5180 = vxor.u32 %v5163, 2147483648
        %v5181 = vsel %vm5179, %v5180, %v5171
        %v5182 = vsel %vm5175, %v5178, %v5181
        %v5183 = vsel %vm5172, nan, %v5182
        %v5184 = vand.u32 2147483647, %v524
        %vm5185 = vcmp.le.f32.partialorder %v5184, 0.7853982
        %vm5186 = vcmp.lt.s32.totalorder %v524, 0
        %v5187 = vand.u32 %v524, 2139095040
        %v5188 = vshrl.u32 %v5187, 23
        %v5189 = vsub.s32 %v5188, 127
        %v5190 = vand.u32 2147483647, %v524
        %v5191 = vand.u32 %v5190, 8388607
        %v5192 = vor.u32 %v5191, 8388608
        %v5193 = vsub.s32 0, %v5192
        %v5194 = vadd.s32 %v5189, 1
        %vm5195 = vcmp.gt.s32.totalorder %v5194, 0
        %v5196 = vsel %vm5195, %v5194, 0
        %v5197 = vshrl.u32 %v5196, 5
        %v5198 = vand.u32 %v5196, 31
        %v5199 = vsub.s32 32, %v5198
        %v5200 = vshrl.u32 683565275, %v5199
        %v5201 = vshll.u32 683565275, %v5198
        %v5202 = vshrl.u32 2475754826, %v5199
        %v5203 = vor.u32 %v5201, %v5202
        %v5204 = vshll.u32 2475754826, %v5198
        %v5205 = vshrl.u32 2131351028, %v5199
        %v5206 = vor.u32 %v5204, %v5205
        %v5207 = vshll.u32 2131351028, %v5198
        %v5208 = vshrl.u32 2102212464, %v5199
        %v5209 = vor.u32 %v5207, %v5208
        %v5210 = vshll.u32 2102212464, %v5198
        %v5211 = vshrl.u32 920167782, %v5199
        %v5212 = vor.u32 %v5210, %v5211
        %v5213 = vshll.u32 920167782, %v5198
        %v5214 = vshrl.u32 1326507024, %v5199
        %v5215 = vor.u32 %v5213, %v5214
        %vm5216 = vcmp.lt.s32.totalorder %v5197, 1
        %vm5217 = vcmp.lt.s32.totalorder %v5197, 2
        %vm5218 = vcmp.lt.s32.totalorder %v5197, 3
        %vm5219 = vcmp.lt.s32.totalorder %v5197, 4
        %v5220 = vsel %vm5216, %v5200, %v5203
        %v5221 = vsel %vm5219, %v5209, 2102212464
        %v5222 = vsel %vm5218, %v5206, %v5221
        %v5223 = vsel %vm5217, %v5220, %v5222
        %v5224 = vsel %vm5216, %v5203, %v5206
        %v5225 = vsel %vm5219, %v5212, 920167782
        %v5226 = vsel %vm5218, %v5209, %v5225
        %v5227 = vsel %vm5217, %v5224, %v5226
        %v5228 = vsel %vm5216, %v5206, %v5209
        %v5229 = vsel %vm5219, %v5215, 1326507024
        %v5230 = vsel %vm5218, %v5212, %v5229
        %v5231 = vsel %vm5217, %v5228, %v5230
        %v5232 = vshll.u32 %v5192, 8
        %v5233 = vand.u32 %v5232, 65535
        %v5234 = vshrl.u32 %v5232, 16
        %v5235 = vand.u32 %v5231, 65535
        %v5236 = vshrl.u32 %v5231, 16
        %v5237 = vmul.u32 %v5233, %v5235
        %v5238 = vmul.u32 %v5233, %v5236
        %v5239 = vmul.u32 %v5234, %v5235
        %v5240 = vmul.u32 %v5234, %v5236
        %v5241 = vshll.u32 %v5238, 16
        %v5242 = vshrl.u32 %v5238, 16
        %v5243 = vshll.u32 %v5239, 16
        %v5244 = vshrl.u32 %v5239, 16
        %vm5245 = vc.u32 %v5237, %v5241
        %v5246 = vsel %vm5245, 1, 0
        %v5247 = vadd.s32 %v5237, %v5241
        %v5248 = vadd.s32 %v5240, %v5246
        %vm5249 = vc.u32 %v5247, %v5243
        %v5250 = vsel %vm5249, 1, 0
        %v5251 = vadd.s32 %v5247, %v5243
        %v5252 = vadd.s32 %v5248, %v5250
        %v5253 = vadd.s32 %v5252, %v5242
        %v5254 = vadd.s32 %v5253, %v5244
        %v5255 = vand.u32 %v5232, 65535
        %v5256 = vshrl.u32 %v5232, 16
        %v5257 = vand.u32 %v5227, 65535
        %v5258 = vshrl.u32 %v5227, 16
        %v5259 = vmul.u32 %v5255, %v5257
        %v5260 = vmul.u32 %v5255, %v5258
        %v5261 = vmul.u32 %v5256, %v5257
        %v5262 = vmul.u32 %v5256, %v5258
        %v5263 = vshll.u32 %v5260, 16
        %v5264 = vshrl.u32 %v5260, 16
        %v5265 = vshll.u32 %v5261, 16
        %v5266 = vshrl.u32 %v5261, 16
        %vm5267 = vc.u32 %v5259, %v5263
        %v5268 = vsel %vm5267, 1, 0
        %v5269 = vadd.s32 %v5259, %v5263
        %v5270 = vadd.s32 %v5262, %v5268
        %vm5271 = vc.u32 %v5269, %v5265
        %v5272 = vsel %vm5271, 1, 0
        %v5273 = vadd.s32 %v5269, %v5265
        %v5274 = vadd.s32 %v5270, %v5272
        %v5275 = vadd.s32 %v5274, %v5264
        %v5276 = vadd.s32 %v5275, %v5266
        %v5277 = vmul.u32 %v5232, %v5223
        %v5278 = vadd.s32 %v5254, %v5273
        %vm5279 = vc.u32 %v5254, %v5273
        %v5280 = vadd.s32 %v5276, 1
        %v5281 = vsel %vm5279, %v5280, %v5276
        %v5282 = vadd.s32 %v5277, %v5281
        %v5283 = vadd.s32 %v5282, 536870912
        %v5284 = vshrl.u32 %v5283, 30
        %v5285 = vshll.u32 %v5284, 30
        %v5286 = vsub.s32 %v5282, %v5285
        %vm5287 = vcmp.lt.s32.totalorder %v5286, 0
        %v5288 = vsub.s32 0, %v5286
        %v5289 = vsel %vm5287, %v5288, %v5286
        %v5290 = vclz %v5289
        %v5291 = vsub.s32 %v5290, 2
        %vm5292 = vcmp.gt.s32.totalorder 0, %v5291
        %v5293 = vsel %vm5292, 0, %v5291
        %v5294 = vsub.s32 32, %v5293
        %v5295 = vshll.u32 %v5286, %v5293
        %v5296 = vshrl.u32 %v5278, %v5294
        %v5297 = vor.u32 %v5295, %v5296
        %v5298 = vsub.s32 4294967266, %v5293
        %v5299 = vadd.s32 %v5298, 127
        %v5300 = vshll.u32 %v5299, 23
        %v5301 = vor.u32 4788187, %v5300
        %v5302 = vand.u32 2147483647, %v5301
        %v5304 = vcvt.s32.f32 %v5297
        %v5305 = vmul.f32 %v5304, %v5302
        %v5306 = vxor.u32 %v5305, 2147483648
        %v5307 = vsel %vm5186, %v5306, %v5305
        %v5308 = vsub.s32 4, %v5284
        %v5309 = vsel %vm5186, %v5308, %v5284
        %v5310 = vsel %vm5185, %v524, %v5307
        %v5311 = vsel %vm5185, 0, %v5309
        %v5312 = vmul.f32 %v5310, %v5310
        %v5313 = vmul.f32 %v5312, -0.001358992
        %v5314 = vadd.f32 %v5313, 0.041655596
        %v5315 = vmul.f32 %v5312, %v5314
        %v5316 = vadd.f32 %v5315, -0.4999988
        %v5317 = vmul.f32 %v5312, %v5316
        %v5318 = vadd.f32 1.0, %v5317
        %v5319 = vmul.f32 %v5310, %v5310
        %v5320 = vmul.f32 %v5319, -0.00019511016
        %v5321 = vadd.f32 %v5320, 0.008332121
        %v5322 = vmul.f32 %v5319, %v5321
        %v5323 = vadd.f32 %v5322, -0.16666654
        %v5324 = vmul.f32 %v5319, %v5323
        %v5325 = vadd.f32 %v5324, 1.0
        %v5326 = vmul.f32 %v5325, %v5310
        %vm5327 = vweird.f32 %v524
        %v5328 = vadd.s32 %v5311, 3
        %v5329 = vand.u32 %v5328, 3
        %vm5330 = vcmp.lt.s32.totalorder %v5329, 2
        %vm5331 = vcmp.eq.s32.totalorder %v5329, 0
        %v5332 = vxor.u32 %v5326, 2147483648
        %v5333 = vsel %vm5331, %v5318, %v5332
        %vm5334 = vcmp.eq.s32.totalorder %v5329, 2
        %v5335 = vxor.u32 %v5318, 2147483648
        %v5336 = vsel %vm5334, %v5335, %v5326
        %v5337 = vsel %vm5330, %v5333, %v5336
        %v5338 = vsel %vm5327, nan, %v5337
        %v5339 = vand.u32 2147483647, %v592
        %vm5340 = vcmp.le.f32.partialorder %v5339, 0.7853982
        %vm5341 = vcmp.lt.s32.totalorder %v592, 0
        %v5342 = vand.u32 %v592, 2139095040
        %v5343 = vshrl.u32 %v5342, 23
        %v5344 = vsub.s32 %v5343, 127
        %v5345 = vand.u32 2147483647, %v592
        %v5346 = vand.u32 %v5345, 8388607
        %v5347 = vor.u32 %v5346, 8388608
        %v5348 = vsub.s32 0, %v5347
        %v5349 = vadd.s32 %v5344, 1
        %vm5350 = vcmp.gt.s32.totalorder %v5349, 0
        %v5351 = vsel %vm5350, %v5349, 0
        %v5352 = vshrl.u32 %v5351, 5
        %v5353 = vand.u32 %v5351, 31
        %v5354 = vsub.s32 32, %v5353
        %v5355 = vshrl.u32 683565275, %v5354
        %v5356 = vshll.u32 683565275, %v5353
        %v5357 = vshrl.u32 2475754826, %v5354
        %v5358 = vor.u32 %v5356, %v5357
        %v5359 = vshll.u32 2475754826, %v5353
        %v5360 = vshrl.u32 2131351028, %v5354
        %v5361 = vor.u32 %v5359, %v5360
        %v5362 = vshll.u32 2131351028, %v5353
        %v5363 = vshrl.u32 2102212464, %v5354
        %v5364 = vor.u32 %v5362, %v5363
        %v5365 = vshll.u32 2102212464, %v5353
        %v5366 = vshrl.u32 920167782, %v5354
        %v5367 = vor.u32 %v5365, %v5366
        %v5368 = vshll.u32 920167782, %v5353
        %v5369 = vshrl.u32 1326507024, %v5354
        %v5370 = vor.u32 %v5368, %v5369
        %vm5371 = vcmp.lt.s32.totalorder %v5352, 1
        %vm5372 = vcmp.lt.s32.totalorder %v5352, 2
        %vm5373 = vcmp.lt.s32.totalorder %v5352, 3
        %vm5374 = vcmp.lt.s32.totalorder %v5352, 4
        %v5375 = vsel %vm5371, %v5355, %v5358
        %v5376 = vsel %vm5374, %v5364, 2102212464
        %v5377 = vsel %vm5373, %v5361, %v5376
        %v5378 = vsel %vm5372, %v5375, %v5377
        %v5379 = vsel %vm5371, %v5358, %v5361
        %v5380 = vsel %vm5374, %v5367, 920167782
        %v5381 = vsel %vm5373, %v5364, %v5380
        %v5382 = vsel %vm5372, %v5379, %v5381
        %v5383 = vsel %vm5371, %v5361, %v5364
        %v5384 = vsel %vm5374, %v5370, 1326507024
        %v5385 = vsel %vm5373, %v5367, %v5384
        %v5386 = vsel %vm5372, %v5383, %v5385
        %v5387 = vshll.u32 %v5347, 8
        %v5388 = vand.u32 %v5387, 65535
        %v5389 = vshrl.u32 %v5387, 16
        %v5390 = vand.u32 %v5386, 65535
        %v5391 = vshrl.u32 %v5386, 16
        %v5392 = vmul.u32 %v5388, %v5390
        %v5393 = vmul.u32 %v5388, %v5391
        %v5394 = vmul.u32 %v5389, %v5390
        %v5395 = vmul.u32 %v5389, %v5391
        %v5396 = vshll.u32 %v5393, 16
        %v5397 = vshrl.u32 %v5393, 16
        %v5398 = vshll.u32 %v5394, 16
        %v5399 = vshrl.u32 %v5394, 16
        %vm5400 = vc.u32 %v5392, %v5396
        %v5401 = vsel %vm5400, 1, 0
        %v5402 = vadd.s32 %v5392, %v5396
        %v5403 = vadd.s32 %v5395, %v5401
        %vm5404 = vc.u32 %v5402, %v5398
        %v5405 = vsel %vm5404, 1, 0
        %v5406 = vadd.s32 %v5402, %v5398
        %v5407 = vadd.s32 %v5403, %v5405
        %v5408 = vadd.s32 %v5407, %v5397
        %v5409 = vadd.s32 %v5408, %v5399
        %v5410 = vand.u32 %v5387, 65535
        %v5411 = vshrl.u32 %v5387, 16
        %v5412 = vand.u32 %v5382, 65535
        %v5413 = vshrl.u32 %v5382, 16
        %v5414 = vmul.u32 %v5410, %v5412
        %v5415 = vmul.u32 %v5410, %v5413
        %v5416 = vmul.u32 %v5411, %v5412
        %v5417 = vmul.u32 %v5411, %v5413
        %v5418 = vshll.u32 %v5415, 16
        %v5419 = vshrl.u32 %v5415, 16
        %v5420 = vshll.u32 %v5416, 16
        %v5421 = vshrl.u32 %v5416, 16
        %vm5422 = vc.u32 %v5414, %v5418
        %v5423 = vsel %vm5422, 1, 0
        %v5424 = vadd.s32 %v5414, %v5418
        %v5425 = vadd.s32 %v5417, %v5423
        %vm5426 = vc.u32 %v5424, %v5420
        %v5427 = vsel %vm5426, 1, 0
        %v5428 = vadd.s32 %v5424, %v5420
        %v5429 = vadd.s32 %v5425, %v5427
        %v5430 = vadd.s32 %v5429, %v5419
        %v5431 = vadd.s32 %v5430, %v5421
        %v5432 = vmul.u32 %v5387, %v5378
        %v5433 = vadd.s32 %v5409, %v5428
        %vm5434 = vc.u32 %v5409, %v5428
        %v5435 = vadd.s32 %v5431, 1
        %v5436 = vsel %vm5434, %v5435, %v5431
        %v5437 = vadd.s32 %v5432, %v5436
        %v5438 = vadd.s32 %v5437, 536870912
        %v5439 = vshrl.u32 %v5438, 30
        %v5440 = vshll.u32 %v5439, 30
        %v5441 = vsub.s32 %v5437, %v5440
        %vm5442 = vcmp.lt.s32.totalorder %v5441, 0
        %v5443 = vsub.s32 0, %v5441
        %v5444 = vsel %vm5442, %v5443, %v5441
        %v5445 = vclz %v5444
        %v5446 = vsub.s32 %v5445, 2
        %vm5447 = vcmp.gt.s32.totalorder 0, %v5446
        %v5448 = vsel %vm5447, 0, %v5446
        %v5449 = vsub.s32 32, %v5448
        %v5450 = vshll.u32 %v5441, %v5448
        %v5451 = vshrl.u32 %v5433, %v5449
        %v5452 = vor.u32 %v5450, %v5451
        %v5453 = vsub.s32 4294967266, %v5448
        %v5454 = vadd.s32 %v5453, 127
        %v5455 = vshll.u32 %v5454, 23
        %v5456 = vor.u32 4788187, %v5455
        %v5457 = vand.u32 2147483647, %v5456
        %v5459 = vcvt.s32.f32 %v5452
        %v5460 = vmul.f32 %v5459, %v5457
        %v5461 = vxor.u32 %v5460, 2147483648
        %v5462 = vsel %vm5341, %v5461, %v5460
        %v5463 = vsub.s32 4, %v5439
        %v5464 = vsel %vm5341, %v5463, %v5439
        %v5465 = vsel %vm5340, %v592, %v5462
        %v5466 = vsel %vm5340, 0, %v5464
        %v5467 = vmul.f32 %v5465, %v5465
        %v5468 = vmul.f32 %v5467, -0.001358992
        %v5469 = vadd.f32 %v5468, 0.041655596
        %v5470 = vmul.f32 %v5467, %v5469
        %v5471 = vadd.f32 %v5470, -0.4999988
        %v5472 = vmul.f32 %v5467, %v5471
        %v5473 = vadd.f32 1.0, %v5472
        %v5474 = vmul.f32 %v5465, %v5465
        %v5475 = vmul.f32 %v5474, -0.00019511016
        %v5476 = vadd.f32 %v5475, 0.008332121
        %v5477 = vmul.f32 %v5474, %v5476
        %v5478 = vadd.f32 %v5477, -0.16666654
        %v5479 = vmul.f32 %v5474, %v5478
        %v5480 = vadd.f32 %v5479, 1.0
        %v5481 = vmul.f32 %v5480, %v5465
        %vm5482 = vweird.f32 %v592
        %v5483 = vadd.s32 %v5466, 3
        %v5484 = vand.u32 %v5483, 3
        %vm5485 = vcmp.lt.s32.totalorder %v5484, 2
        %vm5486 = vcmp.eq.s32.totalorder %v5484, 0
        %v5487 = vxor.u32 %v5481, 2147483648
        %v5488 = vsel %vm5486, %v5473, %v5487
        %vm5489 = vcmp.eq.s32.totalorder %v5484, 2
        %v5490 = vxor.u32 %v5473, 2147483648
        %v5491 = vsel %vm5489, %v5490, %v5481
        %v5492 = vsel %vm5485, %v5488, %v5491
        %v5493 = vsel %vm5482, nan, %v5492
        %v5494 = vand.u32 2147483647, %v660
        %vm5495 = vcmp.le.f32.partialorder %v5494, 0.7853982
        %vm5496 = vcmp.lt.s32.totalorder %v660, 0
        %v5497 = vand.u32 %v660, 2139095040
        %v5498 = vshrl.u32 %v5497, 23
        %v5499 = vsub.s32 %v5498, 127
        %v5500 = vand.u32 2147483647, %v660
        %v5501 = vand.u32 %v5500, 8388607
        %v5502 = vor.u32 %v5501, 8388608
        %v5503 = vsub.s32 0, %v5502
        %v5504 = vadd.s32 %v5499, 1
        %vm5505 = vcmp.gt.s32.totalorder %v5504, 0
        %v5506 = vsel %vm5505, %v5504, 0
        %v5507 = vshrl.u32 %v5506, 5
        %v5508 = vand.u32 %v5506, 31
        %v5509 = vsub.s32 32, %v5508
        %v5510 = vshrl.u32 683565275, %v5509
        %v5511 = vshll.u32 683565275, %v5508
        %v5512 = vshrl.u32 2475754826, %v5509
        %v5513 = vor.u32 %v5511, %v5512
        %v5514 = vshll.u32 2475754826, %v5508
        %v5515 = vshrl.u32 2131351028, %v5509
        %v5516 = vor.u32 %v5514, %v5515
        %v5517 = vshll.u32 2131351028, %v5508
        %v5518 = vshrl.u32 2102212464, %v5509
        %v5519 = vor.u32 %v5517, %v5518
        %v5520 = vshll.u32 2102212464, %v5508
        %v5521 = vshrl.u32 920167782, %v5509
        %v5522 = vor.u32 %v5520, %v5521
        %v5523 = vshll.u32 920167782, %v5508
        %v5524 = vshrl.u32 1326507024, %v5509
        %v5525 = vor.u32 %v5523, %v5524
        %vm5526 = vcmp.lt.s32.totalorder %v5507, 1
        %vm5527 = vcmp.lt.s32.totalorder %v5507, 2
        %vm5528 = vcmp.lt.s32.totalorder %v5507, 3
        %vm5529 = vcmp.lt.s32.totalorder %v5507, 4
        %v5530 = vsel %vm5526, %v5510, %v5513
        %v5531 = vsel %vm5529, %v5519, 2102212464
        %v5532 = vsel %vm5528, %v5516, %v5531
        %v5533 = vsel %vm5527, %v5530, %v5532
        %v5534 = vsel %vm5526, %v5513, %v5516
        %v5535 = vsel %vm5529, %v5522, 920167782
        %v5536 = vsel %vm5528, %v5519, %v5535
        %v5537 = vsel %vm5527, %v5534, %v5536
        %v5538 = vsel %vm5526, %v5516, %v5519
        %v5539 = vsel %vm5529, %v5525, 1326507024
        %v5540 = vsel %vm5528, %v5522, %v5539
        %v5541 = vsel %vm5527, %v5538, %v5540
        %v5542 = vshll.u32 %v5502, 8
        %v5543 = vand.u32 %v5542, 65535
        %v5544 = vshrl.u32 %v5542, 16
        %v5545 = vand.u32 %v5541, 65535
        %v5546 = vshrl.u32 %v5541, 16
        %v5547 = vmul.u32 %v5543, %v5545
        %v5548 = vmul.u32 %v5543, %v5546
        %v5549 = vmul.u32 %v5544, %v5545
        %v5550 = vmul.u32 %v5544, %v5546
        %v5551 = vshll.u32 %v5548, 16
        %v5552 = vshrl.u32 %v5548, 16
        %v5553 = vshll.u32 %v5549, 16
        %v5554 = vshrl.u32 %v5549, 16
        %vm5555 = vc.u32 %v5547, %v5551
        %v5556 = vsel %vm5555, 1, 0
        %v5557 = vadd.s32 %v5547, %v5551
        %v5558 = vadd.s32 %v5550, %v5556
        %vm5559 = vc.u32 %v5557, %v5553
        %v5560 = vsel %vm5559, 1, 0
        %v5561 = vadd.s32 %v5557, %v5553
        %v5562 = vadd.s32 %v5558, %v5560
        %v5563 = vadd.s32 %v5562, %v5552
        %v5564 = vadd.s32 %v5563, %v5554
        %v5565 = vand.u32 %v5542, 65535
        %v5566 = vshrl.u32 %v5542, 16
        %v5567 = vand.u32 %v5537, 65535
        %v5568 = vshrl.u32 %v5537, 16
        %v5569 = vmul.u32 %v5565, %v5567
        %v5570 = vmul.u32 %v5565, %v5568
        %v5571 = vmul.u32 %v5566, %v5567
        %v5572 = vmul.u32 %v5566, %v5568
        %v5573 = vshll.u32 %v5570, 16
        %v5574 = vshrl.u32 %v5570, 16
        %v5575 = vshll.u32 %v5571, 16
        %v5576 = vshrl.u32 %v5571, 16
        %vm5577 = vc.u32 %v5569, %v5573
        %v5578 = vsel %vm5577, 1, 0
        %v5579 = vadd.s32 %v5569, %v5573
        %v5580 = vadd.s32 %v5572, %v5578
        %vm5581 = vc.u32 %v5579, %v5575
        %v5582 = vsel %vm5581, 1, 0
        %v5583 = vadd.s32 %v5579, %v5575
        %v5584 = vadd.s32 %v5580, %v5582
        %v5585 = vadd.s32 %v5584, %v5574
        %v5586 = vadd.s32 %v5585, %v5576
        %v5587 = vmul.u32 %v5542, %v5533
        %v5588 = vadd.s32 %v5564, %v5583
        %vm5589 = vc.u32 %v5564, %v5583
        %v5590 = vadd.s32 %v5586, 1
        %v5591 = vsel %vm5589, %v5590, %v5586
        %v5592 = vadd.s32 %v5587, %v5591
        %v5593 = vadd.s32 %v5592, 536870912
        %v5594 = vshrl.u32 %v5593, 30
        %v5595 = vshll.u32 %v5594, 30
        %v5596 = vsub.s32 %v5592, %v5595
        %vm5597 = vcmp.lt.s32.totalorder %v5596, 0
        %v5598 = vsub.s32 0, %v5596
        %v5599 = vsel %vm5597, %v5598, %v5596
        %v5600 = vclz %v5599
        %v5601 = vsub.s32 %v5600, 2
        %vm5602 = vcmp.gt.s32.totalorder 0, %v5601
        %v5603 = vsel %vm5602, 0, %v5601
        %v5604 = vsub.s32 32, %v5603
        %v5605 = vshll.u32 %v5596, %v5603
        %v5606 = vshrl.u32 %v5588, %v5604
        %v5607 = vor.u32 %v5605, %v5606
        %v5608 = vsub.s32 4294967266, %v5603
        %v5609 = vadd.s32 %v5608, 127
        %v5610 = vshll.u32 %v5609, 23
        %v5611 = vor.u32 4788187, %v5610
        %v5612 = vand.u32 2147483647, %v5611
        %v5614 = vcvt.s32.f32 %v5607
        %v5615 = vmul.f32 %v5614, %v5612
        %v5616 = vxor.u32 %v5615, 2147483648
        %v5617 = vsel %vm5496, %v5616, %v5615
        %v5618 = vsub.s32 4, %v5594
        %v5619 = vsel %vm5496, %v5618, %v5594
        %v5620 = vsel %vm5495, %v660, %v5617
        %v5621 = vsel %vm5495, 0, %v5619
        %v5622 = vmul.f32 %v5620, %v5620
        %v5623 = vmul.f32 %v5622, -0.001358992
        %v5624 = vadd.f32 %v5623, 0.041655596
        %v5625 = vmul.f32 %v5622, %v5624
        %v5626 = vadd.f32 %v5625, -0.4999988
        %v5627 = vmul.f32 %v5622, %v5626
        %v5628 = vadd.f32 1.0, %v5627
        %v5629 = vmul.f32 %v5620, %v5620
        %v5630 = vmul.f32 %v5629, -0.00019511016
        %v5631 = vadd.f32 %v5630, 0.008332121
        %v5632 = vmul.f32 %v5629, %v5631
        %v5633 = vadd.f32 %v5632, -0.16666654
        %v5634 = vmul.f32 %v5629, %v5633
        %v5635 = vadd.f32 %v5634, 1.0
        %v5636 = vmul.f32 %v5635, %v5620
        %vm5637 = vweird.f32 %v660
        %v5638 = vadd.s32 %v5621, 3
        %v5639 = vand.u32 %v5638, 3
        %vm5640 = vcmp.lt.s32.totalorder %v5639, 2
        %vm5641 = vcmp.eq.s32.totalorder %v5639, 0
        %v5642 = vxor.u32 %v5636, 2147483648
        %v5643 = vsel %vm5641, %v5628, %v5642
        %vm5644 = vcmp.eq.s32.totalorder %v5639, 2
        %v5645 = vxor.u32 %v5628, 2147483648
        %v5646 = vsel %vm5644, %v5645, %v5636
        %v5647 = vsel %vm5640, %v5643, %v5646
        %v5648 = vsel %vm5637, nan, %v5647
        %v5649 = vld [vmem:[%s3] sm:$0xff]
        %v5650 = vld [vmem:[%s3 + $0x8] sm:$0xff]
        %v5651 = vld [vmem:[%s3 + $0x10] sm:$0xff]
        %v5652 = vld [vmem:[%s3 + $0x18] sm:$0xff]
        %v5653 = vld [vmem:[%s3 + $0x20] sm:$0xff]
        %v5654 = vld [vmem:[%s3 + $0x28] sm:$0xff]
        %v5655 = vld [vmem:[%s3 + $0x30] sm:$0xff]
        %v5656 = vld [vmem:[%s3 + $0x38] sm:$0xff]
        %v5657 = vld [vmem:[%s3 + $0x40] sm:$0xff]
        %vm5658 = vcmask 523264
        %v5660 = vsel %vm5658, %v5649, 0
        %v5663 = vsel %vm5658, %v5650, 0
        %v5666 = vsel %vm5658, %v5651, 0
        %v5669 = vsel %vm5658, %v5652, 0
        %v5672 = vsel %vm5658, %v5653, 0
        %v5675 = vsel %vm5658, %v5654, 0
        %v5678 = vsel %vm5658, %v5655, 0
        %v5681 = vsel %vm5658, %v5656, 0
        %v5684 = vsel %vm5658, %v5657, 0
        %5686 = vmatpush.msra.mxu0 0.0
        %5687 = vmatpush.msra.mxu0 0.0
        %5688 = vmatpush.msra.mxu0 0.0
        %5689 = vmatpush.msra.mxu0 0.0
        %5690 = vmatpush.msra.mxu0 0.0
        %5691 = vmatpush.msra.mxu0 0.0
        %5692 = vmatpush.msra.mxu0 0.0
        %5693 = vmatpush.msra.mxu0 0.0
        %5694 = vmatpush.msra.mxu0 %v5183
        %5695 = vmatpush.msra.mxu0 %v4563
        %5696 = vmatpush.msra.mxu0 %v3943
        %5697 = vmatpush.msra.mxu0 %v3323
        %5698 = vmatpush.msra.mxu0 %v2703
        %5699 = vmatpush.msra.mxu0 %v2083
        %5700 = vmatpush.msra.mxu0 %v1463
        %5701 = vmatpush.msra.mxu0 %v843
        %5702 = vmatmul.f32.gmra.mxu0 %v5660
        %v5703 = vpop.f32.mrf.mxu0
        %v5704 = vadd.f32 0.0, %v5703
        %5705 = vmatmul.f32.gmra.mxu0 %v5663
        %v5706 = vpop.f32.mrf.mxu0
        %v5707 = vadd.f32 0.0, %v5706
        %5708 = vmatmul.f32.gmra.mxu0 %v5666
        %v5709 = vpop.f32.mrf.mxu0
        %v5710 = vadd.f32 0.0, %v5709
        %5711 = vmatmul.f32.gmra.mxu0 %v5669
        %v5712 = vpop.f32.mrf.mxu0
        %v5713 = vadd.f32 0.0, %v5712
        %5714 = vmatmul.f32.gmra.mxu0 %v5672
        %v5715 = vpop.f32.mrf.mxu0
        %v5716 = vadd.f32 0.0, %v5715
        %5717 = vmatmul.f32.gmra.mxu0 %v5675
        %v5718 = vpop.f32.mrf.mxu0
        %v5719 = vadd.f32 0.0, %v5718
        %5720 = vmatmul.f32.gmra.mxu0 %v5678
        %v5721 = vpop.f32.mrf.mxu0
        %v5722 = vadd.f32 0.0, %v5721
        %5723 = vmatmul.f32.gmra.mxu0 %v5681
        %v5724 = vpop.f32.mrf.mxu0
        %v5725 = vadd.f32 0.0, %v5724
        %5726 = vmatmul.f32.gmra.mxu0 %v5684
        %v5727 = vpop.f32.mrf.mxu0
        %v5728 = vadd.f32 0.0, %v5727
        %5729 = vdwg.mxu0
        %5730 = vmatpush.msra.mxu0 0.0
        %5731 = vmatpush.msra.mxu0 0.0
        %5732 = vmatpush.msra.mxu0 0.0
        %5733 = vmatpush.msra.mxu0 0.0
        %5734 = vmatpush.msra.mxu0 0.0
        %5735 = vmatpush.msra.mxu0 0.0
        %5736 = vmatpush.msra.mxu0 0.0
        %5737 = vmatpush.msra.mxu0 0.0
        %5738 = vmatpush.msra.mxu0 %v5338
        %5739 = vmatpush.msra.mxu0 %v4718
        %5740 = vmatpush.msra.mxu0 %v4098
        %5741 = vmatpush.msra.mxu0 %v3478
        %5742 = vmatpush.msra.mxu0 %v2858
        %5743 = vmatpush.msra.mxu0 %v2238
        %5744 = vmatpush.msra.mxu0 %v1618
        %5745 = vmatpush.msra.mxu0 %v998
        %5746 = vmatmul.f32.gmra.mxu0 %v5660
        %v5747 = vpop.f32.mrf.mxu0
        %v5748 = vadd.f32 0.0, %v5747
        %5749 = vmatmul.f32.gmra.mxu0 %v5663
        %v5750 = vpop.f32.mrf.mxu0
        %v5751 = vadd.f32 0.0, %v5750
        %5752 = vmatmul.f32.gmra.mxu0 %v5666
        %v5753 = vpop.f32.mrf.mxu0
        %v5754 = vadd.f32 0.0, %v5753
        %5755 = vmatmul.f32.gmra.mxu0 %v5669
        %v5756 = vpop.f32.mrf.mxu0
        %v5757 = vadd.f32 0.0, %v5756
        %5758 = vmatmul.f32.gmra.mxu0 %v5672
        %v5759 = vpop.f32.mrf.mxu0
        %v5760 = vadd.f32 0.0, %v5759
        %5761 = vmatmul.f32.gmra.mxu0 %v5675
        %v5762 = vpop.f32.mrf.mxu0
        %v5763 = vadd.f32 0.0, %v5762
        %5764 = vmatmul.f32.gmra.mxu0 %v5678
        %v5765 = vpop.f32.mrf.mxu0
        %v5766 = vadd.f32 0.0, %v5765
        %5767 = vmatmul.f32.gmra.mxu0 %v5681
        %v5768 = vpop.f32.mrf.mxu0
        %v5769 = vadd.f32 0.0, %v5768
        %5770 = vmatmul.f32.gmra.mxu0 %v5684
        %v5771 = vpop.f32.mrf.mxu0
        %v5772 = vadd.f32 0.0, %v5771
        %5773 = vdwg.mxu0
        %5774 = vmatpush.msra.mxu0 0.0
        %5775 = vmatpush.msra.mxu0 0.0
        %5776 = vmatpush.msra.mxu0 0.0
        %5777 = vmatpush.msra.mxu0 0.0
        %5778 = vmatpush.msra.mxu0 0.0
        %5779 = vmatpush.msra.mxu0 0.0
        %5780 = vmatpush.msra.mxu0 0.0
        %5781 = vmatpush.msra.mxu0 0.0
        %5782 = vmatpush.msra.mxu0 %v5493
        %5783 = vmatpush.msra.mxu0 %v4873
        %5784 = vmatpush.msra.mxu0 %v4253
        %5785 = vmatpush.msra.mxu0 %v3633
        %5786 = vmatpush.msra.mxu0 %v3013
        %5787 = vmatpush.msra.mxu0 %v2393
        %5788 = vmatpush.msra.mxu0 %v1773
        %5789 = vmatpush.msra.mxu0 %v1153
        %5790 = vmatmul.f32.gmra.mxu0 %v5660
        %v5791 = vpop.f32.mrf.mxu0
        %v5792 = vadd.f32 0.0, %v5791
        %5793 = vmatmul.f32.gmra.mxu0 %v5663
        %v5794 = vpop.f32.mrf.mxu0
        %v5795 = vadd.f32 0.0, %v5794
        %5796 = vmatmul.f32.gmra.mxu0 %v5666
        %v5797 = vpop.f32.mrf.mxu0
        %v5798 = vadd.f32 0.0, %v5797
        %5799 = vmatmul.f32.gmra.mxu0 %v5669
        %v5800 = vpop.f32.mrf.mxu0
        %v5801 = vadd.f32 0.0, %v5800
        %5802 = vmatmul.f32.gmra.mxu0 %v5672
        %v5803 = vpop.f32.mrf.mxu0
        %v5804 = vadd.f32 0.0, %v5803
        %5805 = vmatmul.f32.gmra.mxu0 %v5675
        %v5806 = vpop.f32.mrf.mxu0
        %v5807 = vadd.f32 0.0, %v5806
        %5808 = vmatmul.f32.gmra.mxu0 %v5678
        %v5809 = vpop.f32.mrf.mxu0
        %v5810 = vadd.f32 0.0, %v5809
        %5811 = vmatmul.f32.gmra.mxu0 %v5681
        %v5812 = vpop.f32.mrf.mxu0
        %v5813 = vadd.f32 0.0, %v5812
        %5814 = vmatmul.f32.gmra.mxu0 %v5684
        %v5815 = vpop.f32.mrf.mxu0
        %v5816 = vadd.f32 0.0, %v5815
        %5817 = vdwg.mxu0
        %5818 = vmatpush.msra.mxu0 0.0
        %5819 = vmatpush.msra.mxu0 0.0
        %5820 = vmatpush.msra.mxu0 0.0
        %5821 = vmatpush.msra.mxu0 0.0
        %5822 = vmatpush.msra.mxu0 0.0
        %5823 = vmatpush.msra.mxu0 0.0
        %5824 = vmatpush.msra.mxu0 0.0
        %5825 = vmatpush.msra.mxu0 0.0
        %5826 = vmatpush.msra.mxu0 %v5648
        %5827 = vmatpush.msra.mxu0 %v5028
        %5828 = vmatpush.msra.mxu0 %v4408
        %5829 = vmatpush.msra.mxu0 %v3788
        %5830 = vmatpush.msra.mxu0 %v3168
        %5831 = vmatpush.msra.mxu0 %v2548
        %5832 = vmatpush.msra.mxu0 %v1928
        %5833 = vmatpush.msra.mxu0 %v1308
        %5834 = vmatmul.f32.gmra.mxu0 %v5660
        %v5835 = vpop.f32.mrf.mxu0
        %v5836 = vadd.f32 0.0, %v5835
        %5837 = vmatmul.f32.gmra.mxu0 %v5663
        %v5838 = vpop.f32.mrf.mxu0
        %v5839 = vadd.f32 0.0, %v5838
        %5840 = vmatmul.f32.gmra.mxu0 %v5666
        %v5841 = vpop.f32.mrf.mxu0
        %v5842 = vadd.f32 0.0, %v5841
        %5843 = vmatmul.f32.gmra.mxu0 %v5669
        %v5844 = vpop.f32.mrf.mxu0
        %v5845 = vadd.f32 0.0, %v5844
        %5846 = vmatmul.f32.gmra.mxu0 %v5672
        %v5847 = vpop.f32.mrf.mxu0
        %v5848 = vadd.f32 0.0, %v5847
        %5849 = vmatmul.f32.gmra.mxu0 %v5675
        %v5850 = vpop.f32.mrf.mxu0
        %v5851 = vadd.f32 0.0, %v5850
        %5852 = vmatmul.f32.gmra.mxu0 %v5678
        %v5853 = vpop.f32.mrf.mxu0
        %v5854 = vadd.f32 0.0, %v5853
        %5855 = vmatmul.f32.gmra.mxu0 %v5681
        %v5856 = vpop.f32.mrf.mxu0
        %v5857 = vadd.f32 0.0, %v5856
        %5858 = vmatmul.f32.gmra.mxu0 %v5684
        %v5859 = vpop.f32.mrf.mxu0
        %v5860 = vadd.f32 0.0, %v5859
        %5861 = vdwg.mxu0
        %v5862 = vadd.f32 %v459, %v5704
        %v5863 = vadd.f32 %v527, %v5748
        %v5864 = vadd.f32 %v595, %v5792
        %v5865 = vadd.f32 %v663, %v5836
        %v5866 = vadd.f32 %v462, %v5707
        %v5867 = vadd.f32 %v530, %v5751
        %v5868 = vadd.f32 %v598, %v5795
        %v5869 = vadd.f32 %v666, %v5839
        %v5870 = vadd.f32 %v465, %v5710
        %v5871 = vadd.f32 %v533, %v5754
        %v5872 = vadd.f32 %v601, %v5798
        %v5873 = vadd.f32 %v669, %v5842
        %v5874 = vadd.f32 %v468, %v5713
        %v5875 = vadd.f32 %v536, %v5757
        %v5876 = vadd.f32 %v604, %v5801
        %v5877 = vadd.f32 %v672, %v5845
        %v5878 = vadd.f32 %v471, %v5716
        %v5879 = vadd.f32 %v539, %v5760
        %v5880 = vadd.f32 %v607, %v5804
        %v5881 = vadd.f32 %v675, %v5848
        %v5882 = vadd.f32 %v474, %v5719
        %v5883 = vadd.f32 %v542, %v5763
        %v5884 = vadd.f32 %v610, %v5807
        %v5885 = vadd.f32 %v678, %v5851
        %v5886 = vadd.f32 %v477, %v5722
        %v5887 = vadd.f32 %v545, %v5766
        %v5888 = vadd.f32 %v613, %v5810
        %v5889 = vadd.f32 %v681, %v5854
        %v5890 = vadd.f32 %v480, %v5725
        %v5891 = vadd.f32 %v548, %v5769
        %v5892 = vadd.f32 %v616, %v5813
        %v5893 = vadd.f32 %v684, %v5857
        %v5894 = vadd.f32 %v483, %v5728
        %v5895 = vadd.f32 %v551, %v5772
        %v5896 = vadd.f32 %v619, %v5816
        %v5897 = vadd.f32 %v687, %v5860
        %v5898 = vand.u32 2147483647, %v5862
        %vm5899 = vcmp.le.f32.partialorder %v5898, 0.7853982
        %vm5900 = vcmp.lt.s32.totalorder %v5862, 0
        %v5901 = vand.u32 %v5862, 2139095040
        %v5902 = vshrl.u32 %v5901, 23
        %v5903 = vsub.s32 %v5902, 127
        %v5904 = vand.u32 2147483647, %v5862
        %v5905 = vand.u32 %v5904, 8388607
        %v5906 = vor.u32 %v5905, 8388608
        %v5907 = vsub.s32 0, %v5906
        %v5908 = vadd.s32 %v5903, 1
        %vm5909 = vcmp.gt.s32.totalorder %v5908, 0
        %v5910 = vsel %vm5909, %v5908, 0
        %v5911 = vshrl.u32 %v5910, 5
        %v5912 = vand.u32 %v5910, 31
        %v5913 = vsub.s32 32, %v5912
        %v5914 = vshrl.u32 683565275, %v5913
        %v5915 = vshll.u32 683565275, %v5912
        %v5916 = vshrl.u32 2475754826, %v5913
        %v5917 = vor.u32 %v5915, %v5916
        %v5918 = vshll.u32 2475754826, %v5912
        %v5919 = vshrl.u32 2131351028, %v5913
        %v5920 = vor.u32 %v5918, %v5919
        %v5921 = vshll.u32 2131351028, %v5912
        %v5922 = vshrl.u32 2102212464, %v5913
        %v5923 = vor.u32 %v5921, %v5922
        %v5924 = vshll.u32 2102212464, %v5912
        %v5925 = vshrl.u32 920167782, %v5913
        %v5926 = vor.u32 %v5924, %v5925
        %v5927 = vshll.u32 920167782, %v5912
        %v5928 = vshrl.u32 1326507024, %v5913
        %v5929 = vor.u32 %v5927, %v5928
        %vm5930 = vcmp.lt.s32.totalorder %v5911, 1
        %vm5931 = vcmp.lt.s32.totalorder %v5911, 2
        %vm5932 = vcmp.lt.s32.totalorder %v5911, 3
        %vm5933 = vcmp.lt.s32.totalorder %v5911, 4
        %v5934 = vsel %vm5930, %v5914, %v5917
        %v5935 = vsel %vm5933, %v5923, 2102212464
        %v5936 = vsel %vm5932, %v5920, %v5935
        %v5937 = vsel %vm5931, %v5934, %v5936
        %v5938 = vsel %vm5930, %v5917, %v5920
        %v5939 = vsel %vm5933, %v5926, 920167782
        %v5940 = vsel %vm5932, %v5923, %v5939
        %v5941 = vsel %vm5931, %v5938, %v5940
        %v5942 = vsel %vm5930, %v5920, %v5923
        %v5943 = vsel %vm5933, %v5929, 1326507024
        %v5944 = vsel %vm5932, %v5926, %v5943
        %v5945 = vsel %vm5931, %v5942, %v5944
        %v5946 = vshll.u32 %v5906, 8
        %v5947 = vand.u32 %v5946, 65535
        %v5948 = vshrl.u32 %v5946, 16
        %v5949 = vand.u32 %v5945, 65535
        %v5950 = vshrl.u32 %v5945, 16
        %v5951 = vmul.u32 %v5947, %v5949
        %v5952 = vmul.u32 %v5947, %v5950
        %v5953 = vmul.u32 %v5948, %v5949
        %v5954 = vmul.u32 %v5948, %v5950
        %v5955 = vshll.u32 %v5952, 16
        %v5956 = vshrl.u32 %v5952, 16
        %v5957 = vshll.u32 %v5953, 16
        %v5958 = vshrl.u32 %v5953, 16
        %vm5959 = vc.u32 %v5951, %v5955
        %v5960 = vsel %vm5959, 1, 0
        %v5961 = vadd.s32 %v5951, %v5955
        %v5962 = vadd.s32 %v5954, %v5960
        %vm5963 = vc.u32 %v5961, %v5957
        %v5964 = vsel %vm5963, 1, 0
        %v5965 = vadd.s32 %v5961, %v5957
        %v5966 = vadd.s32 %v5962, %v5964
        %v5967 = vadd.s32 %v5966, %v5956
        %v5968 = vadd.s32 %v5967, %v5958
        %v5969 = vand.u32 %v5946, 65535
        %v5970 = vshrl.u32 %v5946, 16
        %v5971 = vand.u32 %v5941, 65535
        %v5972 = vshrl.u32 %v5941, 16
        %v5973 = vmul.u32 %v5969, %v5971
        %v5974 = vmul.u32 %v5969, %v5972
        %v5975 = vmul.u32 %v5970, %v5971
        %v5976 = vmul.u32 %v5970, %v5972
        %v5977 = vshll.u32 %v5974, 16
        %v5978 = vshrl.u32 %v5974, 16
        %v5979 = vshll.u32 %v5975, 16
        %v5980 = vshrl.u32 %v5975, 16
        %vm5981 = vc.u32 %v5973, %v5977
        %v5982 = vsel %vm5981, 1, 0
        %v5983 = vadd.s32 %v5973, %v5977
        %v5984 = vadd.s32 %v5976, %v5982
        %vm5985 = vc.u32 %v5983, %v5979
        %v5986 = vsel %vm5985, 1, 0
        %v5987 = vadd.s32 %v5983, %v5979
        %v5988 = vadd.s32 %v5984, %v5986
        %v5989 = vadd.s32 %v5988, %v5978
        %v5990 = vadd.s32 %v5989, %v5980
        %v5991 = vmul.u32 %v5946, %v5937
        %v5992 = vadd.s32 %v5968, %v5987
        %vm5993 = vc.u32 %v5968, %v5987
        %v5994 = vadd.s32 %v5990, 1
        %v5995 = vsel %vm5993, %v5994, %v5990
        %v5996 = vadd.s32 %v5991, %v5995
        %v5997 = vadd.s32 %v5996, 536870912
        %v5998 = vshrl.u32 %v5997, 30
        %v5999 = vshll.u32 %v5998, 30
        %v6000 = vsub.s32 %v5996, %v5999
        %vm6001 = vcmp.lt.s32.totalorder %v6000, 0
        %v6002 = vsub.s32 0, %v6000
        %v6003 = vsel %vm6001, %v6002, %v6000
        %v6004 = vclz %v6003
        %v6005 = vsub.s32 %v6004, 2
        %vm6006 = vcmp.gt.s32.totalorder 0, %v6005
        %v6007 = vsel %vm6006, 0, %v6005
        %v6008 = vsub.s32 32, %v6007
        %v6009 = vshll.u32 %v6000, %v6007
        %v6010 = vshrl.u32 %v5992, %v6008
        %v6011 = vor.u32 %v6009, %v6010
        %v6012 = vsub.s32 4294967266, %v6007
        %v6013 = vadd.s32 %v6012, 127
        %v6014 = vshll.u32 %v6013, 23
        %v6015 = vor.u32 4788187, %v6014
        %v6016 = vand.u32 2147483647, %v6015
        %v6018 = vcvt.s32.f32 %v6011
        %v6019 = vmul.f32 %v6018, %v6016
        %v6020 = vxor.u32 %v6019, 2147483648
        %v6021 = vsel %vm5900, %v6020, %v6019
        %v6022 = vsub.s32 4, %v5998
        %v6023 = vsel %vm5900, %v6022, %v5998
        %v6024 = vsel %vm5899, %v5862, %v6021
        %v6025 = vsel %vm5899, 0, %v6023
        %v6026 = vmul.f32 %v6024, %v6024
        %v6027 = vmul.f32 %v6026, -0.001358992
        %v6028 = vadd.f32 %v6027, 0.041655596
        %v6029 = vmul.f32 %v6026, %v6028
        %v6030 = vadd.f32 %v6029, -0.4999988
        %v6031 = vmul.f32 %v6026, %v6030
        %v6032 = vadd.f32 1.0, %v6031
        %v6033 = vmul.f32 %v6024, %v6024
        %v6034 = vmul.f32 %v6033, -0.00019511016
        %v6035 = vadd.f32 %v6034, 0.008332121
        %v6036 = vmul.f32 %v6033, %v6035
        %v6037 = vadd.f32 %v6036, -0.16666654
        %v6038 = vmul.f32 %v6033, %v6037
        %v6039 = vadd.f32 %v6038, 1.0
        %v6040 = vmul.f32 %v6039, %v6024
        %vm6041 = vweird.f32 %v5862
        %v6042 = vadd.s32 %v6025, 3
        %v6043 = vand.u32 %v6042, 3
        %vm6044 = vcmp.lt.s32.totalorder %v6043, 2
        %vm6045 = vcmp.eq.s32.totalorder %v6043, 0
        %v6046 = vxor.u32 %v6040, 2147483648
        %v6047 = vsel %vm6045, %v6032, %v6046
        %vm6048 = vcmp.eq.s32.totalorder %v6043, 2
        %v6049 = vxor.u32 %v6032, 2147483648
        %v6050 = vsel %vm6048, %v6049, %v6040
        %v6051 = vsel %vm6044, %v6047, %v6050
        %v6052 = vsel %vm6041, nan, %v6051
        %v6053 = vand.u32 2147483647, %v5863
        %vm6054 = vcmp.le.f32.partialorder %v6053, 0.7853982
        %vm6055 = vcmp.lt.s32.totalorder %v5863, 0
        %v6056 = vand.u32 %v5863, 2139095040
        %v6057 = vshrl.u32 %v6056, 23
        %v6058 = vsub.s32 %v6057, 127
        %v6059 = vand.u32 2147483647, %v5863
        %v6060 = vand.u32 %v6059, 8388607
        %v6061 = vor.u32 %v6060, 8388608
        %v6062 = vsub.s32 0, %v6061
        %v6063 = vadd.s32 %v6058, 1
        %vm6064 = vcmp.gt.s32.totalorder %v6063, 0
        %v6065 = vsel %vm6064, %v6063, 0
        %v6066 = vshrl.u32 %v6065, 5
        %v6067 = vand.u32 %v6065, 31
        %v6068 = vsub.s32 32, %v6067
        %v6069 = vshrl.u32 683565275, %v6068
        %v6070 = vshll.u32 683565275, %v6067
        %v6071 = vshrl.u32 2475754826, %v6068
        %v6072 = vor.u32 %v6070, %v6071
        %v6073 = vshll.u32 2475754826, %v6067
        %v6074 = vshrl.u32 2131351028, %v6068
        %v6075 = vor.u32 %v6073, %v6074
        %v6076 = vshll.u32 2131351028, %v6067
        %v6077 = vshrl.u32 2102212464, %v6068
        %v6078 = vor.u32 %v6076, %v6077
        %v6079 = vshll.u32 2102212464, %v6067
        %v6080 = vshrl.u32 920167782, %v6068
        %v6081 = vor.u32 %v6079, %v6080
        %v6082 = vshll.u32 920167782, %v6067
        %v6083 = vshrl.u32 1326507024, %v6068
        %v6084 = vor.u32 %v6082, %v6083
        %vm6085 = vcmp.lt.s32.totalorder %v6066, 1
        %vm6086 = vcmp.lt.s32.totalorder %v6066, 2
        %vm6087 = vcmp.lt.s32.totalorder %v6066, 3
        %vm6088 = vcmp.lt.s32.totalorder %v6066, 4
        %v6089 = vsel %vm6085, %v6069, %v6072
        %v6090 = vsel %vm6088, %v6078, 2102212464
        %v6091 = vsel %vm6087, %v6075, %v6090
        %v6092 = vsel %vm6086, %v6089, %v6091
        %v6093 = vsel %vm6085, %v6072, %v6075
        %v6094 = vsel %vm6088, %v6081, 920167782
        %v6095 = vsel %vm6087, %v6078, %v6094
        %v6096 = vsel %vm6086, %v6093, %v6095
        %v6097 = vsel %vm6085, %v6075, %v6078
        %v6098 = vsel %vm6088, %v6084, 1326507024
        %v6099 = vsel %vm6087, %v6081, %v6098
        %v6100 = vsel %vm6086, %v6097, %v6099
        %v6101 = vshll.u32 %v6061, 8
        %v6102 = vand.u32 %v6101, 65535
        %v6103 = vshrl.u32 %v6101, 16
        %v6104 = vand.u32 %v6100, 65535
        %v6105 = vshrl.u32 %v6100, 16
        %v6106 = vmul.u32 %v6102, %v6104
        %v6107 = vmul.u32 %v6102, %v6105
        %v6108 = vmul.u32 %v6103, %v6104
        %v6109 = vmul.u32 %v6103, %v6105
        %v6110 = vshll.u32 %v6107, 16
        %v6111 = vshrl.u32 %v6107, 16
        %v6112 = vshll.u32 %v6108, 16
        %v6113 = vshrl.u32 %v6108, 16
        %vm6114 = vc.u32 %v6106, %v6110
        %v6115 = vsel %vm6114, 1, 0
        %v6116 = vadd.s32 %v6106, %v6110
        %v6117 = vadd.s32 %v6109, %v6115
        %vm6118 = vc.u32 %v6116, %v6112
        %v6119 = vsel %vm6118, 1, 0
        %v6120 = vadd.s32 %v6116, %v6112
        %v6121 = vadd.s32 %v6117, %v6119
        %v6122 = vadd.s32 %v6121, %v6111
        %v6123 = vadd.s32 %v6122, %v6113
        %v6124 = vand.u32 %v6101, 65535
        %v6125 = vshrl.u32 %v6101, 16
        %v6126 = vand.u32 %v6096, 65535
        %v6127 = vshrl.u32 %v6096, 16
        %v6128 = vmul.u32 %v6124, %v6126
        %v6129 = vmul.u32 %v6124, %v6127
        %v6130 = vmul.u32 %v6125, %v6126
        %v6131 = vmul.u32 %v6125, %v6127
        %v6132 = vshll.u32 %v6129, 16
        %v6133 = vshrl.u32 %v6129, 16
        %v6134 = vshll.u32 %v6130, 16
        %v6135 = vshrl.u32 %v6130, 16
        %vm6136 = vc.u32 %v6128, %v6132
        %v6137 = vsel %vm6136, 1, 0
        %v6138 = vadd.s32 %v6128, %v6132
        %v6139 = vadd.s32 %v6131, %v6137
        %vm6140 = vc.u32 %v6138, %v6134
        %v6141 = vsel %vm6140, 1, 0
        %v6142 = vadd.s32 %v6138, %v6134
        %v6143 = vadd.s32 %v6139, %v6141
        %v6144 = vadd.s32 %v6143, %v6133
        %v6145 = vadd.s32 %v6144, %v6135
        %v6146 = vmul.u32 %v6101, %v6092
        %v6147 = vadd.s32 %v6123, %v6142
        %vm6148 = vc.u32 %v6123, %v6142
        %v6149 = vadd.s32 %v6145, 1
        %v6150 = vsel %vm6148, %v6149, %v6145
        %v6151 = vadd.s32 %v6146, %v6150
        %v6152 = vadd.s32 %v6151, 536870912
        %v6153 = vshrl.u32 %v6152, 30
        %v6154 = vshll.u32 %v6153, 30
        %v6155 = vsub.s32 %v6151, %v6154
        %vm6156 = vcmp.lt.s32.totalorder %v6155, 0
        %v6157 = vsub.s32 0, %v6155
        %v6158 = vsel %vm6156, %v6157, %v6155
        %v6159 = vclz %v6158
        %v6160 = vsub.s32 %v6159, 2
        %vm6161 = vcmp.gt.s32.totalorder 0, %v6160
        %v6162 = vsel %vm6161, 0, %v6160
        %v6163 = vsub.s32 32, %v6162
        %v6164 = vshll.u32 %v6155, %v6162
        %v6165 = vshrl.u32 %v6147, %v6163
        %v6166 = vor.u32 %v6164, %v6165
        %v6167 = vsub.s32 4294967266, %v6162
        %v6168 = vadd.s32 %v6167, 127
        %v6169 = vshll.u32 %v6168, 23
        %v6170 = vor.u32 4788187, %v6169
        %v6171 = vand.u32 2147483647, %v6170
        %v6173 = vcvt.s32.f32 %v6166
        %v6174 = vmul.f32 %v6173, %v6171
        %v6175 = vxor.u32 %v6174, 2147483648
        %v6176 = vsel %vm6055, %v6175, %v6174
        %v6177 = vsub.s32 4, %v6153
        %v6178 = vsel %vm6055, %v6177, %v6153
        %v6179 = vsel %vm6054, %v5863, %v6176
        %v6180 = vsel %vm6054, 0, %v6178
        %v6181 = vmul.f32 %v6179, %v6179
        %v6182 = vmul.f32 %v6181, -0.001358992
        %v6183 = vadd.f32 %v6182, 0.041655596
        %v6184 = vmul.f32 %v6181, %v6183
        %v6185 = vadd.f32 %v6184, -0.4999988
        %v6186 = vmul.f32 %v6181, %v6185
        %v6187 = vadd.f32 1.0, %v6186
        %v6188 = vmul.f32 %v6179, %v6179
        %v6189 = vmul.f32 %v6188, -0.00019511016
        %v6190 = vadd.f32 %v6189, 0.008332121
        %v6191 = vmul.f32 %v6188, %v6190
        %v6192 = vadd.f32 %v6191, -0.16666654
        %v6193 = vmul.f32 %v6188, %v6192
        %v6194 = vadd.f32 %v6193, 1.0
        %v6195 = vmul.f32 %v6194, %v6179
        %vm6196 = vweird.f32 %v5863
        %v6197 = vadd.s32 %v6180, 3
        %v6198 = vand.u32 %v6197, 3
        %vm6199 = vcmp.lt.s32.totalorder %v6198, 2
        %vm6200 = vcmp.eq.s32.totalorder %v6198, 0
        %v6201 = vxor.u32 %v6195, 2147483648
        %v6202 = vsel %vm6200, %v6187, %v6201
        %vm6203 = vcmp.eq.s32.totalorder %v6198, 2
        %v6204 = vxor.u32 %v6187, 2147483648
        %v6205 = vsel %vm6203, %v6204, %v6195
        %v6206 = vsel %vm6199, %v6202, %v6205
        %v6207 = vsel %vm6196, nan, %v6206
        %v6208 = vand.u32 2147483647, %v5864
        %vm6209 = vcmp.le.f32.partialorder %v6208, 0.7853982
        %vm6210 = vcmp.lt.s32.totalorder %v5864, 0
        %v6211 = vand.u32 %v5864, 2139095040
        %v6212 = vshrl.u32 %v6211, 23
        %v6213 = vsub.s32 %v6212, 127
        %v6214 = vand.u32 2147483647, %v5864
        %v6215 = vand.u32 %v6214, 8388607
        %v6216 = vor.u32 %v6215, 8388608
        %v6217 = vsub.s32 0, %v6216
        %v6218 = vadd.s32 %v6213, 1
        %vm6219 = vcmp.gt.s32.totalorder %v6218, 0
        %v6220 = vsel %vm6219, %v6218, 0
        %v6221 = vshrl.u32 %v6220, 5
        %v6222 = vand.u32 %v6220, 31
        %v6223 = vsub.s32 32, %v6222
        %v6224 = vshrl.u32 683565275, %v6223
        %v6225 = vshll.u32 683565275, %v6222
        %v6226 = vshrl.u32 2475754826, %v6223
        %v6227 = vor.u32 %v6225, %v6226
        %v6228 = vshll.u32 2475754826, %v6222
        %v6229 = vshrl.u32 2131351028, %v6223
        %v6230 = vor.u32 %v6228, %v6229
        %v6231 = vshll.u32 2131351028, %v6222
        %v6232 = vshrl.u32 2102212464, %v6223
        %v6233 = vor.u32 %v6231, %v6232
        %v6234 = vshll.u32 2102212464, %v6222
        %v6235 = vshrl.u32 920167782, %v6223
        %v6236 = vor.u32 %v6234, %v6235
        %v6237 = vshll.u32 920167782, %v6222
        %v6238 = vshrl.u32 1326507024, %v6223
        %v6239 = vor.u32 %v6237, %v6238
        %vm6240 = vcmp.lt.s32.totalorder %v6221, 1
        %vm6241 = vcmp.lt.s32.totalorder %v6221, 2
        %vm6242 = vcmp.lt.s32.totalorder %v6221, 3
        %vm6243 = vcmp.lt.s32.totalorder %v6221, 4
        %v6244 = vsel %vm6240, %v6224, %v6227
        %v6245 = vsel %vm6243, %v6233, 2102212464
        %v6246 = vsel %vm6242, %v6230, %v6245
        %v6247 = vsel %vm6241, %v6244, %v6246
        %v6248 = vsel %vm6240, %v6227, %v6230
        %v6249 = vsel %vm6243, %v6236, 920167782
        %v6250 = vsel %vm6242, %v6233, %v6249
        %v6251 = vsel %vm6241, %v6248, %v6250
        %v6252 = vsel %vm6240, %v6230, %v6233
        %v6253 = vsel %vm6243, %v6239, 1326507024
        %v6254 = vsel %vm6242, %v6236, %v6253
        %v6255 = vsel %vm6241, %v6252, %v6254
        %v6256 = vshll.u32 %v6216, 8
        %v6257 = vand.u32 %v6256, 65535
        %v6258 = vshrl.u32 %v6256, 16
        %v6259 = vand.u32 %v6255, 65535
        %v6260 = vshrl.u32 %v6255, 16
        %v6261 = vmul.u32 %v6257, %v6259
        %v6262 = vmul.u32 %v6257, %v6260
        %v6263 = vmul.u32 %v6258, %v6259
        %v6264 = vmul.u32 %v6258, %v6260
        %v6265 = vshll.u32 %v6262, 16
        %v6266 = vshrl.u32 %v6262, 16
        %v6267 = vshll.u32 %v6263, 16
        %v6268 = vshrl.u32 %v6263, 16
        %vm6269 = vc.u32 %v6261, %v6265
        %v6270 = vsel %vm6269, 1, 0
        %v6271 = vadd.s32 %v6261, %v6265
        %v6272 = vadd.s32 %v6264, %v6270
        %vm6273 = vc.u32 %v6271, %v6267
        %v6274 = vsel %vm6273, 1, 0
        %v6275 = vadd.s32 %v6271, %v6267
        %v6276 = vadd.s32 %v6272, %v6274
        %v6277 = vadd.s32 %v6276, %v6266
        %v6278 = vadd.s32 %v6277, %v6268
        %v6279 = vand.u32 %v6256, 65535
        %v6280 = vshrl.u32 %v6256, 16
        %v6281 = vand.u32 %v6251, 65535
        %v6282 = vshrl.u32 %v6251, 16
        %v6283 = vmul.u32 %v6279, %v6281
        %v6284 = vmul.u32 %v6279, %v6282
        %v6285 = vmul.u32 %v6280, %v6281
        %v6286 = vmul.u32 %v6280, %v6282
        %v6287 = vshll.u32 %v6284, 16
        %v6288 = vshrl.u32 %v6284, 16
        %v6289 = vshll.u32 %v6285, 16
        %v6290 = vshrl.u32 %v6285, 16
        %vm6291 = vc.u32 %v6283, %v6287
        %v6292 = vsel %vm6291, 1, 0
        %v6293 = vadd.s32 %v6283, %v6287
        %v6294 = vadd.s32 %v6286, %v6292
        %vm6295 = vc.u32 %v6293, %v6289
        %v6296 = vsel %vm6295, 1, 0
        %v6297 = vadd.s32 %v6293, %v6289
        %v6298 = vadd.s32 %v6294, %v6296
        %v6299 = vadd.s32 %v6298, %v6288
        %v6300 = vadd.s32 %v6299, %v6290
        %v6301 = vmul.u32 %v6256, %v6247
        %v6302 = vadd.s32 %v6278, %v6297
        %vm6303 = vc.u32 %v6278, %v6297
        %v6304 = vadd.s32 %v6300, 1
        %v6305 = vsel %vm6303, %v6304, %v6300
        %v6306 = vadd.s32 %v6301, %v6305
        %v6307 = vadd.s32 %v6306, 536870912
        %v6308 = vshrl.u32 %v6307, 30
        %v6309 = vshll.u32 %v6308, 30
        %v6310 = vsub.s32 %v6306, %v6309
        %vm6311 = vcmp.lt.s32.totalorder %v6310, 0
        %v6312 = vsub.s32 0, %v6310
        %v6313 = vsel %vm6311, %v6312, %v6310
        %v6314 = vclz %v6313
        %v6315 = vsub.s32 %v6314, 2
        %vm6316 = vcmp.gt.s32.totalorder 0, %v6315
        %v6317 = vsel %vm6316, 0, %v6315
        %v6318 = vsub.s32 32, %v6317
        %v6319 = vshll.u32 %v6310, %v6317
        %v6320 = vshrl.u32 %v6302, %v6318
        %v6321 = vor.u32 %v6319, %v6320
        %v6322 = vsub.s32 4294967266, %v6317
        %v6323 = vadd.s32 %v6322, 127
        %v6324 = vshll.u32 %v6323, 23
        %v6325 = vor.u32 4788187, %v6324
        %v6326 = vand.u32 2147483647, %v6325
        %v6328 = vcvt.s32.f32 %v6321
        %v6329 = vmul.f32 %v6328, %v6326
        %v6330 = vxor.u32 %v6329, 2147483648
        %v6331 = vsel %vm6210, %v6330, %v6329
        %v6332 = vsub.s32 4, %v6308
        %v6333 = vsel %vm6210, %v6332, %v6308
        %v6334 = vsel %vm6209, %v5864, %v6331
        %v6335 = vsel %vm6209, 0, %v6333
        %v6336 = vmul.f32 %v6334, %v6334
        %v6337 = vmul.f32 %v6336, -0.001358992
        %v6338 = vadd.f32 %v6337, 0.041655596
        %v6339 = vmul.f32 %v6336, %v6338
        %v6340 = vadd.f32 %v6339, -0.4999988
        %v6341 = vmul.f32 %v6336, %v6340
        %v6342 = vadd.f32 1.0, %v6341
        %v6343 = vmul.f32 %v6334, %v6334
        %v6344 = vmul.f32 %v6343, -0.00019511016
        %v6345 = vadd.f32 %v6344, 0.008332121
        %v6346 = vmul.f32 %v6343, %v6345
        %v6347 = vadd.f32 %v6346, -0.16666654
        %v6348 = vmul.f32 %v6343, %v6347
        %v6349 = vadd.f32 %v6348, 1.0
        %v6350 = vmul.f32 %v6349, %v6334
        %vm6351 = vweird.f32 %v5864
        %v6352 = vadd.s32 %v6335, 3
        %v6353 = vand.u32 %v6352, 3
        %vm6354 = vcmp.lt.s32.totalorder %v6353, 2
        %vm6355 = vcmp.eq.s32.totalorder %v6353, 0
        %v6356 = vxor.u32 %v6350, 2147483648
        %v6357 = vsel %vm6355, %v6342, %v6356
        %vm6358 = vcmp.eq.s32.totalorder %v6353, 2
        %v6359 = vxor.u32 %v6342, 2147483648
        %v6360 = vsel %vm6358, %v6359, %v6350
        %v6361 = vsel %vm6354, %v6357, %v6360
        %v6362 = vsel %vm6351, nan, %v6361
        %v6363 = vand.u32 2147483647, %v5865
        %vm6364 = vcmp.le.f32.partialorder %v6363, 0.7853982
        %vm6365 = vcmp.lt.s32.totalorder %v5865, 0
        %v6366 = vand.u32 %v5865, 2139095040
        %v6367 = vshrl.u32 %v6366, 23
        %v6368 = vsub.s32 %v6367, 127
        %v6369 = vand.u32 2147483647, %v5865
        %v6370 = vand.u32 %v6369, 8388607
        %v6371 = vor.u32 %v6370, 8388608
        %v6372 = vsub.s32 0, %v6371
        %v6373 = vadd.s32 %v6368, 1
        %vm6374 = vcmp.gt.s32.totalorder %v6373, 0
        %v6375 = vsel %vm6374, %v6373, 0
        %v6376 = vshrl.u32 %v6375, 5
        %v6377 = vand.u32 %v6375, 31
        %v6378 = vsub.s32 32, %v6377
        %v6379 = vshrl.u32 683565275, %v6378
        %v6380 = vshll.u32 683565275, %v6377
        %v6381 = vshrl.u32 2475754826, %v6378
        %v6382 = vor.u32 %v6380, %v6381
        %v6383 = vshll.u32 2475754826, %v6377
        %v6384 = vshrl.u32 2131351028, %v6378
        %v6385 = vor.u32 %v6383, %v6384
        %v6386 = vshll.u32 2131351028, %v6377
        %v6387 = vshrl.u32 2102212464, %v6378
        %v6388 = vor.u32 %v6386, %v6387
        %v6389 = vshll.u32 2102212464, %v6377
        %v6390 = vshrl.u32 920167782, %v6378
        %v6391 = vor.u32 %v6389, %v6390
        %v6392 = vshll.u32 920167782, %v6377
        %v6393 = vshrl.u32 1326507024, %v6378
        %v6394 = vor.u32 %v6392, %v6393
        %vm6395 = vcmp.lt.s32.totalorder %v6376, 1
        %vm6396 = vcmp.lt.s32.totalorder %v6376, 2
        %vm6397 = vcmp.lt.s32.totalorder %v6376, 3
        %vm6398 = vcmp.lt.s32.totalorder %v6376, 4
        %v6399 = vsel %vm6395, %v6379, %v6382
        %v6400 = vsel %vm6398, %v6388, 2102212464
        %v6401 = vsel %vm6397, %v6385, %v6400
        %v6402 = vsel %vm6396, %v6399, %v6401
        %v6403 = vsel %vm6395, %v6382, %v6385
        %v6404 = vsel %vm6398, %v6391, 920167782
        %v6405 = vsel %vm6397, %v6388, %v6404
        %v6406 = vsel %vm6396, %v6403, %v6405
        %v6407 = vsel %vm6395, %v6385, %v6388
        %v6408 = vsel %vm6398, %v6394, 1326507024
        %v6409 = vsel %vm6397, %v6391, %v6408
        %v6410 = vsel %vm6396, %v6407, %v6409
        %v6411 = vshll.u32 %v6371, 8
        %v6412 = vand.u32 %v6411, 65535
        %v6413 = vshrl.u32 %v6411, 16
        %v6414 = vand.u32 %v6410, 65535
        %v6415 = vshrl.u32 %v6410, 16
        %v6416 = vmul.u32 %v6412, %v6414
        %v6417 = vmul.u32 %v6412, %v6415
        %v6418 = vmul.u32 %v6413, %v6414
        %v6419 = vmul.u32 %v6413, %v6415
        %v6420 = vshll.u32 %v6417, 16
        %v6421 = vshrl.u32 %v6417, 16
        %v6422 = vshll.u32 %v6418, 16
        %v6423 = vshrl.u32 %v6418, 16
        %vm6424 = vc.u32 %v6416, %v6420
        %v6425 = vsel %vm6424, 1, 0
        %v6426 = vadd.s32 %v6416, %v6420
        %v6427 = vadd.s32 %v6419, %v6425
        %vm6428 = vc.u32 %v6426, %v6422
        %v6429 = vsel %vm6428, 1, 0
        %v6430 = vadd.s32 %v6426, %v6422
        %v6431 = vadd.s32 %v6427, %v6429
        %v6432 = vadd.s32 %v6431, %v6421
        %v6433 = vadd.s32 %v6432, %v6423
        %v6434 = vand.u32 %v6411, 65535
        %v6435 = vshrl.u32 %v6411, 16
        %v6436 = vand.u32 %v6406, 65535
        %v6437 = vshrl.u32 %v6406, 16
        %v6438 = vmul.u32 %v6434, %v6436
        %v6439 = vmul.u32 %v6434, %v6437
        %v6440 = vmul.u32 %v6435, %v6436
        %v6441 = vmul.u32 %v6435, %v6437
        %v6442 = vshll.u32 %v6439, 16
        %v6443 = vshrl.u32 %v6439, 16
        %v6444 = vshll.u32 %v6440, 16
        %v6445 = vshrl.u32 %v6440, 16
        %vm6446 = vc.u32 %v6438, %v6442
        %v6447 = vsel %vm6446, 1, 0
        %v6448 = vadd.s32 %v6438, %v6442
        %v6449 = vadd.s32 %v6441, %v6447
        %vm6450 = vc.u32 %v6448, %v6444
        %v6451 = vsel %vm6450, 1, 0
        %v6452 = vadd.s32 %v6448, %v6444
        %v6453 = vadd.s32 %v6449, %v6451
        %v6454 = vadd.s32 %v6453, %v6443
        %v6455 = vadd.s32 %v6454, %v6445
        %v6456 = vmul.u32 %v6411, %v6402
        %v6457 = vadd.s32 %v6433, %v6452
        %vm6458 = vc.u32 %v6433, %v6452
        %v6459 = vadd.s32 %v6455, 1
        %v6460 = vsel %vm6458, %v6459, %v6455
        %v6461 = vadd.s32 %v6456, %v6460
        %v6462 = vadd.s32 %v6461, 536870912
        %v6463 = vshrl.u32 %v6462, 30
        %v6464 = vshll.u32 %v6463, 30
        %v6465 = vsub.s32 %v6461, %v6464
        %vm6466 = vcmp.lt.s32.totalorder %v6465, 0
        %v6467 = vsub.s32 0, %v6465
        %v6468 = vsel %vm6466, %v6467, %v6465
        %v6469 = vclz %v6468
        %v6470 = vsub.s32 %v6469, 2
        %vm6471 = vcmp.gt.s32.totalorder 0, %v6470
        %v6472 = vsel %vm6471, 0, %v6470
        %v6473 = vsub.s32 32, %v6472
        %v6474 = vshll.u32 %v6465, %v6472
        %v6475 = vshrl.u32 %v6457, %v6473
        %v6476 = vor.u32 %v6474, %v6475
        %v6477 = vsub.s32 4294967266, %v6472
        %v6478 = vadd.s32 %v6477, 127
        %v6479 = vshll.u32 %v6478, 23
        %v6480 = vor.u32 4788187, %v6479
        %v6481 = vand.u32 2147483647, %v6480
        %v6483 = vcvt.s32.f32 %v6476
        %v6484 = vmul.f32 %v6483, %v6481
        %v6485 = vxor.u32 %v6484, 2147483648
        %v6486 = vsel %vm6365, %v6485, %v6484
        %v6487 = vsub.s32 4, %v6463
        %v6488 = vsel %vm6365, %v6487, %v6463
        %v6489 = vsel %vm6364, %v5865, %v6486
        %v6490 = vsel %vm6364, 0, %v6488
        %v6491 = vmul.f32 %v6489, %v6489
        %v6492 = vmul.f32 %v6491, -0.001358992
        %v6493 = vadd.f32 %v6492, 0.041655596
        %v6494 = vmul.f32 %v6491, %v6493
        %v6495 = vadd.f32 %v6494, -0.4999988
        %v6496 = vmul.f32 %v6491, %v6495
        %v6497 = vadd.f32 1.0, %v6496
        %v6498 = vmul.f32 %v6489, %v6489
        %v6499 = vmul.f32 %v6498, -0.00019511016
        %v6500 = vadd.f32 %v6499, 0.008332121
        %v6501 = vmul.f32 %v6498, %v6500
        %v6502 = vadd.f32 %v6501, -0.16666654
        %v6503 = vmul.f32 %v6498, %v6502
        %v6504 = vadd.f32 %v6503, 1.0
        %v6505 = vmul.f32 %v6504, %v6489
        %vm6506 = vweird.f32 %v5865
        %v6507 = vadd.s32 %v6490, 3
        %v6508 = vand.u32 %v6507, 3
        %vm6509 = vcmp.lt.s32.totalorder %v6508, 2
        %vm6510 = vcmp.eq.s32.totalorder %v6508, 0
        %v6511 = vxor.u32 %v6505, 2147483648
        %v6512 = vsel %vm6510, %v6497, %v6511
        %vm6513 = vcmp.eq.s32.totalorder %v6508, 2
        %v6514 = vxor.u32 %v6497, 2147483648
        %v6515 = vsel %vm6513, %v6514, %v6505
        %v6516 = vsel %vm6509, %v6512, %v6515
        %v6517 = vsel %vm6506, nan, %v6516
        %v6518 = vand.u32 2147483647, %v5866
        %vm6519 = vcmp.le.f32.partialorder %v6518, 0.7853982
        %vm6520 = vcmp.lt.s32.totalorder %v5866, 0
        %v6521 = vand.u32 %v5866, 2139095040
        %v6522 = vshrl.u32 %v6521, 23
        %v6523 = vsub.s32 %v6522, 127
        %v6524 = vand.u32 2147483647, %v5866
        %v6525 = vand.u32 %v6524, 8388607
        %v6526 = vor.u32 %v6525, 8388608
        %v6527 = vsub.s32 0, %v6526
        %v6528 = vadd.s32 %v6523, 1
        %vm6529 = vcmp.gt.s32.totalorder %v6528, 0
        %v6530 = vsel %vm6529, %v6528, 0
        %v6531 = vshrl.u32 %v6530, 5
        %v6532 = vand.u32 %v6530, 31
        %v6533 = vsub.s32 32, %v6532
        %v6534 = vshrl.u32 683565275, %v6533
        %v6535 = vshll.u32 683565275, %v6532
        %v6536 = vshrl.u32 2475754826, %v6533
        %v6537 = vor.u32 %v6535, %v6536
        %v6538 = vshll.u32 2475754826, %v6532
        %v6539 = vshrl.u32 2131351028, %v6533
        %v6540 = vor.u32 %v6538, %v6539
        %v6541 = vshll.u32 2131351028, %v6532
        %v6542 = vshrl.u32 2102212464, %v6533
        %v6543 = vor.u32 %v6541, %v6542
        %v6544 = vshll.u32 2102212464, %v6532
        %v6545 = vshrl.u32 920167782, %v6533
        %v6546 = vor.u32 %v6544, %v6545
        %v6547 = vshll.u32 920167782, %v6532
        %v6548 = vshrl.u32 1326507024, %v6533
        %v6549 = vor.u32 %v6547, %v6548
        %vm6550 = vcmp.lt.s32.totalorder %v6531, 1
        %vm6551 = vcmp.lt.s32.totalorder %v6531, 2
        %vm6552 = vcmp.lt.s32.totalorder %v6531, 3
        %vm6553 = vcmp.lt.s32.totalorder %v6531, 4
        %v6554 = vsel %vm6550, %v6534, %v6537
        %v6555 = vsel %vm6553, %v6543, 2102212464
        %v6556 = vsel %vm6552, %v6540, %v6555
        %v6557 = vsel %vm6551, %v6554, %v6556
        %v6558 = vsel %vm6550, %v6537, %v6540
        %v6559 = vsel %vm6553, %v6546, 920167782
        %v6560 = vsel %vm6552, %v6543, %v6559
        %v6561 = vsel %vm6551, %v6558, %v6560
        %v6562 = vsel %vm6550, %v6540, %v6543
        %v6563 = vsel %vm6553, %v6549, 1326507024
        %v6564 = vsel %vm6552, %v6546, %v6563
        %v6565 = vsel %vm6551, %v6562, %v6564
        %v6566 = vshll.u32 %v6526, 8
        %v6567 = vand.u32 %v6566, 65535
        %v6568 = vshrl.u32 %v6566, 16
        %v6569 = vand.u32 %v6565, 65535
        %v6570 = vshrl.u32 %v6565, 16
        %v6571 = vmul.u32 %v6567, %v6569
        %v6572 = vmul.u32 %v6567, %v6570
        %v6573 = vmul.u32 %v6568, %v6569
        %v6574 = vmul.u32 %v6568, %v6570
        %v6575 = vshll.u32 %v6572, 16
        %v6576 = vshrl.u32 %v6572, 16
        %v6577 = vshll.u32 %v6573, 16
        %v6578 = vshrl.u32 %v6573, 16
        %vm6579 = vc.u32 %v6571, %v6575
        %v6580 = vsel %vm6579, 1, 0
        %v6581 = vadd.s32 %v6571, %v6575
        %v6582 = vadd.s32 %v6574, %v6580
        %vm6583 = vc.u32 %v6581, %v6577
        %v6584 = vsel %vm6583, 1, 0
        %v6585 = vadd.s32 %v6581, %v6577
        %v6586 = vadd.s32 %v6582, %v6584
        %v6587 = vadd.s32 %v6586, %v6576
        %v6588 = vadd.s32 %v6587, %v6578
        %v6589 = vand.u32 %v6566, 65535
        %v6590 = vshrl.u32 %v6566, 16
        %v6591 = vand.u32 %v6561, 65535
        %v6592 = vshrl.u32 %v6561, 16
        %v6593 = vmul.u32 %v6589, %v6591
        %v6594 = vmul.u32 %v6589, %v6592
        %v6595 = vmul.u32 %v6590, %v6591
        %v6596 = vmul.u32 %v6590, %v6592
        %v6597 = vshll.u32 %v6594, 16
        %v6598 = vshrl.u32 %v6594, 16
        %v6599 = vshll.u32 %v6595, 16
        %v6600 = vshrl.u32 %v6595, 16
        %vm6601 = vc.u32 %v6593, %v6597
        %v6602 = vsel %vm6601, 1, 0
        %v6603 = vadd.s32 %v6593, %v6597
        %v6604 = vadd.s32 %v6596, %v6602
        %vm6605 = vc.u32 %v6603, %v6599
        %v6606 = vsel %vm6605, 1, 0
        %v6607 = vadd.s32 %v6603, %v6599
        %v6608 = vadd.s32 %v6604, %v6606
        %v6609 = vadd.s32 %v6608, %v6598
        %v6610 = vadd.s32 %v6609, %v6600
        %v6611 = vmul.u32 %v6566, %v6557
        %v6612 = vadd.s32 %v6588, %v6607
        %vm6613 = vc.u32 %v6588, %v6607
        %v6614 = vadd.s32 %v6610, 1
        %v6615 = vsel %vm6613, %v6614, %v6610
        %v6616 = vadd.s32 %v6611, %v6615
        %v6617 = vadd.s32 %v6616, 536870912
        %v6618 = vshrl.u32 %v6617, 30
        %v6619 = vshll.u32 %v6618, 30
        %v6620 = vsub.s32 %v6616, %v6619
        %vm6621 = vcmp.lt.s32.totalorder %v6620, 0
        %v6622 = vsub.s32 0, %v6620
        %v6623 = vsel %vm6621, %v6622, %v6620
        %v6624 = vclz %v6623
        %v6625 = vsub.s32 %v6624, 2
        %vm6626 = vcmp.gt.s32.totalorder 0, %v6625
        %v6627 = vsel %vm6626, 0, %v6625
        %v6628 = vsub.s32 32, %v6627
        %v6629 = vshll.u32 %v6620, %v6627
        %v6630 = vshrl.u32 %v6612, %v6628
        %v6631 = vor.u32 %v6629, %v6630
        %v6632 = vsub.s32 4294967266, %v6627
        %v6633 = vadd.s32 %v6632, 127
        %v6634 = vshll.u32 %v6633, 23
        %v6635 = vor.u32 4788187, %v6634
        %v6636 = vand.u32 2147483647, %v6635
        %v6638 = vcvt.s32.f32 %v6631
        %v6639 = vmul.f32 %v6638, %v6636
        %v6640 = vxor.u32 %v6639, 2147483648
        %v6641 = vsel %vm6520, %v6640, %v6639
        %v6642 = vsub.s32 4, %v6618
        %v6643 = vsel %vm6520, %v6642, %v6618
        %v6644 = vsel %vm6519, %v5866, %v6641
        %v6645 = vsel %vm6519, 0, %v6643
        %v6646 = vmul.f32 %v6644, %v6644
        %v6647 = vmul.f32 %v6646, -0.001358992
        %v6648 = vadd.f32 %v6647, 0.041655596
        %v6649 = vmul.f32 %v6646, %v6648
        %v6650 = vadd.f32 %v6649, -0.4999988
        %v6651 = vmul.f32 %v6646, %v6650
        %v6652 = vadd.f32 1.0, %v6651
        %v6653 = vmul.f32 %v6644, %v6644
        %v6654 = vmul.f32 %v6653, -0.00019511016
        %v6655 = vadd.f32 %v6654, 0.008332121
        %v6656 = vmul.f32 %v6653, %v6655
        %v6657 = vadd.f32 %v6656, -0.16666654
        %v6658 = vmul.f32 %v6653, %v6657
        %v6659 = vadd.f32 %v6658, 1.0
        %v6660 = vmul.f32 %v6659, %v6644
        %vm6661 = vweird.f32 %v5866
        %v6662 = vadd.s32 %v6645, 3
        %v6663 = vand.u32 %v6662, 3
        %vm6664 = vcmp.lt.s32.totalorder %v6663, 2
        %vm6665 = vcmp.eq.s32.totalorder %v6663, 0
        %v6666 = vxor.u32 %v6660, 2147483648
        %v6667 = vsel %vm6665, %v6652, %v6666
        %vm6668 = vcmp.eq.s32.totalorder %v6663, 2
        %v6669 = vxor.u32 %v6652, 2147483648
        %v6670 = vsel %vm6668, %v6669, %v6660
        %v6671 = vsel %vm6664, %v6667, %v6670
        %v6672 = vsel %vm6661, nan, %v6671
        %v6673 = vand.u32 2147483647, %v5867
        %vm6674 = vcmp.le.f32.partialorder %v6673, 0.7853982
        %vm6675 = vcmp.lt.s32.totalorder %v5867, 0
        %v6676 = vand.u32 %v5867, 2139095040
        %v6677 = vshrl.u32 %v6676, 23
        %v6678 = vsub.s32 %v6677, 127
        %v6679 = vand.u32 2147483647, %v5867
        %v6680 = vand.u32 %v6679, 8388607
        %v6681 = vor.u32 %v6680, 8388608
        %v6682 = vsub.s32 0, %v6681
        %v6683 = vadd.s32 %v6678, 1
        %vm6684 = vcmp.gt.s32.totalorder %v6683, 0
        %v6685 = vsel %vm6684, %v6683, 0
        %v6686 = vshrl.u32 %v6685, 5
        %v6687 = vand.u32 %v6685, 31
        %v6688 = vsub.s32 32, %v6687
        %v6689 = vshrl.u32 683565275, %v6688
        %v6690 = vshll.u32 683565275, %v6687
        %v6691 = vshrl.u32 2475754826, %v6688
        %v6692 = vor.u32 %v6690, %v6691
        %v6693 = vshll.u32 2475754826, %v6687
        %v6694 = vshrl.u32 2131351028, %v6688
        %v6695 = vor.u32 %v6693, %v6694
        %v6696 = vshll.u32 2131351028, %v6687
        %v6697 = vshrl.u32 2102212464, %v6688
        %v6698 = vor.u32 %v6696, %v6697
        %v6699 = vshll.u32 2102212464, %v6687
        %v6700 = vshrl.u32 920167782, %v6688
        %v6701 = vor.u32 %v6699, %v6700
        %v6702 = vshll.u32 920167782, %v6687
        %v6703 = vshrl.u32 1326507024, %v6688
        %v6704 = vor.u32 %v6702, %v6703
        %vm6705 = vcmp.lt.s32.totalorder %v6686, 1
        %vm6706 = vcmp.lt.s32.totalorder %v6686, 2
        %vm6707 = vcmp.lt.s32.totalorder %v6686, 3
        %vm6708 = vcmp.lt.s32.totalorder %v6686, 4
        %v6709 = vsel %vm6705, %v6689, %v6692
        %v6710 = vsel %vm6708, %v6698, 2102212464
        %v6711 = vsel %vm6707, %v6695, %v6710
        %v6712 = vsel %vm6706, %v6709, %v6711
        %v6713 = vsel %vm6705, %v6692, %v6695
        %v6714 = vsel %vm6708, %v6701, 920167782
        %v6715 = vsel %vm6707, %v6698, %v6714
        %v6716 = vsel %vm6706, %v6713, %v6715
        %v6717 = vsel %vm6705, %v6695, %v6698
        %v6718 = vsel %vm6708, %v6704, 1326507024
        %v6719 = vsel %vm6707, %v6701, %v6718
        %v6720 = vsel %vm6706, %v6717, %v6719
        %v6721 = vshll.u32 %v6681, 8
        %v6722 = vand.u32 %v6721, 65535
        %v6723 = vshrl.u32 %v6721, 16
        %v6724 = vand.u32 %v6720, 65535
        %v6725 = vshrl.u32 %v6720, 16
        %v6726 = vmul.u32 %v6722, %v6724
        %v6727 = vmul.u32 %v6722, %v6725
        %v6728 = vmul.u32 %v6723, %v6724
        %v6729 = vmul.u32 %v6723, %v6725
        %v6730 = vshll.u32 %v6727, 16
        %v6731 = vshrl.u32 %v6727, 16
        %v6732 = vshll.u32 %v6728, 16
        %v6733 = vshrl.u32 %v6728, 16
        %vm6734 = vc.u32 %v6726, %v6730
        %v6735 = vsel %vm6734, 1, 0
        %v6736 = vadd.s32 %v6726, %v6730
        %v6737 = vadd.s32 %v6729, %v6735
        %vm6738 = vc.u32 %v6736, %v6732
        %v6739 = vsel %vm6738, 1, 0
        %v6740 = vadd.s32 %v6736, %v6732
        %v6741 = vadd.s32 %v6737, %v6739
        %v6742 = vadd.s32 %v6741, %v6731
        %v6743 = vadd.s32 %v6742, %v6733
        %v6744 = vand.u32 %v6721, 65535
        %v6745 = vshrl.u32 %v6721, 16
        %v6746 = vand.u32 %v6716, 65535
        %v6747 = vshrl.u32 %v6716, 16
        %v6748 = vmul.u32 %v6744, %v6746
        %v6749 = vmul.u32 %v6744, %v6747
        %v6750 = vmul.u32 %v6745, %v6746
        %v6751 = vmul.u32 %v6745, %v6747
        %v6752 = vshll.u32 %v6749, 16
        %v6753 = vshrl.u32 %v6749, 16
        %v6754 = vshll.u32 %v6750, 16
        %v6755 = vshrl.u32 %v6750, 16
        %vm6756 = vc.u32 %v6748, %v6752
        %v6757 = vsel %vm6756, 1, 0
        %v6758 = vadd.s32 %v6748, %v6752
        %v6759 = vadd.s32 %v6751, %v6757
        %vm6760 = vc.u32 %v6758, %v6754
        %v6761 = vsel %vm6760, 1, 0
        %v6762 = vadd.s32 %v6758, %v6754
        %v6763 = vadd.s32 %v6759, %v6761
        %v6764 = vadd.s32 %v6763, %v6753
        %v6765 = vadd.s32 %v6764, %v6755
        %v6766 = vmul.u32 %v6721, %v6712
        %v6767 = vadd.s32 %v6743, %v6762
        %vm6768 = vc.u32 %v6743, %v6762
        %v6769 = vadd.s32 %v6765, 1
        %v6770 = vsel %vm6768, %v6769, %v6765
        %v6771 = vadd.s32 %v6766, %v6770
        %v6772 = vadd.s32 %v6771, 536870912
        %v6773 = vshrl.u32 %v6772, 30
        %v6774 = vshll.u32 %v6773, 30
        %v6775 = vsub.s32 %v6771, %v6774
        %vm6776 = vcmp.lt.s32.totalorder %v6775, 0
        %v6777 = vsub.s32 0, %v6775
        %v6778 = vsel %vm6776, %v6777, %v6775
        %v6779 = vclz %v6778
        %v6780 = vsub.s32 %v6779, 2
        %vm6781 = vcmp.gt.s32.totalorder 0, %v6780
        %v6782 = vsel %vm6781, 0, %v6780
        %v6783 = vsub.s32 32, %v6782
        %v6784 = vshll.u32 %v6775, %v6782
        %v6785 = vshrl.u32 %v6767, %v6783
        %v6786 = vor.u32 %v6784, %v6785
        %v6787 = vsub.s32 4294967266, %v6782
        %v6788 = vadd.s32 %v6787, 127
        %v6789 = vshll.u32 %v6788, 23
        %v6790 = vor.u32 4788187, %v6789
        %v6791 = vand.u32 2147483647, %v6790
        %v6793 = vcvt.s32.f32 %v6786
        %v6794 = vmul.f32 %v6793, %v6791
        %v6795 = vxor.u32 %v6794, 2147483648
        %v6796 = vsel %vm6675, %v6795, %v6794
        %v6797 = vsub.s32 4, %v6773
        %v6798 = vsel %vm6675, %v6797, %v6773
        %v6799 = vsel %vm6674, %v5867, %v6796
        %v6800 = vsel %vm6674, 0, %v6798
        %v6801 = vmul.f32 %v6799, %v6799
        %v6802 = vmul.f32 %v6801, -0.001358992
        %v6803 = vadd.f32 %v6802, 0.041655596
        %v6804 = vmul.f32 %v6801, %v6803
        %v6805 = vadd.f32 %v6804, -0.4999988
        %v6806 = vmul.f32 %v6801, %v6805
        %v6807 = vadd.f32 1.0, %v6806
        %v6808 = vmul.f32 %v6799, %v6799
        %v6809 = vmul.f32 %v6808, -0.00019511016
        %v6810 = vadd.f32 %v6809, 0.008332121
        %v6811 = vmul.f32 %v6808, %v6810
        %v6812 = vadd.f32 %v6811, -0.16666654
        %v6813 = vmul.f32 %v6808, %v6812
        %v6814 = vadd.f32 %v6813, 1.0
        %v6815 = vmul.f32 %v6814, %v6799
        %vm6816 = vweird.f32 %v5867
        %v6817 = vadd.s32 %v6800, 3
        %v6818 = vand.u32 %v6817, 3
        %vm6819 = vcmp.lt.s32.totalorder %v6818, 2
        %vm6820 = vcmp.eq.s32.totalorder %v6818, 0
        %v6821 = vxor.u32 %v6815, 2147483648
        %v6822 = vsel %vm6820, %v6807, %v6821
        %vm6823 = vcmp.eq.s32.totalorder %v6818, 2
        %v6824 = vxor.u32 %v6807, 2147483648
        %v6825 = vsel %vm6823, %v6824, %v6815
        %v6826 = vsel %vm6819, %v6822, %v6825
        %v6827 = vsel %vm6816, nan, %v6826
        %v6828 = vand.u32 2147483647, %v5868
        %vm6829 = vcmp.le.f32.partialorder %v6828, 0.7853982
        %vm6830 = vcmp.lt.s32.totalorder %v5868, 0
        %v6831 = vand.u32 %v5868, 2139095040
        %v6832 = vshrl.u32 %v6831, 23
        %v6833 = vsub.s32 %v6832, 127
        %v6834 = vand.u32 2147483647, %v5868
        %v6835 = vand.u32 %v6834, 8388607
        %v6836 = vor.u32 %v6835, 8388608
        %v6837 = vsub.s32 0, %v6836
        %v6838 = vadd.s32 %v6833, 1
        %vm6839 = vcmp.gt.s32.totalorder %v6838, 0
        %v6840 = vsel %vm6839, %v6838, 0
        %v6841 = vshrl.u32 %v6840, 5
        %v6842 = vand.u32 %v6840, 31
        %v6843 = vsub.s32 32, %v6842
        %v6844 = vshrl.u32 683565275, %v6843
        %v6845 = vshll.u32 683565275, %v6842
        %v6846 = vshrl.u32 2475754826, %v6843
        %v6847 = vor.u32 %v6845, %v6846
        %v6848 = vshll.u32 2475754826, %v6842
        %v6849 = vshrl.u32 2131351028, %v6843
        %v6850 = vor.u32 %v6848, %v6849
        %v6851 = vshll.u32 2131351028, %v6842
        %v6852 = vshrl.u32 2102212464, %v6843
        %v6853 = vor.u32 %v6851, %v6852
        %v6854 = vshll.u32 2102212464, %v6842
        %v6855 = vshrl.u32 920167782, %v6843
        %v6856 = vor.u32 %v6854, %v6855
        %v6857 = vshll.u32 920167782, %v6842
        %v6858 = vshrl.u32 1326507024, %v6843
        %v6859 = vor.u32 %v6857, %v6858
        %vm6860 = vcmp.lt.s32.totalorder %v6841, 1
        %vm6861 = vcmp.lt.s32.totalorder %v6841, 2
        %vm6862 = vcmp.lt.s32.totalorder %v6841, 3
        %vm6863 = vcmp.lt.s32.totalorder %v6841, 4
        %v6864 = vsel %vm6860, %v6844, %v6847
        %v6865 = vsel %vm6863, %v6853, 2102212464
        %v6866 = vsel %vm6862, %v6850, %v6865
        %v6867 = vsel %vm6861, %v6864, %v6866
        %v6868 = vsel %vm6860, %v6847, %v6850
        %v6869 = vsel %vm6863, %v6856, 920167782
        %v6870 = vsel %vm6862, %v6853, %v6869
        %v6871 = vsel %vm6861, %v6868, %v6870
        %v6872 = vsel %vm6860, %v6850, %v6853
        %v6873 = vsel %vm6863, %v6859, 1326507024
        %v6874 = vsel %vm6862, %v6856, %v6873
        %v6875 = vsel %vm6861, %v6872, %v6874
        %v6876 = vshll.u32 %v6836, 8
        %v6877 = vand.u32 %v6876, 65535
        %v6878 = vshrl.u32 %v6876, 16
        %v6879 = vand.u32 %v6875, 65535
        %v6880 = vshrl.u32 %v6875, 16
        %v6881 = vmul.u32 %v6877, %v6879
        %v6882 = vmul.u32 %v6877, %v6880
        %v6883 = vmul.u32 %v6878, %v6879
        %v6884 = vmul.u32 %v6878, %v6880
        %v6885 = vshll.u32 %v6882, 16
        %v6886 = vshrl.u32 %v6882, 16
        %v6887 = vshll.u32 %v6883, 16
        %v6888 = vshrl.u32 %v6883, 16
        %vm6889 = vc.u32 %v6881, %v6885
        %v6890 = vsel %vm6889, 1, 0
        %v6891 = vadd.s32 %v6881, %v6885
        %v6892 = vadd.s32 %v6884, %v6890
        %vm6893 = vc.u32 %v6891, %v6887
        %v6894 = vsel %vm6893, 1, 0
        %v6895 = vadd.s32 %v6891, %v6887
        %v6896 = vadd.s32 %v6892, %v6894
        %v6897 = vadd.s32 %v6896, %v6886
        %v6898 = vadd.s32 %v6897, %v6888
        %v6899 = vand.u32 %v6876, 65535
        %v6900 = vshrl.u32 %v6876, 16
        %v6901 = vand.u32 %v6871, 65535
        %v6902 = vshrl.u32 %v6871, 16
        %v6903 = vmul.u32 %v6899, %v6901
        %v6904 = vmul.u32 %v6899, %v6902
        %v6905 = vmul.u32 %v6900, %v6901
        %v6906 = vmul.u32 %v6900, %v6902
        %v6907 = vshll.u32 %v6904, 16
        %v6908 = vshrl.u32 %v6904, 16
        %v6909 = vshll.u32 %v6905, 16
        %v6910 = vshrl.u32 %v6905, 16
        %vm6911 = vc.u32 %v6903, %v6907
        %v6912 = vsel %vm6911, 1, 0
        %v6913 = vadd.s32 %v6903, %v6907
        %v6914 = vadd.s32 %v6906, %v6912
        %vm6915 = vc.u32 %v6913, %v6909
        %v6916 = vsel %vm6915, 1, 0
        %v6917 = vadd.s32 %v6913, %v6909
        %v6918 = vadd.s32 %v6914, %v6916
        %v6919 = vadd.s32 %v6918, %v6908
        %v6920 = vadd.s32 %v6919, %v6910
        %v6921 = vmul.u32 %v6876, %v6867
        %v6922 = vadd.s32 %v6898, %v6917
        %vm6923 = vc.u32 %v6898, %v6917
        %v6924 = vadd.s32 %v6920, 1
        %v6925 = vsel %vm6923, %v6924, %v6920
        %v6926 = vadd.s32 %v6921, %v6925
        %v6927 = vadd.s32 %v6926, 536870912
        %v6928 = vshrl.u32 %v6927, 30
        %v6929 = vshll.u32 %v6928, 30
        %v6930 = vsub.s32 %v6926, %v6929
        %vm6931 = vcmp.lt.s32.totalorder %v6930, 0
        %v6932 = vsub.s32 0, %v6930
        %v6933 = vsel %vm6931, %v6932, %v6930
        %v6934 = vclz %v6933
        %v6935 = vsub.s32 %v6934, 2
        %vm6936 = vcmp.gt.s32.totalorder 0, %v6935
        %v6937 = vsel %vm6936, 0, %v6935
        %v6938 = vsub.s32 32, %v6937
        %v6939 = vshll.u32 %v6930, %v6937
        %v6940 = vshrl.u32 %v6922, %v6938
        %v6941 = vor.u32 %v6939, %v6940
        %v6942 = vsub.s32 4294967266, %v6937
        %v6943 = vadd.s32 %v6942, 127
        %v6944 = vshll.u32 %v6943, 23
        %v6945 = vor.u32 4788187, %v6944
        %v6946 = vand.u32 2147483647, %v6945
        %v6948 = vcvt.s32.f32 %v6941
        %v6949 = vmul.f32 %v6948, %v6946
        %v6950 = vxor.u32 %v6949, 2147483648
        %v6951 = vsel %vm6830, %v6950, %v6949
        %v6952 = vsub.s32 4, %v6928
        %v6953 = vsel %vm6830, %v6952, %v6928
        %v6954 = vsel %vm6829, %v5868, %v6951
        %v6955 = vsel %vm6829, 0, %v6953
        %v6956 = vmul.f32 %v6954, %v6954
        %v6957 = vmul.f32 %v6956, -0.001358992
        %v6958 = vadd.f32 %v6957, 0.041655596
        %v6959 = vmul.f32 %v6956, %v6958
        %v6960 = vadd.f32 %v6959, -0.4999988
        %v6961 = vmul.f32 %v6956, %v6960
        %v6962 = vadd.f32 1.0, %v6961
        %v6963 = vmul.f32 %v6954, %v6954
        %v6964 = vmul.f32 %v6963, -0.00019511016
        %v6965 = vadd.f32 %v6964, 0.008332121
        %v6966 = vmul.f32 %v6963, %v6965
        %v6967 = vadd.f32 %v6966, -0.16666654
        %v6968 = vmul.f32 %v6963, %v6967
        %v6969 = vadd.f32 %v6968, 1.0
        %v6970 = vmul.f32 %v6969, %v6954
        %vm6971 = vweird.f32 %v5868
        %v6972 = vadd.s32 %v6955, 3
        %v6973 = vand.u32 %v6972, 3
        %vm6974 = vcmp.lt.s32.totalorder %v6973, 2
        %vm6975 = vcmp.eq.s32.totalorder %v6973, 0
        %v6976 = vxor.u32 %v6970, 2147483648
        %v6977 = vsel %vm6975, %v6962, %v6976
        %vm6978 = vcmp.eq.s32.totalorder %v6973, 2
        %v6979 = vxor.u32 %v6962, 2147483648
        %v6980 = vsel %vm6978, %v6979, %v6970
        %v6981 = vsel %vm6974, %v6977, %v6980
        %v6982 = vsel %vm6971, nan, %v6981
        %v6983 = vand.u32 2147483647, %v5869
        %vm6984 = vcmp.le.f32.partialorder %v6983, 0.7853982
        %vm6985 = vcmp.lt.s32.totalorder %v5869, 0
        %v6986 = vand.u32 %v5869, 2139095040
        %v6987 = vshrl.u32 %v6986, 23
        %v6988 = vsub.s32 %v6987, 127
        %v6989 = vand.u32 2147483647, %v5869
        %v6990 = vand.u32 %v6989, 8388607
        %v6991 = vor.u32 %v6990, 8388608
        %v6992 = vsub.s32 0, %v6991
        %v6993 = vadd.s32 %v6988, 1
        %vm6994 = vcmp.gt.s32.totalorder %v6993, 0
        %v6995 = vsel %vm6994, %v6993, 0
        %v6996 = vshrl.u32 %v6995, 5
        %v6997 = vand.u32 %v6995, 31
        %v6998 = vsub.s32 32, %v6997
        %v6999 = vshrl.u32 683565275, %v6998
        %v7000 = vshll.u32 683565275, %v6997
        %v7001 = vshrl.u32 2475754826, %v6998
        %v7002 = vor.u32 %v7000, %v7001
        %v7003 = vshll.u32 2475754826, %v6997
        %v7004 = vshrl.u32 2131351028, %v6998
        %v7005 = vor.u32 %v7003, %v7004
        %v7006 = vshll.u32 2131351028, %v6997
        %v7007 = vshrl.u32 2102212464, %v6998
        %v7008 = vor.u32 %v7006, %v7007
        %v7009 = vshll.u32 2102212464, %v6997
        %v7010 = vshrl.u32 920167782, %v6998
        %v7011 = vor.u32 %v7009, %v7010
        %v7012 = vshll.u32 920167782, %v6997
        %v7013 = vshrl.u32 1326507024, %v6998
        %v7014 = vor.u32 %v7012, %v7013
        %vm7015 = vcmp.lt.s32.totalorder %v6996, 1
        %vm7016 = vcmp.lt.s32.totalorder %v6996, 2
        %vm7017 = vcmp.lt.s32.totalorder %v6996, 3
        %vm7018 = vcmp.lt.s32.totalorder %v6996, 4
        %v7019 = vsel %vm7015, %v6999, %v7002
        %v7020 = vsel %vm7018, %v7008, 2102212464
        %v7021 = vsel %vm7017, %v7005, %v7020
        %v7022 = vsel %vm7016, %v7019, %v7021
        %v7023 = vsel %vm7015, %v7002, %v7005
        %v7024 = vsel %vm7018, %v7011, 920167782
        %v7025 = vsel %vm7017, %v7008, %v7024
        %v7026 = vsel %vm7016, %v7023, %v7025
        %v7027 = vsel %vm7015, %v7005, %v7008
        %v7028 = vsel %vm7018, %v7014, 1326507024
        %v7029 = vsel %vm7017, %v7011, %v7028
        %v7030 = vsel %vm7016, %v7027, %v7029
        %v7031 = vshll.u32 %v6991, 8
        %v7032 = vand.u32 %v7031, 65535
        %v7033 = vshrl.u32 %v7031, 16
        %v7034 = vand.u32 %v7030, 65535
        %v7035 = vshrl.u32 %v7030, 16
        %v7036 = vmul.u32 %v7032, %v7034
        %v7037 = vmul.u32 %v7032, %v7035
        %v7038 = vmul.u32 %v7033, %v7034
        %v7039 = vmul.u32 %v7033, %v7035
        %v7040 = vshll.u32 %v7037, 16
        %v7041 = vshrl.u32 %v7037, 16
        %v7042 = vshll.u32 %v7038, 16
        %v7043 = vshrl.u32 %v7038, 16
        %vm7044 = vc.u32 %v7036, %v7040
        %v7045 = vsel %vm7044, 1, 0
        %v7046 = vadd.s32 %v7036, %v7040
        %v7047 = vadd.s32 %v7039, %v7045
        %vm7048 = vc.u32 %v7046, %v7042
        %v7049 = vsel %vm7048, 1, 0
        %v7050 = vadd.s32 %v7046, %v7042
        %v7051 = vadd.s32 %v7047, %v7049
        %v7052 = vadd.s32 %v7051, %v7041
        %v7053 = vadd.s32 %v7052, %v7043
        %v7054 = vand.u32 %v7031, 65535
        %v7055 = vshrl.u32 %v7031, 16
        %v7056 = vand.u32 %v7026, 65535
        %v7057 = vshrl.u32 %v7026, 16
        %v7058 = vmul.u32 %v7054, %v7056
        %v7059 = vmul.u32 %v7054, %v7057
        %v7060 = vmul.u32 %v7055, %v7056
        %v7061 = vmul.u32 %v7055, %v7057
        %v7062 = vshll.u32 %v7059, 16
        %v7063 = vshrl.u32 %v7059, 16
        %v7064 = vshll.u32 %v7060, 16
        %v7065 = vshrl.u32 %v7060, 16
        %vm7066 = vc.u32 %v7058, %v7062
        %v7067 = vsel %vm7066, 1, 0
        %v7068 = vadd.s32 %v7058, %v7062
        %v7069 = vadd.s32 %v7061, %v7067
        %vm7070 = vc.u32 %v7068, %v7064
        %v7071 = vsel %vm7070, 1, 0
        %v7072 = vadd.s32 %v7068, %v7064
        %v7073 = vadd.s32 %v7069, %v7071
        %v7074 = vadd.s32 %v7073, %v7063
        %v7075 = vadd.s32 %v7074, %v7065
        %v7076 = vmul.u32 %v7031, %v7022
        %v7077 = vadd.s32 %v7053, %v7072
        %vm7078 = vc.u32 %v7053, %v7072
        %v7079 = vadd.s32 %v7075, 1
        %v7080 = vsel %vm7078, %v7079, %v7075
        %v7081 = vadd.s32 %v7076, %v7080
        %v7082 = vadd.s32 %v7081, 536870912
        %v7083 = vshrl.u32 %v7082, 30
        %v7084 = vshll.u32 %v7083, 30
        %v7085 = vsub.s32 %v7081, %v7084
        %vm7086 = vcmp.lt.s32.totalorder %v7085, 0
        %v7087 = vsub.s32 0, %v7085
        %v7088 = vsel %vm7086, %v7087, %v7085
        %v7089 = vclz %v7088
        %v7090 = vsub.s32 %v7089, 2
        %vm7091 = vcmp.gt.s32.totalorder 0, %v7090
        %v7092 = vsel %vm7091, 0, %v7090
        %v7093 = vsub.s32 32, %v7092
        %v7094 = vshll.u32 %v7085, %v7092
        %v7095 = vshrl.u32 %v7077, %v7093
        %v7096 = vor.u32 %v7094, %v7095
        %v7097 = vsub.s32 4294967266, %v7092
        %v7098 = vadd.s32 %v7097, 127
        %v7099 = vshll.u32 %v7098, 23
        %v7100 = vor.u32 4788187, %v7099
        %v7101 = vand.u32 2147483647, %v7100
        %v7103 = vcvt.s32.f32 %v7096
        %v7104 = vmul.f32 %v7103, %v7101
        %v7105 = vxor.u32 %v7104, 2147483648
        %v7106 = vsel %vm6985, %v7105, %v7104
        %v7107 = vsub.s32 4, %v7083
        %v7108 = vsel %vm6985, %v7107, %v7083
        %v7109 = vsel %vm6984, %v5869, %v7106
        %v7110 = vsel %vm6984, 0, %v7108
        %v7111 = vmul.f32 %v7109, %v7109
        %v7112 = vmul.f32 %v7111, -0.001358992
        %v7113 = vadd.f32 %v7112, 0.041655596
        %v7114 = vmul.f32 %v7111, %v7113
        %v7115 = vadd.f32 %v7114, -0.4999988
        %v7116 = vmul.f32 %v7111, %v7115
        %v7117 = vadd.f32 1.0, %v7116
        %v7118 = vmul.f32 %v7109, %v7109
        %v7119 = vmul.f32 %v7118, -0.00019511016
        %v7120 = vadd.f32 %v7119, 0.008332121
        %v7121 = vmul.f32 %v7118, %v7120
        %v7122 = vadd.f32 %v7121, -0.16666654
        %v7123 = vmul.f32 %v7118, %v7122
        %v7124 = vadd.f32 %v7123, 1.0
        %v7125 = vmul.f32 %v7124, %v7109
        %vm7126 = vweird.f32 %v5869
        %v7127 = vadd.s32 %v7110, 3
        %v7128 = vand.u32 %v7127, 3
        %vm7129 = vcmp.lt.s32.totalorder %v7128, 2
        %vm7130 = vcmp.eq.s32.totalorder %v7128, 0
        %v7131 = vxor.u32 %v7125, 2147483648
        %v7132 = vsel %vm7130, %v7117, %v7131
        %vm7133 = vcmp.eq.s32.totalorder %v7128, 2
        %v7134 = vxor.u32 %v7117, 2147483648
        %v7135 = vsel %vm7133, %v7134, %v7125
        %v7136 = vsel %vm7129, %v7132, %v7135
        %v7137 = vsel %vm7126, nan, %v7136
        %v7138 = vand.u32 2147483647, %v5870
        %vm7139 = vcmp.le.f32.partialorder %v7138, 0.7853982
        %vm7140 = vcmp.lt.s32.totalorder %v5870, 0
        %v7141 = vand.u32 %v5870, 2139095040
        %v7142 = vshrl.u32 %v7141, 23
        %v7143 = vsub.s32 %v7142, 127
        %v7144 = vand.u32 2147483647, %v5870
        %v7145 = vand.u32 %v7144, 8388607
        %v7146 = vor.u32 %v7145, 8388608
        %v7147 = vsub.s32 0, %v7146
        %v7148 = vadd.s32 %v7143, 1
        %vm7149 = vcmp.gt.s32.totalorder %v7148, 0
        %v7150 = vsel %vm7149, %v7148, 0
        %v7151 = vshrl.u32 %v7150, 5
        %v7152 = vand.u32 %v7150, 31
        %v7153 = vsub.s32 32, %v7152
        %v7154 = vshrl.u32 683565275, %v7153
        %v7155 = vshll.u32 683565275, %v7152
        %v7156 = vshrl.u32 2475754826, %v7153
        %v7157 = vor.u32 %v7155, %v7156
        %v7158 = vshll.u32 2475754826, %v7152
        %v7159 = vshrl.u32 2131351028, %v7153
        %v7160 = vor.u32 %v7158, %v7159
        %v7161 = vshll.u32 2131351028, %v7152
        %v7162 = vshrl.u32 2102212464, %v7153
        %v7163 = vor.u32 %v7161, %v7162
        %v7164 = vshll.u32 2102212464, %v7152
        %v7165 = vshrl.u32 920167782, %v7153
        %v7166 = vor.u32 %v7164, %v7165
        %v7167 = vshll.u32 920167782, %v7152
        %v7168 = vshrl.u32 1326507024, %v7153
        %v7169 = vor.u32 %v7167, %v7168
        %vm7170 = vcmp.lt.s32.totalorder %v7151, 1
        %vm7171 = vcmp.lt.s32.totalorder %v7151, 2
        %vm7172 = vcmp.lt.s32.totalorder %v7151, 3
        %vm7173 = vcmp.lt.s32.totalorder %v7151, 4
        %v7174 = vsel %vm7170, %v7154, %v7157
        %v7175 = vsel %vm7173, %v7163, 2102212464
        %v7176 = vsel %vm7172, %v7160, %v7175
        %v7177 = vsel %vm7171, %v7174, %v7176
        %v7178 = vsel %vm7170, %v7157, %v7160
        %v7179 = vsel %vm7173, %v7166, 920167782
        %v7180 = vsel %vm7172, %v7163, %v7179
        %v7181 = vsel %vm7171, %v7178, %v7180
        %v7182 = vsel %vm7170, %v7160, %v7163
        %v7183 = vsel %vm7173, %v7169, 1326507024
        %v7184 = vsel %vm7172, %v7166, %v7183
        %v7185 = vsel %vm7171, %v7182, %v7184
        %v7186 = vshll.u32 %v7146, 8
        %v7187 = vand.u32 %v7186, 65535
        %v7188 = vshrl.u32 %v7186, 16
        %v7189 = vand.u32 %v7185, 65535
        %v7190 = vshrl.u32 %v7185, 16
        %v7191 = vmul.u32 %v7187, %v7189
        %v7192 = vmul.u32 %v7187, %v7190
        %v7193 = vmul.u32 %v7188, %v7189
        %v7194 = vmul.u32 %v7188, %v7190
        %v7195 = vshll.u32 %v7192, 16
        %v7196 = vshrl.u32 %v7192, 16
        %v7197 = vshll.u32 %v7193, 16
        %v7198 = vshrl.u32 %v7193, 16
        %vm7199 = vc.u32 %v7191, %v7195
        %v7200 = vsel %vm7199, 1, 0
        %v7201 = vadd.s32 %v7191, %v7195
        %v7202 = vadd.s32 %v7194, %v7200
        %vm7203 = vc.u32 %v7201, %v7197
        %v7204 = vsel %vm7203, 1, 0
        %v7205 = vadd.s32 %v7201, %v7197
        %v7206 = vadd.s32 %v7202, %v7204
        %v7207 = vadd.s32 %v7206, %v7196
        %v7208 = vadd.s32 %v7207, %v7198
        %v7209 = vand.u32 %v7186, 65535
        %v7210 = vshrl.u32 %v7186, 16
        %v7211 = vand.u32 %v7181, 65535
        %v7212 = vshrl.u32 %v7181, 16
        %v7213 = vmul.u32 %v7209, %v7211
        %v7214 = vmul.u32 %v7209, %v7212
        %v7215 = vmul.u32 %v7210, %v7211
        %v7216 = vmul.u32 %v7210, %v7212
        %v7217 = vshll.u32 %v7214, 16
        %v7218 = vshrl.u32 %v7214, 16
        %v7219 = vshll.u32 %v7215, 16
        %v7220 = vshrl.u32 %v7215, 16
        %vm7221 = vc.u32 %v7213, %v7217
        %v7222 = vsel %vm7221, 1, 0
        %v7223 = vadd.s32 %v7213, %v7217
        %v7224 = vadd.s32 %v7216, %v7222
        %vm7225 = vc.u32 %v7223, %v7219
        %v7226 = vsel %vm7225, 1, 0
        %v7227 = vadd.s32 %v7223, %v7219
        %v7228 = vadd.s32 %v7224, %v7226
        %v7229 = vadd.s32 %v7228, %v7218
        %v7230 = vadd.s32 %v7229, %v7220
        %v7231 = vmul.u32 %v7186, %v7177
        %v7232 = vadd.s32 %v7208, %v7227
        %vm7233 = vc.u32 %v7208, %v7227
        %v7234 = vadd.s32 %v7230, 1
        %v7235 = vsel %vm7233, %v7234, %v7230
        %v7236 = vadd.s32 %v7231, %v7235
        %v7237 = vadd.s32 %v7236, 536870912
        %v7238 = vshrl.u32 %v7237, 30
        %v7239 = vshll.u32 %v7238, 30
        %v7240 = vsub.s32 %v7236, %v7239
        %vm7241 = vcmp.lt.s32.totalorder %v7240, 0
        %v7242 = vsub.s32 0, %v7240
        %v7243 = vsel %vm7241, %v7242, %v7240
        %v7244 = vclz %v7243
        %v7245 = vsub.s32 %v7244, 2
        %vm7246 = vcmp.gt.s32.totalorder 0, %v7245
        %v7247 = vsel %vm7246, 0, %v7245
        %v7248 = vsub.s32 32, %v7247
        %v7249 = vshll.u32 %v7240, %v7247
        %v7250 = vshrl.u32 %v7232, %v7248
        %v7251 = vor.u32 %v7249, %v7250
        %v7252 = vsub.s32 4294967266, %v7247
        %v7253 = vadd.s32 %v7252, 127
        %v7254 = vshll.u32 %v7253, 23
        %v7255 = vor.u32 4788187, %v7254
        %v7256 = vand.u32 2147483647, %v7255
        %v7258 = vcvt.s32.f32 %v7251
        %v7259 = vmul.f32 %v7258, %v7256
        %v7260 = vxor.u32 %v7259, 2147483648
        %v7261 = vsel %vm7140, %v7260, %v7259
        %v7262 = vsub.s32 4, %v7238
        %v7263 = vsel %vm7140, %v7262, %v7238
        %v7264 = vsel %vm7139, %v5870, %v7261
        %v7265 = vsel %vm7139, 0, %v7263
        %v7266 = vmul.f32 %v7264, %v7264
        %v7267 = vmul.f32 %v7266, -0.001358992
        %v7268 = vadd.f32 %v7267, 0.041655596
        %v7269 = vmul.f32 %v7266, %v7268
        %v7270 = vadd.f32 %v7269, -0.4999988
        %v7271 = vmul.f32 %v7266, %v7270
        %v7272 = vadd.f32 1.0, %v7271
        %v7273 = vmul.f32 %v7264, %v7264
        %v7274 = vmul.f32 %v7273, -0.00019511016
        %v7275 = vadd.f32 %v7274, 0.008332121
        %v7276 = vmul.f32 %v7273, %v7275
        %v7277 = vadd.f32 %v7276, -0.16666654
        %v7278 = vmul.f32 %v7273, %v7277
        %v7279 = vadd.f32 %v7278, 1.0
        %v7280 = vmul.f32 %v7279, %v7264
        %vm7281 = vweird.f32 %v5870
        %v7282 = vadd.s32 %v7265, 3
        %v7283 = vand.u32 %v7282, 3
        %vm7284 = vcmp.lt.s32.totalorder %v7283, 2
        %vm7285 = vcmp.eq.s32.totalorder %v7283, 0
        %v7286 = vxor.u32 %v7280, 2147483648
        %v7287 = vsel %vm7285, %v7272, %v7286
        %vm7288 = vcmp.eq.s32.totalorder %v7283, 2
        %v7289 = vxor.u32 %v7272, 2147483648
        %v7290 = vsel %vm7288, %v7289, %v7280
        %v7291 = vsel %vm7284, %v7287, %v7290
        %v7292 = vsel %vm7281, nan, %v7291
        %v7293 = vand.u32 2147483647, %v5871
        %vm7294 = vcmp.le.f32.partialorder %v7293, 0.7853982
        %vm7295 = vcmp.lt.s32.totalorder %v5871, 0
        %v7296 = vand.u32 %v5871, 2139095040
        %v7297 = vshrl.u32 %v7296, 23
        %v7298 = vsub.s32 %v7297, 127
        %v7299 = vand.u32 2147483647, %v5871
        %v7300 = vand.u32 %v7299, 8388607
        %v7301 = vor.u32 %v7300, 8388608
        %v7302 = vsub.s32 0, %v7301
        %v7303 = vadd.s32 %v7298, 1
        %vm7304 = vcmp.gt.s32.totalorder %v7303, 0
        %v7305 = vsel %vm7304, %v7303, 0
        %v7306 = vshrl.u32 %v7305, 5
        %v7307 = vand.u32 %v7305, 31
        %v7308 = vsub.s32 32, %v7307
        %v7309 = vshrl.u32 683565275, %v7308
        %v7310 = vshll.u32 683565275, %v7307
        %v7311 = vshrl.u32 2475754826, %v7308
        %v7312 = vor.u32 %v7310, %v7311
        %v7313 = vshll.u32 2475754826, %v7307
        %v7314 = vshrl.u32 2131351028, %v7308
        %v7315 = vor.u32 %v7313, %v7314
        %v7316 = vshll.u32 2131351028, %v7307
        %v7317 = vshrl.u32 2102212464, %v7308
        %v7318 = vor.u32 %v7316, %v7317
        %v7319 = vshll.u32 2102212464, %v7307
        %v7320 = vshrl.u32 920167782, %v7308
        %v7321 = vor.u32 %v7319, %v7320
        %v7322 = vshll.u32 920167782, %v7307
        %v7323 = vshrl.u32 1326507024, %v7308
        %v7324 = vor.u32 %v7322, %v7323
        %vm7325 = vcmp.lt.s32.totalorder %v7306, 1
        %vm7326 = vcmp.lt.s32.totalorder %v7306, 2
        %vm7327 = vcmp.lt.s32.totalorder %v7306, 3
        %vm7328 = vcmp.lt.s32.totalorder %v7306, 4
        %v7329 = vsel %vm7325, %v7309, %v7312
        %v7330 = vsel %vm7328, %v7318, 2102212464
        %v7331 = vsel %vm7327, %v7315, %v7330
        %v7332 = vsel %vm7326, %v7329, %v7331
        %v7333 = vsel %vm7325, %v7312, %v7315
        %v7334 = vsel %vm7328, %v7321, 920167782
        %v7335 = vsel %vm7327, %v7318, %v7334
        %v7336 = vsel %vm7326, %v7333, %v7335
        %v7337 = vsel %vm7325, %v7315, %v7318
        %v7338 = vsel %vm7328, %v7324, 1326507024
        %v7339 = vsel %vm7327, %v7321, %v7338
        %v7340 = vsel %vm7326, %v7337, %v7339
        %v7341 = vshll.u32 %v7301, 8
        %v7342 = vand.u32 %v7341, 65535
        %v7343 = vshrl.u32 %v7341, 16
        %v7344 = vand.u32 %v7340, 65535
        %v7345 = vshrl.u32 %v7340, 16
        %v7346 = vmul.u32 %v7342, %v7344
        %v7347 = vmul.u32 %v7342, %v7345
        %v7348 = vmul.u32 %v7343, %v7344
        %v7349 = vmul.u32 %v7343, %v7345
        %v7350 = vshll.u32 %v7347, 16
        %v7351 = vshrl.u32 %v7347, 16
        %v7352 = vshll.u32 %v7348, 16
        %v7353 = vshrl.u32 %v7348, 16
        %vm7354 = vc.u32 %v7346, %v7350
        %v7355 = vsel %vm7354, 1, 0
        %v7356 = vadd.s32 %v7346, %v7350
        %v7357 = vadd.s32 %v7349, %v7355
        %vm7358 = vc.u32 %v7356, %v7352
        %v7359 = vsel %vm7358, 1, 0
        %v7360 = vadd.s32 %v7356, %v7352
        %v7361 = vadd.s32 %v7357, %v7359
        %v7362 = vadd.s32 %v7361, %v7351
        %v7363 = vadd.s32 %v7362, %v7353
        %v7364 = vand.u32 %v7341, 65535
        %v7365 = vshrl.u32 %v7341, 16
        %v7366 = vand.u32 %v7336, 65535
        %v7367 = vshrl.u32 %v7336, 16
        %v7368 = vmul.u32 %v7364, %v7366
        %v7369 = vmul.u32 %v7364, %v7367
        %v7370 = vmul.u32 %v7365, %v7366
        %v7371 = vmul.u32 %v7365, %v7367
        %v7372 = vshll.u32 %v7369, 16
        %v7373 = vshrl.u32 %v7369, 16
        %v7374 = vshll.u32 %v7370, 16
        %v7375 = vshrl.u32 %v7370, 16
        %vm7376 = vc.u32 %v7368, %v7372
        %v7377 = vsel %vm7376, 1, 0
        %v7378 = vadd.s32 %v7368, %v7372
        %v7379 = vadd.s32 %v7371, %v7377
        %vm7380 = vc.u32 %v7378, %v7374
        %v7381 = vsel %vm7380, 1, 0
        %v7382 = vadd.s32 %v7378, %v7374
        %v7383 = vadd.s32 %v7379, %v7381
        %v7384 = vadd.s32 %v7383, %v7373
        %v7385 = vadd.s32 %v7384, %v7375
        %v7386 = vmul.u32 %v7341, %v7332
        %v7387 = vadd.s32 %v7363, %v7382
        %vm7388 = vc.u32 %v7363, %v7382
        %v7389 = vadd.s32 %v7385, 1
        %v7390 = vsel %vm7388, %v7389, %v7385
        %v7391 = vadd.s32 %v7386, %v7390
        %v7392 = vadd.s32 %v7391, 536870912
        %v7393 = vshrl.u32 %v7392, 30
        %v7394 = vshll.u32 %v7393, 30
        %v7395 = vsub.s32 %v7391, %v7394
        %vm7396 = vcmp.lt.s32.totalorder %v7395, 0
        %v7397 = vsub.s32 0, %v7395
        %v7398 = vsel %vm7396, %v7397, %v7395
        %v7399 = vclz %v7398
        %v7400 = vsub.s32 %v7399, 2
        %vm7401 = vcmp.gt.s32.totalorder 0, %v7400
        %v7402 = vsel %vm7401, 0, %v7400
        %v7403 = vsub.s32 32, %v7402
        %v7404 = vshll.u32 %v7395, %v7402
        %v7405 = vshrl.u32 %v7387, %v7403
        %v7406 = vor.u32 %v7404, %v7405
        %v7407 = vsub.s32 4294967266, %v7402
        %v7408 = vadd.s32 %v7407, 127
        %v7409 = vshll.u32 %v7408, 23
        %v7410 = vor.u32 4788187, %v7409
        %v7411 = vand.u32 2147483647, %v7410
        %v7413 = vcvt.s32.f32 %v7406
        %v7414 = vmul.f32 %v7413, %v7411
        %v7415 = vxor.u32 %v7414, 2147483648
        %v7416 = vsel %vm7295, %v7415, %v7414
        %v7417 = vsub.s32 4, %v7393
        %v7418 = vsel %vm7295, %v7417, %v7393
        %v7419 = vsel %vm7294, %v5871, %v7416
        %v7420 = vsel %vm7294, 0, %v7418
        %v7421 = vmul.f32 %v7419, %v7419
        %v7422 = vmul.f32 %v7421, -0.001358992
        %v7423 = vadd.f32 %v7422, 0.041655596
        %v7424 = vmul.f32 %v7421, %v7423
        %v7425 = vadd.f32 %v7424, -0.4999988
        %v7426 = vmul.f32 %v7421, %v7425
        %v7427 = vadd.f32 1.0, %v7426
        %v7428 = vmul.f32 %v7419, %v7419
        %v7429 = vmul.f32 %v7428, -0.00019511016
        %v7430 = vadd.f32 %v7429, 0.008332121
        %v7431 = vmul.f32 %v7428, %v7430
        %v7432 = vadd.f32 %v7431, -0.16666654
        %v7433 = vmul.f32 %v7428, %v7432
        %v7434 = vadd.f32 %v7433, 1.0
        %v7435 = vmul.f32 %v7434, %v7419
        %vm7436 = vweird.f32 %v5871
        %v7437 = vadd.s32 %v7420, 3
        %v7438 = vand.u32 %v7437, 3
        %vm7439 = vcmp.lt.s32.totalorder %v7438, 2
        %vm7440 = vcmp.eq.s32.totalorder %v7438, 0
        %v7441 = vxor.u32 %v7435, 2147483648
        %v7442 = vsel %vm7440, %v7427, %v7441
        %vm7443 = vcmp.eq.s32.totalorder %v7438, 2
        %v7444 = vxor.u32 %v7427, 2147483648
        %v7445 = vsel %vm7443, %v7444, %v7435
        %v7446 = vsel %vm7439, %v7442, %v7445
        %v7447 = vsel %vm7436, nan, %v7446
        %v7448 = vand.u32 2147483647, %v5872
        %vm7449 = vcmp.le.f32.partialorder %v7448, 0.7853982
        %vm7450 = vcmp.lt.s32.totalorder %v5872, 0
        %v7451 = vand.u32 %v5872, 2139095040
        %v7452 = vshrl.u32 %v7451, 23
        %v7453 = vsub.s32 %v7452, 127
        %v7454 = vand.u32 2147483647, %v5872
        %v7455 = vand.u32 %v7454, 8388607
        %v7456 = vor.u32 %v7455, 8388608
        %v7457 = vsub.s32 0, %v7456
        %v7458 = vadd.s32 %v7453, 1
        %vm7459 = vcmp.gt.s32.totalorder %v7458, 0
        %v7460 = vsel %vm7459, %v7458, 0
        %v7461 = vshrl.u32 %v7460, 5
        %v7462 = vand.u32 %v7460, 31
        %v7463 = vsub.s32 32, %v7462
        %v7464 = vshrl.u32 683565275, %v7463
        %v7465 = vshll.u32 683565275, %v7462
        %v7466 = vshrl.u32 2475754826, %v7463
        %v7467 = vor.u32 %v7465, %v7466
        %v7468 = vshll.u32 2475754826, %v7462
        %v7469 = vshrl.u32 2131351028, %v7463
        %v7470 = vor.u32 %v7468, %v7469
        %v7471 = vshll.u32 2131351028, %v7462
        %v7472 = vshrl.u32 2102212464, %v7463
        %v7473 = vor.u32 %v7471, %v7472
        %v7474 = vshll.u32 2102212464, %v7462
        %v7475 = vshrl.u32 920167782, %v7463
        %v7476 = vor.u32 %v7474, %v7475
        %v7477 = vshll.u32 920167782, %v7462
        %v7478 = vshrl.u32 1326507024, %v7463
        %v7479 = vor.u32 %v7477, %v7478
        %vm7480 = vcmp.lt.s32.totalorder %v7461, 1
        %vm7481 = vcmp.lt.s32.totalorder %v7461, 2
        %vm7482 = vcmp.lt.s32.totalorder %v7461, 3
        %vm7483 = vcmp.lt.s32.totalorder %v7461, 4
        %v7484 = vsel %vm7480, %v7464, %v7467
        %v7485 = vsel %vm7483, %v7473, 2102212464
        %v7486 = vsel %vm7482, %v7470, %v7485
        %v7487 = vsel %vm7481, %v7484, %v7486
        %v7488 = vsel %vm7480, %v7467, %v7470
        %v7489 = vsel %vm7483, %v7476, 920167782
        %v7490 = vsel %vm7482, %v7473, %v7489
        %v7491 = vsel %vm7481, %v7488, %v7490
        %v7492 = vsel %vm7480, %v7470, %v7473
        %v7493 = vsel %vm7483, %v7479, 1326507024
        %v7494 = vsel %vm7482, %v7476, %v7493
        %v7495 = vsel %vm7481, %v7492, %v7494
        %v7496 = vshll.u32 %v7456, 8
        %v7497 = vand.u32 %v7496, 65535
        %v7498 = vshrl.u32 %v7496, 16
        %v7499 = vand.u32 %v7495, 65535
        %v7500 = vshrl.u32 %v7495, 16
        %v7501 = vmul.u32 %v7497, %v7499
        %v7502 = vmul.u32 %v7497, %v7500
        %v7503 = vmul.u32 %v7498, %v7499
        %v7504 = vmul.u32 %v7498, %v7500
        %v7505 = vshll.u32 %v7502, 16
        %v7506 = vshrl.u32 %v7502, 16
        %v7507 = vshll.u32 %v7503, 16
        %v7508 = vshrl.u32 %v7503, 16
        %vm7509 = vc.u32 %v7501, %v7505
        %v7510 = vsel %vm7509, 1, 0
        %v7511 = vadd.s32 %v7501, %v7505
        %v7512 = vadd.s32 %v7504, %v7510
        %vm7513 = vc.u32 %v7511, %v7507
        %v7514 = vsel %vm7513, 1, 0
        %v7515 = vadd.s32 %v7511, %v7507
        %v7516 = vadd.s32 %v7512, %v7514
        %v7517 = vadd.s32 %v7516, %v7506
        %v7518 = vadd.s32 %v7517, %v7508
        %v7519 = vand.u32 %v7496, 65535
        %v7520 = vshrl.u32 %v7496, 16
        %v7521 = vand.u32 %v7491, 65535
        %v7522 = vshrl.u32 %v7491, 16
        %v7523 = vmul.u32 %v7519, %v7521
        %v7524 = vmul.u32 %v7519, %v7522
        %v7525 = vmul.u32 %v7520, %v7521
        %v7526 = vmul.u32 %v7520, %v7522
        %v7527 = vshll.u32 %v7524, 16
        %v7528 = vshrl.u32 %v7524, 16
        %v7529 = vshll.u32 %v7525, 16
        %v7530 = vshrl.u32 %v7525, 16
        %vm7531 = vc.u32 %v7523, %v7527
        %v7532 = vsel %vm7531, 1, 0
        %v7533 = vadd.s32 %v7523, %v7527
        %v7534 = vadd.s32 %v7526, %v7532
        %vm7535 = vc.u32 %v7533, %v7529
        %v7536 = vsel %vm7535, 1, 0
        %v7537 = vadd.s32 %v7533, %v7529
        %v7538 = vadd.s32 %v7534, %v7536
        %v7539 = vadd.s32 %v7538, %v7528
        %v7540 = vadd.s32 %v7539, %v7530
        %v7541 = vmul.u32 %v7496, %v7487
        %v7542 = vadd.s32 %v7518, %v7537
        %vm7543 = vc.u32 %v7518, %v7537
        %v7544 = vadd.s32 %v7540, 1
        %v7545 = vsel %vm7543, %v7544, %v7540
        %v7546 = vadd.s32 %v7541, %v7545
        %v7547 = vadd.s32 %v7546, 536870912
        %v7548 = vshrl.u32 %v7547, 30
        %v7549 = vshll.u32 %v7548, 30
        %v7550 = vsub.s32 %v7546, %v7549
        %vm7551 = vcmp.lt.s32.totalorder %v7550, 0
        %v7552 = vsub.s32 0, %v7550
        %v7553 = vsel %vm7551, %v7552, %v7550
        %v7554 = vclz %v7553
        %v7555 = vsub.s32 %v7554, 2
        %vm7556 = vcmp.gt.s32.totalorder 0, %v7555
        %v7557 = vsel %vm7556, 0, %v7555
        %v7558 = vsub.s32 32, %v7557
        %v7559 = vshll.u32 %v7550, %v7557
        %v7560 = vshrl.u32 %v7542, %v7558
        %v7561 = vor.u32 %v7559, %v7560
        %v7562 = vsub.s32 4294967266, %v7557
        %v7563 = vadd.s32 %v7562, 127
        %v7564 = vshll.u32 %v7563, 23
        %v7565 = vor.u32 4788187, %v7564
        %v7566 = vand.u32 2147483647, %v7565
        %v7568 = vcvt.s32.f32 %v7561
        %v7569 = vmul.f32 %v7568, %v7566
        %v7570 = vxor.u32 %v7569, 2147483648
        %v7571 = vsel %vm7450, %v7570, %v7569
        %v7572 = vsub.s32 4, %v7548
        %v7573 = vsel %vm7450, %v7572, %v7548
        %v7574 = vsel %vm7449, %v5872, %v7571
        %v7575 = vsel %vm7449, 0, %v7573
        %v7576 = vmul.f32 %v7574, %v7574
        %v7577 = vmul.f32 %v7576, -0.001358992
        %v7578 = vadd.f32 %v7577, 0.041655596
        %v7579 = vmul.f32 %v7576, %v7578
        %v7580 = vadd.f32 %v7579, -0.4999988
        %v7581 = vmul.f32 %v7576, %v7580
        %v7582 = vadd.f32 1.0, %v7581
        %v7583 = vmul.f32 %v7574, %v7574
        %v7584 = vmul.f32 %v7583, -0.00019511016
        %v7585 = vadd.f32 %v7584, 0.008332121
        %v7586 = vmul.f32 %v7583, %v7585
        %v7587 = vadd.f32 %v7586, -0.16666654
        %v7588 = vmul.f32 %v7583, %v7587
        %v7589 = vadd.f32 %v7588, 1.0
        %v7590 = vmul.f32 %v7589, %v7574
        %vm7591 = vweird.f32 %v5872
        %v7592 = vadd.s32 %v7575, 3
        %v7593 = vand.u32 %v7592, 3
        %vm7594 = vcmp.lt.s32.totalorder %v7593, 2
        %vm7595 = vcmp.eq.s32.totalorder %v7593, 0
        %v7596 = vxor.u32 %v7590, 2147483648
        %v7597 = vsel %vm7595, %v7582, %v7596
        %vm7598 = vcmp.eq.s32.totalorder %v7593, 2
        %v7599 = vxor.u32 %v7582, 2147483648
        %v7600 = vsel %vm7598, %v7599, %v7590
        %v7601 = vsel %vm7594, %v7597, %v7600
        %v7602 = vsel %vm7591, nan, %v7601
        %v7603 = vand.u32 2147483647, %v5873
        %vm7604 = vcmp.le.f32.partialorder %v7603, 0.7853982
        %vm7605 = vcmp.lt.s32.totalorder %v5873, 0
        %v7606 = vand.u32 %v5873, 2139095040
        %v7607 = vshrl.u32 %v7606, 23
        %v7608 = vsub.s32 %v7607, 127
        %v7609 = vand.u32 2147483647, %v5873
        %v7610 = vand.u32 %v7609, 8388607
        %v7611 = vor.u32 %v7610, 8388608
        %v7612 = vsub.s32 0, %v7611
        %v7613 = vadd.s32 %v7608, 1
        %vm7614 = vcmp.gt.s32.totalorder %v7613, 0
        %v7615 = vsel %vm7614, %v7613, 0
        %v7616 = vshrl.u32 %v7615, 5
        %v7617 = vand.u32 %v7615, 31
        %v7618 = vsub.s32 32, %v7617
        %v7619 = vshrl.u32 683565275, %v7618
        %v7620 = vshll.u32 683565275, %v7617
        %v7621 = vshrl.u32 2475754826, %v7618
        %v7622 = vor.u32 %v7620, %v7621
        %v7623 = vshll.u32 2475754826, %v7617
        %v7624 = vshrl.u32 2131351028, %v7618
        %v7625 = vor.u32 %v7623, %v7624
        %v7626 = vshll.u32 2131351028, %v7617
        %v7627 = vshrl.u32 2102212464, %v7618
        %v7628 = vor.u32 %v7626, %v7627
        %v7629 = vshll.u32 2102212464, %v7617
        %v7630 = vshrl.u32 920167782, %v7618
        %v7631 = vor.u32 %v7629, %v7630
        %v7632 = vshll.u32 920167782, %v7617
        %v7633 = vshrl.u32 1326507024, %v7618
        %v7634 = vor.u32 %v7632, %v7633
        %vm7635 = vcmp.lt.s32.totalorder %v7616, 1
        %vm7636 = vcmp.lt.s32.totalorder %v7616, 2
        %vm7637 = vcmp.lt.s32.totalorder %v7616, 3
        %vm7638 = vcmp.lt.s32.totalorder %v7616, 4
        %v7639 = vsel %vm7635, %v7619, %v7622
        %v7640 = vsel %vm7638, %v7628, 2102212464
        %v7641 = vsel %vm7637, %v7625, %v7640
        %v7642 = vsel %vm7636, %v7639, %v7641
        %v7643 = vsel %vm7635, %v7622, %v7625
        %v7644 = vsel %vm7638, %v7631, 920167782
        %v7645 = vsel %vm7637, %v7628, %v7644
        %v7646 = vsel %vm7636, %v7643, %v7645
        %v7647 = vsel %vm7635, %v7625, %v7628
        %v7648 = vsel %vm7638, %v7634, 1326507024
        %v7649 = vsel %vm7637, %v7631, %v7648
        %v7650 = vsel %vm7636, %v7647, %v7649
        %v7651 = vshll.u32 %v7611, 8
        %v7652 = vand.u32 %v7651, 65535
        %v7653 = vshrl.u32 %v7651, 16
        %v7654 = vand.u32 %v7650, 65535
        %v7655 = vshrl.u32 %v7650, 16
        %v7656 = vmul.u32 %v7652, %v7654
        %v7657 = vmul.u32 %v7652, %v7655
        %v7658 = vmul.u32 %v7653, %v7654
        %v7659 = vmul.u32 %v7653, %v7655
        %v7660 = vshll.u32 %v7657, 16
        %v7661 = vshrl.u32 %v7657, 16
        %v7662 = vshll.u32 %v7658, 16
        %v7663 = vshrl.u32 %v7658, 16
        %vm7664 = vc.u32 %v7656, %v7660
        %v7665 = vsel %vm7664, 1, 0
        %v7666 = vadd.s32 %v7656, %v7660
        %v7667 = vadd.s32 %v7659, %v7665
        %vm7668 = vc.u32 %v7666, %v7662
        %v7669 = vsel %vm7668, 1, 0
        %v7670 = vadd.s32 %v7666, %v7662
        %v7671 = vadd.s32 %v7667, %v7669
        %v7672 = vadd.s32 %v7671, %v7661
        %v7673 = vadd.s32 %v7672, %v7663
        %v7674 = vand.u32 %v7651, 65535
        %v7675 = vshrl.u32 %v7651, 16
        %v7676 = vand.u32 %v7646, 65535
        %v7677 = vshrl.u32 %v7646, 16
        %v7678 = vmul.u32 %v7674, %v7676
        %v7679 = vmul.u32 %v7674, %v7677
        %v7680 = vmul.u32 %v7675, %v7676
        %v7681 = vmul.u32 %v7675, %v7677
        %v7682 = vshll.u32 %v7679, 16
        %v7683 = vshrl.u32 %v7679, 16
        %v7684 = vshll.u32 %v7680, 16
        %v7685 = vshrl.u32 %v7680, 16
        %vm7686 = vc.u32 %v7678, %v7682
        %v7687 = vsel %vm7686, 1, 0
        %v7688 = vadd.s32 %v7678, %v7682
        %v7689 = vadd.s32 %v7681, %v7687
        %vm7690 = vc.u32 %v7688, %v7684
        %v7691 = vsel %vm7690, 1, 0
        %v7692 = vadd.s32 %v7688, %v7684
        %v7693 = vadd.s32 %v7689, %v7691
        %v7694 = vadd.s32 %v7693, %v7683
        %v7695 = vadd.s32 %v7694, %v7685
        %v7696 = vmul.u32 %v7651, %v7642
        %v7697 = vadd.s32 %v7673, %v7692
        %vm7698 = vc.u32 %v7673, %v7692
        %v7699 = vadd.s32 %v7695, 1
        %v7700 = vsel %vm7698, %v7699, %v7695
        %v7701 = vadd.s32 %v7696, %v7700
        %v7702 = vadd.s32 %v7701, 536870912
        %v7703 = vshrl.u32 %v7702, 30
        %v7704 = vshll.u32 %v7703, 30
        %v7705 = vsub.s32 %v7701, %v7704
        %vm7706 = vcmp.lt.s32.totalorder %v7705, 0
        %v7707 = vsub.s32 0, %v7705
        %v7708 = vsel %vm7706, %v7707, %v7705
        %v7709 = vclz %v7708
        %v7710 = vsub.s32 %v7709, 2
        %vm7711 = vcmp.gt.s32.totalorder 0, %v7710
        %v7712 = vsel %vm7711, 0, %v7710
        %v7713 = vsub.s32 32, %v7712
        %v7714 = vshll.u32 %v7705, %v7712
        %v7715 = vshrl.u32 %v7697, %v7713
        %v7716 = vor.u32 %v7714, %v7715
        %v7717 = vsub.s32 4294967266, %v7712
        %v7718 = vadd.s32 %v7717, 127
        %v7719 = vshll.u32 %v7718, 23
        %v7720 = vor.u32 4788187, %v7719
        %v7721 = vand.u32 2147483647, %v7720
        %v7723 = vcvt.s32.f32 %v7716
        %v7724 = vmul.f32 %v7723, %v7721
        %v7725 = vxor.u32 %v7724, 2147483648
        %v7726 = vsel %vm7605, %v7725, %v7724
        %v7727 = vsub.s32 4, %v7703
        %v7728 = vsel %vm7605, %v7727, %v7703
        %v7729 = vsel %vm7604, %v5873, %v7726
        %v7730 = vsel %vm7604, 0, %v7728
        %v7731 = vmul.f32 %v7729, %v7729
        %v7732 = vmul.f32 %v7731, -0.001358992
        %v7733 = vadd.f32 %v7732, 0.041655596
        %v7734 = vmul.f32 %v7731, %v7733
        %v7735 = vadd.f32 %v7734, -0.4999988
        %v7736 = vmul.f32 %v7731, %v7735
        %v7737 = vadd.f32 1.0, %v7736
        %v7738 = vmul.f32 %v7729, %v7729
        %v7739 = vmul.f32 %v7738, -0.00019511016
        %v7740 = vadd.f32 %v7739, 0.008332121
        %v7741 = vmul.f32 %v7738, %v7740
        %v7742 = vadd.f32 %v7741, -0.16666654
        %v7743 = vmul.f32 %v7738, %v7742
        %v7744 = vadd.f32 %v7743, 1.0
        %v7745 = vmul.f32 %v7744, %v7729
        %vm7746 = vweird.f32 %v5873
        %v7747 = vadd.s32 %v7730, 3
        %v7748 = vand.u32 %v7747, 3
        %vm7749 = vcmp.lt.s32.totalorder %v7748, 2
        %vm7750 = vcmp.eq.s32.totalorder %v7748, 0
        %v7751 = vxor.u32 %v7745, 2147483648
        %v7752 = vsel %vm7750, %v7737, %v7751
        %vm7753 = vcmp.eq.s32.totalorder %v7748, 2
        %v7754 = vxor.u32 %v7737, 2147483648
        %v7755 = vsel %vm7753, %v7754, %v7745
        %v7756 = vsel %vm7749, %v7752, %v7755
        %v7757 = vsel %vm7746, nan, %v7756
        %v7758 = vand.u32 2147483647, %v5874
        %vm7759 = vcmp.le.f32.partialorder %v7758, 0.7853982
        %vm7760 = vcmp.lt.s32.totalorder %v5874, 0
        %v7761 = vand.u32 %v5874, 2139095040
        %v7762 = vshrl.u32 %v7761, 23
        %v7763 = vsub.s32 %v7762, 127
        %v7764 = vand.u32 2147483647, %v5874
        %v7765 = vand.u32 %v7764, 8388607
        %v7766 = vor.u32 %v7765, 8388608
        %v7767 = vsub.s32 0, %v7766
        %v7768 = vadd.s32 %v7763, 1
        %vm7769 = vcmp.gt.s32.totalorder %v7768, 0
        %v7770 = vsel %vm7769, %v7768, 0
        %v7771 = vshrl.u32 %v7770, 5
        %v7772 = vand.u32 %v7770, 31
        %v7773 = vsub.s32 32, %v7772
        %v7774 = vshrl.u32 683565275, %v7773
        %v7775 = vshll.u32 683565275, %v7772
        %v7776 = vshrl.u32 2475754826, %v7773
        %v7777 = vor.u32 %v7775, %v7776
        %v7778 = vshll.u32 2475754826, %v7772
        %v7779 = vshrl.u32 2131351028, %v7773
        %v7780 = vor.u32 %v7778, %v7779
        %v7781 = vshll.u32 2131351028, %v7772
        %v7782 = vshrl.u32 2102212464, %v7773
        %v7783 = vor.u32 %v7781, %v7782
        %v7784 = vshll.u32 2102212464, %v7772
        %v7785 = vshrl.u32 920167782, %v7773
        %v7786 = vor.u32 %v7784, %v7785
        %v7787 = vshll.u32 920167782, %v7772
        %v7788 = vshrl.u32 1326507024, %v7773
        %v7789 = vor.u32 %v7787, %v7788
        %vm7790 = vcmp.lt.s32.totalorder %v7771, 1
        %vm7791 = vcmp.lt.s32.totalorder %v7771, 2
        %vm7792 = vcmp.lt.s32.totalorder %v7771, 3
        %vm7793 = vcmp.lt.s32.totalorder %v7771, 4
        %v7794 = vsel %vm7790, %v7774, %v7777
        %v7795 = vsel %vm7793, %v7783, 2102212464
        %v7796 = vsel %vm7792, %v7780, %v7795
        %v7797 = vsel %vm7791, %v7794, %v7796
        %v7798 = vsel %vm7790, %v7777, %v7780
        %v7799 = vsel %vm7793, %v7786, 920167782
        %v7800 = vsel %vm7792, %v7783, %v7799
        %v7801 = vsel %vm7791, %v7798, %v7800
        %v7802 = vsel %vm7790, %v7780, %v7783
        %v7803 = vsel %vm7793, %v7789, 1326507024
        %v7804 = vsel %vm7792, %v7786, %v7803
        %v7805 = vsel %vm7791, %v7802, %v7804
        %v7806 = vshll.u32 %v7766, 8
        %v7807 = vand.u32 %v7806, 65535
        %v7808 = vshrl.u32 %v7806, 16
        %v7809 = vand.u32 %v7805, 65535
        %v7810 = vshrl.u32 %v7805, 16
        %v7811 = vmul.u32 %v7807, %v7809
        %v7812 = vmul.u32 %v7807, %v7810
        %v7813 = vmul.u32 %v7808, %v7809
        %v7814 = vmul.u32 %v7808, %v7810
        %v7815 = vshll.u32 %v7812, 16
        %v7816 = vshrl.u32 %v7812, 16
        %v7817 = vshll.u32 %v7813, 16
        %v7818 = vshrl.u32 %v7813, 16
        %vm7819 = vc.u32 %v7811, %v7815
        %v7820 = vsel %vm7819, 1, 0
        %v7821 = vadd.s32 %v7811, %v7815
        %v7822 = vadd.s32 %v7814, %v7820
        %vm7823 = vc.u32 %v7821, %v7817
        %v7824 = vsel %vm7823, 1, 0
        %v7825 = vadd.s32 %v7821, %v7817
        %v7826 = vadd.s32 %v7822, %v7824
        %v7827 = vadd.s32 %v7826, %v7816
        %v7828 = vadd.s32 %v7827, %v7818
        %v7829 = vand.u32 %v7806, 65535
        %v7830 = vshrl.u32 %v7806, 16
        %v7831 = vand.u32 %v7801, 65535
        %v7832 = vshrl.u32 %v7801, 16
        %v7833 = vmul.u32 %v7829, %v7831
        %v7834 = vmul.u32 %v7829, %v7832
        %v7835 = vmul.u32 %v7830, %v7831
        %v7836 = vmul.u32 %v7830, %v7832
        %v7837 = vshll.u32 %v7834, 16
        %v7838 = vshrl.u32 %v7834, 16
        %v7839 = vshll.u32 %v7835, 16
        %v7840 = vshrl.u32 %v7835, 16
        %vm7841 = vc.u32 %v7833, %v7837
        %v7842 = vsel %vm7841, 1, 0
        %v7843 = vadd.s32 %v7833, %v7837
        %v7844 = vadd.s32 %v7836, %v7842
        %vm7845 = vc.u32 %v7843, %v7839
        %v7846 = vsel %vm7845, 1, 0
        %v7847 = vadd.s32 %v7843, %v7839
        %v7848 = vadd.s32 %v7844, %v7846
        %v7849 = vadd.s32 %v7848, %v7838
        %v7850 = vadd.s32 %v7849, %v7840
        %v7851 = vmul.u32 %v7806, %v7797
        %v7852 = vadd.s32 %v7828, %v7847
        %vm7853 = vc.u32 %v7828, %v7847
        %v7854 = vadd.s32 %v7850, 1
        %v7855 = vsel %vm7853, %v7854, %v7850
        %v7856 = vadd.s32 %v7851, %v7855
        %v7857 = vadd.s32 %v7856, 536870912
        %v7858 = vshrl.u32 %v7857, 30
        %v7859 = vshll.u32 %v7858, 30
        %v7860 = vsub.s32 %v7856, %v7859
        %vm7861 = vcmp.lt.s32.totalorder %v7860, 0
        %v7862 = vsub.s32 0, %v7860
        %v7863 = vsel %vm7861, %v7862, %v7860
        %v7864 = vclz %v7863
        %v7865 = vsub.s32 %v7864, 2
        %vm7866 = vcmp.gt.s32.totalorder 0, %v7865
        %v7867 = vsel %vm7866, 0, %v7865
        %v7868 = vsub.s32 32, %v7867
        %v7869 = vshll.u32 %v7860, %v7867
        %v7870 = vshrl.u32 %v7852, %v7868
        %v7871 = vor.u32 %v7869, %v7870
        %v7872 = vsub.s32 4294967266, %v7867
        %v7873 = vadd.s32 %v7872, 127
        %v7874 = vshll.u32 %v7873, 23
        %v7875 = vor.u32 4788187, %v7874
        %v7876 = vand.u32 2147483647, %v7875
        %v7878 = vcvt.s32.f32 %v7871
        %v7879 = vmul.f32 %v7878, %v7876
        %v7880 = vxor.u32 %v7879, 2147483648
        %v7881 = vsel %vm7760, %v7880, %v7879
        %v7882 = vsub.s32 4, %v7858
        %v7883 = vsel %vm7760, %v7882, %v7858
        %v7884 = vsel %vm7759, %v5874, %v7881
        %v7885 = vsel %vm7759, 0, %v7883
        %v7886 = vmul.f32 %v7884, %v7884
        %v7887 = vmul.f32 %v7886, -0.001358992
        %v7888 = vadd.f32 %v7887, 0.041655596
        %v7889 = vmul.f32 %v7886, %v7888
        %v7890 = vadd.f32 %v7889, -0.4999988
        %v7891 = vmul.f32 %v7886, %v7890
        %v7892 = vadd.f32 1.0, %v7891
        %v7893 = vmul.f32 %v7884, %v7884
        %v7894 = vmul.f32 %v7893, -0.00019511016
        %v7895 = vadd.f32 %v7894, 0.008332121
        %v7896 = vmul.f32 %v7893, %v7895
        %v7897 = vadd.f32 %v7896, -0.16666654
        %v7898 = vmul.f32 %v7893, %v7897
        %v7899 = vadd.f32 %v7898, 1.0
        %v7900 = vmul.f32 %v7899, %v7884
        %vm7901 = vweird.f32 %v5874
        %v7902 = vadd.s32 %v7885, 3
        %v7903 = vand.u32 %v7902, 3
        %vm7904 = vcmp.lt.s32.totalorder %v7903, 2
        %vm7905 = vcmp.eq.s32.totalorder %v7903, 0
        %v7906 = vxor.u32 %v7900, 2147483648
        %v7907 = vsel %vm7905, %v7892, %v7906
        %vm7908 = vcmp.eq.s32.totalorder %v7903, 2
        %v7909 = vxor.u32 %v7892, 2147483648
        %v7910 = vsel %vm7908, %v7909, %v7900
        %v7911 = vsel %vm7904, %v7907, %v7910
        %v7912 = vsel %vm7901, nan, %v7911
        %v7913 = vand.u32 2147483647, %v5875
        %vm7914 = vcmp.le.f32.partialorder %v7913, 0.7853982
        %vm7915 = vcmp.lt.s32.totalorder %v5875, 0
        %v7916 = vand.u32 %v5875, 2139095040
        %v7917 = vshrl.u32 %v7916, 23
        %v7918 = vsub.s32 %v7917, 127
        %v7919 = vand.u32 2147483647, %v5875
        %v7920 = vand.u32 %v7919, 8388607
        %v7921 = vor.u32 %v7920, 8388608
        %v7922 = vsub.s32 0, %v7921
        %v7923 = vadd.s32 %v7918, 1
        %vm7924 = vcmp.gt.s32.totalorder %v7923, 0
        %v7925 = vsel %vm7924, %v7923, 0
        %v7926 = vshrl.u32 %v7925, 5
        %v7927 = vand.u32 %v7925, 31
        %v7928 = vsub.s32 32, %v7927
        %v7929 = vshrl.u32 683565275, %v7928
        %v7930 = vshll.u32 683565275, %v7927
        %v7931 = vshrl.u32 2475754826, %v7928
        %v7932 = vor.u32 %v7930, %v7931
        %v7933 = vshll.u32 2475754826, %v7927
        %v7934 = vshrl.u32 2131351028, %v7928
        %v7935 = vor.u32 %v7933, %v7934
        %v7936 = vshll.u32 2131351028, %v7927
        %v7937 = vshrl.u32 2102212464, %v7928
        %v7938 = vor.u32 %v7936, %v7937
        %v7939 = vshll.u32 2102212464, %v7927
        %v7940 = vshrl.u32 920167782, %v7928
        %v7941 = vor.u32 %v7939, %v7940
        %v7942 = vshll.u32 920167782, %v7927
        %v7943 = vshrl.u32 1326507024, %v7928
        %v7944 = vor.u32 %v7942, %v7943
        %vm7945 = vcmp.lt.s32.totalorder %v7926, 1
        %vm7946 = vcmp.lt.s32.totalorder %v7926, 2
        %vm7947 = vcmp.lt.s32.totalorder %v7926, 3
        %vm7948 = vcmp.lt.s32.totalorder %v7926, 4
        %v7949 = vsel %vm7945, %v7929, %v7932
        %v7950 = vsel %vm7948, %v7938, 2102212464
        %v7951 = vsel %vm7947, %v7935, %v7950
        %v7952 = vsel %vm7946, %v7949, %v7951
        %v7953 = vsel %vm7945, %v7932, %v7935
        %v7954 = vsel %vm7948, %v7941, 920167782
        %v7955 = vsel %vm7947, %v7938, %v7954
        %v7956 = vsel %vm7946, %v7953, %v7955
        %v7957 = vsel %vm7945, %v7935, %v7938
        %v7958 = vsel %vm7948, %v7944, 1326507024
        %v7959 = vsel %vm7947, %v7941, %v7958
        %v7960 = vsel %vm7946, %v7957, %v7959
        %v7961 = vshll.u32 %v7921, 8
        %v7962 = vand.u32 %v7961, 65535
        %v7963 = vshrl.u32 %v7961, 16
        %v7964 = vand.u32 %v7960, 65535
        %v7965 = vshrl.u32 %v7960, 16
        %v7966 = vmul.u32 %v7962, %v7964
        %v7967 = vmul.u32 %v7962, %v7965
        %v7968 = vmul.u32 %v7963, %v7964
        %v7969 = vmul.u32 %v7963, %v7965
        %v7970 = vshll.u32 %v7967, 16
        %v7971 = vshrl.u32 %v7967, 16
        %v7972 = vshll.u32 %v7968, 16
        %v7973 = vshrl.u32 %v7968, 16
        %vm7974 = vc.u32 %v7966, %v7970
        %v7975 = vsel %vm7974, 1, 0
        %v7976 = vadd.s32 %v7966, %v7970
        %v7977 = vadd.s32 %v7969, %v7975
        %vm7978 = vc.u32 %v7976, %v7972
        %v7979 = vsel %vm7978, 1, 0
        %v7980 = vadd.s32 %v7976, %v7972
        %v7981 = vadd.s32 %v7977, %v7979
        %v7982 = vadd.s32 %v7981, %v7971
        %v7983 = vadd.s32 %v7982, %v7973
        %v7984 = vand.u32 %v7961, 65535
        %v7985 = vshrl.u32 %v7961, 16
        %v7986 = vand.u32 %v7956, 65535
        %v7987 = vshrl.u32 %v7956, 16
        %v7988 = vmul.u32 %v7984, %v7986
        %v7989 = vmul.u32 %v7984, %v7987
        %v7990 = vmul.u32 %v7985, %v7986
        %v7991 = vmul.u32 %v7985, %v7987
        %v7992 = vshll.u32 %v7989, 16
        %v7993 = vshrl.u32 %v7989, 16
        %v7994 = vshll.u32 %v7990, 16
        %v7995 = vshrl.u32 %v7990, 16
        %vm7996 = vc.u32 %v7988, %v7992
        %v7997 = vsel %vm7996, 1, 0
        %v7998 = vadd.s32 %v7988, %v7992
        %v7999 = vadd.s32 %v7991, %v7997
        %vm8000 = vc.u32 %v7998, %v7994
        %v8001 = vsel %vm8000, 1, 0
        %v8002 = vadd.s32 %v7998, %v7994
        %v8003 = vadd.s32 %v7999, %v8001
        %v8004 = vadd.s32 %v8003, %v7993
        %v8005 = vadd.s32 %v8004, %v7995
        %v8006 = vmul.u32 %v7961, %v7952
        %v8007 = vadd.s32 %v7983, %v8002
        %vm8008 = vc.u32 %v7983, %v8002
        %v8009 = vadd.s32 %v8005, 1
        %v8010 = vsel %vm8008, %v8009, %v8005
        %v8011 = vadd.s32 %v8006, %v8010
        %v8012 = vadd.s32 %v8011, 536870912
        %v8013 = vshrl.u32 %v8012, 30
        %v8014 = vshll.u32 %v8013, 30
        %v8015 = vsub.s32 %v8011, %v8014
        %vm8016 = vcmp.lt.s32.totalorder %v8015, 0
        %v8017 = vsub.s32 0, %v8015
        %v8018 = vsel %vm8016, %v8017, %v8015
        %v8019 = vclz %v8018
        %v8020 = vsub.s32 %v8019, 2
        %vm8021 = vcmp.gt.s32.totalorder 0, %v8020
        %v8022 = vsel %vm8021, 0, %v8020
        %v8023 = vsub.s32 32, %v8022
        %v8024 = vshll.u32 %v8015, %v8022
        %v8025 = vshrl.u32 %v8007, %v8023
        %v8026 = vor.u32 %v8024, %v8025
        %v8027 = vsub.s32 4294967266, %v8022
        %v8028 = vadd.s32 %v8027, 127
        %v8029 = vshll.u32 %v8028, 23
        %v8030 = vor.u32 4788187, %v8029
        %v8031 = vand.u32 2147483647, %v8030
        %v8033 = vcvt.s32.f32 %v8026
        %v8034 = vmul.f32 %v8033, %v8031
        %v8035 = vxor.u32 %v8034, 2147483648
        %v8036 = vsel %vm7915, %v8035, %v8034
        %v8037 = vsub.s32 4, %v8013
        %v8038 = vsel %vm7915, %v8037, %v8013
        %v8039 = vsel %vm7914, %v5875, %v8036
        %v8040 = vsel %vm7914, 0, %v8038
        %v8041 = vmul.f32 %v8039, %v8039
        %v8042 = vmul.f32 %v8041, -0.001358992
        %v8043 = vadd.f32 %v8042, 0.041655596
        %v8044 = vmul.f32 %v8041, %v8043
        %v8045 = vadd.f32 %v8044, -0.4999988
        %v8046 = vmul.f32 %v8041, %v8045
        %v8047 = vadd.f32 1.0, %v8046
        %v8048 = vmul.f32 %v8039, %v8039
        %v8049 = vmul.f32 %v8048, -0.00019511016
        %v8050 = vadd.f32 %v8049, 0.008332121
        %v8051 = vmul.f32 %v8048, %v8050
        %v8052 = vadd.f32 %v8051, -0.16666654
        %v8053 = vmul.f32 %v8048, %v8052
        %v8054 = vadd.f32 %v8053, 1.0
        %v8055 = vmul.f32 %v8054, %v8039
        %vm8056 = vweird.f32 %v5875
        %v8057 = vadd.s32 %v8040, 3
        %v8058 = vand.u32 %v8057, 3
        %vm8059 = vcmp.lt.s32.totalorder %v8058, 2
        %vm8060 = vcmp.eq.s32.totalorder %v8058, 0
        %v8061 = vxor.u32 %v8055, 2147483648
        %v8062 = vsel %vm8060, %v8047, %v8061
        %vm8063 = vcmp.eq.s32.totalorder %v8058, 2
        %v8064 = vxor.u32 %v8047, 2147483648
        %v8065 = vsel %vm8063, %v8064, %v8055
        %v8066 = vsel %vm8059, %v8062, %v8065
        %v8067 = vsel %vm8056, nan, %v8066
        %v8068 = vand.u32 2147483647, %v5876
        %vm8069 = vcmp.le.f32.partialorder %v8068, 0.7853982
        %vm8070 = vcmp.lt.s32.totalorder %v5876, 0
        %v8071 = vand.u32 %v5876, 2139095040
        %v8072 = vshrl.u32 %v8071, 23
        %v8073 = vsub.s32 %v8072, 127
        %v8074 = vand.u32 2147483647, %v5876
        %v8075 = vand.u32 %v8074, 8388607
        %v8076 = vor.u32 %v8075, 8388608
        %v8077 = vsub.s32 0, %v8076
        %v8078 = vadd.s32 %v8073, 1
        %vm8079 = vcmp.gt.s32.totalorder %v8078, 0
        %v8080 = vsel %vm8079, %v8078, 0
        %v8081 = vshrl.u32 %v8080, 5
        %v8082 = vand.u32 %v8080, 31
        %v8083 = vsub.s32 32, %v8082
        %v8084 = vshrl.u32 683565275, %v8083
        %v8085 = vshll.u32 683565275, %v8082
        %v8086 = vshrl.u32 2475754826, %v8083
        %v8087 = vor.u32 %v8085, %v8086
        %v8088 = vshll.u32 2475754826, %v8082
        %v8089 = vshrl.u32 2131351028, %v8083
        %v8090 = vor.u32 %v8088, %v8089
        %v8091 = vshll.u32 2131351028, %v8082
        %v8092 = vshrl.u32 2102212464, %v8083
        %v8093 = vor.u32 %v8091, %v8092
        %v8094 = vshll.u32 2102212464, %v8082
        %v8095 = vshrl.u32 920167782, %v8083
        %v8096 = vor.u32 %v8094, %v8095
        %v8097 = vshll.u32 920167782, %v8082
        %v8098 = vshrl.u32 1326507024, %v8083
        %v8099 = vor.u32 %v8097, %v8098
        %vm8100 = vcmp.lt.s32.totalorder %v8081, 1
        %vm8101 = vcmp.lt.s32.totalorder %v8081, 2
        %vm8102 = vcmp.lt.s32.totalorder %v8081, 3
        %vm8103 = vcmp.lt.s32.totalorder %v8081, 4
        %v8104 = vsel %vm8100, %v8084, %v8087
        %v8105 = vsel %vm8103, %v8093, 2102212464
        %v8106 = vsel %vm8102, %v8090, %v8105
        %v8107 = vsel %vm8101, %v8104, %v8106
        %v8108 = vsel %vm8100, %v8087, %v8090
        %v8109 = vsel %vm8103, %v8096, 920167782
        %v8110 = vsel %vm8102, %v8093, %v8109
        %v8111 = vsel %vm8101, %v8108, %v8110
        %v8112 = vsel %vm8100, %v8090, %v8093
        %v8113 = vsel %vm8103, %v8099, 1326507024
        %v8114 = vsel %vm8102, %v8096, %v8113
        %v8115 = vsel %vm8101, %v8112, %v8114
        %v8116 = vshll.u32 %v8076, 8
        %v8117 = vand.u32 %v8116, 65535
        %v8118 = vshrl.u32 %v8116, 16
        %v8119 = vand.u32 %v8115, 65535
        %v8120 = vshrl.u32 %v8115, 16
        %v8121 = vmul.u32 %v8117, %v8119
        %v8122 = vmul.u32 %v8117, %v8120
        %v8123 = vmul.u32 %v8118, %v8119
        %v8124 = vmul.u32 %v8118, %v8120
        %v8125 = vshll.u32 %v8122, 16
        %v8126 = vshrl.u32 %v8122, 16
        %v8127 = vshll.u32 %v8123, 16
        %v8128 = vshrl.u32 %v8123, 16
        %vm8129 = vc.u32 %v8121, %v8125
        %v8130 = vsel %vm8129, 1, 0
        %v8131 = vadd.s32 %v8121, %v8125
        %v8132 = vadd.s32 %v8124, %v8130
        %vm8133 = vc.u32 %v8131, %v8127
        %v8134 = vsel %vm8133, 1, 0
        %v8135 = vadd.s32 %v8131, %v8127
        %v8136 = vadd.s32 %v8132, %v8134
        %v8137 = vadd.s32 %v8136, %v8126
        %v8138 = vadd.s32 %v8137, %v8128
        %v8139 = vand.u32 %v8116, 65535
        %v8140 = vshrl.u32 %v8116, 16
        %v8141 = vand.u32 %v8111, 65535
        %v8142 = vshrl.u32 %v8111, 16
        %v8143 = vmul.u32 %v8139, %v8141
        %v8144 = vmul.u32 %v8139, %v8142
        %v8145 = vmul.u32 %v8140, %v8141
        %v8146 = vmul.u32 %v8140, %v8142
        %v8147 = vshll.u32 %v8144, 16
        %v8148 = vshrl.u32 %v8144, 16
        %v8149 = vshll.u32 %v8145, 16
        %v8150 = vshrl.u32 %v8145, 16
        %vm8151 = vc.u32 %v8143, %v8147
        %v8152 = vsel %vm8151, 1, 0
        %v8153 = vadd.s32 %v8143, %v8147
        %v8154 = vadd.s32 %v8146, %v8152
        %vm8155 = vc.u32 %v8153, %v8149
        %v8156 = vsel %vm8155, 1, 0
        %v8157 = vadd.s32 %v8153, %v8149
        %v8158 = vadd.s32 %v8154, %v8156
        %v8159 = vadd.s32 %v8158, %v8148
        %v8160 = vadd.s32 %v8159, %v8150
        %v8161 = vmul.u32 %v8116, %v8107
        %v8162 = vadd.s32 %v8138, %v8157
        %vm8163 = vc.u32 %v8138, %v8157
        %v8164 = vadd.s32 %v8160, 1
        %v8165 = vsel %vm8163, %v8164, %v8160
        %v8166 = vadd.s32 %v8161, %v8165
        %v8167 = vadd.s32 %v8166, 536870912
        %v8168 = vshrl.u32 %v8167, 30
        %v8169 = vshll.u32 %v8168, 30
        %v8170 = vsub.s32 %v8166, %v8169
        %vm8171 = vcmp.lt.s32.totalorder %v8170, 0
        %v8172 = vsub.s32 0, %v8170
        %v8173 = vsel %vm8171, %v8172, %v8170
        %v8174 = vclz %v8173
        %v8175 = vsub.s32 %v8174, 2
        %vm8176 = vcmp.gt.s32.totalorder 0, %v8175
        %v8177 = vsel %vm8176, 0, %v8175
        %v8178 = vsub.s32 32, %v8177
        %v8179 = vshll.u32 %v8170, %v8177
        %v8180 = vshrl.u32 %v8162, %v8178
        %v8181 = vor.u32 %v8179, %v8180
        %v8182 = vsub.s32 4294967266, %v8177
        %v8183 = vadd.s32 %v8182, 127
        %v8184 = vshll.u32 %v8183, 23
        %v8185 = vor.u32 4788187, %v8184
        %v8186 = vand.u32 2147483647, %v8185
        %v8188 = vcvt.s32.f32 %v8181
        %v8189 = vmul.f32 %v8188, %v8186
        %v8190 = vxor.u32 %v8189, 2147483648
        %v8191 = vsel %vm8070, %v8190, %v8189
        %v8192 = vsub.s32 4, %v8168
        %v8193 = vsel %vm8070, %v8192, %v8168
        %v8194 = vsel %vm8069, %v5876, %v8191
        %v8195 = vsel %vm8069, 0, %v8193
        %v8196 = vmul.f32 %v8194, %v8194
        %v8197 = vmul.f32 %v8196, -0.001358992
        %v8198 = vadd.f32 %v8197, 0.041655596
        %v8199 = vmul.f32 %v8196, %v8198
        %v8200 = vadd.f32 %v8199, -0.4999988
        %v8201 = vmul.f32 %v8196, %v8200
        %v8202 = vadd.f32 1.0, %v8201
        %v8203 = vmul.f32 %v8194, %v8194
        %v8204 = vmul.f32 %v8203, -0.00019511016
        %v8205 = vadd.f32 %v8204, 0.008332121
        %v8206 = vmul.f32 %v8203, %v8205
        %v8207 = vadd.f32 %v8206, -0.16666654
        %v8208 = vmul.f32 %v8203, %v8207
        %v8209 = vadd.f32 %v8208, 1.0
        %v8210 = vmul.f32 %v8209, %v8194
        %vm8211 = vweird.f32 %v5876
        %v8212 = vadd.s32 %v8195, 3
        %v8213 = vand.u32 %v8212, 3
        %vm8214 = vcmp.lt.s32.totalorder %v8213, 2
        %vm8215 = vcmp.eq.s32.totalorder %v8213, 0
        %v8216 = vxor.u32 %v8210, 2147483648
        %v8217 = vsel %vm8215, %v8202, %v8216
        %vm8218 = vcmp.eq.s32.totalorder %v8213, 2
        %v8219 = vxor.u32 %v8202, 2147483648
        %v8220 = vsel %vm8218, %v8219, %v8210
        %v8221 = vsel %vm8214, %v8217, %v8220
        %v8222 = vsel %vm8211, nan, %v8221
        %v8223 = vand.u32 2147483647, %v5877
        %vm8224 = vcmp.le.f32.partialorder %v8223, 0.7853982
        %vm8225 = vcmp.lt.s32.totalorder %v5877, 0
        %v8226 = vand.u32 %v5877, 2139095040
        %v8227 = vshrl.u32 %v8226, 23
        %v8228 = vsub.s32 %v8227, 127
        %v8229 = vand.u32 2147483647, %v5877
        %v8230 = vand.u32 %v8229, 8388607
        %v8231 = vor.u32 %v8230, 8388608
        %v8232 = vsub.s32 0, %v8231
        %v8233 = vadd.s32 %v8228, 1
        %vm8234 = vcmp.gt.s32.totalorder %v8233, 0
        %v8235 = vsel %vm8234, %v8233, 0
        %v8236 = vshrl.u32 %v8235, 5
        %v8237 = vand.u32 %v8235, 31
        %v8238 = vsub.s32 32, %v8237
        %v8239 = vshrl.u32 683565275, %v8238
        %v8240 = vshll.u32 683565275, %v8237
        %v8241 = vshrl.u32 2475754826, %v8238
        %v8242 = vor.u32 %v8240, %v8241
        %v8243 = vshll.u32 2475754826, %v8237
        %v8244 = vshrl.u32 2131351028, %v8238
        %v8245 = vor.u32 %v8243, %v8244
        %v8246 = vshll.u32 2131351028, %v8237
        %v8247 = vshrl.u32 2102212464, %v8238
        %v8248 = vor.u32 %v8246, %v8247
        %v8249 = vshll.u32 2102212464, %v8237
        %v8250 = vshrl.u32 920167782, %v8238
        %v8251 = vor.u32 %v8249, %v8250
        %v8252 = vshll.u32 920167782, %v8237
        %v8253 = vshrl.u32 1326507024, %v8238
        %v8254 = vor.u32 %v8252, %v8253
        %vm8255 = vcmp.lt.s32.totalorder %v8236, 1
        %vm8256 = vcmp.lt.s32.totalorder %v8236, 2
        %vm8257 = vcmp.lt.s32.totalorder %v8236, 3
        %vm8258 = vcmp.lt.s32.totalorder %v8236, 4
        %v8259 = vsel %vm8255, %v8239, %v8242
        %v8260 = vsel %vm8258, %v8248, 2102212464
        %v8261 = vsel %vm8257, %v8245, %v8260
        %v8262 = vsel %vm8256, %v8259, %v8261
        %v8263 = vsel %vm8255, %v8242, %v8245
        %v8264 = vsel %vm8258, %v8251, 920167782
        %v8265 = vsel %vm8257, %v8248, %v8264
        %v8266 = vsel %vm8256, %v8263, %v8265
        %v8267 = vsel %vm8255, %v8245, %v8248
        %v8268 = vsel %vm8258, %v8254, 1326507024
        %v8269 = vsel %vm8257, %v8251, %v8268
        %v8270 = vsel %vm8256, %v8267, %v8269
        %v8271 = vshll.u32 %v8231, 8
        %v8272 = vand.u32 %v8271, 65535
        %v8273 = vshrl.u32 %v8271, 16
        %v8274 = vand.u32 %v8270, 65535
        %v8275 = vshrl.u32 %v8270, 16
        %v8276 = vmul.u32 %v8272, %v8274
        %v8277 = vmul.u32 %v8272, %v8275
        %v8278 = vmul.u32 %v8273, %v8274
        %v8279 = vmul.u32 %v8273, %v8275
        %v8280 = vshll.u32 %v8277, 16
        %v8281 = vshrl.u32 %v8277, 16
        %v8282 = vshll.u32 %v8278, 16
        %v8283 = vshrl.u32 %v8278, 16
        %vm8284 = vc.u32 %v8276, %v8280
        %v8285 = vsel %vm8284, 1, 0
        %v8286 = vadd.s32 %v8276, %v8280
        %v8287 = vadd.s32 %v8279, %v8285
        %vm8288 = vc.u32 %v8286, %v8282
        %v8289 = vsel %vm8288, 1, 0
        %v8290 = vadd.s32 %v8286, %v8282
        %v8291 = vadd.s32 %v8287, %v8289
        %v8292 = vadd.s32 %v8291, %v8281
        %v8293 = vadd.s32 %v8292, %v8283
        %v8294 = vand.u32 %v8271, 65535
        %v8295 = vshrl.u32 %v8271, 16
        %v8296 = vand.u32 %v8266, 65535
        %v8297 = vshrl.u32 %v8266, 16
        %v8298 = vmul.u32 %v8294, %v8296
        %v8299 = vmul.u32 %v8294, %v8297
        %v8300 = vmul.u32 %v8295, %v8296
        %v8301 = vmul.u32 %v8295, %v8297
        %v8302 = vshll.u32 %v8299, 16
        %v8303 = vshrl.u32 %v8299, 16
        %v8304 = vshll.u32 %v8300, 16
        %v8305 = vshrl.u32 %v8300, 16
        %vm8306 = vc.u32 %v8298, %v8302
        %v8307 = vsel %vm8306, 1, 0
        %v8308 = vadd.s32 %v8298, %v8302
        %v8309 = vadd.s32 %v8301, %v8307
        %vm8310 = vc.u32 %v8308, %v8304
        %v8311 = vsel %vm8310, 1, 0
        %v8312 = vadd.s32 %v8308, %v8304
        %v8313 = vadd.s32 %v8309, %v8311
        %v8314 = vadd.s32 %v8313, %v8303
        %v8315 = vadd.s32 %v8314, %v8305
        %v8316 = vmul.u32 %v8271, %v8262
        %v8317 = vadd.s32 %v8293, %v8312
        %vm8318 = vc.u32 %v8293, %v8312
        %v8319 = vadd.s32 %v8315, 1
        %v8320 = vsel %vm8318, %v8319, %v8315
        %v8321 = vadd.s32 %v8316, %v8320
        %v8322 = vadd.s32 %v8321, 536870912
        %v8323 = vshrl.u32 %v8322, 30
        %v8324 = vshll.u32 %v8323, 30
        %v8325 = vsub.s32 %v8321, %v8324
        %vm8326 = vcmp.lt.s32.totalorder %v8325, 0
        %v8327 = vsub.s32 0, %v8325
        %v8328 = vsel %vm8326, %v8327, %v8325
        %v8329 = vclz %v8328
        %v8330 = vsub.s32 %v8329, 2
        %vm8331 = vcmp.gt.s32.totalorder 0, %v8330
        %v8332 = vsel %vm8331, 0, %v8330
        %v8333 = vsub.s32 32, %v8332
        %v8334 = vshll.u32 %v8325, %v8332
        %v8335 = vshrl.u32 %v8317, %v8333
        %v8336 = vor.u32 %v8334, %v8335
        %v8337 = vsub.s32 4294967266, %v8332
        %v8338 = vadd.s32 %v8337, 127
        %v8339 = vshll.u32 %v8338, 23
        %v8340 = vor.u32 4788187, %v8339
        %v8341 = vand.u32 2147483647, %v8340
        %v8343 = vcvt.s32.f32 %v8336
        %v8344 = vmul.f32 %v8343, %v8341
        %v8345 = vxor.u32 %v8344, 2147483648
        %v8346 = vsel %vm8225, %v8345, %v8344
        %v8347 = vsub.s32 4, %v8323
        %v8348 = vsel %vm8225, %v8347, %v8323
        %v8349 = vsel %vm8224, %v5877, %v8346
        %v8350 = vsel %vm8224, 0, %v8348
        %v8351 = vmul.f32 %v8349, %v8349
        %v8352 = vmul.f32 %v8351, -0.001358992
        %v8353 = vadd.f32 %v8352, 0.041655596
        %v8354 = vmul.f32 %v8351, %v8353
        %v8355 = vadd.f32 %v8354, -0.4999988
        %v8356 = vmul.f32 %v8351, %v8355
        %v8357 = vadd.f32 1.0, %v8356
        %v8358 = vmul.f32 %v8349, %v8349
        %v8359 = vmul.f32 %v8358, -0.00019511016
        %v8360 = vadd.f32 %v8359, 0.008332121
        %v8361 = vmul.f32 %v8358, %v8360
        %v8362 = vadd.f32 %v8361, -0.16666654
        %v8363 = vmul.f32 %v8358, %v8362
        %v8364 = vadd.f32 %v8363, 1.0
        %v8365 = vmul.f32 %v8364, %v8349
        %vm8366 = vweird.f32 %v5877
        %v8367 = vadd.s32 %v8350, 3
        %v8368 = vand.u32 %v8367, 3
        %vm8369 = vcmp.lt.s32.totalorder %v8368, 2
        %vm8370 = vcmp.eq.s32.totalorder %v8368, 0
        %v8371 = vxor.u32 %v8365, 2147483648
        %v8372 = vsel %vm8370, %v8357, %v8371
        %vm8373 = vcmp.eq.s32.totalorder %v8368, 2
        %v8374 = vxor.u32 %v8357, 2147483648
        %v8375 = vsel %vm8373, %v8374, %v8365
        %v8376 = vsel %vm8369, %v8372, %v8375
        %v8377 = vsel %vm8366, nan, %v8376
        %v8378 = vand.u32 2147483647, %v5878
        %vm8379 = vcmp.le.f32.partialorder %v8378, 0.7853982
        %vm8380 = vcmp.lt.s32.totalorder %v5878, 0
        %v8381 = vand.u32 %v5878, 2139095040
        %v8382 = vshrl.u32 %v8381, 23
        %v8383 = vsub.s32 %v8382, 127
        %v8384 = vand.u32 2147483647, %v5878
        %v8385 = vand.u32 %v8384, 8388607
        %v8386 = vor.u32 %v8385, 8388608
        %v8387 = vsub.s32 0, %v8386
        %v8388 = vadd.s32 %v8383, 1
        %vm8389 = vcmp.gt.s32.totalorder %v8388, 0
        %v8390 = vsel %vm8389, %v8388, 0
        %v8391 = vshrl.u32 %v8390, 5
        %v8392 = vand.u32 %v8390, 31
        %v8393 = vsub.s32 32, %v8392
        %v8394 = vshrl.u32 683565275, %v8393
        %v8395 = vshll.u32 683565275, %v8392
        %v8396 = vshrl.u32 2475754826, %v8393
        %v8397 = vor.u32 %v8395, %v8396
        %v8398 = vshll.u32 2475754826, %v8392
        %v8399 = vshrl.u32 2131351028, %v8393
        %v8400 = vor.u32 %v8398, %v8399
        %v8401 = vshll.u32 2131351028, %v8392
        %v8402 = vshrl.u32 2102212464, %v8393
        %v8403 = vor.u32 %v8401, %v8402
        %v8404 = vshll.u32 2102212464, %v8392
        %v8405 = vshrl.u32 920167782, %v8393
        %v8406 = vor.u32 %v8404, %v8405
        %v8407 = vshll.u32 920167782, %v8392
        %v8408 = vshrl.u32 1326507024, %v8393
        %v8409 = vor.u32 %v8407, %v8408
        %vm8410 = vcmp.lt.s32.totalorder %v8391, 1
        %vm8411 = vcmp.lt.s32.totalorder %v8391, 2
        %vm8412 = vcmp.lt.s32.totalorder %v8391, 3
        %vm8413 = vcmp.lt.s32.totalorder %v8391, 4
        %v8414 = vsel %vm8410, %v8394, %v8397
        %v8415 = vsel %vm8413, %v8403, 2102212464
        %v8416 = vsel %vm8412, %v8400, %v8415
        %v8417 = vsel %vm8411, %v8414, %v8416
        %v8418 = vsel %vm8410, %v8397, %v8400
        %v8419 = vsel %vm8413, %v8406, 920167782
        %v8420 = vsel %vm8412, %v8403, %v8419
        %v8421 = vsel %vm8411, %v8418, %v8420
        %v8422 = vsel %vm8410, %v8400, %v8403
        %v8423 = vsel %vm8413, %v8409, 1326507024
        %v8424 = vsel %vm8412, %v8406, %v8423
        %v8425 = vsel %vm8411, %v8422, %v8424
        %v8426 = vshll.u32 %v8386, 8
        %v8427 = vand.u32 %v8426, 65535
        %v8428 = vshrl.u32 %v8426, 16
        %v8429 = vand.u32 %v8425, 65535
        %v8430 = vshrl.u32 %v8425, 16
        %v8431 = vmul.u32 %v8427, %v8429
        %v8432 = vmul.u32 %v8427, %v8430
        %v8433 = vmul.u32 %v8428, %v8429
        %v8434 = vmul.u32 %v8428, %v8430
        %v8435 = vshll.u32 %v8432, 16
        %v8436 = vshrl.u32 %v8432, 16
        %v8437 = vshll.u32 %v8433, 16
        %v8438 = vshrl.u32 %v8433, 16
        %vm8439 = vc.u32 %v8431, %v8435
        %v8440 = vsel %vm8439, 1, 0
        %v8441 = vadd.s32 %v8431, %v8435
        %v8442 = vadd.s32 %v8434, %v8440
        %vm8443 = vc.u32 %v8441, %v8437
        %v8444 = vsel %vm8443, 1, 0
        %v8445 = vadd.s32 %v8441, %v8437
        %v8446 = vadd.s32 %v8442, %v8444
        %v8447 = vadd.s32 %v8446, %v8436
        %v8448 = vadd.s32 %v8447, %v8438
        %v8449 = vand.u32 %v8426, 65535
        %v8450 = vshrl.u32 %v8426, 16
        %v8451 = vand.u32 %v8421, 65535
        %v8452 = vshrl.u32 %v8421, 16
        %v8453 = vmul.u32 %v8449, %v8451
        %v8454 = vmul.u32 %v8449, %v8452
        %v8455 = vmul.u32 %v8450, %v8451
        %v8456 = vmul.u32 %v8450, %v8452
        %v8457 = vshll.u32 %v8454, 16
        %v8458 = vshrl.u32 %v8454, 16
        %v8459 = vshll.u32 %v8455, 16
        %v8460 = vshrl.u32 %v8455, 16
        %vm8461 = vc.u32 %v8453, %v8457
        %v8462 = vsel %vm8461, 1, 0
        %v8463 = vadd.s32 %v8453, %v8457
        %v8464 = vadd.s32 %v8456, %v8462
        %vm8465 = vc.u32 %v8463, %v8459
        %v8466 = vsel %vm8465, 1, 0
        %v8467 = vadd.s32 %v8463, %v8459
        %v8468 = vadd.s32 %v8464, %v8466
        %v8469 = vadd.s32 %v8468, %v8458
        %v8470 = vadd.s32 %v8469, %v8460
        %v8471 = vmul.u32 %v8426, %v8417
        %v8472 = vadd.s32 %v8448, %v8467
        %vm8473 = vc.u32 %v8448, %v8467
        %v8474 = vadd.s32 %v8470, 1
        %v8475 = vsel %vm8473, %v8474, %v8470
        %v8476 = vadd.s32 %v8471, %v8475
        %v8477 = vadd.s32 %v8476, 536870912
        %v8478 = vshrl.u32 %v8477, 30
        %v8479 = vshll.u32 %v8478, 30
        %v8480 = vsub.s32 %v8476, %v8479
        %vm8481 = vcmp.lt.s32.totalorder %v8480, 0
        %v8482 = vsub.s32 0, %v8480
        %v8483 = vsel %vm8481, %v8482, %v8480
        %v8484 = vclz %v8483
        %v8485 = vsub.s32 %v8484, 2
        %vm8486 = vcmp.gt.s32.totalorder 0, %v8485
        %v8487 = vsel %vm8486, 0, %v8485
        %v8488 = vsub.s32 32, %v8487
        %v8489 = vshll.u32 %v8480, %v8487
        %v8490 = vshrl.u32 %v8472, %v8488
        %v8491 = vor.u32 %v8489, %v8490
        %v8492 = vsub.s32 4294967266, %v8487
        %v8493 = vadd.s32 %v8492, 127
        %v8494 = vshll.u32 %v8493, 23
        %v8495 = vor.u32 4788187, %v8494
        %v8496 = vand.u32 2147483647, %v8495
        %v8498 = vcvt.s32.f32 %v8491
        %v8499 = vmul.f32 %v8498, %v8496
        %v8500 = vxor.u32 %v8499, 2147483648
        %v8501 = vsel %vm8380, %v8500, %v8499
        %v8502 = vsub.s32 4, %v8478
        %v8503 = vsel %vm8380, %v8502, %v8478
        %v8504 = vsel %vm8379, %v5878, %v8501
        %v8505 = vsel %vm8379, 0, %v8503
        %v8506 = vmul.f32 %v8504, %v8504
        %v8507 = vmul.f32 %v8506, -0.001358992
        %v8508 = vadd.f32 %v8507, 0.041655596
        %v8509 = vmul.f32 %v8506, %v8508
        %v8510 = vadd.f32 %v8509, -0.4999988
        %v8511 = vmul.f32 %v8506, %v8510
        %v8512 = vadd.f32 1.0, %v8511
        %v8513 = vmul.f32 %v8504, %v8504
        %v8514 = vmul.f32 %v8513, -0.00019511016
        %v8515 = vadd.f32 %v8514, 0.008332121
        %v8516 = vmul.f32 %v8513, %v8515
        %v8517 = vadd.f32 %v8516, -0.16666654
        %v8518 = vmul.f32 %v8513, %v8517
        %v8519 = vadd.f32 %v8518, 1.0
        %v8520 = vmul.f32 %v8519, %v8504
        %vm8521 = vweird.f32 %v5878
        %v8522 = vadd.s32 %v8505, 3
        %v8523 = vand.u32 %v8522, 3
        %vm8524 = vcmp.lt.s32.totalorder %v8523, 2
        %vm8525 = vcmp.eq.s32.totalorder %v8523, 0
        %v8526 = vxor.u32 %v8520, 2147483648
        %v8527 = vsel %vm8525, %v8512, %v8526
        %vm8528 = vcmp.eq.s32.totalorder %v8523, 2
        %v8529 = vxor.u32 %v8512, 2147483648
        %v8530 = vsel %vm8528, %v8529, %v8520
        %v8531 = vsel %vm8524, %v8527, %v8530
        %v8532 = vsel %vm8521, nan, %v8531
        %v8533 = vand.u32 2147483647, %v5879
        %vm8534 = vcmp.le.f32.partialorder %v8533, 0.7853982
        %vm8535 = vcmp.lt.s32.totalorder %v5879, 0
        %v8536 = vand.u32 %v5879, 2139095040
        %v8537 = vshrl.u32 %v8536, 23
        %v8538 = vsub.s32 %v8537, 127
        %v8539 = vand.u32 2147483647, %v5879
        %v8540 = vand.u32 %v8539, 8388607
        %v8541 = vor.u32 %v8540, 8388608
        %v8542 = vsub.s32 0, %v8541
        %v8543 = vadd.s32 %v8538, 1
        %vm8544 = vcmp.gt.s32.totalorder %v8543, 0
        %v8545 = vsel %vm8544, %v8543, 0
        %v8546 = vshrl.u32 %v8545, 5
        %v8547 = vand.u32 %v8545, 31
        %v8548 = vsub.s32 32, %v8547
        %v8549 = vshrl.u32 683565275, %v8548
        %v8550 = vshll.u32 683565275, %v8547
        %v8551 = vshrl.u32 2475754826, %v8548
        %v8552 = vor.u32 %v8550, %v8551
        %v8553 = vshll.u32 2475754826, %v8547
        %v8554 = vshrl.u32 2131351028, %v8548
        %v8555 = vor.u32 %v8553, %v8554
        %v8556 = vshll.u32 2131351028, %v8547
        %v8557 = vshrl.u32 2102212464, %v8548
        %v8558 = vor.u32 %v8556, %v8557
        %v8559 = vshll.u32 2102212464, %v8547
        %v8560 = vshrl.u32 920167782, %v8548
        %v8561 = vor.u32 %v8559, %v8560
        %v8562 = vshll.u32 920167782, %v8547
        %v8563 = vshrl.u32 1326507024, %v8548
        %v8564 = vor.u32 %v8562, %v8563
        %vm8565 = vcmp.lt.s32.totalorder %v8546, 1
        %vm8566 = vcmp.lt.s32.totalorder %v8546, 2
        %vm8567 = vcmp.lt.s32.totalorder %v8546, 3
        %vm8568 = vcmp.lt.s32.totalorder %v8546, 4
        %v8569 = vsel %vm8565, %v8549, %v8552
        %v8570 = vsel %vm8568, %v8558, 2102212464
        %v8571 = vsel %vm8567, %v8555, %v8570
        %v8572 = vsel %vm8566, %v8569, %v8571
        %v8573 = vsel %vm8565, %v8552, %v8555
        %v8574 = vsel %vm8568, %v8561, 920167782
        %v8575 = vsel %vm8567, %v8558, %v8574
        %v8576 = vsel %vm8566, %v8573, %v8575
        %v8577 = vsel %vm8565, %v8555, %v8558
        %v8578 = vsel %vm8568, %v8564, 1326507024
        %v8579 = vsel %vm8567, %v8561, %v8578
        %v8580 = vsel %vm8566, %v8577, %v8579
        %v8581 = vshll.u32 %v8541, 8
        %v8582 = vand.u32 %v8581, 65535
        %v8583 = vshrl.u32 %v8581, 16
        %v8584 = vand.u32 %v8580, 65535
        %v8585 = vshrl.u32 %v8580, 16
        %v8586 = vmul.u32 %v8582, %v8584
        %v8587 = vmul.u32 %v8582, %v8585
        %v8588 = vmul.u32 %v8583, %v8584
        %v8589 = vmul.u32 %v8583, %v8585
        %v8590 = vshll.u32 %v8587, 16
        %v8591 = vshrl.u32 %v8587, 16
        %v8592 = vshll.u32 %v8588, 16
        %v8593 = vshrl.u32 %v8588, 16
        %vm8594 = vc.u32 %v8586, %v8590
        %v8595 = vsel %vm8594, 1, 0
        %v8596 = vadd.s32 %v8586, %v8590
        %v8597 = vadd.s32 %v8589, %v8595
        %vm8598 = vc.u32 %v8596, %v8592
        %v8599 = vsel %vm8598, 1, 0
        %v8600 = vadd.s32 %v8596, %v8592
        %v8601 = vadd.s32 %v8597, %v8599
        %v8602 = vadd.s32 %v8601, %v8591
        %v8603 = vadd.s32 %v8602, %v8593
        %v8604 = vand.u32 %v8581, 65535
        %v8605 = vshrl.u32 %v8581, 16
        %v8606 = vand.u32 %v8576, 65535
        %v8607 = vshrl.u32 %v8576, 16
        %v8608 = vmul.u32 %v8604, %v8606
        %v8609 = vmul.u32 %v8604, %v8607
        %v8610 = vmul.u32 %v8605, %v8606
        %v8611 = vmul.u32 %v8605, %v8607
        %v8612 = vshll.u32 %v8609, 16
        %v8613 = vshrl.u32 %v8609, 16
        %v8614 = vshll.u32 %v8610, 16
        %v8615 = vshrl.u32 %v8610, 16
        %vm8616 = vc.u32 %v8608, %v8612
        %v8617 = vsel %vm8616, 1, 0
        %v8618 = vadd.s32 %v8608, %v8612
        %v8619 = vadd.s32 %v8611, %v8617
        %vm8620 = vc.u32 %v8618, %v8614
        %v8621 = vsel %vm8620, 1, 0
        %v8622 = vadd.s32 %v8618, %v8614
        %v8623 = vadd.s32 %v8619, %v8621
        %v8624 = vadd.s32 %v8623, %v8613
        %v8625 = vadd.s32 %v8624, %v8615
        %v8626 = vmul.u32 %v8581, %v8572
        %v8627 = vadd.s32 %v8603, %v8622
        %vm8628 = vc.u32 %v8603, %v8622
        %v8629 = vadd.s32 %v8625, 1
        %v8630 = vsel %vm8628, %v8629, %v8625
        %v8631 = vadd.s32 %v8626, %v8630
        %v8632 = vadd.s32 %v8631, 536870912
        %v8633 = vshrl.u32 %v8632, 30
        %v8634 = vshll.u32 %v8633, 30
        %v8635 = vsub.s32 %v8631, %v8634
        %vm8636 = vcmp.lt.s32.totalorder %v8635, 0
        %v8637 = vsub.s32 0, %v8635
        %v8638 = vsel %vm8636, %v8637, %v8635
        %v8639 = vclz %v8638
        %v8640 = vsub.s32 %v8639, 2
        %vm8641 = vcmp.gt.s32.totalorder 0, %v8640
        %v8642 = vsel %vm8641, 0, %v8640
        %v8643 = vsub.s32 32, %v8642
        %v8644 = vshll.u32 %v8635, %v8642
        %v8645 = vshrl.u32 %v8627, %v8643
        %v8646 = vor.u32 %v8644, %v8645
        %v8647 = vsub.s32 4294967266, %v8642
        %v8648 = vadd.s32 %v8647, 127
        %v8649 = vshll.u32 %v8648, 23
        %v8650 = vor.u32 4788187, %v8649
        %v8651 = vand.u32 2147483647, %v8650
        %v8653 = vcvt.s32.f32 %v8646
        %v8654 = vmul.f32 %v8653, %v8651
        %v8655 = vxor.u32 %v8654, 2147483648
        %v8656 = vsel %vm8535, %v8655, %v8654
        %v8657 = vsub.s32 4, %v8633
        %v8658 = vsel %vm8535, %v8657, %v8633
        %v8659 = vsel %vm8534, %v5879, %v8656
        %v8660 = vsel %vm8534, 0, %v8658
        %v8661 = vmul.f32 %v8659, %v8659
        %v8662 = vmul.f32 %v8661, -0.001358992
        %v8663 = vadd.f32 %v8662, 0.041655596
        %v8664 = vmul.f32 %v8661, %v8663
        %v8665 = vadd.f32 %v8664, -0.4999988
        %v8666 = vmul.f32 %v8661, %v8665
        %v8667 = vadd.f32 1.0, %v8666
        %v8668 = vmul.f32 %v8659, %v8659
        %v8669 = vmul.f32 %v8668, -0.00019511016
        %v8670 = vadd.f32 %v8669, 0.008332121
        %v8671 = vmul.f32 %v8668, %v8670
        %v8672 = vadd.f32 %v8671, -0.16666654
        %v8673 = vmul.f32 %v8668, %v8672
        %v8674 = vadd.f32 %v8673, 1.0
        %v8675 = vmul.f32 %v8674, %v8659
        %vm8676 = vweird.f32 %v5879
        %v8677 = vadd.s32 %v8660, 3
        %v8678 = vand.u32 %v8677, 3
        %vm8679 = vcmp.lt.s32.totalorder %v8678, 2
        %vm8680 = vcmp.eq.s32.totalorder %v8678, 0
        %v8681 = vxor.u32 %v8675, 2147483648
        %v8682 = vsel %vm8680, %v8667, %v8681
        %vm8683 = vcmp.eq.s32.totalorder %v8678, 2
        %v8684 = vxor.u32 %v8667, 2147483648
        %v8685 = vsel %vm8683, %v8684, %v8675
        %v8686 = vsel %vm8679, %v8682, %v8685
        %v8687 = vsel %vm8676, nan, %v8686
        %v8688 = vand.u32 2147483647, %v5880
        %vm8689 = vcmp.le.f32.partialorder %v8688, 0.7853982
        %vm8690 = vcmp.lt.s32.totalorder %v5880, 0
        %v8691 = vand.u32 %v5880, 2139095040
        %v8692 = vshrl.u32 %v8691, 23
        %v8693 = vsub.s32 %v8692, 127
        %v8694 = vand.u32 2147483647, %v5880
        %v8695 = vand.u32 %v8694, 8388607
        %v8696 = vor.u32 %v8695, 8388608
        %v8697 = vsub.s32 0, %v8696
        %v8698 = vadd.s32 %v8693, 1
        %vm8699 = vcmp.gt.s32.totalorder %v8698, 0
        %v8700 = vsel %vm8699, %v8698, 0
        %v8701 = vshrl.u32 %v8700, 5
        %v8702 = vand.u32 %v8700, 31
        %v8703 = vsub.s32 32, %v8702
        %v8704 = vshrl.u32 683565275, %v8703
        %v8705 = vshll.u32 683565275, %v8702
        %v8706 = vshrl.u32 2475754826, %v8703
        %v8707 = vor.u32 %v8705, %v8706
        %v8708 = vshll.u32 2475754826, %v8702
        %v8709 = vshrl.u32 2131351028, %v8703
        %v8710 = vor.u32 %v8708, %v8709
        %v8711 = vshll.u32 2131351028, %v8702
        %v8712 = vshrl.u32 2102212464, %v8703
        %v8713 = vor.u32 %v8711, %v8712
        %v8714 = vshll.u32 2102212464, %v8702
        %v8715 = vshrl.u32 920167782, %v8703
        %v8716 = vor.u32 %v8714, %v8715
        %v8717 = vshll.u32 920167782, %v8702
        %v8718 = vshrl.u32 1326507024, %v8703
        %v8719 = vor.u32 %v8717, %v8718
        %vm8720 = vcmp.lt.s32.totalorder %v8701, 1
        %vm8721 = vcmp.lt.s32.totalorder %v8701, 2
        %vm8722 = vcmp.lt.s32.totalorder %v8701, 3
        %vm8723 = vcmp.lt.s32.totalorder %v8701, 4
        %v8724 = vsel %vm8720, %v8704, %v8707
        %v8725 = vsel %vm8723, %v8713, 2102212464
        %v8726 = vsel %vm8722, %v8710, %v8725
        %v8727 = vsel %vm8721, %v8724, %v8726
        %v8728 = vsel %vm8720, %v8707, %v8710
        %v8729 = vsel %vm8723, %v8716, 920167782
        %v8730 = vsel %vm8722, %v8713, %v8729
        %v8731 = vsel %vm8721, %v8728, %v8730
        %v8732 = vsel %vm8720, %v8710, %v8713
        %v8733 = vsel %vm8723, %v8719, 1326507024
        %v8734 = vsel %vm8722, %v8716, %v8733
        %v8735 = vsel %vm8721, %v8732, %v8734
        %v8736 = vshll.u32 %v8696, 8
        %v8737 = vand.u32 %v8736, 65535
        %v8738 = vshrl.u32 %v8736, 16
        %v8739 = vand.u32 %v8735, 65535
        %v8740 = vshrl.u32 %v8735, 16
        %v8741 = vmul.u32 %v8737, %v8739
        %v8742 = vmul.u32 %v8737, %v8740
        %v8743 = vmul.u32 %v8738, %v8739
        %v8744 = vmul.u32 %v8738, %v8740
        %v8745 = vshll.u32 %v8742, 16
        %v8746 = vshrl.u32 %v8742, 16
        %v8747 = vshll.u32 %v8743, 16
        %v8748 = vshrl.u32 %v8743, 16
        %vm8749 = vc.u32 %v8741, %v8745
        %v8750 = vsel %vm8749, 1, 0
        %v8751 = vadd.s32 %v8741, %v8745
        %v8752 = vadd.s32 %v8744, %v8750
        %vm8753 = vc.u32 %v8751, %v8747
        %v8754 = vsel %vm8753, 1, 0
        %v8755 = vadd.s32 %v8751, %v8747
        %v8756 = vadd.s32 %v8752, %v8754
        %v8757 = vadd.s32 %v8756, %v8746
        %v8758 = vadd.s32 %v8757, %v8748
        %v8759 = vand.u32 %v8736, 65535
        %v8760 = vshrl.u32 %v8736, 16
        %v8761 = vand.u32 %v8731, 65535
        %v8762 = vshrl.u32 %v8731, 16
        %v8763 = vmul.u32 %v8759, %v8761
        %v8764 = vmul.u32 %v8759, %v8762
        %v8765 = vmul.u32 %v8760, %v8761
        %v8766 = vmul.u32 %v8760, %v8762
        %v8767 = vshll.u32 %v8764, 16
        %v8768 = vshrl.u32 %v8764, 16
        %v8769 = vshll.u32 %v8765, 16
        %v8770 = vshrl.u32 %v8765, 16
        %vm8771 = vc.u32 %v8763, %v8767
        %v8772 = vsel %vm8771, 1, 0
        %v8773 = vadd.s32 %v8763, %v8767
        %v8774 = vadd.s32 %v8766, %v8772
        %vm8775 = vc.u32 %v8773, %v8769
        %v8776 = vsel %vm8775, 1, 0
        %v8777 = vadd.s32 %v8773, %v8769
        %v8778 = vadd.s32 %v8774, %v8776
        %v8779 = vadd.s32 %v8778, %v8768
        %v8780 = vadd.s32 %v8779, %v8770
        %v8781 = vmul.u32 %v8736, %v8727
        %v8782 = vadd.s32 %v8758, %v8777
        %vm8783 = vc.u32 %v8758, %v8777
        %v8784 = vadd.s32 %v8780, 1
        %v8785 = vsel %vm8783, %v8784, %v8780
        %v8786 = vadd.s32 %v8781, %v8785
        %v8787 = vadd.s32 %v8786, 536870912
        %v8788 = vshrl.u32 %v8787, 30
        %v8789 = vshll.u32 %v8788, 30
        %v8790 = vsub.s32 %v8786, %v8789
        %vm8791 = vcmp.lt.s32.totalorder %v8790, 0
        %v8792 = vsub.s32 0, %v8790
        %v8793 = vsel %vm8791, %v8792, %v8790
        %v8794 = vclz %v8793
        %v8795 = vsub.s32 %v8794, 2
        %vm8796 = vcmp.gt.s32.totalorder 0, %v8795
        %v8797 = vsel %vm8796, 0, %v8795
        %v8798 = vsub.s32 32, %v8797
        %v8799 = vshll.u32 %v8790, %v8797
        %v8800 = vshrl.u32 %v8782, %v8798
        %v8801 = vor.u32 %v8799, %v8800
        %v8802 = vsub.s32 4294967266, %v8797
        %v8803 = vadd.s32 %v8802, 127
        %v8804 = vshll.u32 %v8803, 23
        %v8805 = vor.u32 4788187, %v8804
        %v8806 = vand.u32 2147483647, %v8805
        %v8808 = vcvt.s32.f32 %v8801
        %v8809 = vmul.f32 %v8808, %v8806
        %v8810 = vxor.u32 %v8809, 2147483648
        %v8811 = vsel %vm8690, %v8810, %v8809
        %v8812 = vsub.s32 4, %v8788
        %v8813 = vsel %vm8690, %v8812, %v8788
        %v8814 = vsel %vm8689, %v5880, %v8811
        %v8815 = vsel %vm8689, 0, %v8813
        %v8816 = vmul.f32 %v8814, %v8814
        %v8817 = vmul.f32 %v8816, -0.001358992
        %v8818 = vadd.f32 %v8817, 0.041655596
        %v8819 = vmul.f32 %v8816, %v8818
        %v8820 = vadd.f32 %v8819, -0.4999988
        %v8821 = vmul.f32 %v8816, %v8820
        %v8822 = vadd.f32 1.0, %v8821
        %v8823 = vmul.f32 %v8814, %v8814
        %v8824 = vmul.f32 %v8823, -0.00019511016
        %v8825 = vadd.f32 %v8824, 0.008332121
        %v8826 = vmul.f32 %v8823, %v8825
        %v8827 = vadd.f32 %v8826, -0.16666654
        %v8828 = vmul.f32 %v8823, %v8827
        %v8829 = vadd.f32 %v8828, 1.0
        %v8830 = vmul.f32 %v8829, %v8814
        %vm8831 = vweird.f32 %v5880
        %v8832 = vadd.s32 %v8815, 3
        %v8833 = vand.u32 %v8832, 3
        %vm8834 = vcmp.lt.s32.totalorder %v8833, 2
        %vm8835 = vcmp.eq.s32.totalorder %v8833, 0
        %v8836 = vxor.u32 %v8830, 2147483648
        %v8837 = vsel %vm8835, %v8822, %v8836
        %vm8838 = vcmp.eq.s32.totalorder %v8833, 2
        %v8839 = vxor.u32 %v8822, 2147483648
        %v8840 = vsel %vm8838, %v8839, %v8830
        %v8841 = vsel %vm8834, %v8837, %v8840
        %v8842 = vsel %vm8831, nan, %v8841
        %v8843 = vand.u32 2147483647, %v5881
        %vm8844 = vcmp.le.f32.partialorder %v8843, 0.7853982
        %vm8845 = vcmp.lt.s32.totalorder %v5881, 0
        %v8846 = vand.u32 %v5881, 2139095040
        %v8847 = vshrl.u32 %v8846, 23
        %v8848 = vsub.s32 %v8847, 127
        %v8849 = vand.u32 2147483647, %v5881
        %v8850 = vand.u32 %v8849, 8388607
        %v8851 = vor.u32 %v8850, 8388608
        %v8852 = vsub.s32 0, %v8851
        %v8853 = vadd.s32 %v8848, 1
        %vm8854 = vcmp.gt.s32.totalorder %v8853, 0
        %v8855 = vsel %vm8854, %v8853, 0
        %v8856 = vshrl.u32 %v8855, 5
        %v8857 = vand.u32 %v8855, 31
        %v8858 = vsub.s32 32, %v8857
        %v8859 = vshrl.u32 683565275, %v8858
        %v8860 = vshll.u32 683565275, %v8857
        %v8861 = vshrl.u32 2475754826, %v8858
        %v8862 = vor.u32 %v8860, %v8861
        %v8863 = vshll.u32 2475754826, %v8857
        %v8864 = vshrl.u32 2131351028, %v8858
        %v8865 = vor.u32 %v8863, %v8864
        %v8866 = vshll.u32 2131351028, %v8857
        %v8867 = vshrl.u32 2102212464, %v8858
        %v8868 = vor.u32 %v8866, %v8867
        %v8869 = vshll.u32 2102212464, %v8857
        %v8870 = vshrl.u32 920167782, %v8858
        %v8871 = vor.u32 %v8869, %v8870
        %v8872 = vshll.u32 920167782, %v8857
        %v8873 = vshrl.u32 1326507024, %v8858
        %v8874 = vor.u32 %v8872, %v8873
        %vm8875 = vcmp.lt.s32.totalorder %v8856, 1
        %vm8876 = vcmp.lt.s32.totalorder %v8856, 2
        %vm8877 = vcmp.lt.s32.totalorder %v8856, 3
        %vm8878 = vcmp.lt.s32.totalorder %v8856, 4
        %v8879 = vsel %vm8875, %v8859, %v8862
        %v8880 = vsel %vm8878, %v8868, 2102212464
        %v8881 = vsel %vm8877, %v8865, %v8880
        %v8882 = vsel %vm8876, %v8879, %v8881
        %v8883 = vsel %vm8875, %v8862, %v8865
        %v8884 = vsel %vm8878, %v8871, 920167782
        %v8885 = vsel %vm8877, %v8868, %v8884
        %v8886 = vsel %vm8876, %v8883, %v8885
        %v8887 = vsel %vm8875, %v8865, %v8868
        %v8888 = vsel %vm8878, %v8874, 1326507024
        %v8889 = vsel %vm8877, %v8871, %v8888
        %v8890 = vsel %vm8876, %v8887, %v8889
        %v8891 = vshll.u32 %v8851, 8
        %v8892 = vand.u32 %v8891, 65535
        %v8893 = vshrl.u32 %v8891, 16
        %v8894 = vand.u32 %v8890, 65535
        %v8895 = vshrl.u32 %v8890, 16
        %v8896 = vmul.u32 %v8892, %v8894
        %v8897 = vmul.u32 %v8892, %v8895
        %v8898 = vmul.u32 %v8893, %v8894
        %v8899 = vmul.u32 %v8893, %v8895
        %v8900 = vshll.u32 %v8897, 16
        %v8901 = vshrl.u32 %v8897, 16
        %v8902 = vshll.u32 %v8898, 16
        %v8903 = vshrl.u32 %v8898, 16
        %vm8904 = vc.u32 %v8896, %v8900
        %v8905 = vsel %vm8904, 1, 0
        %v8906 = vadd.s32 %v8896, %v8900
        %v8907 = vadd.s32 %v8899, %v8905
        %vm8908 = vc.u32 %v8906, %v8902
        %v8909 = vsel %vm8908, 1, 0
        %v8910 = vadd.s32 %v8906, %v8902
        %v8911 = vadd.s32 %v8907, %v8909
        %v8912 = vadd.s32 %v8911, %v8901
        %v8913 = vadd.s32 %v8912, %v8903
        %v8914 = vand.u32 %v8891, 65535
        %v8915 = vshrl.u32 %v8891, 16
        %v8916 = vand.u32 %v8886, 65535
        %v8917 = vshrl.u32 %v8886, 16
        %v8918 = vmul.u32 %v8914, %v8916
        %v8919 = vmul.u32 %v8914, %v8917
        %v8920 = vmul.u32 %v8915, %v8916
        %v8921 = vmul.u32 %v8915, %v8917
        %v8922 = vshll.u32 %v8919, 16
        %v8923 = vshrl.u32 %v8919, 16
        %v8924 = vshll.u32 %v8920, 16
        %v8925 = vshrl.u32 %v8920, 16
        %vm8926 = vc.u32 %v8918, %v8922
        %v8927 = vsel %vm8926, 1, 0
        %v8928 = vadd.s32 %v8918, %v8922
        %v8929 = vadd.s32 %v8921, %v8927
        %vm8930 = vc.u32 %v8928, %v8924
        %v8931 = vsel %vm8930, 1, 0
        %v8932 = vadd.s32 %v8928, %v8924
        %v8933 = vadd.s32 %v8929, %v8931
        %v8934 = vadd.s32 %v8933, %v8923
        %v8935 = vadd.s32 %v8934, %v8925
        %v8936 = vmul.u32 %v8891, %v8882
        %v8937 = vadd.s32 %v8913, %v8932
        %vm8938 = vc.u32 %v8913, %v8932
        %v8939 = vadd.s32 %v8935, 1
        %v8940 = vsel %vm8938, %v8939, %v8935
        %v8941 = vadd.s32 %v8936, %v8940
        %v8942 = vadd.s32 %v8941, 536870912
        %v8943 = vshrl.u32 %v8942, 30
        %v8944 = vshll.u32 %v8943, 30
        %v8945 = vsub.s32 %v8941, %v8944
        %vm8946 = vcmp.lt.s32.totalorder %v8945, 0
        %v8947 = vsub.s32 0, %v8945
        %v8948 = vsel %vm8946, %v8947, %v8945
        %v8949 = vclz %v8948
        %v8950 = vsub.s32 %v8949, 2
        %vm8951 = vcmp.gt.s32.totalorder 0, %v8950
        %v8952 = vsel %vm8951, 0, %v8950
        %v8953 = vsub.s32 32, %v8952
        %v8954 = vshll.u32 %v8945, %v8952
        %v8955 = vshrl.u32 %v8937, %v8953
        %v8956 = vor.u32 %v8954, %v8955
        %v8957 = vsub.s32 4294967266, %v8952
        %v8958 = vadd.s32 %v8957, 127
        %v8959 = vshll.u32 %v8958, 23
        %v8960 = vor.u32 4788187, %v8959
        %v8961 = vand.u32 2147483647, %v8960
        %v8963 = vcvt.s32.f32 %v8956
        %v8964 = vmul.f32 %v8963, %v8961
        %v8965 = vxor.u32 %v8964, 2147483648
        %v8966 = vsel %vm8845, %v8965, %v8964
        %v8967 = vsub.s32 4, %v8943
        %v8968 = vsel %vm8845, %v8967, %v8943
        %v8969 = vsel %vm8844, %v5881, %v8966
        %v8970 = vsel %vm8844, 0, %v8968
        %v8971 = vmul.f32 %v8969, %v8969
        %v8972 = vmul.f32 %v8971, -0.001358992
        %v8973 = vadd.f32 %v8972, 0.041655596
        %v8974 = vmul.f32 %v8971, %v8973
        %v8975 = vadd.f32 %v8974, -0.4999988
        %v8976 = vmul.f32 %v8971, %v8975
        %v8977 = vadd.f32 1.0, %v8976
        %v8978 = vmul.f32 %v8969, %v8969
        %v8979 = vmul.f32 %v8978, -0.00019511016
        %v8980 = vadd.f32 %v8979, 0.008332121
        %v8981 = vmul.f32 %v8978, %v8980
        %v8982 = vadd.f32 %v8981, -0.16666654
        %v8983 = vmul.f32 %v8978, %v8982
        %v8984 = vadd.f32 %v8983, 1.0
        %v8985 = vmul.f32 %v8984, %v8969
        %vm8986 = vweird.f32 %v5881
        %v8987 = vadd.s32 %v8970, 3
        %v8988 = vand.u32 %v8987, 3
        %vm8989 = vcmp.lt.s32.totalorder %v8988, 2
        %vm8990 = vcmp.eq.s32.totalorder %v8988, 0
        %v8991 = vxor.u32 %v8985, 2147483648
        %v8992 = vsel %vm8990, %v8977, %v8991
        %vm8993 = vcmp.eq.s32.totalorder %v8988, 2
        %v8994 = vxor.u32 %v8977, 2147483648
        %v8995 = vsel %vm8993, %v8994, %v8985
        %v8996 = vsel %vm8989, %v8992, %v8995
        %v8997 = vsel %vm8986, nan, %v8996
        %v8998 = vand.u32 2147483647, %v5882
        %vm8999 = vcmp.le.f32.partialorder %v8998, 0.7853982
        %vm9000 = vcmp.lt.s32.totalorder %v5882, 0
        %v9001 = vand.u32 %v5882, 2139095040
        %v9002 = vshrl.u32 %v9001, 23
        %v9003 = vsub.s32 %v9002, 127
        %v9004 = vand.u32 2147483647, %v5882
        %v9005 = vand.u32 %v9004, 8388607
        %v9006 = vor.u32 %v9005, 8388608
        %v9007 = vsub.s32 0, %v9006
        %v9008 = vadd.s32 %v9003, 1
        %vm9009 = vcmp.gt.s32.totalorder %v9008, 0
        %v9010 = vsel %vm9009, %v9008, 0
        %v9011 = vshrl.u32 %v9010, 5
        %v9012 = vand.u32 %v9010, 31
        %v9013 = vsub.s32 32, %v9012
        %v9014 = vshrl.u32 683565275, %v9013
        %v9015 = vshll.u32 683565275, %v9012
        %v9016 = vshrl.u32 2475754826, %v9013
        %v9017 = vor.u32 %v9015, %v9016
        %v9018 = vshll.u32 2475754826, %v9012
        %v9019 = vshrl.u32 2131351028, %v9013
        %v9020 = vor.u32 %v9018, %v9019
        %v9021 = vshll.u32 2131351028, %v9012
        %v9022 = vshrl.u32 2102212464, %v9013
        %v9023 = vor.u32 %v9021, %v9022
        %v9024 = vshll.u32 2102212464, %v9012
        %v9025 = vshrl.u32 920167782, %v9013
        %v9026 = vor.u32 %v9024, %v9025
        %v9027 = vshll.u32 920167782, %v9012
        %v9028 = vshrl.u32 1326507024, %v9013
        %v9029 = vor.u32 %v9027, %v9028
        %vm9030 = vcmp.lt.s32.totalorder %v9011, 1
        %vm9031 = vcmp.lt.s32.totalorder %v9011, 2
        %vm9032 = vcmp.lt.s32.totalorder %v9011, 3
        %vm9033 = vcmp.lt.s32.totalorder %v9011, 4
        %v9034 = vsel %vm9030, %v9014, %v9017
        %v9035 = vsel %vm9033, %v9023, 2102212464
        %v9036 = vsel %vm9032, %v9020, %v9035
        %v9037 = vsel %vm9031, %v9034, %v9036
        %v9038 = vsel %vm9030, %v9017, %v9020
        %v9039 = vsel %vm9033, %v9026, 920167782
        %v9040 = vsel %vm9032, %v9023, %v9039
        %v9041 = vsel %vm9031, %v9038, %v9040
        %v9042 = vsel %vm9030, %v9020, %v9023
        %v9043 = vsel %vm9033, %v9029, 1326507024
        %v9044 = vsel %vm9032, %v9026, %v9043
        %v9045 = vsel %vm9031, %v9042, %v9044
        %v9046 = vshll.u32 %v9006, 8
        %v9047 = vand.u32 %v9046, 65535
        %v9048 = vshrl.u32 %v9046, 16
        %v9049 = vand.u32 %v9045, 65535
        %v9050 = vshrl.u32 %v9045, 16
        %v9051 = vmul.u32 %v9047, %v9049
        %v9052 = vmul.u32 %v9047, %v9050
        %v9053 = vmul.u32 %v9048, %v9049
        %v9054 = vmul.u32 %v9048, %v9050
        %v9055 = vshll.u32 %v9052, 16
        %v9056 = vshrl.u32 %v9052, 16
        %v9057 = vshll.u32 %v9053, 16
        %v9058 = vshrl.u32 %v9053, 16
        %vm9059 = vc.u32 %v9051, %v9055
        %v9060 = vsel %vm9059, 1, 0
        %v9061 = vadd.s32 %v9051, %v9055
        %v9062 = vadd.s32 %v9054, %v9060
        %vm9063 = vc.u32 %v9061, %v9057
        %v9064 = vsel %vm9063, 1, 0
        %v9065 = vadd.s32 %v9061, %v9057
        %v9066 = vadd.s32 %v9062, %v9064
        %v9067 = vadd.s32 %v9066, %v9056
        %v9068 = vadd.s32 %v9067, %v9058
        %v9069 = vand.u32 %v9046, 65535
        %v9070 = vshrl.u32 %v9046, 16
        %v9071 = vand.u32 %v9041, 65535
        %v9072 = vshrl.u32 %v9041, 16
        %v9073 = vmul.u32 %v9069, %v9071
        %v9074 = vmul.u32 %v9069, %v9072
        %v9075 = vmul.u32 %v9070, %v9071
        %v9076 = vmul.u32 %v9070, %v9072
        %v9077 = vshll.u32 %v9074, 16
        %v9078 = vshrl.u32 %v9074, 16
        %v9079 = vshll.u32 %v9075, 16
        %v9080 = vshrl.u32 %v9075, 16
        %vm9081 = vc.u32 %v9073, %v9077
        %v9082 = vsel %vm9081, 1, 0
        %v9083 = vadd.s32 %v9073, %v9077
        %v9084 = vadd.s32 %v9076, %v9082
        %vm9085 = vc.u32 %v9083, %v9079
        %v9086 = vsel %vm9085, 1, 0
        %v9087 = vadd.s32 %v9083, %v9079
        %v9088 = vadd.s32 %v9084, %v9086
        %v9089 = vadd.s32 %v9088, %v9078
        %v9090 = vadd.s32 %v9089, %v9080
        %v9091 = vmul.u32 %v9046, %v9037
        %v9092 = vadd.s32 %v9068, %v9087
        %vm9093 = vc.u32 %v9068, %v9087
        %v9094 = vadd.s32 %v9090, 1
        %v9095 = vsel %vm9093, %v9094, %v9090
        %v9096 = vadd.s32 %v9091, %v9095
        %v9097 = vadd.s32 %v9096, 536870912
        %v9098 = vshrl.u32 %v9097, 30
        %v9099 = vshll.u32 %v9098, 30
        %v9100 = vsub.s32 %v9096, %v9099
        %vm9101 = vcmp.lt.s32.totalorder %v9100, 0
        %v9102 = vsub.s32 0, %v9100
        %v9103 = vsel %vm9101, %v9102, %v9100
        %v9104 = vclz %v9103
        %v9105 = vsub.s32 %v9104, 2
        %vm9106 = vcmp.gt.s32.totalorder 0, %v9105
        %v9107 = vsel %vm9106, 0, %v9105
        %v9108 = vsub.s32 32, %v9107
        %v9109 = vshll.u32 %v9100, %v9107
        %v9110 = vshrl.u32 %v9092, %v9108
        %v9111 = vor.u32 %v9109, %v9110
        %v9112 = vsub.s32 4294967266, %v9107
        %v9113 = vadd.s32 %v9112, 127
        %v9114 = vshll.u32 %v9113, 23
        %v9115 = vor.u32 4788187, %v9114
        %v9116 = vand.u32 2147483647, %v9115
        %v9118 = vcvt.s32.f32 %v9111
        %v9119 = vmul.f32 %v9118, %v9116
        %v9120 = vxor.u32 %v9119, 2147483648
        %v9121 = vsel %vm9000, %v9120, %v9119
        %v9122 = vsub.s32 4, %v9098
        %v9123 = vsel %vm9000, %v9122, %v9098
        %v9124 = vsel %vm8999, %v5882, %v9121
        %v9125 = vsel %vm8999, 0, %v9123
        %v9126 = vmul.f32 %v9124, %v9124
        %v9127 = vmul.f32 %v9126, -0.001358992
        %v9128 = vadd.f32 %v9127, 0.041655596
        %v9129 = vmul.f32 %v9126, %v9128
        %v9130 = vadd.f32 %v9129, -0.4999988
        %v9131 = vmul.f32 %v9126, %v9130
        %v9132 = vadd.f32 1.0, %v9131
        %v9133 = vmul.f32 %v9124, %v9124
        %v9134 = vmul.f32 %v9133, -0.00019511016
        %v9135 = vadd.f32 %v9134, 0.008332121
        %v9136 = vmul.f32 %v9133, %v9135
        %v9137 = vadd.f32 %v9136, -0.16666654
        %v9138 = vmul.f32 %v9133, %v9137
        %v9139 = vadd.f32 %v9138, 1.0
        %v9140 = vmul.f32 %v9139, %v9124
        %vm9141 = vweird.f32 %v5882
        %v9142 = vadd.s32 %v9125, 3
        %v9143 = vand.u32 %v9142, 3
        %vm9144 = vcmp.lt.s32.totalorder %v9143, 2
        %vm9145 = vcmp.eq.s32.totalorder %v9143, 0
        %v9146 = vxor.u32 %v9140, 2147483648
        %v9147 = vsel %vm9145, %v9132, %v9146
        %vm9148 = vcmp.eq.s32.totalorder %v9143, 2
        %v9149 = vxor.u32 %v9132, 2147483648
        %v9150 = vsel %vm9148, %v9149, %v9140
        %v9151 = vsel %vm9144, %v9147, %v9150
        %v9152 = vsel %vm9141, nan, %v9151
        %v9153 = vand.u32 2147483647, %v5883
        %vm9154 = vcmp.le.f32.partialorder %v9153, 0.7853982
        %vm9155 = vcmp.lt.s32.totalorder %v5883, 0
        %v9156 = vand.u32 %v5883, 2139095040
        %v9157 = vshrl.u32 %v9156, 23
        %v9158 = vsub.s32 %v9157, 127
        %v9159 = vand.u32 2147483647, %v5883
        %v9160 = vand.u32 %v9159, 8388607
        %v9161 = vor.u32 %v9160, 8388608
        %v9162 = vsub.s32 0, %v9161
        %v9163 = vadd.s32 %v9158, 1
        %vm9164 = vcmp.gt.s32.totalorder %v9163, 0
        %v9165 = vsel %vm9164, %v9163, 0
        %v9166 = vshrl.u32 %v9165, 5
        %v9167 = vand.u32 %v9165, 31
        %v9168 = vsub.s32 32, %v9167
        %v9169 = vshrl.u32 683565275, %v9168
        %v9170 = vshll.u32 683565275, %v9167
        %v9171 = vshrl.u32 2475754826, %v9168
        %v9172 = vor.u32 %v9170, %v9171
        %v9173 = vshll.u32 2475754826, %v9167
        %v9174 = vshrl.u32 2131351028, %v9168
        %v9175 = vor.u32 %v9173, %v9174
        %v9176 = vshll.u32 2131351028, %v9167
        %v9177 = vshrl.u32 2102212464, %v9168
        %v9178 = vor.u32 %v9176, %v9177
        %v9179 = vshll.u32 2102212464, %v9167
        %v9180 = vshrl.u32 920167782, %v9168
        %v9181 = vor.u32 %v9179, %v9180
        %v9182 = vshll.u32 920167782, %v9167
        %v9183 = vshrl.u32 1326507024, %v9168
        %v9184 = vor.u32 %v9182, %v9183
        %vm9185 = vcmp.lt.s32.totalorder %v9166, 1
        %vm9186 = vcmp.lt.s32.totalorder %v9166, 2
        %vm9187 = vcmp.lt.s32.totalorder %v9166, 3
        %vm9188 = vcmp.lt.s32.totalorder %v9166, 4
        %v9189 = vsel %vm9185, %v9169, %v9172
        %v9190 = vsel %vm9188, %v9178, 2102212464
        %v9191 = vsel %vm9187, %v9175, %v9190
        %v9192 = vsel %vm9186, %v9189, %v9191
        %v9193 = vsel %vm9185, %v9172, %v9175
        %v9194 = vsel %vm9188, %v9181, 920167782
        %v9195 = vsel %vm9187, %v9178, %v9194
        %v9196 = vsel %vm9186, %v9193, %v9195
        %v9197 = vsel %vm9185, %v9175, %v9178
        %v9198 = vsel %vm9188, %v9184, 1326507024
        %v9199 = vsel %vm9187, %v9181, %v9198
        %v9200 = vsel %vm9186, %v9197, %v9199
        %v9201 = vshll.u32 %v9161, 8
        %v9202 = vand.u32 %v9201, 65535
        %v9203 = vshrl.u32 %v9201, 16
        %v9204 = vand.u32 %v9200, 65535
        %v9205 = vshrl.u32 %v9200, 16
        %v9206 = vmul.u32 %v9202, %v9204
        %v9207 = vmul.u32 %v9202, %v9205
        %v9208 = vmul.u32 %v9203, %v9204
        %v9209 = vmul.u32 %v9203, %v9205
        %v9210 = vshll.u32 %v9207, 16
        %v9211 = vshrl.u32 %v9207, 16
        %v9212 = vshll.u32 %v9208, 16
        %v9213 = vshrl.u32 %v9208, 16
        %vm9214 = vc.u32 %v9206, %v9210
        %v9215 = vsel %vm9214, 1, 0
        %v9216 = vadd.s32 %v9206, %v9210
        %v9217 = vadd.s32 %v9209, %v9215
        %vm9218 = vc.u32 %v9216, %v9212
        %v9219 = vsel %vm9218, 1, 0
        %v9220 = vadd.s32 %v9216, %v9212
        %v9221 = vadd.s32 %v9217, %v9219
        %v9222 = vadd.s32 %v9221, %v9211
        %v9223 = vadd.s32 %v9222, %v9213
        %v9224 = vand.u32 %v9201, 65535
        %v9225 = vshrl.u32 %v9201, 16
        %v9226 = vand.u32 %v9196, 65535
        %v9227 = vshrl.u32 %v9196, 16
        %v9228 = vmul.u32 %v9224, %v9226
        %v9229 = vmul.u32 %v9224, %v9227
        %v9230 = vmul.u32 %v9225, %v9226
        %v9231 = vmul.u32 %v9225, %v9227
        %v9232 = vshll.u32 %v9229, 16
        %v9233 = vshrl.u32 %v9229, 16
        %v9234 = vshll.u32 %v9230, 16
        %v9235 = vshrl.u32 %v9230, 16
        %vm9236 = vc.u32 %v9228, %v9232
        %v9237 = vsel %vm9236, 1, 0
        %v9238 = vadd.s32 %v9228, %v9232
        %v9239 = vadd.s32 %v9231, %v9237
        %vm9240 = vc.u32 %v9238, %v9234
        %v9241 = vsel %vm9240, 1, 0
        %v9242 = vadd.s32 %v9238, %v9234
        %v9243 = vadd.s32 %v9239, %v9241
        %v9244 = vadd.s32 %v9243, %v9233
        %v9245 = vadd.s32 %v9244, %v9235
        %v9246 = vmul.u32 %v9201, %v9192
        %v9247 = vadd.s32 %v9223, %v9242
        %vm9248 = vc.u32 %v9223, %v9242
        %v9249 = vadd.s32 %v9245, 1
        %v9250 = vsel %vm9248, %v9249, %v9245
        %v9251 = vadd.s32 %v9246, %v9250
        %v9252 = vadd.s32 %v9251, 536870912
        %v9253 = vshrl.u32 %v9252, 30
        %v9254 = vshll.u32 %v9253, 30
        %v9255 = vsub.s32 %v9251, %v9254
        %vm9256 = vcmp.lt.s32.totalorder %v9255, 0
        %v9257 = vsub.s32 0, %v9255
        %v9258 = vsel %vm9256, %v9257, %v9255
        %v9259 = vclz %v9258
        %v9260 = vsub.s32 %v9259, 2
        %vm9261 = vcmp.gt.s32.totalorder 0, %v9260
        %v9262 = vsel %vm9261, 0, %v9260
        %v9263 = vsub.s32 32, %v9262
        %v9264 = vshll.u32 %v9255, %v9262
        %v9265 = vshrl.u32 %v9247, %v9263
        %v9266 = vor.u32 %v9264, %v9265
        %v9267 = vsub.s32 4294967266, %v9262
        %v9268 = vadd.s32 %v9267, 127
        %v9269 = vshll.u32 %v9268, 23
        %v9270 = vor.u32 4788187, %v9269
        %v9271 = vand.u32 2147483647, %v9270
        %v9273 = vcvt.s32.f32 %v9266
        %v9274 = vmul.f32 %v9273, %v9271
        %v9275 = vxor.u32 %v9274, 2147483648
        %v9276 = vsel %vm9155, %v9275, %v9274
        %v9277 = vsub.s32 4, %v9253
        %v9278 = vsel %vm9155, %v9277, %v9253
        %v9279 = vsel %vm9154, %v5883, %v9276
        %v9280 = vsel %vm9154, 0, %v9278
        %v9281 = vmul.f32 %v9279, %v9279
        %v9282 = vmul.f32 %v9281, -0.001358992
        %v9283 = vadd.f32 %v9282, 0.041655596
        %v9284 = vmul.f32 %v9281, %v9283
        %v9285 = vadd.f32 %v9284, -0.4999988
        %v9286 = vmul.f32 %v9281, %v9285
        %v9287 = vadd.f32 1.0, %v9286
        %v9288 = vmul.f32 %v9279, %v9279
        %v9289 = vmul.f32 %v9288, -0.00019511016
        %v9290 = vadd.f32 %v9289, 0.008332121
        %v9291 = vmul.f32 %v9288, %v9290
        %v9292 = vadd.f32 %v9291, -0.16666654
        %v9293 = vmul.f32 %v9288, %v9292
        %v9294 = vadd.f32 %v9293, 1.0
        %v9295 = vmul.f32 %v9294, %v9279
        %vm9296 = vweird.f32 %v5883
        %v9297 = vadd.s32 %v9280, 3
        %v9298 = vand.u32 %v9297, 3
        %vm9299 = vcmp.lt.s32.totalorder %v9298, 2
        %vm9300 = vcmp.eq.s32.totalorder %v9298, 0
        %v9301 = vxor.u32 %v9295, 2147483648
        %v9302 = vsel %vm9300, %v9287, %v9301
        %vm9303 = vcmp.eq.s32.totalorder %v9298, 2
        %v9304 = vxor.u32 %v9287, 2147483648
        %v9305 = vsel %vm9303, %v9304, %v9295
        %v9306 = vsel %vm9299, %v9302, %v9305
        %v9307 = vsel %vm9296, nan, %v9306
        %v9308 = vand.u32 2147483647, %v5884
        %vm9309 = vcmp.le.f32.partialorder %v9308, 0.7853982
        %vm9310 = vcmp.lt.s32.totalorder %v5884, 0
        %v9311 = vand.u32 %v5884, 2139095040
        %v9312 = vshrl.u32 %v9311, 23
        %v9313 = vsub.s32 %v9312, 127
        %v9314 = vand.u32 2147483647, %v5884
        %v9315 = vand.u32 %v9314, 8388607
        %v9316 = vor.u32 %v9315, 8388608
        %v9317 = vsub.s32 0, %v9316
        %v9318 = vadd.s32 %v9313, 1
        %vm9319 = vcmp.gt.s32.totalorder %v9318, 0
        %v9320 = vsel %vm9319, %v9318, 0
        %v9321 = vshrl.u32 %v9320, 5
        %v9322 = vand.u32 %v9320, 31
        %v9323 = vsub.s32 32, %v9322
        %v9324 = vshrl.u32 683565275, %v9323
        %v9325 = vshll.u32 683565275, %v9322
        %v9326 = vshrl.u32 2475754826, %v9323
        %v9327 = vor.u32 %v9325, %v9326
        %v9328 = vshll.u32 2475754826, %v9322
        %v9329 = vshrl.u32 2131351028, %v9323
        %v9330 = vor.u32 %v9328, %v9329
        %v9331 = vshll.u32 2131351028, %v9322
        %v9332 = vshrl.u32 2102212464, %v9323
        %v9333 = vor.u32 %v9331, %v9332
        %v9334 = vshll.u32 2102212464, %v9322
        %v9335 = vshrl.u32 920167782, %v9323
        %v9336 = vor.u32 %v9334, %v9335
        %v9337 = vshll.u32 920167782, %v9322
        %v9338 = vshrl.u32 1326507024, %v9323
        %v9339 = vor.u32 %v9337, %v9338
        %vm9340 = vcmp.lt.s32.totalorder %v9321, 1
        %vm9341 = vcmp.lt.s32.totalorder %v9321, 2
        %vm9342 = vcmp.lt.s32.totalorder %v9321, 3
        %vm9343 = vcmp.lt.s32.totalorder %v9321, 4
        %v9344 = vsel %vm9340, %v9324, %v9327
        %v9345 = vsel %vm9343, %v9333, 2102212464
        %v9346 = vsel %vm9342, %v9330, %v9345
        %v9347 = vsel %vm9341, %v9344, %v9346
        %v9348 = vsel %vm9340, %v9327, %v9330
        %v9349 = vsel %vm9343, %v9336, 920167782
        %v9350 = vsel %vm9342, %v9333, %v9349
        %v9351 = vsel %vm9341, %v9348, %v9350
        %v9352 = vsel %vm9340, %v9330, %v9333
        %v9353 = vsel %vm9343, %v9339, 1326507024
        %v9354 = vsel %vm9342, %v9336, %v9353
        %v9355 = vsel %vm9341, %v9352, %v9354
        %v9356 = vshll.u32 %v9316, 8
        %v9357 = vand.u32 %v9356, 65535
        %v9358 = vshrl.u32 %v9356, 16
        %v9359 = vand.u32 %v9355, 65535
        %v9360 = vshrl.u32 %v9355, 16
        %v9361 = vmul.u32 %v9357, %v9359
        %v9362 = vmul.u32 %v9357, %v9360
        %v9363 = vmul.u32 %v9358, %v9359
        %v9364 = vmul.u32 %v9358, %v9360
        %v9365 = vshll.u32 %v9362, 16
        %v9366 = vshrl.u32 %v9362, 16
        %v9367 = vshll.u32 %v9363, 16
        %v9368 = vshrl.u32 %v9363, 16
        %vm9369 = vc.u32 %v9361, %v9365
        %v9370 = vsel %vm9369, 1, 0
        %v9371 = vadd.s32 %v9361, %v9365
        %v9372 = vadd.s32 %v9364, %v9370
        %vm9373 = vc.u32 %v9371, %v9367
        %v9374 = vsel %vm9373, 1, 0
        %v9375 = vadd.s32 %v9371, %v9367
        %v9376 = vadd.s32 %v9372, %v9374
        %v9377 = vadd.s32 %v9376, %v9366
        %v9378 = vadd.s32 %v9377, %v9368
        %v9379 = vand.u32 %v9356, 65535
        %v9380 = vshrl.u32 %v9356, 16
        %v9381 = vand.u32 %v9351, 65535
        %v9382 = vshrl.u32 %v9351, 16
        %v9383 = vmul.u32 %v9379, %v9381
        %v9384 = vmul.u32 %v9379, %v9382
        %v9385 = vmul.u32 %v9380, %v9381
        %v9386 = vmul.u32 %v9380, %v9382
        %v9387 = vshll.u32 %v9384, 16
        %v9388 = vshrl.u32 %v9384, 16
        %v9389 = vshll.u32 %v9385, 16
        %v9390 = vshrl.u32 %v9385, 16
        %vm9391 = vc.u32 %v9383, %v9387
        %v9392 = vsel %vm9391, 1, 0
        %v9393 = vadd.s32 %v9383, %v9387
        %v9394 = vadd.s32 %v9386, %v9392
        %vm9395 = vc.u32 %v9393, %v9389
        %v9396 = vsel %vm9395, 1, 0
        %v9397 = vadd.s32 %v9393, %v9389
        %v9398 = vadd.s32 %v9394, %v9396
        %v9399 = vadd.s32 %v9398, %v9388
        %v9400 = vadd.s32 %v9399, %v9390
        %v9401 = vmul.u32 %v9356, %v9347
        %v9402 = vadd.s32 %v9378, %v9397
        %vm9403 = vc.u32 %v9378, %v9397
        %v9404 = vadd.s32 %v9400, 1
        %v9405 = vsel %vm9403, %v9404, %v9400
        %v9406 = vadd.s32 %v9401, %v9405
        %v9407 = vadd.s32 %v9406, 536870912
        %v9408 = vshrl.u32 %v9407, 30
        %v9409 = vshll.u32 %v9408, 30
        %v9410 = vsub.s32 %v9406, %v9409
        %vm9411 = vcmp.lt.s32.totalorder %v9410, 0
        %v9412 = vsub.s32 0, %v9410
        %v9413 = vsel %vm9411, %v9412, %v9410
        %v9414 = vclz %v9413
        %v9415 = vsub.s32 %v9414, 2
        %vm9416 = vcmp.gt.s32.totalorder 0, %v9415
        %v9417 = vsel %vm9416, 0, %v9415
        %v9418 = vsub.s32 32, %v9417
        %v9419 = vshll.u32 %v9410, %v9417
        %v9420 = vshrl.u32 %v9402, %v9418
        %v9421 = vor.u32 %v9419, %v9420
        %v9422 = vsub.s32 4294967266, %v9417
        %v9423 = vadd.s32 %v9422, 127
        %v9424 = vshll.u32 %v9423, 23
        %v9425 = vor.u32 4788187, %v9424
        %v9426 = vand.u32 2147483647, %v9425
        %v9428 = vcvt.s32.f32 %v9421
        %v9429 = vmul.f32 %v9428, %v9426
        %v9430 = vxor.u32 %v9429, 2147483648
        %v9431 = vsel %vm9310, %v9430, %v9429
        %v9432 = vsub.s32 4, %v9408
        %v9433 = vsel %vm9310, %v9432, %v9408
        %v9434 = vsel %vm9309, %v5884, %v9431
        %v9435 = vsel %vm9309, 0, %v9433
        %v9436 = vmul.f32 %v9434, %v9434
        %v9437 = vmul.f32 %v9436, -0.001358992
        %v9438 = vadd.f32 %v9437, 0.041655596
        %v9439 = vmul.f32 %v9436, %v9438
        %v9440 = vadd.f32 %v9439, -0.4999988
        %v9441 = vmul.f32 %v9436, %v9440
        %v9442 = vadd.f32 1.0, %v9441
        %v9443 = vmul.f32 %v9434, %v9434
        %v9444 = vmul.f32 %v9443, -0.00019511016
        %v9445 = vadd.f32 %v9444, 0.008332121
        %v9446 = vmul.f32 %v9443, %v9445
        %v9447 = vadd.f32 %v9446, -0.16666654
        %v9448 = vmul.f32 %v9443, %v9447
        %v9449 = vadd.f32 %v9448, 1.0
        %v9450 = vmul.f32 %v9449, %v9434
        %vm9451 = vweird.f32 %v5884
        %v9452 = vadd.s32 %v9435, 3
        %v9453 = vand.u32 %v9452, 3
        %vm9454 = vcmp.lt.s32.totalorder %v9453, 2
        %vm9455 = vcmp.eq.s32.totalorder %v9453, 0
        %v9456 = vxor.u32 %v9450, 2147483648
        %v9457 = vsel %vm9455, %v9442, %v9456
        %vm9458 = vcmp.eq.s32.totalorder %v9453, 2
        %v9459 = vxor.u32 %v9442, 2147483648
        %v9460 = vsel %vm9458, %v9459, %v9450
        %v9461 = vsel %vm9454, %v9457, %v9460
        %v9462 = vsel %vm9451, nan, %v9461
        %v9463 = vand.u32 2147483647, %v5885
        %vm9464 = vcmp.le.f32.partialorder %v9463, 0.7853982
        %vm9465 = vcmp.lt.s32.totalorder %v5885, 0
        %v9466 = vand.u32 %v5885, 2139095040
        %v9467 = vshrl.u32 %v9466, 23
        %v9468 = vsub.s32 %v9467, 127
        %v9469 = vand.u32 2147483647, %v5885
        %v9470 = vand.u32 %v9469, 8388607
        %v9471 = vor.u32 %v9470, 8388608
        %v9472 = vsub.s32 0, %v9471
        %v9473 = vadd.s32 %v9468, 1
        %vm9474 = vcmp.gt.s32.totalorder %v9473, 0
        %v9475 = vsel %vm9474, %v9473, 0
        %v9476 = vshrl.u32 %v9475, 5
        %v9477 = vand.u32 %v9475, 31
        %v9478 = vsub.s32 32, %v9477
        %v9479 = vshrl.u32 683565275, %v9478
        %v9480 = vshll.u32 683565275, %v9477
        %v9481 = vshrl.u32 2475754826, %v9478
        %v9482 = vor.u32 %v9480, %v9481
        %v9483 = vshll.u32 2475754826, %v9477
        %v9484 = vshrl.u32 2131351028, %v9478
        %v9485 = vor.u32 %v9483, %v9484
        %v9486 = vshll.u32 2131351028, %v9477
        %v9487 = vshrl.u32 2102212464, %v9478
        %v9488 = vor.u32 %v9486, %v9487
        %v9489 = vshll.u32 2102212464, %v9477
        %v9490 = vshrl.u32 920167782, %v9478
        %v9491 = vor.u32 %v9489, %v9490
        %v9492 = vshll.u32 920167782, %v9477
        %v9493 = vshrl.u32 1326507024, %v9478
        %v9494 = vor.u32 %v9492, %v9493
        %vm9495 = vcmp.lt.s32.totalorder %v9476, 1
        %vm9496 = vcmp.lt.s32.totalorder %v9476, 2
        %vm9497 = vcmp.lt.s32.totalorder %v9476, 3
        %vm9498 = vcmp.lt.s32.totalorder %v9476, 4
        %v9499 = vsel %vm9495, %v9479, %v9482
        %v9500 = vsel %vm9498, %v9488, 2102212464
        %v9501 = vsel %vm9497, %v9485, %v9500
        %v9502 = vsel %vm9496, %v9499, %v9501
        %v9503 = vsel %vm9495, %v9482, %v9485
        %v9504 = vsel %vm9498, %v9491, 920167782
        %v9505 = vsel %vm9497, %v9488, %v9504
        %v9506 = vsel %vm9496, %v9503, %v9505
        %v9507 = vsel %vm9495, %v9485, %v9488
        %v9508 = vsel %vm9498, %v9494, 1326507024
        %v9509 = vsel %vm9497, %v9491, %v9508
        %v9510 = vsel %vm9496, %v9507, %v9509
        %v9511 = vshll.u32 %v9471, 8
        %v9512 = vand.u32 %v9511, 65535
        %v9513 = vshrl.u32 %v9511, 16
        %v9514 = vand.u32 %v9510, 65535
        %v9515 = vshrl.u32 %v9510, 16
        %v9516 = vmul.u32 %v9512, %v9514
        %v9517 = vmul.u32 %v9512, %v9515
        %v9518 = vmul.u32 %v9513, %v9514
        %v9519 = vmul.u32 %v9513, %v9515
        %v9520 = vshll.u32 %v9517, 16
        %v9521 = vshrl.u32 %v9517, 16
        %v9522 = vshll.u32 %v9518, 16
        %v9523 = vshrl.u32 %v9518, 16
        %vm9524 = vc.u32 %v9516, %v9520
        %v9525 = vsel %vm9524, 1, 0
        %v9526 = vadd.s32 %v9516, %v9520
        %v9527 = vadd.s32 %v9519, %v9525
        %vm9528 = vc.u32 %v9526, %v9522
        %v9529 = vsel %vm9528, 1, 0
        %v9530 = vadd.s32 %v9526, %v9522
        %v9531 = vadd.s32 %v9527, %v9529
        %v9532 = vadd.s32 %v9531, %v9521
        %v9533 = vadd.s32 %v9532, %v9523
        %v9534 = vand.u32 %v9511, 65535
        %v9535 = vshrl.u32 %v9511, 16
        %v9536 = vand.u32 %v9506, 65535
        %v9537 = vshrl.u32 %v9506, 16
        %v9538 = vmul.u32 %v9534, %v9536
        %v9539 = vmul.u32 %v9534, %v9537
        %v9540 = vmul.u32 %v9535, %v9536
        %v9541 = vmul.u32 %v9535, %v9537
        %v9542 = vshll.u32 %v9539, 16
        %v9543 = vshrl.u32 %v9539, 16
        %v9544 = vshll.u32 %v9540, 16
        %v9545 = vshrl.u32 %v9540, 16
        %vm9546 = vc.u32 %v9538, %v9542
        %v9547 = vsel %vm9546, 1, 0
        %v9548 = vadd.s32 %v9538, %v9542
        %v9549 = vadd.s32 %v9541, %v9547
        %vm9550 = vc.u32 %v9548, %v9544
        %v9551 = vsel %vm9550, 1, 0
        %v9552 = vadd.s32 %v9548, %v9544
        %v9553 = vadd.s32 %v9549, %v9551
        %v9554 = vadd.s32 %v9553, %v9543
        %v9555 = vadd.s32 %v9554, %v9545
        %v9556 = vmul.u32 %v9511, %v9502
        %v9557 = vadd.s32 %v9533, %v9552
        %vm9558 = vc.u32 %v9533, %v9552
        %v9559 = vadd.s32 %v9555, 1
        %v9560 = vsel %vm9558, %v9559, %v9555
        %v9561 = vadd.s32 %v9556, %v9560
        %v9562 = vadd.s32 %v9561, 536870912
        %v9563 = vshrl.u32 %v9562, 30
        %v9564 = vshll.u32 %v9563, 30
        %v9565 = vsub.s32 %v9561, %v9564
        %vm9566 = vcmp.lt.s32.totalorder %v9565, 0
        %v9567 = vsub.s32 0, %v9565
        %v9568 = vsel %vm9566, %v9567, %v9565
        %v9569 = vclz %v9568
        %v9570 = vsub.s32 %v9569, 2
        %vm9571 = vcmp.gt.s32.totalorder 0, %v9570
        %v9572 = vsel %vm9571, 0, %v9570
        %v9573 = vsub.s32 32, %v9572
        %v9574 = vshll.u32 %v9565, %v9572
        %v9575 = vshrl.u32 %v9557, %v9573
        %v9576 = vor.u32 %v9574, %v9575
        %v9577 = vsub.s32 4294967266, %v9572
        %v9578 = vadd.s32 %v9577, 127
        %v9579 = vshll.u32 %v9578, 23
        %v9580 = vor.u32 4788187, %v9579
        %v9581 = vand.u32 2147483647, %v9580
        %v9583 = vcvt.s32.f32 %v9576
        %v9584 = vmul.f32 %v9583, %v9581
        %v9585 = vxor.u32 %v9584, 2147483648
        %v9586 = vsel %vm9465, %v9585, %v9584
        %v9587 = vsub.s32 4, %v9563
        %v9588 = vsel %vm9465, %v9587, %v9563
        %v9589 = vsel %vm9464, %v5885, %v9586
        %v9590 = vsel %vm9464, 0, %v9588
        %v9591 = vmul.f32 %v9589, %v9589
        %v9592 = vmul.f32 %v9591, -0.001358992
        %v9593 = vadd.f32 %v9592, 0.041655596
        %v9594 = vmul.f32 %v9591, %v9593
        %v9595 = vadd.f32 %v9594, -0.4999988
        %v9596 = vmul.f32 %v9591, %v9595
        %v9597 = vadd.f32 1.0, %v9596
        %v9598 = vmul.f32 %v9589, %v9589
        %v9599 = vmul.f32 %v9598, -0.00019511016
        %v9600 = vadd.f32 %v9599, 0.008332121
        %v9601 = vmul.f32 %v9598, %v9600
        %v9602 = vadd.f32 %v9601, -0.16666654
        %v9603 = vmul.f32 %v9598, %v9602
        %v9604 = vadd.f32 %v9603, 1.0
        %v9605 = vmul.f32 %v9604, %v9589
        %vm9606 = vweird.f32 %v5885
        %v9607 = vadd.s32 %v9590, 3
        %v9608 = vand.u32 %v9607, 3
        %vm9609 = vcmp.lt.s32.totalorder %v9608, 2
        %vm9610 = vcmp.eq.s32.totalorder %v9608, 0
        %v9611 = vxor.u32 %v9605, 2147483648
        %v9612 = vsel %vm9610, %v9597, %v9611
        %vm9613 = vcmp.eq.s32.totalorder %v9608, 2
        %v9614 = vxor.u32 %v9597, 2147483648
        %v9615 = vsel %vm9613, %v9614, %v9605
        %v9616 = vsel %vm9609, %v9612, %v9615
        %v9617 = vsel %vm9606, nan, %v9616
        %v9618 = vand.u32 2147483647, %v5886
        %vm9619 = vcmp.le.f32.partialorder %v9618, 0.7853982
        %vm9620 = vcmp.lt.s32.totalorder %v5886, 0
        %v9621 = vand.u32 %v5886, 2139095040
        %v9622 = vshrl.u32 %v9621, 23
        %v9623 = vsub.s32 %v9622, 127
        %v9624 = vand.u32 2147483647, %v5886
        %v9625 = vand.u32 %v9624, 8388607
        %v9626 = vor.u32 %v9625, 8388608
        %v9627 = vsub.s32 0, %v9626
        %v9628 = vadd.s32 %v9623, 1
        %vm9629 = vcmp.gt.s32.totalorder %v9628, 0
        %v9630 = vsel %vm9629, %v9628, 0
        %v9631 = vshrl.u32 %v9630, 5
        %v9632 = vand.u32 %v9630, 31
        %v9633 = vsub.s32 32, %v9632
        %v9634 = vshrl.u32 683565275, %v9633
        %v9635 = vshll.u32 683565275, %v9632
        %v9636 = vshrl.u32 2475754826, %v9633
        %v9637 = vor.u32 %v9635, %v9636
        %v9638 = vshll.u32 2475754826, %v9632
        %v9639 = vshrl.u32 2131351028, %v9633
        %v9640 = vor.u32 %v9638, %v9639
        %v9641 = vshll.u32 2131351028, %v9632
        %v9642 = vshrl.u32 2102212464, %v9633
        %v9643 = vor.u32 %v9641, %v9642
        %v9644 = vshll.u32 2102212464, %v9632
        %v9645 = vshrl.u32 920167782, %v9633
        %v9646 = vor.u32 %v9644, %v9645
        %v9647 = vshll.u32 920167782, %v9632
        %v9648 = vshrl.u32 1326507024, %v9633
        %v9649 = vor.u32 %v9647, %v9648
        %vm9650 = vcmp.lt.s32.totalorder %v9631, 1
        %vm9651 = vcmp.lt.s32.totalorder %v9631, 2
        %vm9652 = vcmp.lt.s32.totalorder %v9631, 3
        %vm9653 = vcmp.lt.s32.totalorder %v9631, 4
        %v9654 = vsel %vm9650, %v9634, %v9637
        %v9655 = vsel %vm9653, %v9643, 2102212464
        %v9656 = vsel %vm9652, %v9640, %v9655
        %v9657 = vsel %vm9651, %v9654, %v9656
        %v9658 = vsel %vm9650, %v9637, %v9640
        %v9659 = vsel %vm9653, %v9646, 920167782
        %v9660 = vsel %vm9652, %v9643, %v9659
        %v9661 = vsel %vm9651, %v9658, %v9660
        %v9662 = vsel %vm9650, %v9640, %v9643
        %v9663 = vsel %vm9653, %v9649, 1326507024
        %v9664 = vsel %vm9652, %v9646, %v9663
        %v9665 = vsel %vm9651, %v9662, %v9664
        %v9666 = vshll.u32 %v9626, 8
        %v9667 = vand.u32 %v9666, 65535
        %v9668 = vshrl.u32 %v9666, 16
        %v9669 = vand.u32 %v9665, 65535
        %v9670 = vshrl.u32 %v9665, 16
        %v9671 = vmul.u32 %v9667, %v9669
        %v9672 = vmul.u32 %v9667, %v9670
        %v9673 = vmul.u32 %v9668, %v9669
        %v9674 = vmul.u32 %v9668, %v9670
        %v9675 = vshll.u32 %v9672, 16
        %v9676 = vshrl.u32 %v9672, 16
        %v9677 = vshll.u32 %v9673, 16
        %v9678 = vshrl.u32 %v9673, 16
        %vm9679 = vc.u32 %v9671, %v9675
        %v9680 = vsel %vm9679, 1, 0
        %v9681 = vadd.s32 %v9671, %v9675
        %v9682 = vadd.s32 %v9674, %v9680
        %vm9683 = vc.u32 %v9681, %v9677
        %v9684 = vsel %vm9683, 1, 0
        %v9685 = vadd.s32 %v9681, %v9677
        %v9686 = vadd.s32 %v9682, %v9684
        %v9687 = vadd.s32 %v9686, %v9676
        %v9688 = vadd.s32 %v9687, %v9678
        %v9689 = vand.u32 %v9666, 65535
        %v9690 = vshrl.u32 %v9666, 16
        %v9691 = vand.u32 %v9661, 65535
        %v9692 = vshrl.u32 %v9661, 16
        %v9693 = vmul.u32 %v9689, %v9691
        %v9694 = vmul.u32 %v9689, %v9692
        %v9695 = vmul.u32 %v9690, %v9691
        %v9696 = vmul.u32 %v9690, %v9692
        %v9697 = vshll.u32 %v9694, 16
        %v9698 = vshrl.u32 %v9694, 16
        %v9699 = vshll.u32 %v9695, 16
        %v9700 = vshrl.u32 %v9695, 16
        %vm9701 = vc.u32 %v9693, %v9697
        %v9702 = vsel %vm9701, 1, 0
        %v9703 = vadd.s32 %v9693, %v9697
        %v9704 = vadd.s32 %v9696, %v9702
        %vm9705 = vc.u32 %v9703, %v9699
        %v9706 = vsel %vm9705, 1, 0
        %v9707 = vadd.s32 %v9703, %v9699
        %v9708 = vadd.s32 %v9704, %v9706
        %v9709 = vadd.s32 %v9708, %v9698
        %v9710 = vadd.s32 %v9709, %v9700
        %v9711 = vmul.u32 %v9666, %v9657
        %v9712 = vadd.s32 %v9688, %v9707
        %vm9713 = vc.u32 %v9688, %v9707
        %v9714 = vadd.s32 %v9710, 1
        %v9715 = vsel %vm9713, %v9714, %v9710
        %v9716 = vadd.s32 %v9711, %v9715
        %v9717 = vadd.s32 %v9716, 536870912
        %v9718 = vshrl.u32 %v9717, 30
        %v9719 = vshll.u32 %v9718, 30
        %v9720 = vsub.s32 %v9716, %v9719
        %vm9721 = vcmp.lt.s32.totalorder %v9720, 0
        %v9722 = vsub.s32 0, %v9720
        %v9723 = vsel %vm9721, %v9722, %v9720
        %v9724 = vclz %v9723
        %v9725 = vsub.s32 %v9724, 2
        %vm9726 = vcmp.gt.s32.totalorder 0, %v9725
        %v9727 = vsel %vm9726, 0, %v9725
        %v9728 = vsub.s32 32, %v9727
        %v9729 = vshll.u32 %v9720, %v9727
        %v9730 = vshrl.u32 %v9712, %v9728
        %v9731 = vor.u32 %v9729, %v9730
        %v9732 = vsub.s32 4294967266, %v9727
        %v9733 = vadd.s32 %v9732, 127
        %v9734 = vshll.u32 %v9733, 23
        %v9735 = vor.u32 4788187, %v9734
        %v9736 = vand.u32 2147483647, %v9735
        %v9738 = vcvt.s32.f32 %v9731
        %v9739 = vmul.f32 %v9738, %v9736
        %v9740 = vxor.u32 %v9739, 2147483648
        %v9741 = vsel %vm9620, %v9740, %v9739
        %v9742 = vsub.s32 4, %v9718
        %v9743 = vsel %vm9620, %v9742, %v9718
        %v9744 = vsel %vm9619, %v5886, %v9741
        %v9745 = vsel %vm9619, 0, %v9743
        %v9746 = vmul.f32 %v9744, %v9744
        %v9747 = vmul.f32 %v9746, -0.001358992
        %v9748 = vadd.f32 %v9747, 0.041655596
        %v9749 = vmul.f32 %v9746, %v9748
        %v9750 = vadd.f32 %v9749, -0.4999988
        %v9751 = vmul.f32 %v9746, %v9750
        %v9752 = vadd.f32 1.0, %v9751
        %v9753 = vmul.f32 %v9744, %v9744
        %v9754 = vmul.f32 %v9753, -0.00019511016
        %v9755 = vadd.f32 %v9754, 0.008332121
        %v9756 = vmul.f32 %v9753, %v9755
        %v9757 = vadd.f32 %v9756, -0.16666654
        %v9758 = vmul.f32 %v9753, %v9757
        %v9759 = vadd.f32 %v9758, 1.0
        %v9760 = vmul.f32 %v9759, %v9744
        %vm9761 = vweird.f32 %v5886
        %v9762 = vadd.s32 %v9745, 3
        %v9763 = vand.u32 %v9762, 3
        %vm9764 = vcmp.lt.s32.totalorder %v9763, 2
        %vm9765 = vcmp.eq.s32.totalorder %v9763, 0
        %v9766 = vxor.u32 %v9760, 2147483648
        %v9767 = vsel %vm9765, %v9752, %v9766
        %vm9768 = vcmp.eq.s32.totalorder %v9763, 2
        %v9769 = vxor.u32 %v9752, 2147483648
        %v9770 = vsel %vm9768, %v9769, %v9760
        %v9771 = vsel %vm9764, %v9767, %v9770
        %v9772 = vsel %vm9761, nan, %v9771
        %v9773 = vand.u32 2147483647, %v5887
        %vm9774 = vcmp.le.f32.partialorder %v9773, 0.7853982
        %vm9775 = vcmp.lt.s32.totalorder %v5887, 0
        %v9776 = vand.u32 %v5887, 2139095040
        %v9777 = vshrl.u32 %v9776, 23
        %v9778 = vsub.s32 %v9777, 127
        %v9779 = vand.u32 2147483647, %v5887
        %v9780 = vand.u32 %v9779, 8388607
        %v9781 = vor.u32 %v9780, 8388608
        %v9782 = vsub.s32 0, %v9781
        %v9783 = vadd.s32 %v9778, 1
        %vm9784 = vcmp.gt.s32.totalorder %v9783, 0
        %v9785 = vsel %vm9784, %v9783, 0
        %v9786 = vshrl.u32 %v9785, 5
        %v9787 = vand.u32 %v9785, 31
        %v9788 = vsub.s32 32, %v9787
        %v9789 = vshrl.u32 683565275, %v9788
        %v9790 = vshll.u32 683565275, %v9787
        %v9791 = vshrl.u32 2475754826, %v9788
        %v9792 = vor.u32 %v9790, %v9791
        %v9793 = vshll.u32 2475754826, %v9787
        %v9794 = vshrl.u32 2131351028, %v9788
        %v9795 = vor.u32 %v9793, %v9794
        %v9796 = vshll.u32 2131351028, %v9787
        %v9797 = vshrl.u32 2102212464, %v9788
        %v9798 = vor.u32 %v9796, %v9797
        %v9799 = vshll.u32 2102212464, %v9787
        %v9800 = vshrl.u32 920167782, %v9788
        %v9801 = vor.u32 %v9799, %v9800
        %v9802 = vshll.u32 920167782, %v9787
        %v9803 = vshrl.u32 1326507024, %v9788
        %v9804 = vor.u32 %v9802, %v9803
        %vm9805 = vcmp.lt.s32.totalorder %v9786, 1
        %vm9806 = vcmp.lt.s32.totalorder %v9786, 2
        %vm9807 = vcmp.lt.s32.totalorder %v9786, 3
        %vm9808 = vcmp.lt.s32.totalorder %v9786, 4
        %v9809 = vsel %vm9805, %v9789, %v9792
        %v9810 = vsel %vm9808, %v9798, 2102212464
        %v9811 = vsel %vm9807, %v9795, %v9810
        %v9812 = vsel %vm9806, %v9809, %v9811
        %v9813 = vsel %vm9805, %v9792, %v9795
        %v9814 = vsel %vm9808, %v9801, 920167782
        %v9815 = vsel %vm9807, %v9798, %v9814
        %v9816 = vsel %vm9806, %v9813, %v9815
        %v9817 = vsel %vm9805, %v9795, %v9798
        %v9818 = vsel %vm9808, %v9804, 1326507024
        %v9819 = vsel %vm9807, %v9801, %v9818
        %v9820 = vsel %vm9806, %v9817, %v9819
        %v9821 = vshll.u32 %v9781, 8
        %v9822 = vand.u32 %v9821, 65535
        %v9823 = vshrl.u32 %v9821, 16
        %v9824 = vand.u32 %v9820, 65535
        %v9825 = vshrl.u32 %v9820, 16
        %v9826 = vmul.u32 %v9822, %v9824
        %v9827 = vmul.u32 %v9822, %v9825
        %v9828 = vmul.u32 %v9823, %v9824
        %v9829 = vmul.u32 %v9823, %v9825
        %v9830 = vshll.u32 %v9827, 16
        %v9831 = vshrl.u32 %v9827, 16
        %v9832 = vshll.u32 %v9828, 16
        %v9833 = vshrl.u32 %v9828, 16
        %vm9834 = vc.u32 %v9826, %v9830
        %v9835 = vsel %vm9834, 1, 0
        %v9836 = vadd.s32 %v9826, %v9830
        %v9837 = vadd.s32 %v9829, %v9835
        %vm9838 = vc.u32 %v9836, %v9832
        %v9839 = vsel %vm9838, 1, 0
        %v9840 = vadd.s32 %v9836, %v9832
        %v9841 = vadd.s32 %v9837, %v9839
        %v9842 = vadd.s32 %v9841, %v9831
        %v9843 = vadd.s32 %v9842, %v9833
        %v9844 = vand.u32 %v9821, 65535
        %v9845 = vshrl.u32 %v9821, 16
        %v9846 = vand.u32 %v9816, 65535
        %v9847 = vshrl.u32 %v9816, 16
        %v9848 = vmul.u32 %v9844, %v9846
        %v9849 = vmul.u32 %v9844, %v9847
        %v9850 = vmul.u32 %v9845, %v9846
        %v9851 = vmul.u32 %v9845, %v9847
        %v9852 = vshll.u32 %v9849, 16
        %v9853 = vshrl.u32 %v9849, 16
        %v9854 = vshll.u32 %v9850, 16
        %v9855 = vshrl.u32 %v9850, 16
        %vm9856 = vc.u32 %v9848, %v9852
        %v9857 = vsel %vm9856, 1, 0
        %v9858 = vadd.s32 %v9848, %v9852
        %v9859 = vadd.s32 %v9851, %v9857
        %vm9860 = vc.u32 %v9858, %v9854
        %v9861 = vsel %vm9860, 1, 0
        %v9862 = vadd.s32 %v9858, %v9854
        %v9863 = vadd.s32 %v9859, %v9861
        %v9864 = vadd.s32 %v9863, %v9853
        %v9865 = vadd.s32 %v9864, %v9855
        %v9866 = vmul.u32 %v9821, %v9812
        %v9867 = vadd.s32 %v9843, %v9862
        %vm9868 = vc.u32 %v9843, %v9862
        %v9869 = vadd.s32 %v9865, 1
        %v9870 = vsel %vm9868, %v9869, %v9865
        %v9871 = vadd.s32 %v9866, %v9870
        %v9872 = vadd.s32 %v9871, 536870912
        %v9873 = vshrl.u32 %v9872, 30
        %v9874 = vshll.u32 %v9873, 30
        %v9875 = vsub.s32 %v9871, %v9874
        %vm9876 = vcmp.lt.s32.totalorder %v9875, 0
        %v9877 = vsub.s32 0, %v9875
        %v9878 = vsel %vm9876, %v9877, %v9875
        %v9879 = vclz %v9878
        %v9880 = vsub.s32 %v9879, 2
        %vm9881 = vcmp.gt.s32.totalorder 0, %v9880
        %v9882 = vsel %vm9881, 0, %v9880
        %v9883 = vsub.s32 32, %v9882
        %v9884 = vshll.u32 %v9875, %v9882
        %v9885 = vshrl.u32 %v9867, %v9883
        %v9886 = vor.u32 %v9884, %v9885
        %v9887 = vsub.s32 4294967266, %v9882
        %v9888 = vadd.s32 %v9887, 127
        %v9889 = vshll.u32 %v9888, 23
        %v9890 = vor.u32 4788187, %v9889
        %v9891 = vand.u32 2147483647, %v9890
        %v9893 = vcvt.s32.f32 %v9886
        %v9894 = vmul.f32 %v9893, %v9891
        %v9895 = vxor.u32 %v9894, 2147483648
        %v9896 = vsel %vm9775, %v9895, %v9894
        %v9897 = vsub.s32 4, %v9873
        %v9898 = vsel %vm9775, %v9897, %v9873
        %v9899 = vsel %vm9774, %v5887, %v9896
        %v9900 = vsel %vm9774, 0, %v9898
        %v9901 = vmul.f32 %v9899, %v9899
        %v9902 = vmul.f32 %v9901, -0.001358992
        %v9903 = vadd.f32 %v9902, 0.041655596
        %v9904 = vmul.f32 %v9901, %v9903
        %v9905 = vadd.f32 %v9904, -0.4999988
        %v9906 = vmul.f32 %v9901, %v9905
        %v9907 = vadd.f32 1.0, %v9906
        %v9908 = vmul.f32 %v9899, %v9899
        %v9909 = vmul.f32 %v9908, -0.00019511016
        %v9910 = vadd.f32 %v9909, 0.008332121
        %v9911 = vmul.f32 %v9908, %v9910
        %v9912 = vadd.f32 %v9911, -0.16666654
        %v9913 = vmul.f32 %v9908, %v9912
        %v9914 = vadd.f32 %v9913, 1.0
        %v9915 = vmul.f32 %v9914, %v9899
        %vm9916 = vweird.f32 %v5887
        %v9917 = vadd.s32 %v9900, 3
        %v9918 = vand.u32 %v9917, 3
        %vm9919 = vcmp.lt.s32.totalorder %v9918, 2
        %vm9920 = vcmp.eq.s32.totalorder %v9918, 0
        %v9921 = vxor.u32 %v9915, 2147483648
        %v9922 = vsel %vm9920, %v9907, %v9921
        %vm9923 = vcmp.eq.s32.totalorder %v9918, 2
        %v9924 = vxor.u32 %v9907, 2147483648
        %v9925 = vsel %vm9923, %v9924, %v9915
        %v9926 = vsel %vm9919, %v9922, %v9925
        %v9927 = vsel %vm9916, nan, %v9926
        %v9928 = vand.u32 2147483647, %v5888
        %vm9929 = vcmp.le.f32.partialorder %v9928, 0.7853982
        %vm9930 = vcmp.lt.s32.totalorder %v5888, 0
        %v9931 = vand.u32 %v5888, 2139095040
        %v9932 = vshrl.u32 %v9931, 23
        %v9933 = vsub.s32 %v9932, 127
        %v9934 = vand.u32 2147483647, %v5888
        %v9935 = vand.u32 %v9934, 8388607
        %v9936 = vor.u32 %v9935, 8388608
        %v9937 = vsub.s32 0, %v9936
        %v9938 = vadd.s32 %v9933, 1
        %vm9939 = vcmp.gt.s32.totalorder %v9938, 0
        %v9940 = vsel %vm9939, %v9938, 0
        %v9941 = vshrl.u32 %v9940, 5
        %v9942 = vand.u32 %v9940, 31
        %v9943 = vsub.s32 32, %v9942
        %v9944 = vshrl.u32 683565275, %v9943
        %v9945 = vshll.u32 683565275, %v9942
        %v9946 = vshrl.u32 2475754826, %v9943
        %v9947 = vor.u32 %v9945, %v9946
        %v9948 = vshll.u32 2475754826, %v9942
        %v9949 = vshrl.u32 2131351028, %v9943
        %v9950 = vor.u32 %v9948, %v9949
        %v9951 = vshll.u32 2131351028, %v9942
        %v9952 = vshrl.u32 2102212464, %v9943
        %v9953 = vor.u32 %v9951, %v9952
        %v9954 = vshll.u32 2102212464, %v9942
        %v9955 = vshrl.u32 920167782, %v9943
        %v9956 = vor.u32 %v9954, %v9955
        %v9957 = vshll.u32 920167782, %v9942
        %v9958 = vshrl.u32 1326507024, %v9943
        %v9959 = vor.u32 %v9957, %v9958
        %vm9960 = vcmp.lt.s32.totalorder %v9941, 1
        %vm9961 = vcmp.lt.s32.totalorder %v9941, 2
        %vm9962 = vcmp.lt.s32.totalorder %v9941, 3
        %vm9963 = vcmp.lt.s32.totalorder %v9941, 4
        %v9964 = vsel %vm9960, %v9944, %v9947
        %v9965 = vsel %vm9963, %v9953, 2102212464
        %v9966 = vsel %vm9962, %v9950, %v9965
        %v9967 = vsel %vm9961, %v9964, %v9966
        %v9968 = vsel %vm9960, %v9947, %v9950
        %v9969 = vsel %vm9963, %v9956, 920167782
        %v9970 = vsel %vm9962, %v9953, %v9969
        %v9971 = vsel %vm9961, %v9968, %v9970
        %v9972 = vsel %vm9960, %v9950, %v9953
        %v9973 = vsel %vm9963, %v9959, 1326507024
        %v9974 = vsel %vm9962, %v9956, %v9973
        %v9975 = vsel %vm9961, %v9972, %v9974
        %v9976 = vshll.u32 %v9936, 8
        %v9977 = vand.u32 %v9976, 65535
        %v9978 = vshrl.u32 %v9976, 16
        %v9979 = vand.u32 %v9975, 65535
        %v9980 = vshrl.u32 %v9975, 16
        %v9981 = vmul.u32 %v9977, %v9979
        %v9982 = vmul.u32 %v9977, %v9980
        %v9983 = vmul.u32 %v9978, %v9979
        %v9984 = vmul.u32 %v9978, %v9980
        %v9985 = vshll.u32 %v9982, 16
        %v9986 = vshrl.u32 %v9982, 16
        %v9987 = vshll.u32 %v9983, 16
        %v9988 = vshrl.u32 %v9983, 16
        %vm9989 = vc.u32 %v9981, %v9985
        %v9990 = vsel %vm9989, 1, 0
        %v9991 = vadd.s32 %v9981, %v9985
        %v9992 = vadd.s32 %v9984, %v9990
        %vm9993 = vc.u32 %v9991, %v9987
        %v9994 = vsel %vm9993, 1, 0
        %v9995 = vadd.s32 %v9991, %v9987
        %v9996 = vadd.s32 %v9992, %v9994
        %v9997 = vadd.s32 %v9996, %v9986
        %v9998 = vadd.s32 %v9997, %v9988
        %v9999 = vand.u32 %v9976, 65535
        %v10000 = vshrl.u32 %v9976, 16
        %v10001 = vand.u32 %v9971, 65535
        %v10002 = vshrl.u32 %v9971, 16
        %v10003 = vmul.u32 %v9999, %v10001
        %v10004 = vmul.u32 %v9999, %v10002
        %v10005 = vmul.u32 %v10000, %v10001
        %v10006 = vmul.u32 %v10000, %v10002
        %v10007 = vshll.u32 %v10004, 16
        %v10008 = vshrl.u32 %v10004, 16
        %v10009 = vshll.u32 %v10005, 16
        %v10010 = vshrl.u32 %v10005, 16
        %vm10011 = vc.u32 %v10003, %v10007
        %v10012 = vsel %vm10011, 1, 0
        %v10013 = vadd.s32 %v10003, %v10007
        %v10014 = vadd.s32 %v10006, %v10012
        %vm10015 = vc.u32 %v10013, %v10009
        %v10016 = vsel %vm10015, 1, 0
        %v10017 = vadd.s32 %v10013, %v10009
        %v10018 = vadd.s32 %v10014, %v10016
        %v10019 = vadd.s32 %v10018, %v10008
        %v10020 = vadd.s32 %v10019, %v10010
        %v10021 = vmul.u32 %v9976, %v9967
        %v10022 = vadd.s32 %v9998, %v10017
        %vm10023 = vc.u32 %v9998, %v10017
        %v10024 = vadd.s32 %v10020, 1
        %v10025 = vsel %vm10023, %v10024, %v10020
        %v10026 = vadd.s32 %v10021, %v10025
        %v10027 = vadd.s32 %v10026, 536870912
        %v10028 = vshrl.u32 %v10027, 30
        %v10029 = vshll.u32 %v10028, 30
        %v10030 = vsub.s32 %v10026, %v10029
        %vm10031 = vcmp.lt.s32.totalorder %v10030, 0
        %v10032 = vsub.s32 0, %v10030
        %v10033 = vsel %vm10031, %v10032, %v10030
        %v10034 = vclz %v10033
        %v10035 = vsub.s32 %v10034, 2
        %vm10036 = vcmp.gt.s32.totalorder 0, %v10035
        %v10037 = vsel %vm10036, 0, %v10035
        %v10038 = vsub.s32 32, %v10037
        %v10039 = vshll.u32 %v10030, %v10037
        %v10040 = vshrl.u32 %v10022, %v10038
        %v10041 = vor.u32 %v10039, %v10040
        %v10042 = vsub.s32 4294967266, %v10037
        %v10043 = vadd.s32 %v10042, 127
        %v10044 = vshll.u32 %v10043, 23
        %v10045 = vor.u32 4788187, %v10044
        %v10046 = vand.u32 2147483647, %v10045
        %v10048 = vcvt.s32.f32 %v10041
        %v10049 = vmul.f32 %v10048, %v10046
        %v10050 = vxor.u32 %v10049, 2147483648
        %v10051 = vsel %vm9930, %v10050, %v10049
        %v10052 = vsub.s32 4, %v10028
        %v10053 = vsel %vm9930, %v10052, %v10028
        %v10054 = vsel %vm9929, %v5888, %v10051
        %v10055 = vsel %vm9929, 0, %v10053
        %v10056 = vmul.f32 %v10054, %v10054
        %v10057 = vmul.f32 %v10056, -0.001358992
        %v10058 = vadd.f32 %v10057, 0.041655596
        %v10059 = vmul.f32 %v10056, %v10058
        %v10060 = vadd.f32 %v10059, -0.4999988
        %v10061 = vmul.f32 %v10056, %v10060
        %v10062 = vadd.f32 1.0, %v10061
        %v10063 = vmul.f32 %v10054, %v10054
        %v10064 = vmul.f32 %v10063, -0.00019511016
        %v10065 = vadd.f32 %v10064, 0.008332121
        %v10066 = vmul.f32 %v10063, %v10065
        %v10067 = vadd.f32 %v10066, -0.16666654
        %v10068 = vmul.f32 %v10063, %v10067
        %v10069 = vadd.f32 %v10068, 1.0
        %v10070 = vmul.f32 %v10069, %v10054
        %vm10071 = vweird.f32 %v5888
        %v10072 = vadd.s32 %v10055, 3
        %v10073 = vand.u32 %v10072, 3
        %vm10074 = vcmp.lt.s32.totalorder %v10073, 2
        %vm10075 = vcmp.eq.s32.totalorder %v10073, 0
        %v10076 = vxor.u32 %v10070, 2147483648
        %v10077 = vsel %vm10075, %v10062, %v10076
        %vm10078 = vcmp.eq.s32.totalorder %v10073, 2
        %v10079 = vxor.u32 %v10062, 2147483648
        %v10080 = vsel %vm10078, %v10079, %v10070
        %v10081 = vsel %vm10074, %v10077, %v10080
        %v10082 = vsel %vm10071, nan, %v10081
        %v10083 = vand.u32 2147483647, %v5889
        %vm10084 = vcmp.le.f32.partialorder %v10083, 0.7853982
        %vm10085 = vcmp.lt.s32.totalorder %v5889, 0
        %v10086 = vand.u32 %v5889, 2139095040
        %v10087 = vshrl.u32 %v10086, 23
        %v10088 = vsub.s32 %v10087, 127
        %v10089 = vand.u32 2147483647, %v5889
        %v10090 = vand.u32 %v10089, 8388607
        %v10091 = vor.u32 %v10090, 8388608
        %v10092 = vsub.s32 0, %v10091
        %v10093 = vadd.s32 %v10088, 1
        %vm10094 = vcmp.gt.s32.totalorder %v10093, 0
        %v10095 = vsel %vm10094, %v10093, 0
        %v10096 = vshrl.u32 %v10095, 5
        %v10097 = vand.u32 %v10095, 31
        %v10098 = vsub.s32 32, %v10097
        %v10099 = vshrl.u32 683565275, %v10098
        %v10100 = vshll.u32 683565275, %v10097
        %v10101 = vshrl.u32 2475754826, %v10098
        %v10102 = vor.u32 %v10100, %v10101
        %v10103 = vshll.u32 2475754826, %v10097
        %v10104 = vshrl.u32 2131351028, %v10098
        %v10105 = vor.u32 %v10103, %v10104
        %v10106 = vshll.u32 2131351028, %v10097
        %v10107 = vshrl.u32 2102212464, %v10098
        %v10108 = vor.u32 %v10106, %v10107
        %v10109 = vshll.u32 2102212464, %v10097
        %v10110 = vshrl.u32 920167782, %v10098
        %v10111 = vor.u32 %v10109, %v10110
        %v10112 = vshll.u32 920167782, %v10097
        %v10113 = vshrl.u32 1326507024, %v10098
        %v10114 = vor.u32 %v10112, %v10113
        %vm10115 = vcmp.lt.s32.totalorder %v10096, 1
        %vm10116 = vcmp.lt.s32.totalorder %v10096, 2
        %vm10117 = vcmp.lt.s32.totalorder %v10096, 3
        %vm10118 = vcmp.lt.s32.totalorder %v10096, 4
        %v10119 = vsel %vm10115, %v10099, %v10102
        %v10120 = vsel %vm10118, %v10108, 2102212464
        %v10121 = vsel %vm10117, %v10105, %v10120
        %v10122 = vsel %vm10116, %v10119, %v10121
        %v10123 = vsel %vm10115, %v10102, %v10105
        %v10124 = vsel %vm10118, %v10111, 920167782
        %v10125 = vsel %vm10117, %v10108, %v10124
        %v10126 = vsel %vm10116, %v10123, %v10125
        %v10127 = vsel %vm10115, %v10105, %v10108
        %v10128 = vsel %vm10118, %v10114, 1326507024
        %v10129 = vsel %vm10117, %v10111, %v10128
        %v10130 = vsel %vm10116, %v10127, %v10129
        %v10131 = vshll.u32 %v10091, 8
        %v10132 = vand.u32 %v10131, 65535
        %v10133 = vshrl.u32 %v10131, 16
        %v10134 = vand.u32 %v10130, 65535
        %v10135 = vshrl.u32 %v10130, 16
        %v10136 = vmul.u32 %v10132, %v10134
        %v10137 = vmul.u32 %v10132, %v10135
        %v10138 = vmul.u32 %v10133, %v10134
        %v10139 = vmul.u32 %v10133, %v10135
        %v10140 = vshll.u32 %v10137, 16
        %v10141 = vshrl.u32 %v10137, 16
        %v10142 = vshll.u32 %v10138, 16
        %v10143 = vshrl.u32 %v10138, 16
        %vm10144 = vc.u32 %v10136, %v10140
        %v10145 = vsel %vm10144, 1, 0
        %v10146 = vadd.s32 %v10136, %v10140
        %v10147 = vadd.s32 %v10139, %v10145
        %vm10148 = vc.u32 %v10146, %v10142
        %v10149 = vsel %vm10148, 1, 0
        %v10150 = vadd.s32 %v10146, %v10142
        %v10151 = vadd.s32 %v10147, %v10149
        %v10152 = vadd.s32 %v10151, %v10141
        %v10153 = vadd.s32 %v10152, %v10143
        %v10154 = vand.u32 %v10131, 65535
        %v10155 = vshrl.u32 %v10131, 16
        %v10156 = vand.u32 %v10126, 65535
        %v10157 = vshrl.u32 %v10126, 16
        %v10158 = vmul.u32 %v10154, %v10156
        %v10159 = vmul.u32 %v10154, %v10157
        %v10160 = vmul.u32 %v10155, %v10156
        %v10161 = vmul.u32 %v10155, %v10157
        %v10162 = vshll.u32 %v10159, 16
        %v10163 = vshrl.u32 %v10159, 16
        %v10164 = vshll.u32 %v10160, 16
        %v10165 = vshrl.u32 %v10160, 16
        %vm10166 = vc.u32 %v10158, %v10162
        %v10167 = vsel %vm10166, 1, 0
        %v10168 = vadd.s32 %v10158, %v10162
        %v10169 = vadd.s32 %v10161, %v10167
        %vm10170 = vc.u32 %v10168, %v10164
        %v10171 = vsel %vm10170, 1, 0
        %v10172 = vadd.s32 %v10168, %v10164
        %v10173 = vadd.s32 %v10169, %v10171
        %v10174 = vadd.s32 %v10173, %v10163
        %v10175 = vadd.s32 %v10174, %v10165
        %v10176 = vmul.u32 %v10131, %v10122
        %v10177 = vadd.s32 %v10153, %v10172
        %vm10178 = vc.u32 %v10153, %v10172
        %v10179 = vadd.s32 %v10175, 1
        %v10180 = vsel %vm10178, %v10179, %v10175
        %v10181 = vadd.s32 %v10176, %v10180
        %v10182 = vadd.s32 %v10181, 536870912
        %v10183 = vshrl.u32 %v10182, 30
        %v10184 = vshll.u32 %v10183, 30
        %v10185 = vsub.s32 %v10181, %v10184
        %vm10186 = vcmp.lt.s32.totalorder %v10185, 0
        %v10187 = vsub.s32 0, %v10185
        %v10188 = vsel %vm10186, %v10187, %v10185
        %v10189 = vclz %v10188
        %v10190 = vsub.s32 %v10189, 2
        %vm10191 = vcmp.gt.s32.totalorder 0, %v10190
        %v10192 = vsel %vm10191, 0, %v10190
        %v10193 = vsub.s32 32, %v10192
        %v10194 = vshll.u32 %v10185, %v10192
        %v10195 = vshrl.u32 %v10177, %v10193
        %v10196 = vor.u32 %v10194, %v10195
        %v10197 = vsub.s32 4294967266, %v10192
        %v10198 = vadd.s32 %v10197, 127
        %v10199 = vshll.u32 %v10198, 23
        %v10200 = vor.u32 4788187, %v10199
        %v10201 = vand.u32 2147483647, %v10200
        %v10203 = vcvt.s32.f32 %v10196
        %v10204 = vmul.f32 %v10203, %v10201
        %v10205 = vxor.u32 %v10204, 2147483648
        %v10206 = vsel %vm10085, %v10205, %v10204
        %v10207 = vsub.s32 4, %v10183
        %v10208 = vsel %vm10085, %v10207, %v10183
        %v10209 = vsel %vm10084, %v5889, %v10206
        %v10210 = vsel %vm10084, 0, %v10208
        %v10211 = vmul.f32 %v10209, %v10209
        %v10212 = vmul.f32 %v10211, -0.001358992
        %v10213 = vadd.f32 %v10212, 0.041655596
        %v10214 = vmul.f32 %v10211, %v10213
        %v10215 = vadd.f32 %v10214, -0.4999988
        %v10216 = vmul.f32 %v10211, %v10215
        %v10217 = vadd.f32 1.0, %v10216
        %v10218 = vmul.f32 %v10209, %v10209
        %v10219 = vmul.f32 %v10218, -0.00019511016
        %v10220 = vadd.f32 %v10219, 0.008332121
        %v10221 = vmul.f32 %v10218, %v10220
        %v10222 = vadd.f32 %v10221, -0.16666654
        %v10223 = vmul.f32 %v10218, %v10222
        %v10224 = vadd.f32 %v10223, 1.0
        %v10225 = vmul.f32 %v10224, %v10209
        %vm10226 = vweird.f32 %v5889
        %v10227 = vadd.s32 %v10210, 3
        %v10228 = vand.u32 %v10227, 3
        %vm10229 = vcmp.lt.s32.totalorder %v10228, 2
        %vm10230 = vcmp.eq.s32.totalorder %v10228, 0
        %v10231 = vxor.u32 %v10225, 2147483648
        %v10232 = vsel %vm10230, %v10217, %v10231
        %vm10233 = vcmp.eq.s32.totalorder %v10228, 2
        %v10234 = vxor.u32 %v10217, 2147483648
        %v10235 = vsel %vm10233, %v10234, %v10225
        %v10236 = vsel %vm10229, %v10232, %v10235
        %v10237 = vsel %vm10226, nan, %v10236
        %v10238 = vand.u32 2147483647, %v5890
        %vm10239 = vcmp.le.f32.partialorder %v10238, 0.7853982
        %vm10240 = vcmp.lt.s32.totalorder %v5890, 0
        %v10241 = vand.u32 %v5890, 2139095040
        %v10242 = vshrl.u32 %v10241, 23
        %v10243 = vsub.s32 %v10242, 127
        %v10244 = vand.u32 2147483647, %v5890
        %v10245 = vand.u32 %v10244, 8388607
        %v10246 = vor.u32 %v10245, 8388608
        %v10247 = vsub.s32 0, %v10246
        %v10248 = vadd.s32 %v10243, 1
        %vm10249 = vcmp.gt.s32.totalorder %v10248, 0
        %v10250 = vsel %vm10249, %v10248, 0
        %v10251 = vshrl.u32 %v10250, 5
        %v10252 = vand.u32 %v10250, 31
        %v10253 = vsub.s32 32, %v10252
        %v10254 = vshrl.u32 683565275, %v10253
        %v10255 = vshll.u32 683565275, %v10252
        %v10256 = vshrl.u32 2475754826, %v10253
        %v10257 = vor.u32 %v10255, %v10256
        %v10258 = vshll.u32 2475754826, %v10252
        %v10259 = vshrl.u32 2131351028, %v10253
        %v10260 = vor.u32 %v10258, %v10259
        %v10261 = vshll.u32 2131351028, %v10252
        %v10262 = vshrl.u32 2102212464, %v10253
        %v10263 = vor.u32 %v10261, %v10262
        %v10264 = vshll.u32 2102212464, %v10252
        %v10265 = vshrl.u32 920167782, %v10253
        %v10266 = vor.u32 %v10264, %v10265
        %v10267 = vshll.u32 920167782, %v10252
        %v10268 = vshrl.u32 1326507024, %v10253
        %v10269 = vor.u32 %v10267, %v10268
        %vm10270 = vcmp.lt.s32.totalorder %v10251, 1
        %vm10271 = vcmp.lt.s32.totalorder %v10251, 2
        %vm10272 = vcmp.lt.s32.totalorder %v10251, 3
        %vm10273 = vcmp.lt.s32.totalorder %v10251, 4
        %v10274 = vsel %vm10270, %v10254, %v10257
        %v10275 = vsel %vm10273, %v10263, 2102212464
        %v10276 = vsel %vm10272, %v10260, %v10275
        %v10277 = vsel %vm10271, %v10274, %v10276
        %v10278 = vsel %vm10270, %v10257, %v10260
        %v10279 = vsel %vm10273, %v10266, 920167782
        %v10280 = vsel %vm10272, %v10263, %v10279
        %v10281 = vsel %vm10271, %v10278, %v10280
        %v10282 = vsel %vm10270, %v10260, %v10263
        %v10283 = vsel %vm10273, %v10269, 1326507024
        %v10284 = vsel %vm10272, %v10266, %v10283
        %v10285 = vsel %vm10271, %v10282, %v10284
        %v10286 = vshll.u32 %v10246, 8
        %v10287 = vand.u32 %v10286, 65535
        %v10288 = vshrl.u32 %v10286, 16
        %v10289 = vand.u32 %v10285, 65535
        %v10290 = vshrl.u32 %v10285, 16
        %v10291 = vmul.u32 %v10287, %v10289
        %v10292 = vmul.u32 %v10287, %v10290
        %v10293 = vmul.u32 %v10288, %v10289
        %v10294 = vmul.u32 %v10288, %v10290
        %v10295 = vshll.u32 %v10292, 16
        %v10296 = vshrl.u32 %v10292, 16
        %v10297 = vshll.u32 %v10293, 16
        %v10298 = vshrl.u32 %v10293, 16
        %vm10299 = vc.u32 %v10291, %v10295
        %v10300 = vsel %vm10299, 1, 0
        %v10301 = vadd.s32 %v10291, %v10295
        %v10302 = vadd.s32 %v10294, %v10300
        %vm10303 = vc.u32 %v10301, %v10297
        %v10304 = vsel %vm10303, 1, 0
        %v10305 = vadd.s32 %v10301, %v10297
        %v10306 = vadd.s32 %v10302, %v10304
        %v10307 = vadd.s32 %v10306, %v10296
        %v10308 = vadd.s32 %v10307, %v10298
        %v10309 = vand.u32 %v10286, 65535
        %v10310 = vshrl.u32 %v10286, 16
        %v10311 = vand.u32 %v10281, 65535
        %v10312 = vshrl.u32 %v10281, 16
        %v10313 = vmul.u32 %v10309, %v10311
        %v10314 = vmul.u32 %v10309, %v10312
        %v10315 = vmul.u32 %v10310, %v10311
        %v10316 = vmul.u32 %v10310, %v10312
        %v10317 = vshll.u32 %v10314, 16
        %v10318 = vshrl.u32 %v10314, 16
        %v10319 = vshll.u32 %v10315, 16
        %v10320 = vshrl.u32 %v10315, 16
        %vm10321 = vc.u32 %v10313, %v10317
        %v10322 = vsel %vm10321, 1, 0
        %v10323 = vadd.s32 %v10313, %v10317
        %v10324 = vadd.s32 %v10316, %v10322
        %vm10325 = vc.u32 %v10323, %v10319
        %v10326 = vsel %vm10325, 1, 0
        %v10327 = vadd.s32 %v10323, %v10319
        %v10328 = vadd.s32 %v10324, %v10326
        %v10329 = vadd.s32 %v10328, %v10318
        %v10330 = vadd.s32 %v10329, %v10320
        %v10331 = vmul.u32 %v10286, %v10277
        %v10332 = vadd.s32 %v10308, %v10327
        %vm10333 = vc.u32 %v10308, %v10327
        %v10334 = vadd.s32 %v10330, 1
        %v10335 = vsel %vm10333, %v10334, %v10330
        %v10336 = vadd.s32 %v10331, %v10335
        %v10337 = vadd.s32 %v10336, 536870912
        %v10338 = vshrl.u32 %v10337, 30
        %v10339 = vshll.u32 %v10338, 30
        %v10340 = vsub.s32 %v10336, %v10339
        %vm10341 = vcmp.lt.s32.totalorder %v10340, 0
        %v10342 = vsub.s32 0, %v10340
        %v10343 = vsel %vm10341, %v10342, %v10340
        %v10344 = vclz %v10343
        %v10345 = vsub.s32 %v10344, 2
        %vm10346 = vcmp.gt.s32.totalorder 0, %v10345
        %v10347 = vsel %vm10346, 0, %v10345
        %v10348 = vsub.s32 32, %v10347
        %v10349 = vshll.u32 %v10340, %v10347
        %v10350 = vshrl.u32 %v10332, %v10348
        %v10351 = vor.u32 %v10349, %v10350
        %v10352 = vsub.s32 4294967266, %v10347
        %v10353 = vadd.s32 %v10352, 127
        %v10354 = vshll.u32 %v10353, 23
        %v10355 = vor.u32 4788187, %v10354
        %v10356 = vand.u32 2147483647, %v10355
        %v10358 = vcvt.s32.f32 %v10351
        %v10359 = vmul.f32 %v10358, %v10356
        %v10360 = vxor.u32 %v10359, 2147483648
        %v10361 = vsel %vm10240, %v10360, %v10359
        %v10362 = vsub.s32 4, %v10338
        %v10363 = vsel %vm10240, %v10362, %v10338
        %v10364 = vsel %vm10239, %v5890, %v10361
        %v10365 = vsel %vm10239, 0, %v10363
        %v10366 = vmul.f32 %v10364, %v10364
        %v10367 = vmul.f32 %v10366, -0.001358992
        %v10368 = vadd.f32 %v10367, 0.041655596
        %v10369 = vmul.f32 %v10366, %v10368
        %v10370 = vadd.f32 %v10369, -0.4999988
        %v10371 = vmul.f32 %v10366, %v10370
        %v10372 = vadd.f32 1.0, %v10371
        %v10373 = vmul.f32 %v10364, %v10364
        %v10374 = vmul.f32 %v10373, -0.00019511016
        %v10375 = vadd.f32 %v10374, 0.008332121
        %v10376 = vmul.f32 %v10373, %v10375
        %v10377 = vadd.f32 %v10376, -0.16666654
        %v10378 = vmul.f32 %v10373, %v10377
        %v10379 = vadd.f32 %v10378, 1.0
        %v10380 = vmul.f32 %v10379, %v10364
        %vm10381 = vweird.f32 %v5890
        %v10382 = vadd.s32 %v10365, 3
        %v10383 = vand.u32 %v10382, 3
        %vm10384 = vcmp.lt.s32.totalorder %v10383, 2
        %vm10385 = vcmp.eq.s32.totalorder %v10383, 0
        %v10386 = vxor.u32 %v10380, 2147483648
        %v10387 = vsel %vm10385, %v10372, %v10386
        %vm10388 = vcmp.eq.s32.totalorder %v10383, 2
        %v10389 = vxor.u32 %v10372, 2147483648
        %v10390 = vsel %vm10388, %v10389, %v10380
        %v10391 = vsel %vm10384, %v10387, %v10390
        %v10392 = vsel %vm10381, nan, %v10391
        %v10393 = vand.u32 2147483647, %v5891
        %vm10394 = vcmp.le.f32.partialorder %v10393, 0.7853982
        %vm10395 = vcmp.lt.s32.totalorder %v5891, 0
        %v10396 = vand.u32 %v5891, 2139095040
        %v10397 = vshrl.u32 %v10396, 23
        %v10398 = vsub.s32 %v10397, 127
        %v10399 = vand.u32 2147483647, %v5891
        %v10400 = vand.u32 %v10399, 8388607
        %v10401 = vor.u32 %v10400, 8388608
        %v10402 = vsub.s32 0, %v10401
        %v10403 = vadd.s32 %v10398, 1
        %vm10404 = vcmp.gt.s32.totalorder %v10403, 0
        %v10405 = vsel %vm10404, %v10403, 0
        %v10406 = vshrl.u32 %v10405, 5
        %v10407 = vand.u32 %v10405, 31
        %v10408 = vsub.s32 32, %v10407
        %v10409 = vshrl.u32 683565275, %v10408
        %v10410 = vshll.u32 683565275, %v10407
        %v10411 = vshrl.u32 2475754826, %v10408
        %v10412 = vor.u32 %v10410, %v10411
        %v10413 = vshll.u32 2475754826, %v10407
        %v10414 = vshrl.u32 2131351028, %v10408
        %v10415 = vor.u32 %v10413, %v10414
        %v10416 = vshll.u32 2131351028, %v10407
        %v10417 = vshrl.u32 2102212464, %v10408
        %v10418 = vor.u32 %v10416, %v10417
        %v10419 = vshll.u32 2102212464, %v10407
        %v10420 = vshrl.u32 920167782, %v10408
        %v10421 = vor.u32 %v10419, %v10420
        %v10422 = vshll.u32 920167782, %v10407
        %v10423 = vshrl.u32 1326507024, %v10408
        %v10424 = vor.u32 %v10422, %v10423
        %vm10425 = vcmp.lt.s32.totalorder %v10406, 1
        %vm10426 = vcmp.lt.s32.totalorder %v10406, 2
        %vm10427 = vcmp.lt.s32.totalorder %v10406, 3
        %vm10428 = vcmp.lt.s32.totalorder %v10406, 4
        %v10429 = vsel %vm10425, %v10409, %v10412
        %v10430 = vsel %vm10428, %v10418, 2102212464
        %v10431 = vsel %vm10427, %v10415, %v10430
        %v10432 = vsel %vm10426, %v10429, %v10431
        %v10433 = vsel %vm10425, %v10412, %v10415
        %v10434 = vsel %vm10428, %v10421, 920167782
        %v10435 = vsel %vm10427, %v10418, %v10434
        %v10436 = vsel %vm10426, %v10433, %v10435
        %v10437 = vsel %vm10425, %v10415, %v10418
        %v10438 = vsel %vm10428, %v10424, 1326507024
        %v10439 = vsel %vm10427, %v10421, %v10438
        %v10440 = vsel %vm10426, %v10437, %v10439
        %v10441 = vshll.u32 %v10401, 8
        %v10442 = vand.u32 %v10441, 65535
        %v10443 = vshrl.u32 %v10441, 16
        %v10444 = vand.u32 %v10440, 65535
        %v10445 = vshrl.u32 %v10440, 16
        %v10446 = vmul.u32 %v10442, %v10444
        %v10447 = vmul.u32 %v10442, %v10445
        %v10448 = vmul.u32 %v10443, %v10444
        %v10449 = vmul.u32 %v10443, %v10445
        %v10450 = vshll.u32 %v10447, 16
        %v10451 = vshrl.u32 %v10447, 16
        %v10452 = vshll.u32 %v10448, 16
        %v10453 = vshrl.u32 %v10448, 16
        %vm10454 = vc.u32 %v10446, %v10450
        %v10455 = vsel %vm10454, 1, 0
        %v10456 = vadd.s32 %v10446, %v10450
        %v10457 = vadd.s32 %v10449, %v10455
        %vm10458 = vc.u32 %v10456, %v10452
        %v10459 = vsel %vm10458, 1, 0
        %v10460 = vadd.s32 %v10456, %v10452
        %v10461 = vadd.s32 %v10457, %v10459
        %v10462 = vadd.s32 %v10461, %v10451
        %v10463 = vadd.s32 %v10462, %v10453
        %v10464 = vand.u32 %v10441, 65535
        %v10465 = vshrl.u32 %v10441, 16
        %v10466 = vand.u32 %v10436, 65535
        %v10467 = vshrl.u32 %v10436, 16
        %v10468 = vmul.u32 %v10464, %v10466
        %v10469 = vmul.u32 %v10464, %v10467
        %v10470 = vmul.u32 %v10465, %v10466
        %v10471 = vmul.u32 %v10465, %v10467
        %v10472 = vshll.u32 %v10469, 16
        %v10473 = vshrl.u32 %v10469, 16
        %v10474 = vshll.u32 %v10470, 16
        %v10475 = vshrl.u32 %v10470, 16
        %vm10476 = vc.u32 %v10468, %v10472
        %v10477 = vsel %vm10476, 1, 0
        %v10478 = vadd.s32 %v10468, %v10472
        %v10479 = vadd.s32 %v10471, %v10477
        %vm10480 = vc.u32 %v10478, %v10474
        %v10481 = vsel %vm10480, 1, 0
        %v10482 = vadd.s32 %v10478, %v10474
        %v10483 = vadd.s32 %v10479, %v10481
        %v10484 = vadd.s32 %v10483, %v10473
        %v10485 = vadd.s32 %v10484, %v10475
        %v10486 = vmul.u32 %v10441, %v10432
        %v10487 = vadd.s32 %v10463, %v10482
        %vm10488 = vc.u32 %v10463, %v10482
        %v10489 = vadd.s32 %v10485, 1
        %v10490 = vsel %vm10488, %v10489, %v10485
        %v10491 = vadd.s32 %v10486, %v10490
        %v10492 = vadd.s32 %v10491, 536870912
        %v10493 = vshrl.u32 %v10492, 30
        %v10494 = vshll.u32 %v10493, 30
        %v10495 = vsub.s32 %v10491, %v10494
        %vm10496 = vcmp.lt.s32.totalorder %v10495, 0
        %v10497 = vsub.s32 0, %v10495
        %v10498 = vsel %vm10496, %v10497, %v10495
        %v10499 = vclz %v10498
        %v10500 = vsub.s32 %v10499, 2
        %vm10501 = vcmp.gt.s32.totalorder 0, %v10500
        %v10502 = vsel %vm10501, 0, %v10500
        %v10503 = vsub.s32 32, %v10502
        %v10504 = vshll.u32 %v10495, %v10502
        %v10505 = vshrl.u32 %v10487, %v10503
        %v10506 = vor.u32 %v10504, %v10505
        %v10507 = vsub.s32 4294967266, %v10502
        %v10508 = vadd.s32 %v10507, 127
        %v10509 = vshll.u32 %v10508, 23
        %v10510 = vor.u32 4788187, %v10509
        %v10511 = vand.u32 2147483647, %v10510
        %v10513 = vcvt.s32.f32 %v10506
        %v10514 = vmul.f32 %v10513, %v10511
        %v10515 = vxor.u32 %v10514, 2147483648
        %v10516 = vsel %vm10395, %v10515, %v10514
        %v10517 = vsub.s32 4, %v10493
        %v10518 = vsel %vm10395, %v10517, %v10493
        %v10519 = vsel %vm10394, %v5891, %v10516
        %v10520 = vsel %vm10394, 0, %v10518
        %v10521 = vmul.f32 %v10519, %v10519
        %v10522 = vmul.f32 %v10521, -0.001358992
        %v10523 = vadd.f32 %v10522, 0.041655596
        %v10524 = vmul.f32 %v10521, %v10523
        %v10525 = vadd.f32 %v10524, -0.4999988
        %v10526 = vmul.f32 %v10521, %v10525
        %v10527 = vadd.f32 1.0, %v10526
        %v10528 = vmul.f32 %v10519, %v10519
        %v10529 = vmul.f32 %v10528, -0.00019511016
        %v10530 = vadd.f32 %v10529, 0.008332121
        %v10531 = vmul.f32 %v10528, %v10530
        %v10532 = vadd.f32 %v10531, -0.16666654
        %v10533 = vmul.f32 %v10528, %v10532
        %v10534 = vadd.f32 %v10533, 1.0
        %v10535 = vmul.f32 %v10534, %v10519
        %vm10536 = vweird.f32 %v5891
        %v10537 = vadd.s32 %v10520, 3
        %v10538 = vand.u32 %v10537, 3
        %vm10539 = vcmp.lt.s32.totalorder %v10538, 2
        %vm10540 = vcmp.eq.s32.totalorder %v10538, 0
        %v10541 = vxor.u32 %v10535, 2147483648
        %v10542 = vsel %vm10540, %v10527, %v10541
        %vm10543 = vcmp.eq.s32.totalorder %v10538, 2
        %v10544 = vxor.u32 %v10527, 2147483648
        %v10545 = vsel %vm10543, %v10544, %v10535
        %v10546 = vsel %vm10539, %v10542, %v10545
        %v10547 = vsel %vm10536, nan, %v10546
        %v10548 = vand.u32 2147483647, %v5892
        %vm10549 = vcmp.le.f32.partialorder %v10548, 0.7853982
        %vm10550 = vcmp.lt.s32.totalorder %v5892, 0
        %v10551 = vand.u32 %v5892, 2139095040
        %v10552 = vshrl.u32 %v10551, 23
        %v10553 = vsub.s32 %v10552, 127
        %v10554 = vand.u32 2147483647, %v5892
        %v10555 = vand.u32 %v10554, 8388607
        %v10556 = vor.u32 %v10555, 8388608
        %v10557 = vsub.s32 0, %v10556
        %v10558 = vadd.s32 %v10553, 1
        %vm10559 = vcmp.gt.s32.totalorder %v10558, 0
        %v10560 = vsel %vm10559, %v10558, 0
        %v10561 = vshrl.u32 %v10560, 5
        %v10562 = vand.u32 %v10560, 31
        %v10563 = vsub.s32 32, %v10562
        %v10564 = vshrl.u32 683565275, %v10563
        %v10565 = vshll.u32 683565275, %v10562
        %v10566 = vshrl.u32 2475754826, %v10563
        %v10567 = vor.u32 %v10565, %v10566
        %v10568 = vshll.u32 2475754826, %v10562
        %v10569 = vshrl.u32 2131351028, %v10563
        %v10570 = vor.u32 %v10568, %v10569
        %v10571 = vshll.u32 2131351028, %v10562
        %v10572 = vshrl.u32 2102212464, %v10563
        %v10573 = vor.u32 %v10571, %v10572
        %v10574 = vshll.u32 2102212464, %v10562
        %v10575 = vshrl.u32 920167782, %v10563
        %v10576 = vor.u32 %v10574, %v10575
        %v10577 = vshll.u32 920167782, %v10562
        %v10578 = vshrl.u32 1326507024, %v10563
        %v10579 = vor.u32 %v10577, %v10578
        %vm10580 = vcmp.lt.s32.totalorder %v10561, 1
        %vm10581 = vcmp.lt.s32.totalorder %v10561, 2
        %vm10582 = vcmp.lt.s32.totalorder %v10561, 3
        %vm10583 = vcmp.lt.s32.totalorder %v10561, 4
        %v10584 = vsel %vm10580, %v10564, %v10567
        %v10585 = vsel %vm10583, %v10573, 2102212464
        %v10586 = vsel %vm10582, %v10570, %v10585
        %v10587 = vsel %vm10581, %v10584, %v10586
        %v10588 = vsel %vm10580, %v10567, %v10570
        %v10589 = vsel %vm10583, %v10576, 920167782
        %v10590 = vsel %vm10582, %v10573, %v10589
        %v10591 = vsel %vm10581, %v10588, %v10590
        %v10592 = vsel %vm10580, %v10570, %v10573
        %v10593 = vsel %vm10583, %v10579, 1326507024
        %v10594 = vsel %vm10582, %v10576, %v10593
        %v10595 = vsel %vm10581, %v10592, %v10594
        %v10596 = vshll.u32 %v10556, 8
        %v10597 = vand.u32 %v10596, 65535
        %v10598 = vshrl.u32 %v10596, 16
        %v10599 = vand.u32 %v10595, 65535
        %v10600 = vshrl.u32 %v10595, 16
        %v10601 = vmul.u32 %v10597, %v10599
        %v10602 = vmul.u32 %v10597, %v10600
        %v10603 = vmul.u32 %v10598, %v10599
        %v10604 = vmul.u32 %v10598, %v10600
        %v10605 = vshll.u32 %v10602, 16
        %v10606 = vshrl.u32 %v10602, 16
        %v10607 = vshll.u32 %v10603, 16
        %v10608 = vshrl.u32 %v10603, 16
        %vm10609 = vc.u32 %v10601, %v10605
        %v10610 = vsel %vm10609, 1, 0
        %v10611 = vadd.s32 %v10601, %v10605
        %v10612 = vadd.s32 %v10604, %v10610
        %vm10613 = vc.u32 %v10611, %v10607
        %v10614 = vsel %vm10613, 1, 0
        %v10615 = vadd.s32 %v10611, %v10607
        %v10616 = vadd.s32 %v10612, %v10614
        %v10617 = vadd.s32 %v10616, %v10606
        %v10618 = vadd.s32 %v10617, %v10608
        %v10619 = vand.u32 %v10596, 65535
        %v10620 = vshrl.u32 %v10596, 16
        %v10621 = vand.u32 %v10591, 65535
        %v10622 = vshrl.u32 %v10591, 16
        %v10623 = vmul.u32 %v10619, %v10621
        %v10624 = vmul.u32 %v10619, %v10622
        %v10625 = vmul.u32 %v10620, %v10621
        %v10626 = vmul.u32 %v10620, %v10622
        %v10627 = vshll.u32 %v10624, 16
        %v10628 = vshrl.u32 %v10624, 16
        %v10629 = vshll.u32 %v10625, 16
        %v10630 = vshrl.u32 %v10625, 16
        %vm10631 = vc.u32 %v10623, %v10627
        %v10632 = vsel %vm10631, 1, 0
        %v10633 = vadd.s32 %v10623, %v10627
        %v10634 = vadd.s32 %v10626, %v10632
        %vm10635 = vc.u32 %v10633, %v10629
        %v10636 = vsel %vm10635, 1, 0
        %v10637 = vadd.s32 %v10633, %v10629
        %v10638 = vadd.s32 %v10634, %v10636
        %v10639 = vadd.s32 %v10638, %v10628
        %v10640 = vadd.s32 %v10639, %v10630
        %v10641 = vmul.u32 %v10596, %v10587
        %v10642 = vadd.s32 %v10618, %v10637
        %vm10643 = vc.u32 %v10618, %v10637
        %v10644 = vadd.s32 %v10640, 1
        %v10645 = vsel %vm10643, %v10644, %v10640
        %v10646 = vadd.s32 %v10641, %v10645
        %v10647 = vadd.s32 %v10646, 536870912
        %v10648 = vshrl.u32 %v10647, 30
        %v10649 = vshll.u32 %v10648, 30
        %v10650 = vsub.s32 %v10646, %v10649
        %vm10651 = vcmp.lt.s32.totalorder %v10650, 0
        %v10652 = vsub.s32 0, %v10650
        %v10653 = vsel %vm10651, %v10652, %v10650
        %v10654 = vclz %v10653
        %v10655 = vsub.s32 %v10654, 2
        %vm10656 = vcmp.gt.s32.totalorder 0, %v10655
        %v10657 = vsel %vm10656, 0, %v10655
        %v10658 = vsub.s32 32, %v10657
        %v10659 = vshll.u32 %v10650, %v10657
        %v10660 = vshrl.u32 %v10642, %v10658
        %v10661 = vor.u32 %v10659, %v10660
        %v10662 = vsub.s32 4294967266, %v10657
        %v10663 = vadd.s32 %v10662, 127
        %v10664 = vshll.u32 %v10663, 23
        %v10665 = vor.u32 4788187, %v10664
        %v10666 = vand.u32 2147483647, %v10665
        %v10668 = vcvt.s32.f32 %v10661
        %v10669 = vmul.f32 %v10668, %v10666
        %v10670 = vxor.u32 %v10669, 2147483648
        %v10671 = vsel %vm10550, %v10670, %v10669
        %v10672 = vsub.s32 4, %v10648
        %v10673 = vsel %vm10550, %v10672, %v10648
        %v10674 = vsel %vm10549, %v5892, %v10671
        %v10675 = vsel %vm10549, 0, %v10673
        %v10676 = vmul.f32 %v10674, %v10674
        %v10677 = vmul.f32 %v10676, -0.001358992
        %v10678 = vadd.f32 %v10677, 0.041655596
        %v10679 = vmul.f32 %v10676, %v10678
        %v10680 = vadd.f32 %v10679, -0.4999988
        %v10681 = vmul.f32 %v10676, %v10680
        %v10682 = vadd.f32 1.0, %v10681
        %v10683 = vmul.f32 %v10674, %v10674
        %v10684 = vmul.f32 %v10683, -0.00019511016
        %v10685 = vadd.f32 %v10684, 0.008332121
        %v10686 = vmul.f32 %v10683, %v10685
        %v10687 = vadd.f32 %v10686, -0.16666654
        %v10688 = vmul.f32 %v10683, %v10687
        %v10689 = vadd.f32 %v10688, 1.0
        %v10690 = vmul.f32 %v10689, %v10674
        %vm10691 = vweird.f32 %v5892
        %v10692 = vadd.s32 %v10675, 3
        %v10693 = vand.u32 %v10692, 3
        %vm10694 = vcmp.lt.s32.totalorder %v10693, 2
        %vm10695 = vcmp.eq.s32.totalorder %v10693, 0
        %v10696 = vxor.u32 %v10690, 2147483648
        %v10697 = vsel %vm10695, %v10682, %v10696
        %vm10698 = vcmp.eq.s32.totalorder %v10693, 2
        %v10699 = vxor.u32 %v10682, 2147483648
        %v10700 = vsel %vm10698, %v10699, %v10690
        %v10701 = vsel %vm10694, %v10697, %v10700
        %v10702 = vsel %vm10691, nan, %v10701
        %v10703 = vand.u32 2147483647, %v5893
        %vm10704 = vcmp.le.f32.partialorder %v10703, 0.7853982
        %vm10705 = vcmp.lt.s32.totalorder %v5893, 0
        %v10706 = vand.u32 %v5893, 2139095040
        %v10707 = vshrl.u32 %v10706, 23
        %v10708 = vsub.s32 %v10707, 127
        %v10709 = vand.u32 2147483647, %v5893
        %v10710 = vand.u32 %v10709, 8388607
        %v10711 = vor.u32 %v10710, 8388608
        %v10712 = vsub.s32 0, %v10711
        %v10713 = vadd.s32 %v10708, 1
        %vm10714 = vcmp.gt.s32.totalorder %v10713, 0
        %v10715 = vsel %vm10714, %v10713, 0
        %v10716 = vshrl.u32 %v10715, 5
        %v10717 = vand.u32 %v10715, 31
        %v10718 = vsub.s32 32, %v10717
        %v10719 = vshrl.u32 683565275, %v10718
        %v10720 = vshll.u32 683565275, %v10717
        %v10721 = vshrl.u32 2475754826, %v10718
        %v10722 = vor.u32 %v10720, %v10721
        %v10723 = vshll.u32 2475754826, %v10717
        %v10724 = vshrl.u32 2131351028, %v10718
        %v10725 = vor.u32 %v10723, %v10724
        %v10726 = vshll.u32 2131351028, %v10717
        %v10727 = vshrl.u32 2102212464, %v10718
        %v10728 = vor.u32 %v10726, %v10727
        %v10729 = vshll.u32 2102212464, %v10717
        %v10730 = vshrl.u32 920167782, %v10718
        %v10731 = vor.u32 %v10729, %v10730
        %v10732 = vshll.u32 920167782, %v10717
        %v10733 = vshrl.u32 1326507024, %v10718
        %v10734 = vor.u32 %v10732, %v10733
        %vm10735 = vcmp.lt.s32.totalorder %v10716, 1
        %vm10736 = vcmp.lt.s32.totalorder %v10716, 2
        %vm10737 = vcmp.lt.s32.totalorder %v10716, 3
        %vm10738 = vcmp.lt.s32.totalorder %v10716, 4
        %v10739 = vsel %vm10735, %v10719, %v10722
        %v10740 = vsel %vm10738, %v10728, 2102212464
        %v10741 = vsel %vm10737, %v10725, %v10740
        %v10742 = vsel %vm10736, %v10739, %v10741
        %v10743 = vsel %vm10735, %v10722, %v10725
        %v10744 = vsel %vm10738, %v10731, 920167782
        %v10745 = vsel %vm10737, %v10728, %v10744
        %v10746 = vsel %vm10736, %v10743, %v10745
        %v10747 = vsel %vm10735, %v10725, %v10728
        %v10748 = vsel %vm10738, %v10734, 1326507024
        %v10749 = vsel %vm10737, %v10731, %v10748
        %v10750 = vsel %vm10736, %v10747, %v10749
        %v10751 = vshll.u32 %v10711, 8
        %v10752 = vand.u32 %v10751, 65535
        %v10753 = vshrl.u32 %v10751, 16
        %v10754 = vand.u32 %v10750, 65535
        %v10755 = vshrl.u32 %v10750, 16
        %v10756 = vmul.u32 %v10752, %v10754
        %v10757 = vmul.u32 %v10752, %v10755
        %v10758 = vmul.u32 %v10753, %v10754
        %v10759 = vmul.u32 %v10753, %v10755
        %v10760 = vshll.u32 %v10757, 16
        %v10761 = vshrl.u32 %v10757, 16
        %v10762 = vshll.u32 %v10758, 16
        %v10763 = vshrl.u32 %v10758, 16
        %vm10764 = vc.u32 %v10756, %v10760
        %v10765 = vsel %vm10764, 1, 0
        %v10766 = vadd.s32 %v10756, %v10760
        %v10767 = vadd.s32 %v10759, %v10765
        %vm10768 = vc.u32 %v10766, %v10762
        %v10769 = vsel %vm10768, 1, 0
        %v10770 = vadd.s32 %v10766, %v10762
        %v10771 = vadd.s32 %v10767, %v10769
        %v10772 = vadd.s32 %v10771, %v10761
        %v10773 = vadd.s32 %v10772, %v10763
        %v10774 = vand.u32 %v10751, 65535
        %v10775 = vshrl.u32 %v10751, 16
        %v10776 = vand.u32 %v10746, 65535
        %v10777 = vshrl.u32 %v10746, 16
        %v10778 = vmul.u32 %v10774, %v10776
        %v10779 = vmul.u32 %v10774, %v10777
        %v10780 = vmul.u32 %v10775, %v10776
        %v10781 = vmul.u32 %v10775, %v10777
        %v10782 = vshll.u32 %v10779, 16
        %v10783 = vshrl.u32 %v10779, 16
        %v10784 = vshll.u32 %v10780, 16
        %v10785 = vshrl.u32 %v10780, 16
        %vm10786 = vc.u32 %v10778, %v10782
        %v10787 = vsel %vm10786, 1, 0
        %v10788 = vadd.s32 %v10778, %v10782
        %v10789 = vadd.s32 %v10781, %v10787
        %vm10790 = vc.u32 %v10788, %v10784
        %v10791 = vsel %vm10790, 1, 0
        %v10792 = vadd.s32 %v10788, %v10784
        %v10793 = vadd.s32 %v10789, %v10791
        %v10794 = vadd.s32 %v10793, %v10783
        %v10795 = vadd.s32 %v10794, %v10785
        %v10796 = vmul.u32 %v10751, %v10742
        %v10797 = vadd.s32 %v10773, %v10792
        %vm10798 = vc.u32 %v10773, %v10792
        %v10799 = vadd.s32 %v10795, 1
        %v10800 = vsel %vm10798, %v10799, %v10795
        %v10801 = vadd.s32 %v10796, %v10800
        %v10802 = vadd.s32 %v10801, 536870912
        %v10803 = vshrl.u32 %v10802, 30
        %v10804 = vshll.u32 %v10803, 30
        %v10805 = vsub.s32 %v10801, %v10804
        %vm10806 = vcmp.lt.s32.totalorder %v10805, 0
        %v10807 = vsub.s32 0, %v10805
        %v10808 = vsel %vm10806, %v10807, %v10805
        %v10809 = vclz %v10808
        %v10810 = vsub.s32 %v10809, 2
        %vm10811 = vcmp.gt.s32.totalorder 0, %v10810
        %v10812 = vsel %vm10811, 0, %v10810
        %v10813 = vsub.s32 32, %v10812
        %v10814 = vshll.u32 %v10805, %v10812
        %v10815 = vshrl.u32 %v10797, %v10813
        %v10816 = vor.u32 %v10814, %v10815
        %v10817 = vsub.s32 4294967266, %v10812
        %v10818 = vadd.s32 %v10817, 127
        %v10819 = vshll.u32 %v10818, 23
        %v10820 = vor.u32 4788187, %v10819
        %v10821 = vand.u32 2147483647, %v10820
        %v10823 = vcvt.s32.f32 %v10816
        %v10824 = vmul.f32 %v10823, %v10821
        %v10825 = vxor.u32 %v10824, 2147483648
        %v10826 = vsel %vm10705, %v10825, %v10824
        %v10827 = vsub.s32 4, %v10803
        %v10828 = vsel %vm10705, %v10827, %v10803
        %v10829 = vsel %vm10704, %v5893, %v10826
        %v10830 = vsel %vm10704, 0, %v10828
        %v10831 = vmul.f32 %v10829, %v10829
        %v10832 = vmul.f32 %v10831, -0.001358992
        %v10833 = vadd.f32 %v10832, 0.041655596
        %v10834 = vmul.f32 %v10831, %v10833
        %v10835 = vadd.f32 %v10834, -0.4999988
        %v10836 = vmul.f32 %v10831, %v10835
        %v10837 = vadd.f32 1.0, %v10836
        %v10838 = vmul.f32 %v10829, %v10829
        %v10839 = vmul.f32 %v10838, -0.00019511016
        %v10840 = vadd.f32 %v10839, 0.008332121
        %v10841 = vmul.f32 %v10838, %v10840
        %v10842 = vadd.f32 %v10841, -0.16666654
        %v10843 = vmul.f32 %v10838, %v10842
        %v10844 = vadd.f32 %v10843, 1.0
        %v10845 = vmul.f32 %v10844, %v10829
        %vm10846 = vweird.f32 %v5893
        %v10847 = vadd.s32 %v10830, 3
        %v10848 = vand.u32 %v10847, 3
        %vm10849 = vcmp.lt.s32.totalorder %v10848, 2
        %vm10850 = vcmp.eq.s32.totalorder %v10848, 0
        %v10851 = vxor.u32 %v10845, 2147483648
        %v10852 = vsel %vm10850, %v10837, %v10851
        %vm10853 = vcmp.eq.s32.totalorder %v10848, 2
        %v10854 = vxor.u32 %v10837, 2147483648
        %v10855 = vsel %vm10853, %v10854, %v10845
        %v10856 = vsel %vm10849, %v10852, %v10855
        %v10857 = vsel %vm10846, nan, %v10856
        %v10858 = vld [vmem:[%s4] sm:$0xff]
        %v10860 = vsel %vm5658, %v10858, 0
        %10862 = vmatpush.msra.mxu0 0.0
        %10863 = vmatpush.msra.mxu0 0.0
        %10864 = vmatpush.msra.mxu0 0.0
        %10865 = vmatpush.msra.mxu0 0.0
        %10866 = vmatpush.msra.mxu0 0.0
        %10867 = vmatpush.msra.mxu0 0.0
        %10868 = vmatpush.msra.mxu0 0.0
        %10869 = vmatpush.msra.mxu0 0.0
        %10870 = vmatpush.msra.mxu0 %v10392
        %10871 = vmatpush.msra.mxu0 %v9772
        %10872 = vmatpush.msra.mxu0 %v9152
        %10873 = vmatpush.msra.mxu0 %v8532
        %10874 = vmatpush.msra.mxu0 %v7912
        %10875 = vmatpush.msra.mxu0 %v7292
        %10876 = vmatpush.msra.mxu0 %v6672
        %10877 = vmatpush.msra.mxu0 %v6052
        %10878 = vmatmul.f32.gmra.mxu0 %v10860
        %v10879 = vpop.f32.mrf.mxu0
        %v10880 = vadd.f32 0.0, %v10879
        %10881 = vdwg.mxu0
        %10882 = vmatpush.msra.mxu0 0.0
        %10883 = vmatpush.msra.mxu0 0.0
        %10884 = vmatpush.msra.mxu0 0.0
        %10885 = vmatpush.msra.mxu0 0.0
        %10886 = vmatpush.msra.mxu0 0.0
        %10887 = vmatpush.msra.mxu0 0.0
        %10888 = vmatpush.msra.mxu0 0.0
        %10889 = vmatpush.msra.mxu0 0.0
        %10890 = vmatpush.msra.mxu0 %v10547
        %10891 = vmatpush.msra.mxu0 %v9927
        %10892 = vmatpush.msra.mxu0 %v9307
        %10893 = vmatpush.msra.mxu0 %v8687
        %10894 = vmatpush.msra.mxu0 %v8067
        %10895 = vmatpush.msra.mxu0 %v7447
        %10896 = vmatpush.msra.mxu0 %v6827
        %10897 = vmatpush.msra.mxu0 %v6207
        %10898 = vmatmul.f32.gmra.mxu0 %v10860
        %v10899 = vpop.f32.mrf.mxu0
        %v10900 = vadd.f32 0.0, %v10899
        %10901 = vdwg.mxu0
        %10902 = vmatpush.msra.mxu0 0.0
        %10903 = vmatpush.msra.mxu0 0.0
        %10904 = vmatpush.msra.mxu0 0.0
        %10905 = vmatpush.msra.mxu0 0.0
        %10906 = vmatpush.msra.mxu0 0.0
        %10907 = vmatpush.msra.mxu0 0.0
        %10908 = vmatpush.msra.mxu0 0.0
        %10909 = vmatpush.msra.mxu0 0.0
        %10910 = vmatpush.msra.mxu0 %v10702
        %10911 = vmatpush.msra.mxu0 %v10082
        %10912 = vmatpush.msra.mxu0 %v9462
        %10913 = vmatpush.msra.mxu0 %v8842
        %10914 = vmatpush.msra.mxu0 %v8222
        %10915 = vmatpush.msra.mxu0 %v7602
        %10916 = vmatpush.msra.mxu0 %v6982
        %10917 = vmatpush.msra.mxu0 %v6362
        %10918 = vmatmul.f32.gmra.mxu0 %v10860
        %v10919 = vpop.f32.mrf.mxu0
        %v10920 = vadd.f32 0.0, %v10919
        %10921 = vdwg.mxu0
        %10922 = vmatpush.msra.mxu0 0.0
        %10923 = vmatpush.msra.mxu0 0.0
        %10924 = vmatpush.msra.mxu0 0.0
        %10925 = vmatpush.msra.mxu0 0.0
        %10926 = vmatpush.msra.mxu0 0.0
        %10927 = vmatpush.msra.mxu0 0.0
        %10928 = vmatpush.msra.mxu0 0.0
        %10929 = vmatpush.msra.mxu0 0.0
        %10930 = vmatpush.msra.mxu0 %v10857
        %10931 = vmatpush.msra.mxu0 %v10237
        %10932 = vmatpush.msra.mxu0 %v9617
        %10933 = vmatpush.msra.mxu0 %v8997
        %10934 = vmatpush.msra.mxu0 %v8377
        %10935 = vmatpush.msra.mxu0 %v7757
        %10936 = vmatpush.msra.mxu0 %v7137
        %10937 = vmatpush.msra.mxu0 %v6517
        %10938 = vmatmul.f32.gmra.mxu0 %v10860
        %v10939 = vpop.f32.mrf.mxu0
        %v10940 = vadd.f32 0.0, %v10939
        %10941 = vdwg.mxu0
        %v10942 = vadd.f32 %v5894, %v10880
        %v10943 = vadd.f32 %v5895, %v10900
        %v10944 = vadd.f32 %v5896, %v10920
        %v10945 = vadd.f32 %v5897, %v10940
        %10946 = vst [vmem:[%s218] sm:$0xff] %v10942
        %10947 = vst [vmem:[%s218 + $0x8] sm:$0xff] %v10943
        %10948 = vst [vmem:[%s218 + $0x10] sm:$0xff] %v10944
        %10949 = vst [vmem:[%s218 + $0x18] sm:$0xff] %v10945
        %s10950 = sand.u32 %s137, 1
        %s10951 = scalar_lea.sflag [#allocation3], %s10950
        %s10952 = sand.u32 %s137, 1
        %s10953 = smul.addr %s10952, 32
        %s10954 = scalar_lea.vmem [#allocation2], %s10953
        // Predicated region
        $region41: #{tpu_custom_call.1} parent=39 // pred_check
          %p10955 = pneg %p147
        $region42: #{tpu_custom_call.1} parent=39 // pred_check_branch
          %10957 = sbr.rel (%p10955) target = $region44
        $region43: #{tpu_custom_call.1} parent=39 // pred_region
          %s10958 = smul.u32 4, %s19
          %10960 = vsyncadd %s10951, 0
          %s10961 = smul.addr %s10958, 8
          %s10962 = scalar_lea.hbm %s5, %s10961
          %s10964 = sshll.u32 %s10954, 4
          %s10965 = int_to_ptr.vmem [resolvable:$true] %s10964
          %s10966 = sshll.u32 %s10962, 4
          %s10967 = int_to_ptr.hbm [resolvable:$true] %s10966
          %10969 = dma.vmem_to_hbm [thread:$0]  %s10965, 512, %s10967, %s10951
        $region44: #{tpu_custom_call.1} parent=39 // pred_fallthru
          _
      $region40: #{tpu_custom_call.1} parent=5 // pred_fallthru
        _
      %p10970 = scmp.le.s32.totalorder 2, %s14
      // Predicated region
      $region45: #{tpu_custom_call.1} parent=5 // pred_check
        %p10971 = pneg %p10970
      $region46: #{tpu_custom_call.1} parent=5 // pred_check_branch
        %10973 = sbr.rel (%p10971) target = $region48
      $region47: #{tpu_custom_call.1} parent=5 // pred_region
        %s10974 = ssub.s32 %s14, 2
        // Predicated region
        $region49: #{tpu_custom_call.1} parent=47 // pred_check
          %p10975 = pneg %p153
        $region50: #{tpu_custom_call.1} parent=47 // pred_check_branch
          %10977 = sbr.rel (%p10975) target = $region52
        $region51: #{tpu_custom_call.1} parent=47 // pred_region
          %s10978 = sand.u32 %s138, 1
          %s10979 = scalar_lea.sflag [#allocation3], %s10978
          %s10980 = sand.u32 %s138, 1
          %s10981 = smul.addr %s10980, 32
          %s10982 = scalar_lea.vmem [#allocation2], %s10981
          %10984 = dma.done %s10979, 512
        $region52: #{tpu_custom_call.1} parent=47 // pred_fallthru
          _
      $region48: #{tpu_custom_call.1} parent=5 // pred_fallthru
        _
    $region6: #{tpu_custom_call.1} parent=1 // loop_footer
      %s18 = sadd.s32 1, %s14
    $region7: #{tpu_custom_call.1} parent=1 // loop_footer_branch
      %13 = sbr.rel target = $region3
    $region8: #{tpu_custom_call.1} parent=1 // loop_exit
      _
    %10985 = vsyncpa [#allocation3], 1
    %s10986 = scalar_lea.sflag [#allocation3], 1
    %10987 = vsyncpa %s10986, 1

</llo_original>
